<compile_context>
chip_gen: v7x
topology: tpu7x:2x2x1
jax: 0.10.0
libtpu: 0.0.40
codegen_flags: <defaults>
</compile_context>

<pallas_src>
import functools

import numpy as np
import jax
import jax.numpy as jnp
from jax.experimental import pallas as pl
from jax.experimental.pallas import tpu as pltpu


def _round_up(x, m):
    return ((x + m - 1) // m) * m


# -----------------------------------------------------------------------------
# AutoNCP wiring construction (faithful re-implementation of ncps.wirings.AutoNCP
# / NCP graph build, done in numpy; produces per-layer sparsity masks).
# -----------------------------------------------------------------------------
def build_auto_ncp_wiring(units, output_size, input_dim,
                          sparsity_level=0.5, seed=22222):
    density = 1.0 - sparsity_level
    inter_and_command = units - output_size
    n_command = max(int(0.4 * inter_and_command), 1)
    n_inter = inter_and_command - n_command
    sensory_fanout = max(int(n_inter * density), 1)
    inter_fanout = max(int(n_command * density), 1)
    recurrent_command_synapses = max(int(n_command * density * 2), 1)
    motor_fanin = max(int(n_command * density), 1)

    rng = np.random.RandomState(seed)
    motor_ids = list(range(0, output_size))
    command_ids = list(range(output_size, output_size + n_command))
    inter_ids = list(range(output_size + n_command, units))
    sensory_ids = list(range(input_dim))

    adj = np.zeros((units, units), dtype=np.int32)
    sadj = np.zeros((input_dim, units), dtype=np.int32)

    # sensory -> inter
    unreachable = list(inter_ids)
    for src in sensory_ids:
        for dest in rng.choice(inter_ids, size=sensory_fanout, replace=False):
            if dest in unreachable:
                unreachable.remove(dest)
            sadj[src, dest] = rng.choice([-1, 1])
    mean_fanin = int(np.clip(int(input_dim * sensory_fanout / n_inter), 1, input_dim))
    for dest in unreachable:
        for src in rng.choice(sensory_ids, size=mean_fanin, replace=False):
            sadj[src, dest] = rng.choice([-1, 1])

    # inter -> command
    unreachable = list(command_ids)
    for src in inter_ids:
        for dest in rng.choice(command_ids, size=inter_fanout, replace=False):
            if dest in unreachable:
                unreachable.remove(dest)
            adj[src, dest] = rng.choice([-1, 1])
    mean_fanin = int(np.clip(int(n_inter * inter_fanout / n_command), 1, n_command))
    for dest in unreachable:
        for src in rng.choice(inter_ids, size=mean_fanin, replace=False):
            adj[src, dest] = rng.choice([-1, 1])

    # recurrent command -> command
    for _ in range(recurrent_command_synapses):
        src = rng.choice(command_ids)
        dest = rng.choice(command_ids)
        adj[src, dest] = rng.choice([-1, 1])

    # command -> motor
    unreachable = list(command_ids)
    for dest in motor_ids:
        for src in rng.choice(command_ids, size=motor_fanin, replace=False):
            if src in unreachable:
                unreachable.remove(src)
            adj[src, dest] = rng.choice([-1, 1])
    mean_fanout = int(np.clip(int(output_size * motor_fanin / n_command), 1, output_size))
    for src in unreachable:
        for dest in rng.choice(motor_ids, size=mean_fanout, replace=False):
            adj[src, dest] = rng.choice([-1, 1])

    # Per-layer sparsity masks, exactly like WiredCfCCell:
    #   mask_l = concat([input_sparsity, ones(hid, hid)], axis=0)  (abs taken)
    layer_neurons = [inter_ids, command_ids, motor_ids]
    masks = []
    for l, neurons in enumerate(layer_neurons):
        if l == 0:
            in_sp = sadj[:, neurons]
        else:
            prev = layer_neurons[l - 1]
            in_sp = adj[:, neurons][prev, :]
        mask = np.concatenate(
            [in_sp, np.ones((len(neurons), len(neurons)), dtype=np.int32)], axis=0)
        masks.append(np.abs(mask).astype(np.float32))  # (in_feat + hid, hid)
    layer_sizes = [len(inter_ids), len(command_ids), len(motor_ids)]
    return masks, layer_sizes


# -----------------------------------------------------------------------------
# Deterministic parameter init (synthetic; masks folded into ff1/ff2 weights).
# Gate order per layer: 0=ff1, 1=ff2, 2=time_a, 3=time_b (ncps CfCCell "default").
# -----------------------------------------------------------------------------
def init_params(key, input_dim, layer_sizes, masks, output_dim):
    layer_params = []
    in_feat = input_dim
    for hid, mask in zip(layer_sizes, masks):
        key, k1, k2 = jax.random.split(key, 3)
        lim = 1.0 / np.sqrt(in_feat + hid)
        W = jax.random.uniform(k1, (4, in_feat + hid, hid), jnp.float32, -lim, lim)
        b = jax.random.uniform(k2, (4, 1, hid), jnp.float32, -lim, lim)
        mask_j = jnp.asarray(mask)                       # (in_feat+hid, hid)
        gate_mask = jnp.stack(
            [mask_j, mask_j, jnp.ones_like(mask_j), jnp.ones_like(mask_j)], axis=0)
        W = W * gate_mask                                # ff1/ff2 are wiring-masked
        layer_params.append((W[:, :in_feat, :], W[:, in_feat:, :], b))
        in_feat = hid
    key, kw, kb = jax.random.split(key, 3)
    lim = 1.0 / np.sqrt(output_dim)
    Wfc = jax.random.uniform(kw, (output_dim, output_dim), jnp.float32, -lim, lim)
    bfc = jax.random.uniform(kb, (1, output_dim), jnp.float32, -lim, lim)
    return layer_params, Wfc, bfc


# -----------------------------------------------------------------------------
# Pallas kernel: the ENTIRE sequence is processed in one invocation.
#   refs layout: x_ref, [Wx_l, Wh_l, b_l] * num_layers, Wfc, bfc, out_ref
#   Per layer, the 4 gates are fused along the output axis with a 128-lane
#   stride G, so z[:, g*G : g*G+hid] is gate g (aligned static slices).
# -----------------------------------------------------------------------------
def ncp_kernel(x_ref, *refs, layer_sizes, gate_stride):
    nl = len(layer_sizes)
    wrefs = refs[:3 * nl]
    wfc_ref = refs[3 * nl]
    bfc_ref = refs[3 * nl + 1]
    out_ref = refs[3 * nl + 2]

    S = x_ref.shape[0]
    B = x_ref.shape[1]
    G = gate_stride

    # Hoist the (tiny) weights out of the time loop: load each once.
    Ws = [(wrefs[3 * l][...], wrefs[3 * l + 1][...], wrefs[3 * l + 2][...])
          for l in range(nl)]
    Wfc = wfc_ref[...]
    bfc = bfc_ref[...]

    # Hidden states live in registers as loop-carried values (B x hid each).
    hs = [jnp.zeros((B, n), jnp.float32) for n in layer_sizes]

    # Time recurrence, fully unrolled at trace time (S is small and static).
    for t in range(S):
        inp = x_ref[t]                                    # (B, Din) / (B, hid_prev)
        for l in range(nl):
            hid = layer_sizes[l]
            Wx, Wh, b = Ws[l]
            # All 4 gates in one lane-dense (B, 4*G) result: 2 MXU dots/layer.
            z = (jnp.dot(inp, Wx, preferred_element_type=jnp.float32)
                 + jnp.dot(hs[l], Wh, preferred_element_type=jnp.float32)
                 + b)
            ff1 = jnp.tanh(z[:, 0 * G:0 * G + hid])
            ff2 = jnp.tanh(z[:, 1 * G:1 * G + hid])
            # CfC time gate with ts == 1.0 (timespans=None): sigmoid(ta + tb)
            t_interp = jax.nn.sigmoid(z[:, 2 * G:2 * G + hid] + z[:, 3 * G:3 * G + hid])
            h_new = ff1 + t_interp * (ff2 - ff1)
            hs[l] = h_new
            inp = h_new                                   # feeds next wired layer
        # Final fc on the motor-layer output; columns padded to 128 lanes so the
        # store (and the single output write-back DMA) is lane-dense.
        out_ref[t] = jnp.dot(inp, Wfc, preferred_element_type=jnp.float32) + bfc


def ncp_forward_pallas(x, layer_params, Wfc, bfc, layer_sizes):
    B, S, Din = x.shape
    Dout = Wfc.shape[1]
    Dout_pad = _round_up(Dout, 128)
    G = _round_up(max(layer_sizes), 128)          # per-gate column stride (aligned)

    x_t = jnp.transpose(x, (1, 0, 2))             # (S, B, Din): time-major

    # Build fused, lane-aligned weights (wrapper-side XLA ops, outside kernel).
    flat_weights = []
    for (Win, Wh, b), hid in zip(layer_params, layer_sizes):
        in_feat = Win.shape[1]
        Wx_f = jnp.zeros((in_feat, 4 * G), jnp.float32)
        Wh_f = jnp.zeros((hid, 4 * G), jnp.float32)
        b_f = jnp.zeros((1, 4 * G), jnp.float32)
        for g in range(4):
            Wx_f = Wx_f.at[:, g * G:g * G + hid].set(Win[g])
            Wh_f = Wh_f.at[:, g * G:g * G + hid].set(Wh[g])
            b_f = b_f.at[:, g * G:g * G + hid].set(b[g])
        flat_weights += [Wx_f, Wh_f, b_f]

    Wfc_p = jnp.zeros((Wfc.shape[0], Dout_pad), jnp.float32).at[:, :Dout].set(Wfc)
    bfc_p = jnp.zeros((1, Dout_pad), jnp.float32).at[:, :Dout].set(bfc)
    flat_weights += [Wfc_p, bfc_p]

    kernel = functools.partial(
        ncp_kernel,
        layer_sizes=tuple(int(n) for n in layer_sizes),
        gate_stride=int(G))

    in_specs = [pl.BlockSpec((S, B, Din), lambda i: (0, 0, 0))]
    for w in flat_weights:
        in_specs.append(pl.BlockSpec(w.shape, lambda i, nd=w.ndim: (0,) * nd))
    out_spec = pl.BlockSpec((S, B, Dout_pad), lambda i: (0, 0, 0))

    out = pl.pallas_call(
        kernel,
        out_shape=jax.ShapeDtypeStruct((S, B, Dout_pad), jnp.float32),
        grid_spec=pltpu.PrefetchScalarGridSpec(
            num_scalar_prefetch=0,
            grid=(1,),                            # single invocation; loop is internal
            in_specs=in_specs,
            out_specs=out_spec),
        compiler_params=pltpu.CompilerParams(
            dimension_semantics=("arbitrary",)),  # recurrence is inherently serial
    )(x_t, *flat_weights)

    # (S, B, Dout_pad) -> (B, S, Dout), dropping lane padding.
    return jnp.transpose(out, (1, 0, 2))[:, :, :Dout]


# -----------------------------------------------------------------------------
# Pure-JAX reference (unfused per-gate math) for correctness check.
# -----------------------------------------------------------------------------
def reference_forward(x, layer_params, Wfc, bfc, layer_sizes):
    B = x.shape[0]

    def cfc_layer(inp, h, Win, Wh, b):
        def lin(g):
            return inp @ Win[g] + h @ Wh[g] + b[g]
        ff1 = jnp.tanh(lin(0))
        ff2 = jnp.tanh(lin(1))
        ti = jax.nn.sigmoid(lin(2) + lin(3))
        return ff1 * (1.0 - ti) + ti * ff2

    def step(carry, x_t):
        hs = list(carry)
        inp = x_t
        new_hs = []
        for l, (Win, Wh, b) in enumerate(layer_params):
            inp = cfc_layer(inp, hs[l], Win, Wh, b)
            new_hs.append(inp)
        return tuple(new_hs), inp @ Wfc + bfc

    init = tuple(jnp.zeros((B, n), jnp.float32) for n in layer_sizes)
    _, outs = jax.lax.scan(step, init, jnp.transpose(x, (1, 0, 2)))
    return jnp.transpose(outs, (1, 0, 2))


if __name__ == "__main__":
    # Small shapes consistent with NCPModel(input_dim, hidden_dim, output_dim)
    input_dim, hidden_dim, output_dim = 4, 32, 8
    batch, seq = 2, 8

    masks, layer_sizes = build_auto_ncp_wiring(hidden_dim, output_dim, input_dim)

    key = jax.random.PRNGKey(0)
    kx, kp = jax.random.split(key)
    x = jax.random.normal(kx, (batch, seq, input_dim), jnp.float32)
    layer_params, Wfc, bfc = init_params(kp, input_dim, layer_sizes, masks, output_dim)

    out = ncp_forward_pallas(x, layer_params, Wfc, bfc, layer_sizes)
    out = jax.block_until_ready(out)

    ref = reference_forward(x, layer_params, Wfc, bfc, layer_sizes)
    np.testing.assert_allclose(np.asarray(out), np.asarray(ref),
                               rtol=1e-4, atol=1e-4)
    print("KERNEL_OK")
</pallas_src>

<mosaic_0001>
module attributes {stable_mosaic.version = 11 : i64} {
  func.func @ncp_kernel(%arg0: i32, %arg1: memref<8x2x4xf32, #tpu.memory_space<vmem>>, %arg2: memref<4x512xf32, #tpu.memory_space<vmem>>, %arg3: memref<15x512xf32, #tpu.memory_space<vmem>>, %arg4: memref<1x512xf32, #tpu.memory_space<vmem>>, %arg5: memref<15x512xf32, #tpu.memory_space<vmem>>, %arg6: memref<9x512xf32, #tpu.memory_space<vmem>>, %arg7: memref<1x512xf32, #tpu.memory_space<vmem>>, %arg8: memref<9x512xf32, #tpu.memory_space<vmem>>, %arg9: memref<8x512xf32, #tpu.memory_space<vmem>>, %arg10: memref<1x512xf32, #tpu.memory_space<vmem>>, %arg11: memref<8x128xf32, #tpu.memory_space<vmem>>, %arg12: memref<1x128xf32, #tpu.memory_space<vmem>>, %arg13: memref<8x2x128xf32, #tpu.memory_space<vmem>>) attributes {dimension_semantics = [#tpu.dimension_semantics<arbitrary>], iteration_bounds = array<i64: 1>, scalar_prefetch = 0 : i64, scratch_operands = 0 : i64, tpu.core_type = #tpu.core_type<tc>, window_params = [{pipeline_mode = #tpu.pipeline_mode<synchronous>, transform_indices = @transform_0, window_bounds = array<i64: 8, 2, 4>}, {pipeline_mode = #tpu.pipeline_mode<synchronous>, transform_indices = @transform_1, window_bounds = array<i64: 4, 512>}, {pipeline_mode = #tpu.pipeline_mode<synchronous>, transform_indices = @transform_2, window_bounds = array<i64: 15, 512>}, {pipeline_mode = #tpu.pipeline_mode<synchronous>, transform_indices = @transform_3, window_bounds = array<i64: 1, 512>}, {pipeline_mode = #tpu.pipeline_mode<synchronous>, transform_indices = @transform_4, window_bounds = array<i64: 15, 512>}, {pipeline_mode = #tpu.pipeline_mode<synchronous>, transform_indices = @transform_5, window_bounds = array<i64: 9, 512>}, {pipeline_mode = #tpu.pipeline_mode<synchronous>, transform_indices = @transform_6, window_bounds = array<i64: 1, 512>}, {pipeline_mode = #tpu.pipeline_mode<synchronous>, transform_indices = @transform_7, window_bounds = array<i64: 9, 512>}, {pipeline_mode = #tpu.pipeline_mode<synchronous>, transform_indices = @transform_8, window_bounds = array<i64: 8, 512>}, {pipeline_mode = #tpu.pipeline_mode<synchronous>, transform_indices = @transform_9, window_bounds = array<i64: 1, 512>}, {pipeline_mode = #tpu.pipeline_mode<synchronous>, transform_indices = @transform_10, window_bounds = array<i64: 8, 128>}, {pipeline_mode = #tpu.pipeline_mode<synchronous>, transform_indices = @transform_11, window_bounds = array<i64: 1, 128>}, {pipeline_mode = #tpu.pipeline_mode<synchronous>, transform_indices = @transform_12, window_bounds = array<i64: 8, 2, 128>}]} {
    %c0 = arith.constant 0 : index
    %c0_0 = arith.constant 0 : index
    %0 = vector.load %arg2[%c0, %c0_0] : memref<4x512xf32, #tpu.memory_space<vmem>>, vector<4x512xf32>
    %c0_1 = arith.constant 0 : index
    %c0_2 = arith.constant 0 : index
    %1 = vector.load %arg3[%c0_1, %c0_2] : memref<15x512xf32, #tpu.memory_space<vmem>>, vector<15x512xf32>
    %c0_3 = arith.constant 0 : index
    %c0_4 = arith.constant 0 : index
    %2 = vector.load %arg4[%c0_3, %c0_4] : memref<1x512xf32, #tpu.memory_space<vmem>>, vector<1x512xf32>
    %c0_5 = arith.constant 0 : index
    %c0_6 = arith.constant 0 : index
    %3 = vector.load %arg5[%c0_5, %c0_6] : memref<15x512xf32, #tpu.memory_space<vmem>>, vector<15x512xf32>
    %c0_7 = arith.constant 0 : index
    %c0_8 = arith.constant 0 : index
    %4 = vector.load %arg6[%c0_7, %c0_8] : memref<9x512xf32, #tpu.memory_space<vmem>>, vector<9x512xf32>
    %c0_9 = arith.constant 0 : index
    %c0_10 = arith.constant 0 : index
    %5 = vector.load %arg7[%c0_9, %c0_10] : memref<1x512xf32, #tpu.memory_space<vmem>>, vector<1x512xf32>
    %c0_11 = arith.constant 0 : index
    %c0_12 = arith.constant 0 : index
    %6 = vector.load %arg8[%c0_11, %c0_12] : memref<9x512xf32, #tpu.memory_space<vmem>>, vector<9x512xf32>
    %c0_13 = arith.constant 0 : index
    %c0_14 = arith.constant 0 : index
    %7 = vector.load %arg9[%c0_13, %c0_14] : memref<8x512xf32, #tpu.memory_space<vmem>>, vector<8x512xf32>
    %c0_15 = arith.constant 0 : index
    %c0_16 = arith.constant 0 : index
    %8 = vector.load %arg10[%c0_15, %c0_16] : memref<1x512xf32, #tpu.memory_space<vmem>>, vector<1x512xf32>
    %c0_17 = arith.constant 0 : index
    %c0_18 = arith.constant 0 : index
    %9 = vector.load %arg11[%c0_17, %c0_18] : memref<8x128xf32, #tpu.memory_space<vmem>>, vector<8x128xf32>
    %c0_19 = arith.constant 0 : index
    %c0_20 = arith.constant 0 : index
    %10 = vector.load %arg12[%c0_19, %c0_20] : memref<1x128xf32, #tpu.memory_space<vmem>>, vector<1x128xf32>
    %cst = arith.constant 0.000000e+00 : f32
    %11 = vector.broadcast %cst : f32 to vector<2x15xf32>
    %cst_21 = arith.constant 0.000000e+00 : f32
    %12 = vector.broadcast %cst_21 : f32 to vector<2x9xf32>
    %cst_22 = arith.constant 0.000000e+00 : f32
    %13 = vector.broadcast %cst_22 : f32 to vector<2x8xf32>
    %c0_23 = arith.constant 0 : index
    %c0_24 = arith.constant 0 : index
    %c0_25 = arith.constant 0 : index
    %14 = vector.load %arg1[%c0_23, %c0_24, %c0_25] : memref<8x2x4xf32, #tpu.memory_space<vmem>>, vector<1x2x4xf32>
    %15 = vector.shape_cast %14 : vector<1x2x4xf32> to vector<2x4xf32>
    %cst_26 = arith.constant dense<0.000000e+00> : vector<2x512xf32>
    %16 = tpu.matmul %15, %0, %cst_26 {dimension_numbers = #tpu.dot_dimension_numbers<[1], [0], [0], [1], [0, 0, 1, 1], [], []>} : vector<2x4xf32>, vector<4x512xf32>, vector<2x512xf32> -> vector<2x512xf32>
    %cst_27 = arith.constant dense<0.000000e+00> : vector<2x512xf32>
    %17 = tpu.matmul %11, %1, %cst_27 {dimension_numbers = #tpu.dot_dimension_numbers<[1], [0], [0], [1], [0, 0, 1, 1], [], []>} : vector<2x15xf32>, vector<15x512xf32>, vector<2x512xf32> -> vector<2x512xf32>
    %18 = arith.addf %16, %17 : vector<2x512xf32>
    %19 = vector.broadcast %2 : vector<1x512xf32> to vector<2x512xf32>
    %20 = arith.addf %18, %19 : vector<2x512xf32>
    %21 = vector.extract_strided_slice %20 {offsets = [0, 0], sizes = [2, 15], strides = [1, 1]} : vector<2x512xf32> to vector<2x15xf32>
    %22 = math.tanh %21 : vector<2x15xf32>
    %23 = vector.extract_strided_slice %20 {offsets = [0, 128], sizes = [2, 15], strides = [1, 1]} : vector<2x512xf32> to vector<2x15xf32>
    %24 = math.tanh %23 : vector<2x15xf32>
    %25 = vector.extract_strided_slice %20 {offsets = [0, 256], sizes = [2, 15], strides = [1, 1]} : vector<2x512xf32> to vector<2x15xf32>
    %26 = vector.extract_strided_slice %20 {offsets = [0, 384], sizes = [2, 15], strides = [1, 1]} : vector<2x512xf32> to vector<2x15xf32>
    %27 = arith.addf %25, %26 : vector<2x15xf32>
    %28 = arith.negf %27 : vector<2x15xf32>
    %29 = math.exp %28 : vector<2x15xf32>
    %cst_28 = arith.constant 1.000000e+00 : f32
    %30 = vector.broadcast %cst_28 : f32 to vector<2x15xf32>
    %31 = arith.addf %30, %29 : vector<2x15xf32>
    %32 = arith.divf %30, %31 : vector<2x15xf32>
    %33 = arith.subf %24, %22 : vector<2x15xf32>
    %34 = arith.mulf %32, %33 : vector<2x15xf32>
    %35 = arith.addf %22, %34 : vector<2x15xf32>
    %cst_29 = arith.constant dense<0.000000e+00> : vector<2x512xf32>
    %36 = tpu.matmul %35, %3, %cst_29 {dimension_numbers = #tpu.dot_dimension_numbers<[1], [0], [0], [1], [0, 0, 1, 1], [], []>} : vector<2x15xf32>, vector<15x512xf32>, vector<2x512xf32> -> vector<2x512xf32>
    %cst_30 = arith.constant dense<0.000000e+00> : vector<2x512xf32>
    %37 = tpu.matmul %12, %4, %cst_30 {dimension_numbers = #tpu.dot_dimension_numbers<[1], [0], [0], [1], [0, 0, 1, 1], [], []>} : vector<2x9xf32>, vector<9x512xf32>, vector<2x512xf32> -> vector<2x512xf32>
    %38 = arith.addf %36, %37 : vector<2x512xf32>
    %39 = vector.broadcast %5 : vector<1x512xf32> to vector<2x512xf32>
    %40 = arith.addf %38, %39 : vector<2x512xf32>
    %41 = vector.extract_strided_slice %40 {offsets = [0, 0], sizes = [2, 9], strides = [1, 1]} : vector<2x512xf32> to vector<2x9xf32>
    %42 = math.tanh %41 : vector<2x9xf32>
    %43 = vector.extract_strided_slice %40 {offsets = [0, 128], sizes = [2, 9], strides = [1, 1]} : vector<2x512xf32> to vector<2x9xf32>
    %44 = math.tanh %43 : vector<2x9xf32>
    %45 = vector.extract_strided_slice %40 {offsets = [0, 256], sizes = [2, 9], strides = [1, 1]} : vector<2x512xf32> to vector<2x9xf32>
    %46 = vector.extract_strided_slice %40 {offsets = [0, 384], sizes = [2, 9], strides = [1, 1]} : vector<2x512xf32> to vector<2x9xf32>
    %47 = arith.addf %45, %46 : vector<2x9xf32>
    %48 = arith.negf %47 : vector<2x9xf32>
    %49 = math.exp %48 : vector<2x9xf32>
    %cst_31 = arith.constant 1.000000e+00 : f32
    %50 = vector.broadcast %cst_31 : f32 to vector<2x9xf32>
    %51 = arith.addf %50, %49 : vector<2x9xf32>
    %52 = arith.divf %50, %51 : vector<2x9xf32>
    %53 = arith.subf %44, %42 : vector<2x9xf32>
    %54 = arith.mulf %52, %53 : vector<2x9xf32>
    %55 = arith.addf %42, %54 : vector<2x9xf32>
    %cst_32 = arith.constant dense<0.000000e+00> : vector<2x512xf32>
    %56 = tpu.matmul %55, %6, %cst_32 {dimension_numbers = #tpu.dot_dimension_numbers<[1], [0], [0], [1], [0, 0, 1, 1], [], []>} : vector<2x9xf32>, vector<9x512xf32>, vector<2x512xf32> -> vector<2x512xf32>
    %cst_33 = arith.constant dense<0.000000e+00> : vector<2x512xf32>
    %57 = tpu.matmul %13, %7, %cst_33 {dimension_numbers = #tpu.dot_dimension_numbers<[1], [0], [0], [1], [0, 0, 1, 1], [], []>} : vector<2x8xf32>, vector<8x512xf32>, vector<2x512xf32> -> vector<2x512xf32>
    %58 = arith.addf %56, %57 : vector<2x512xf32>
    %59 = vector.broadcast %8 : vector<1x512xf32> to vector<2x512xf32>
    %60 = arith.addf %58, %59 : vector<2x512xf32>
    %61 = vector.extract_strided_slice %60 {offsets = [0, 0], sizes = [2, 8], strides = [1, 1]} : vector<2x512xf32> to vector<2x8xf32>
    %62 = math.tanh %61 : vector<2x8xf32>
    %63 = vector.extract_strided_slice %60 {offsets = [0, 128], sizes = [2, 8], strides = [1, 1]} : vector<2x512xf32> to vector<2x8xf32>
    %64 = math.tanh %63 : vector<2x8xf32>
    %65 = vector.extract_strided_slice %60 {offsets = [0, 256], sizes = [2, 8], strides = [1, 1]} : vector<2x512xf32> to vector<2x8xf32>
    %66 = vector.extract_strided_slice %60 {offsets = [0, 384], sizes = [2, 8], strides = [1, 1]} : vector<2x512xf32> to vector<2x8xf32>
    %67 = arith.addf %65, %66 : vector<2x8xf32>
    %68 = arith.negf %67 : vector<2x8xf32>
    %69 = math.exp %68 : vector<2x8xf32>
    %cst_34 = arith.constant 1.000000e+00 : f32
    %70 = vector.broadcast %cst_34 : f32 to vector<2x8xf32>
    %71 = arith.addf %70, %69 : vector<2x8xf32>
    %72 = arith.divf %70, %71 : vector<2x8xf32>
    %73 = arith.subf %64, %62 : vector<2x8xf32>
    %74 = arith.mulf %72, %73 : vector<2x8xf32>
    %75 = arith.addf %62, %74 : vector<2x8xf32>
    %cst_35 = arith.constant dense<0.000000e+00> : vector<2x128xf32>
    %76 = tpu.matmul %75, %9, %cst_35 {dimension_numbers = #tpu.dot_dimension_numbers<[1], [0], [0], [1], [0, 0, 1, 1], [], []>} : vector<2x8xf32>, vector<8x128xf32>, vector<2x128xf32> -> vector<2x128xf32>
    %77 = vector.broadcast %10 : vector<1x128xf32> to vector<2x128xf32>
    %78 = arith.addf %76, %77 : vector<2x128xf32>
    %c0_36 = arith.constant 0 : index
    %c0_37 = arith.constant 0 : index
    %c0_38 = arith.constant 0 : index
    %79 = vector.load %arg13[%c0_36, %c0_37, %c0_38] : memref<8x2x128xf32, #tpu.memory_space<vmem>>, vector<1x2x128xf32>
    %80 = vector.shape_cast %79 : vector<1x2x128xf32> to vector<2x128xf32>
    %81 = vector.shape_cast %78 : vector<2x128xf32> to vector<1x2x128xf32>
    tpu.vector_store %arg13[%c0_36, %c0_37, %c0_38], %81 {strides = array<i32>} : memref<8x2x128xf32, #tpu.memory_space<vmem>>, vector<1x2x128xf32>,
    %c1 = arith.constant 1 : index
    %c0_39 = arith.constant 0 : index
    %c0_40 = arith.constant 0 : index
    %82 = vector.load %arg1[%c1, %c0_39, %c0_40] : memref<8x2x4xf32, #tpu.memory_space<vmem>>, vector<1x2x4xf32>
    %83 = vector.shape_cast %82 : vector<1x2x4xf32> to vector<2x4xf32>
    %cst_41 = arith.constant dense<0.000000e+00> : vector<2x512xf32>
    %84 = tpu.matmul %83, %0, %cst_41 {dimension_numbers = #tpu.dot_dimension_numbers<[1], [0], [0], [1], [0, 0, 1, 1], [], []>} : vector<2x4xf32>, vector<4x512xf32>, vector<2x512xf32> -> vector<2x512xf32>
    %cst_42 = arith.constant dense<0.000000e+00> : vector<2x512xf32>
    %85 = tpu.matmul %35, %1, %cst_42 {dimension_numbers = #tpu.dot_dimension_numbers<[1], [0], [0], [1], [0, 0, 1, 1], [], []>} : vector<2x15xf32>, vector<15x512xf32>, vector<2x512xf32> -> vector<2x512xf32>
    %86 = arith.addf %84, %85 : vector<2x512xf32>
    %87 = vector.broadcast %2 : vector<1x512xf32> to vector<2x512xf32>
    %88 = arith.addf %86, %87 : vector<2x512xf32>
    %89 = vector.extract_strided_slice %88 {offsets = [0, 0], sizes = [2, 15], strides = [1, 1]} : vector<2x512xf32> to vector<2x15xf32>
    %90 = math.tanh %89 : vector<2x15xf32>
    %91 = vector.extract_strided_slice %88 {offsets = [0, 128], sizes = [2, 15], strides = [1, 1]} : vector<2x512xf32> to vector<2x15xf32>
    %92 = math.tanh %91 : vector<2x15xf32>
    %93 = vector.extract_strided_slice %88 {offsets = [0, 256], sizes = [2, 15], strides = [1, 1]} : vector<2x512xf32> to vector<2x15xf32>
    %94 = vector.extract_strided_slice %88 {offsets = [0, 384], sizes = [2, 15], strides = [1, 1]} : vector<2x512xf32> to vector<2x15xf32>
    %95 = arith.addf %93, %94 : vector<2x15xf32>
    %96 = arith.negf %95 : vector<2x15xf32>
    %97 = math.exp %96 : vector<2x15xf32>
    %cst_43 = arith.constant 1.000000e+00 : f32
    %98 = vector.broadcast %cst_43 : f32 to vector<2x15xf32>
    %99 = arith.addf %98, %97 : vector<2x15xf32>
    %100 = arith.divf %98, %99 : vector<2x15xf32>
    %101 = arith.subf %92, %90 : vector<2x15xf32>
    %102 = arith.mulf %100, %101 : vector<2x15xf32>
    %103 = arith.addf %90, %102 : vector<2x15xf32>
    %cst_44 = arith.constant dense<0.000000e+00> : vector<2x512xf32>
    %104 = tpu.matmul %103, %3, %cst_44 {dimension_numbers = #tpu.dot_dimension_numbers<[1], [0], [0], [1], [0, 0, 1, 1], [], []>} : vector<2x15xf32>, vector<15x512xf32>, vector<2x512xf32> -> vector<2x512xf32>
    %cst_45 = arith.constant dense<0.000000e+00> : vector<2x512xf32>
    %105 = tpu.matmul %55, %4, %cst_45 {dimension_numbers = #tpu.dot_dimension_numbers<[1], [0], [0], [1], [0, 0, 1, 1], [], []>} : vector<2x9xf32>, vector<9x512xf32>, vector<2x512xf32> -> vector<2x512xf32>
    %106 = arith.addf %104, %105 : vector<2x512xf32>
    %107 = vector.broadcast %5 : vector<1x512xf32> to vector<2x512xf32>
    %108 = arith.addf %106, %107 : vector<2x512xf32>
    %109 = vector.extract_strided_slice %108 {offsets = [0, 0], sizes = [2, 9], strides = [1, 1]} : vector<2x512xf32> to vector<2x9xf32>
    %110 = math.tanh %109 : vector<2x9xf32>
    %111 = vector.extract_strided_slice %108 {offsets = [0, 128], sizes = [2, 9], strides = [1, 1]} : vector<2x512xf32> to vector<2x9xf32>
    %112 = math.tanh %111 : vector<2x9xf32>
    %113 = vector.extract_strided_slice %108 {offsets = [0, 256], sizes = [2, 9], strides = [1, 1]} : vector<2x512xf32> to vector<2x9xf32>
    %114 = vector.extract_strided_slice %108 {offsets = [0, 384], sizes = [2, 9], strides = [1, 1]} : vector<2x512xf32> to vector<2x9xf32>
    %115 = arith.addf %113, %114 : vector<2x9xf32>
    %116 = arith.negf %115 : vector<2x9xf32>
    %117 = math.exp %116 : vector<2x9xf32>
    %cst_46 = arith.constant 1.000000e+00 : f32
    %118 = vector.broadcast %cst_46 : f32 to vector<2x9xf32>
    %119 = arith.addf %118, %117 : vector<2x9xf32>
    %120 = arith.divf %118, %119 : vector<2x9xf32>
    %121 = arith.subf %112, %110 : vector<2x9xf32>
    %122 = arith.mulf %120, %121 : vector<2x9xf32>
    %123 = arith.addf %110, %122 : vector<2x9xf32>
    %cst_47 = arith.constant dense<0.000000e+00> : vector<2x512xf32>
    %124 = tpu.matmul %123, %6, %cst_47 {dimension_numbers = #tpu.dot_dimension_numbers<[1], [0], [0], [1], [0, 0, 1, 1], [], []>} : vector<2x9xf32>, vector<9x512xf32>, vector<2x512xf32> -> vector<2x512xf32>
    %cst_48 = arith.constant dense<0.000000e+00> : vector<2x512xf32>
    %125 = tpu.matmul %75, %7, %cst_48 {dimension_numbers = #tpu.dot_dimension_numbers<[1], [0], [0], [1], [0, 0, 1, 1], [], []>} : vector<2x8xf32>, vector<8x512xf32>, vector<2x512xf32> -> vector<2x512xf32>
    %126 = arith.addf %124, %125 : vector<2x512xf32>
    %127 = vector.broadcast %8 : vector<1x512xf32> to vector<2x512xf32>
    %128 = arith.addf %126, %127 : vector<2x512xf32>
    %129 = vector.extract_strided_slice %128 {offsets = [0, 0], sizes = [2, 8], strides = [1, 1]} : vector<2x512xf32> to vector<2x8xf32>
    %130 = math.tanh %129 : vector<2x8xf32>
    %131 = vector.extract_strided_slice %128 {offsets = [0, 128], sizes = [2, 8], strides = [1, 1]} : vector<2x512xf32> to vector<2x8xf32>
    %132 = math.tanh %131 : vector<2x8xf32>
    %133 = vector.extract_strided_slice %128 {offsets = [0, 256], sizes = [2, 8], strides = [1, 1]} : vector<2x512xf32> to vector<2x8xf32>
    %134 = vector.extract_strided_slice %128 {offsets = [0, 384], sizes = [2, 8], strides = [1, 1]} : vector<2x512xf32> to vector<2x8xf32>
    %135 = arith.addf %133, %134 : vector<2x8xf32>
    %136 = arith.negf %135 : vector<2x8xf32>
    %137 = math.exp %136 : vector<2x8xf32>
    %cst_49 = arith.constant 1.000000e+00 : f32
    %138 = vector.broadcast %cst_49 : f32 to vector<2x8xf32>
    %139 = arith.addf %138, %137 : vector<2x8xf32>
    %140 = arith.divf %138, %139 : vector<2x8xf32>
    %141 = arith.subf %132, %130 : vector<2x8xf32>
    %142 = arith.mulf %140, %141 : vector<2x8xf32>
    %143 = arith.addf %130, %142 : vector<2x8xf32>
    %cst_50 = arith.constant dense<0.000000e+00> : vector<2x128xf32>
    %144 = tpu.matmul %143, %9, %cst_50 {dimension_numbers = #tpu.dot_dimension_numbers<[1], [0], [0], [1], [0, 0, 1, 1], [], []>} : vector<2x8xf32>, vector<8x128xf32>, vector<2x128xf32> -> vector<2x128xf32>
    %145 = vector.broadcast %10 : vector<1x128xf32> to vector<2x128xf32>
    %146 = arith.addf %144, %145 : vector<2x128xf32>
    %c1_51 = arith.constant 1 : index
    %c0_52 = arith.constant 0 : index
    %c0_53 = arith.constant 0 : index
    %147 = vector.load %arg13[%c1_51, %c0_52, %c0_53] : memref<8x2x128xf32, #tpu.memory_space<vmem>>, vector<1x2x128xf32>
    %148 = vector.shape_cast %147 : vector<1x2x128xf32> to vector<2x128xf32>
    %149 = vector.shape_cast %146 : vector<2x128xf32> to vector<1x2x128xf32>
    tpu.vector_store %arg13[%c1_51, %c0_52, %c0_53], %149 {strides = array<i32>} : memref<8x2x128xf32, #tpu.memory_space<vmem>>, vector<1x2x128xf32>,
    %c2 = arith.constant 2 : index
    %c0_54 = arith.constant 0 : index
    %c0_55 = arith.constant 0 : index
    %150 = vector.load %arg1[%c2, %c0_54, %c0_55] : memref<8x2x4xf32, #tpu.memory_space<vmem>>, vector<1x2x4xf32>
    %151 = vector.shape_cast %150 : vector<1x2x4xf32> to vector<2x4xf32>
    %cst_56 = arith.constant dense<0.000000e+00> : vector<2x512xf32>
    %152 = tpu.matmul %151, %0, %cst_56 {dimension_numbers = #tpu.dot_dimension_numbers<[1], [0], [0], [1], [0, 0, 1, 1], [], []>} : vector<2x4xf32>, vector<4x512xf32>, vector<2x512xf32> -> vector<2x512xf32>
    %cst_57 = arith.constant dense<0.000000e+00> : vector<2x512xf32>
    %153 = tpu.matmul %103, %1, %cst_57 {dimension_numbers = #tpu.dot_dimension_numbers<[1], [0], [0], [1], [0, 0, 1, 1], [], []>} : vector<2x15xf32>, vector<15x512xf32>, vector<2x512xf32> -> vector<2x512xf32>
    %154 = arith.addf %152, %153 : vector<2x512xf32>
    %155 = vector.broadcast %2 : vector<1x512xf32> to vector<2x512xf32>
    %156 = arith.addf %154, %155 : vector<2x512xf32>
    %157 = vector.extract_strided_slice %156 {offsets = [0, 0], sizes = [2, 15], strides = [1, 1]} : vector<2x512xf32> to vector<2x15xf32>
    %158 = math.tanh %157 : vector<2x15xf32>
    %159 = vector.extract_strided_slice %156 {offsets = [0, 128], sizes = [2, 15], strides = [1, 1]} : vector<2x512xf32> to vector<2x15xf32>
    %160 = math.tanh %159 : vector<2x15xf32>
    %161 = vector.extract_strided_slice %156 {offsets = [0, 256], sizes = [2, 15], strides = [1, 1]} : vector<2x512xf32> to vector<2x15xf32>
    %162 = vector.extract_strided_slice %156 {offsets = [0, 384], sizes = [2, 15], strides = [1, 1]} : vector<2x512xf32> to vector<2x15xf32>
    %163 = arith.addf %161, %162 : vector<2x15xf32>
    %164 = arith.negf %163 : vector<2x15xf32>
    %165 = math.exp %164 : vector<2x15xf32>
    %cst_58 = arith.constant 1.000000e+00 : f32
    %166 = vector.broadcast %cst_58 : f32 to vector<2x15xf32>
    %167 = arith.addf %166, %165 : vector<2x15xf32>
    %168 = arith.divf %166, %167 : vector<2x15xf32>
    %169 = arith.subf %160, %158 : vector<2x15xf32>
    %170 = arith.mulf %168, %169 : vector<2x15xf32>
    %171 = arith.addf %158, %170 : vector<2x15xf32>
    %cst_59 = arith.constant dense<0.000000e+00> : vector<2x512xf32>
    %172 = tpu.matmul %171, %3, %cst_59 {dimension_numbers = #tpu.dot_dimension_numbers<[1], [0], [0], [1], [0, 0, 1, 1], [], []>} : vector<2x15xf32>, vector<15x512xf32>, vector<2x512xf32> -> vector<2x512xf32>
    %cst_60 = arith.constant dense<0.000000e+00> : vector<2x512xf32>
    %173 = tpu.matmul %123, %4, %cst_60 {dimension_numbers = #tpu.dot_dimension_numbers<[1], [0], [0], [1], [0, 0, 1, 1], [], []>} : vector<2x9xf32>, vector<9x512xf32>, vector<2x512xf32> -> vector<2x512xf32>
    %174 = arith.addf %172, %173 : vector<2x512xf32>
    %175 = vector.broadcast %5 : vector<1x512xf32> to vector<2x512xf32>
    %176 = arith.addf %174, %175 : vector<2x512xf32>
    %177 = vector.extract_strided_slice %176 {offsets = [0, 0], sizes = [2, 9], strides = [1, 1]} : vector<2x512xf32> to vector<2x9xf32>
    %178 = math.tanh %177 : vector<2x9xf32>
    %179 = vector.extract_strided_slice %176 {offsets = [0, 128], sizes = [2, 9], strides = [1, 1]} : vector<2x512xf32> to vector<2x9xf32>
    %180 = math.tanh %179 : vector<2x9xf32>
    %181 = vector.extract_strided_slice %176 {offsets = [0, 256], sizes = [2, 9], strides = [1, 1]} : vector<2x512xf32> to vector<2x9xf32>
    %182 = vector.extract_strided_slice %176 {offsets = [0, 384], sizes = [2, 9], strides = [1, 1]} : vector<2x512xf32> to vector<2x9xf32>
    %183 = arith.addf %181, %182 : vector<2x9xf32>
    %184 = arith.negf %183 : vector<2x9xf32>
    %185 = math.exp %184 : vector<2x9xf32>
    %cst_61 = arith.constant 1.000000e+00 : f32
    %186 = vector.broadcast %cst_61 : f32 to vector<2x9xf32>
    %187 = arith.addf %186, %185 : vector<2x9xf32>
    %188 = arith.divf %186, %187 : vector<2x9xf32>
    %189 = arith.subf %180, %178 : vector<2x9xf32>
    %190 = arith.mulf %188, %189 : vector<2x9xf32>
    %191 = arith.addf %178, %190 : vector<2x9xf32>
    %cst_62 = arith.constant dense<0.000000e+00> : vector<2x512xf32>
    %192 = tpu.matmul %191, %6, %cst_62 {dimension_numbers = #tpu.dot_dimension_numbers<[1], [0], [0], [1], [0, 0, 1, 1], [], []>} : vector<2x9xf32>, vector<9x512xf32>, vector<2x512xf32> -> vector<2x512xf32>
    %cst_63 = arith.constant dense<0.000000e+00> : vector<2x512xf32>
    %193 = tpu.matmul %143, %7, %cst_63 {dimension_numbers = #tpu.dot_dimension_numbers<[1], [0], [0], [1], [0, 0, 1, 1], [], []>} : vector<2x8xf32>, vector<8x512xf32>, vector<2x512xf32> -> vector<2x512xf32>
    %194 = arith.addf %192, %193 : vector<2x512xf32>
    %195 = vector.broadcast %8 : vector<1x512xf32> to vector<2x512xf32>
    %196 = arith.addf %194, %195 : vector<2x512xf32>
    %197 = vector.extract_strided_slice %196 {offsets = [0, 0], sizes = [2, 8], strides = [1, 1]} : vector<2x512xf32> to vector<2x8xf32>
    %198 = math.tanh %197 : vector<2x8xf32>
    %199 = vector.extract_strided_slice %196 {offsets = [0, 128], sizes = [2, 8], strides = [1, 1]} : vector<2x512xf32> to vector<2x8xf32>
    %200 = math.tanh %199 : vector<2x8xf32>
    %201 = vector.extract_strided_slice %196 {offsets = [0, 256], sizes = [2, 8], strides = [1, 1]} : vector<2x512xf32> to vector<2x8xf32>
    %202 = vector.extract_strided_slice %196 {offsets = [0, 384], sizes = [2, 8], strides = [1, 1]} : vector<2x512xf32> to vector<2x8xf32>
    %203 = arith.addf %201, %202 : vector<2x8xf32>
    %204 = arith.negf %203 : vector<2x8xf32>
    %205 = math.exp %204 : vector<2x8xf32>
    %cst_64 = arith.constant 1.000000e+00 : f32
    %206 = vector.broadcast %cst_64 : f32 to vector<2x8xf32>
    %207 = arith.addf %206, %205 : vector<2x8xf32>
    %208 = arith.divf %206, %207 : vector<2x8xf32>
    %209 = arith.subf %200, %198 : vector<2x8xf32>
    %210 = arith.mulf %208, %209 : vector<2x8xf32>
    %211 = arith.addf %198, %210 : vector<2x8xf32>
    %cst_65 = arith.constant dense<0.000000e+00> : vector<2x128xf32>
    %212 = tpu.matmul %211, %9, %cst_65 {dimension_numbers = #tpu.dot_dimension_numbers<[1], [0], [0], [1], [0, 0, 1, 1], [], []>} : vector<2x8xf32>, vector<8x128xf32>, vector<2x128xf32> -> vector<2x128xf32>
    %213 = vector.broadcast %10 : vector<1x128xf32> to vector<2x128xf32>
    %214 = arith.addf %212, %213 : vector<2x128xf32>
    %c2_66 = arith.constant 2 : index
    %c0_67 = arith.constant 0 : index
    %c0_68 = arith.constant 0 : index
    %215 = vector.load %arg13[%c2_66, %c0_67, %c0_68] : memref<8x2x128xf32, #tpu.memory_space<vmem>>, vector<1x2x128xf32>
    %216 = vector.shape_cast %215 : vector<1x2x128xf32> to vector<2x128xf32>
    %217 = vector.shape_cast %214 : vector<2x128xf32> to vector<1x2x128xf32>
    tpu.vector_store %arg13[%c2_66, %c0_67, %c0_68], %217 {strides = array<i32>} : memref<8x2x128xf32, #tpu.memory_space<vmem>>, vector<1x2x128xf32>,
    %c3 = arith.constant 3 : index
    %c0_69 = arith.constant 0 : index
    %c0_70 = arith.constant 0 : index
    %218 = vector.load %arg1[%c3, %c0_69, %c0_70] : memref<8x2x4xf32, #tpu.memory_space<vmem>>, vector<1x2x4xf32>
    %219 = vector.shape_cast %218 : vector<1x2x4xf32> to vector<2x4xf32>
    %cst_71 = arith.constant dense<0.000000e+00> : vector<2x512xf32>
    %220 = tpu.matmul %219, %0, %cst_71 {dimension_numbers = #tpu.dot_dimension_numbers<[1], [0], [0], [1], [0, 0, 1, 1], [], []>} : vector<2x4xf32>, vector<4x512xf32>, vector<2x512xf32> -> vector<2x512xf32>
    %cst_72 = arith.constant dense<0.000000e+00> : vector<2x512xf32>
    %221 = tpu.matmul %171, %1, %cst_72 {dimension_numbers = #tpu.dot_dimension_numbers<[1], [0], [0], [1], [0, 0, 1, 1], [], []>} : vector<2x15xf32>, vector<15x512xf32>, vector<2x512xf32> -> vector<2x512xf32>
    %222 = arith.addf %220, %221 : vector<2x512xf32>
    %223 = vector.broadcast %2 : vector<1x512xf32> to vector<2x512xf32>
    %224 = arith.addf %222, %223 : vector<2x512xf32>
    %225 = vector.extract_strided_slice %224 {offsets = [0, 0], sizes = [2, 15], strides = [1, 1]} : vector<2x512xf32> to vector<2x15xf32>
    %226 = math.tanh %225 : vector<2x15xf32>
    %227 = vector.extract_strided_slice %224 {offsets = [0, 128], sizes = [2, 15], strides = [1, 1]} : vector<2x512xf32> to vector<2x15xf32>
    %228 = math.tanh %227 : vector<2x15xf32>
    %229 = vector.extract_strided_slice %224 {offsets = [0, 256], sizes = [2, 15], strides = [1, 1]} : vector<2x512xf32> to vector<2x15xf32>
    %230 = vector.extract_strided_slice %224 {offsets = [0, 384], sizes = [2, 15], strides = [1, 1]} : vector<2x512xf32> to vector<2x15xf32>
    %231 = arith.addf %229, %230 : vector<2x15xf32>
    %232 = arith.negf %231 : vector<2x15xf32>
    %233 = math.exp %232 : vector<2x15xf32>
    %cst_73 = arith.constant 1.000000e+00 : f32
    %234 = vector.broadcast %cst_73 : f32 to vector<2x15xf32>
    %235 = arith.addf %234, %233 : vector<2x15xf32>
    %236 = arith.divf %234, %235 : vector<2x15xf32>
    %237 = arith.subf %228, %226 : vector<2x15xf32>
    %238 = arith.mulf %236, %237 : vector<2x15xf32>
    %239 = arith.addf %226, %238 : vector<2x15xf32>
    %cst_74 = arith.constant dense<0.000000e+00> : vector<2x512xf32>
    %240 = tpu.matmul %239, %3, %cst_74 {dimension_numbers = #tpu.dot_dimension_numbers<[1], [0], [0], [1], [0, 0, 1, 1], [], []>} : vector<2x15xf32>, vector<15x512xf32>, vector<2x512xf32> -> vector<2x512xf32>
    %cst_75 = arith.constant dense<0.000000e+00> : vector<2x512xf32>
    %241 = tpu.matmul %191, %4, %cst_75 {dimension_numbers = #tpu.dot_dimension_numbers<[1], [0], [0], [1], [0, 0, 1, 1], [], []>} : vector<2x9xf32>, vector<9x512xf32>, vector<2x512xf32> -> vector<2x512xf32>
    %242 = arith.addf %240, %241 : vector<2x512xf32>
    %243 = vector.broadcast %5 : vector<1x512xf32> to vector<2x512xf32>
    %244 = arith.addf %242, %243 : vector<2x512xf32>
    %245 = vector.extract_strided_slice %244 {offsets = [0, 0], sizes = [2, 9], strides = [1, 1]} : vector<2x512xf32> to vector<2x9xf32>
    %246 = math.tanh %245 : vector<2x9xf32>
    %247 = vector.extract_strided_slice %244 {offsets = [0, 128], sizes = [2, 9], strides = [1, 1]} : vector<2x512xf32> to vector<2x9xf32>
    %248 = math.tanh %247 : vector<2x9xf32>
    %249 = vector.extract_strided_slice %244 {offsets = [0, 256], sizes = [2, 9], strides = [1, 1]} : vector<2x512xf32> to vector<2x9xf32>
    %250 = vector.extract_strided_slice %244 {offsets = [0, 384], sizes = [2, 9], strides = [1, 1]} : vector<2x512xf32> to vector<2x9xf32>
    %251 = arith.addf %249, %250 : vector<2x9xf32>
    %252 = arith.negf %251 : vector<2x9xf32>
    %253 = math.exp %252 : vector<2x9xf32>
    %cst_76 = arith.constant 1.000000e+00 : f32
    %254 = vector.broadcast %cst_76 : f32 to vector<2x9xf32>
    %255 = arith.addf %254, %253 : vector<2x9xf32>
    %256 = arith.divf %254, %255 : vector<2x9xf32>
    %257 = arith.subf %248, %246 : vector<2x9xf32>
    %258 = arith.mulf %256, %257 : vector<2x9xf32>
    %259 = arith.addf %246, %258 : vector<2x9xf32>
    %cst_77 = arith.constant dense<0.000000e+00> : vector<2x512xf32>
    %260 = tpu.matmul %259, %6, %cst_77 {dimension_numbers = #tpu.dot_dimension_numbers<[1], [0], [0], [1], [0, 0, 1, 1], [], []>} : vector<2x9xf32>, vector<9x512xf32>, vector<2x512xf32> -> vector<2x512xf32>
    %cst_78 = arith.constant dense<0.000000e+00> : vector<2x512xf32>
    %261 = tpu.matmul %211, %7, %cst_78 {dimension_numbers = #tpu.dot_dimension_numbers<[1], [0], [0], [1], [0, 0, 1, 1], [], []>} : vector<2x8xf32>, vector<8x512xf32>, vector<2x512xf32> -> vector<2x512xf32>
    %262 = arith.addf %260, %261 : vector<2x512xf32>
    %263 = vector.broadcast %8 : vector<1x512xf32> to vector<2x512xf32>
    %264 = arith.addf %262, %263 : vector<2x512xf32>
    %265 = vector.extract_strided_slice %264 {offsets = [0, 0], sizes = [2, 8], strides = [1, 1]} : vector<2x512xf32> to vector<2x8xf32>
    %266 = math.tanh %265 : vector<2x8xf32>
    %267 = vector.extract_strided_slice %264 {offsets = [0, 128], sizes = [2, 8], strides = [1, 1]} : vector<2x512xf32> to vector<2x8xf32>
    %268 = math.tanh %267 : vector<2x8xf32>
    %269 = vector.extract_strided_slice %264 {offsets = [0, 256], sizes = [2, 8], strides = [1, 1]} : vector<2x512xf32> to vector<2x8xf32>
    %270 = vector.extract_strided_slice %264 {offsets = [0, 384], sizes = [2, 8], strides = [1, 1]} : vector<2x512xf32> to vector<2x8xf32>
    %271 = arith.addf %269, %270 : vector<2x8xf32>
    %272 = arith.negf %271 : vector<2x8xf32>
    %273 = math.exp %272 : vector<2x8xf32>
    %cst_79 = arith.constant 1.000000e+00 : f32
    %274 = vector.broadcast %cst_79 : f32 to vector<2x8xf32>
    %275 = arith.addf %274, %273 : vector<2x8xf32>
    %276 = arith.divf %274, %275 : vector<2x8xf32>
    %277 = arith.subf %268, %266 : vector<2x8xf32>
    %278 = arith.mulf %276, %277 : vector<2x8xf32>
    %279 = arith.addf %266, %278 : vector<2x8xf32>
    %cst_80 = arith.constant dense<0.000000e+00> : vector<2x128xf32>
    %280 = tpu.matmul %279, %9, %cst_80 {dimension_numbers = #tpu.dot_dimension_numbers<[1], [0], [0], [1], [0, 0, 1, 1], [], []>} : vector<2x8xf32>, vector<8x128xf32>, vector<2x128xf32> -> vector<2x128xf32>
    %281 = vector.broadcast %10 : vector<1x128xf32> to vector<2x128xf32>
    %282 = arith.addf %280, %281 : vector<2x128xf32>
    %c3_81 = arith.constant 3 : index
    %c0_82 = arith.constant 0 : index
    %c0_83 = arith.constant 0 : index
    %283 = vector.load %arg13[%c3_81, %c0_82, %c0_83] : memref<8x2x128xf32, #tpu.memory_space<vmem>>, vector<1x2x128xf32>
    %284 = vector.shape_cast %283 : vector<1x2x128xf32> to vector<2x128xf32>
    %285 = vector.shape_cast %282 : vector<2x128xf32> to vector<1x2x128xf32>
    tpu.vector_store %arg13[%c3_81, %c0_82, %c0_83], %285 {strides = array<i32>} : memref<8x2x128xf32, #tpu.memory_space<vmem>>, vector<1x2x128xf32>,
    %c4 = arith.constant 4 : index
    %c0_84 = arith.constant 0 : index
    %c0_85 = arith.constant 0 : index
    %286 = vector.load %arg1[%c4, %c0_84, %c0_85] : memref<8x2x4xf32, #tpu.memory_space<vmem>>, vector<1x2x4xf32>
    %287 = vector.shape_cast %286 : vector<1x2x4xf32> to vector<2x4xf32>
    %cst_86 = arith.constant dense<0.000000e+00> : vector<2x512xf32>
    %288 = tpu.matmul %287, %0, %cst_86 {dimension_numbers = #tpu.dot_dimension_numbers<[1], [0], [0], [1], [0, 0, 1, 1], [], []>} : vector<2x4xf32>, vector<4x512xf32>, vector<2x512xf32> -> vector<2x512xf32>
    %cst_87 = arith.constant dense<0.000000e+00> : vector<2x512xf32>
    %289 = tpu.matmul %239, %1, %cst_87 {dimension_numbers = #tpu.dot_dimension_numbers<[1], [0], [0], [1], [0, 0, 1, 1], [], []>} : vector<2x15xf32>, vector<15x512xf32>, vector<2x512xf32> -> vector<2x512xf32>
    %290 = arith.addf %288, %289 : vector<2x512xf32>
    %291 = vector.broadcast %2 : vector<1x512xf32> to vector<2x512xf32>
    %292 = arith.addf %290, %291 : vector<2x512xf32>
    %293 = vector.extract_strided_slice %292 {offsets = [0, 0], sizes = [2, 15], strides = [1, 1]} : vector<2x512xf32> to vector<2x15xf32>
    %294 = math.tanh %293 : vector<2x15xf32>
    %295 = vector.extract_strided_slice %292 {offsets = [0, 128], sizes = [2, 15], strides = [1, 1]} : vector<2x512xf32> to vector<2x15xf32>
    %296 = math.tanh %295 : vector<2x15xf32>
    %297 = vector.extract_strided_slice %292 {offsets = [0, 256], sizes = [2, 15], strides = [1, 1]} : vector<2x512xf32> to vector<2x15xf32>
    %298 = vector.extract_strided_slice %292 {offsets = [0, 384], sizes = [2, 15], strides = [1, 1]} : vector<2x512xf32> to vector<2x15xf32>
    %299 = arith.addf %297, %298 : vector<2x15xf32>
    %300 = arith.negf %299 : vector<2x15xf32>
    %301 = math.exp %300 : vector<2x15xf32>
    %cst_88 = arith.constant 1.000000e+00 : f32
    %302 = vector.broadcast %cst_88 : f32 to vector<2x15xf32>
    %303 = arith.addf %302, %301 : vector<2x15xf32>
    %304 = arith.divf %302, %303 : vector<2x15xf32>
    %305 = arith.subf %296, %294 : vector<2x15xf32>
    %306 = arith.mulf %304, %305 : vector<2x15xf32>
    %307 = arith.addf %294, %306 : vector<2x15xf32>
    %cst_89 = arith.constant dense<0.000000e+00> : vector<2x512xf32>
    %308 = tpu.matmul %307, %3, %cst_89 {dimension_numbers = #tpu.dot_dimension_numbers<[1], [0], [0], [1], [0, 0, 1, 1], [], []>} : vector<2x15xf32>, vector<15x512xf32>, vector<2x512xf32> -> vector<2x512xf32>
    %cst_90 = arith.constant dense<0.000000e+00> : vector<2x512xf32>
    %309 = tpu.matmul %259, %4, %cst_90 {dimension_numbers = #tpu.dot_dimension_numbers<[1], [0], [0], [1], [0, 0, 1, 1], [], []>} : vector<2x9xf32>, vector<9x512xf32>, vector<2x512xf32> -> vector<2x512xf32>
    %310 = arith.addf %308, %309 : vector<2x512xf32>
    %311 = vector.broadcast %5 : vector<1x512xf32> to vector<2x512xf32>
    %312 = arith.addf %310, %311 : vector<2x512xf32>
    %313 = vector.extract_strided_slice %312 {offsets = [0, 0], sizes = [2, 9], strides = [1, 1]} : vector<2x512xf32> to vector<2x9xf32>
    %314 = math.tanh %313 : vector<2x9xf32>
    %315 = vector.extract_strided_slice %312 {offsets = [0, 128], sizes = [2, 9], strides = [1, 1]} : vector<2x512xf32> to vector<2x9xf32>
    %316 = math.tanh %315 : vector<2x9xf32>
    %317 = vector.extract_strided_slice %312 {offsets = [0, 256], sizes = [2, 9], strides = [1, 1]} : vector<2x512xf32> to vector<2x9xf32>
    %318 = vector.extract_strided_slice %312 {offsets = [0, 384], sizes = [2, 9], strides = [1, 1]} : vector<2x512xf32> to vector<2x9xf32>
    %319 = arith.addf %317, %318 : vector<2x9xf32>
    %320 = arith.negf %319 : vector<2x9xf32>
    %321 = math.exp %320 : vector<2x9xf32>
    %cst_91 = arith.constant 1.000000e+00 : f32
    %322 = vector.broadcast %cst_91 : f32 to vector<2x9xf32>
    %323 = arith.addf %322, %321 : vector<2x9xf32>
    %324 = arith.divf %322, %323 : vector<2x9xf32>
    %325 = arith.subf %316, %314 : vector<2x9xf32>
    %326 = arith.mulf %324, %325 : vector<2x9xf32>
    %327 = arith.addf %314, %326 : vector<2x9xf32>
    %cst_92 = arith.constant dense<0.000000e+00> : vector<2x512xf32>
    %328 = tpu.matmul %327, %6, %cst_92 {dimension_numbers = #tpu.dot_dimension_numbers<[1], [0], [0], [1], [0, 0, 1, 1], [], []>} : vector<2x9xf32>, vector<9x512xf32>, vector<2x512xf32> -> vector<2x512xf32>
    %cst_93 = arith.constant dense<0.000000e+00> : vector<2x512xf32>
    %329 = tpu.matmul %279, %7, %cst_93 {dimension_numbers = #tpu.dot_dimension_numbers<[1], [0], [0], [1], [0, 0, 1, 1], [], []>} : vector<2x8xf32>, vector<8x512xf32>, vector<2x512xf32> -> vector<2x512xf32>
    %330 = arith.addf %328, %329 : vector<2x512xf32>
    %331 = vector.broadcast %8 : vector<1x512xf32> to vector<2x512xf32>
    %332 = arith.addf %330, %331 : vector<2x512xf32>
    %333 = vector.extract_strided_slice %332 {offsets = [0, 0], sizes = [2, 8], strides = [1, 1]} : vector<2x512xf32> to vector<2x8xf32>
    %334 = math.tanh %333 : vector<2x8xf32>
    %335 = vector.extract_strided_slice %332 {offsets = [0, 128], sizes = [2, 8], strides = [1, 1]} : vector<2x512xf32> to vector<2x8xf32>
    %336 = math.tanh %335 : vector<2x8xf32>
    %337 = vector.extract_strided_slice %332 {offsets = [0, 256], sizes = [2, 8], strides = [1, 1]} : vector<2x512xf32> to vector<2x8xf32>
    %338 = vector.extract_strided_slice %332 {offsets = [0, 384], sizes = [2, 8], strides = [1, 1]} : vector<2x512xf32> to vector<2x8xf32>
    %339 = arith.addf %337, %338 : vector<2x8xf32>
    %340 = arith.negf %339 : vector<2x8xf32>
    %341 = math.exp %340 : vector<2x8xf32>
    %cst_94 = arith.constant 1.000000e+00 : f32
    %342 = vector.broadcast %cst_94 : f32 to vector<2x8xf32>
    %343 = arith.addf %342, %341 : vector<2x8xf32>
    %344 = arith.divf %342, %343 : vector<2x8xf32>
    %345 = arith.subf %336, %334 : vector<2x8xf32>
    %346 = arith.mulf %344, %345 : vector<2x8xf32>
    %347 = arith.addf %334, %346 : vector<2x8xf32>
    %cst_95 = arith.constant dense<0.000000e+00> : vector<2x128xf32>
    %348 = tpu.matmul %347, %9, %cst_95 {dimension_numbers = #tpu.dot_dimension_numbers<[1], [0], [0], [1], [0, 0, 1, 1], [], []>} : vector<2x8xf32>, vector<8x128xf32>, vector<2x128xf32> -> vector<2x128xf32>
    %349 = vector.broadcast %10 : vector<1x128xf32> to vector<2x128xf32>
    %350 = arith.addf %348, %349 : vector<2x128xf32>
    %c4_96 = arith.constant 4 : index
    %c0_97 = arith.constant 0 : index
    %c0_98 = arith.constant 0 : index
    %351 = vector.load %arg13[%c4_96, %c0_97, %c0_98] : memref<8x2x128xf32, #tpu.memory_space<vmem>>, vector<1x2x128xf32>
    %352 = vector.shape_cast %351 : vector<1x2x128xf32> to vector<2x128xf32>
    %353 = vector.shape_cast %350 : vector<2x128xf32> to vector<1x2x128xf32>
    tpu.vector_store %arg13[%c4_96, %c0_97, %c0_98], %353 {strides = array<i32>} : memref<8x2x128xf32, #tpu.memory_space<vmem>>, vector<1x2x128xf32>,
    %c5 = arith.constant 5 : index
    %c0_99 = arith.constant 0 : index
    %c0_100 = arith.constant 0 : index
    %354 = vector.load %arg1[%c5, %c0_99, %c0_100] : memref<8x2x4xf32, #tpu.memory_space<vmem>>, vector<1x2x4xf32>
    %355 = vector.shape_cast %354 : vector<1x2x4xf32> to vector<2x4xf32>
    %cst_101 = arith.constant dense<0.000000e+00> : vector<2x512xf32>
    %356 = tpu.matmul %355, %0, %cst_101 {dimension_numbers = #tpu.dot_dimension_numbers<[1], [0], [0], [1], [0, 0, 1, 1], [], []>} : vector<2x4xf32>, vector<4x512xf32>, vector<2x512xf32> -> vector<2x512xf32>
    %cst_102 = arith.constant dense<0.000000e+00> : vector<2x512xf32>
    %357 = tpu.matmul %307, %1, %cst_102 {dimension_numbers = #tpu.dot_dimension_numbers<[1], [0], [0], [1], [0, 0, 1, 1], [], []>} : vector<2x15xf32>, vector<15x512xf32>, vector<2x512xf32> -> vector<2x512xf32>
    %358 = arith.addf %356, %357 : vector<2x512xf32>
    %359 = vector.broadcast %2 : vector<1x512xf32> to vector<2x512xf32>
    %360 = arith.addf %358, %359 : vector<2x512xf32>
    %361 = vector.extract_strided_slice %360 {offsets = [0, 0], sizes = [2, 15], strides = [1, 1]} : vector<2x512xf32> to vector<2x15xf32>
    %362 = math.tanh %361 : vector<2x15xf32>
    %363 = vector.extract_strided_slice %360 {offsets = [0, 128], sizes = [2, 15], strides = [1, 1]} : vector<2x512xf32> to vector<2x15xf32>
    %364 = math.tanh %363 : vector<2x15xf32>
    %365 = vector.extract_strided_slice %360 {offsets = [0, 256], sizes = [2, 15], strides = [1, 1]} : vector<2x512xf32> to vector<2x15xf32>
    %366 = vector.extract_strided_slice %360 {offsets = [0, 384], sizes = [2, 15], strides = [1, 1]} : vector<2x512xf32> to vector<2x15xf32>
    %367 = arith.addf %365, %366 : vector<2x15xf32>
    %368 = arith.negf %367 : vector<2x15xf32>
    %369 = math.exp %368 : vector<2x15xf32>
    %cst_103 = arith.constant 1.000000e+00 : f32
    %370 = vector.broadcast %cst_103 : f32 to vector<2x15xf32>
    %371 = arith.addf %370, %369 : vector<2x15xf32>
    %372 = arith.divf %370, %371 : vector<2x15xf32>
    %373 = arith.subf %364, %362 : vector<2x15xf32>
    %374 = arith.mulf %372, %373 : vector<2x15xf32>
    %375 = arith.addf %362, %374 : vector<2x15xf32>
    %cst_104 = arith.constant dense<0.000000e+00> : vector<2x512xf32>
    %376 = tpu.matmul %375, %3, %cst_104 {dimension_numbers = #tpu.dot_dimension_numbers<[1], [0], [0], [1], [0, 0, 1, 1], [], []>} : vector<2x15xf32>, vector<15x512xf32>, vector<2x512xf32> -> vector<2x512xf32>
    %cst_105 = arith.constant dense<0.000000e+00> : vector<2x512xf32>
    %377 = tpu.matmul %327, %4, %cst_105 {dimension_numbers = #tpu.dot_dimension_numbers<[1], [0], [0], [1], [0, 0, 1, 1], [], []>} : vector<2x9xf32>, vector<9x512xf32>, vector<2x512xf32> -> vector<2x512xf32>
    %378 = arith.addf %376, %377 : vector<2x512xf32>
    %379 = vector.broadcast %5 : vector<1x512xf32> to vector<2x512xf32>
    %380 = arith.addf %378, %379 : vector<2x512xf32>
    %381 = vector.extract_strided_slice %380 {offsets = [0, 0], sizes = [2, 9], strides = [1, 1]} : vector<2x512xf32> to vector<2x9xf32>
    %382 = math.tanh %381 : vector<2x9xf32>
    %383 = vector.extract_strided_slice %380 {offsets = [0, 128], sizes = [2, 9], strides = [1, 1]} : vector<2x512xf32> to vector<2x9xf32>
    %384 = math.tanh %383 : vector<2x9xf32>
    %385 = vector.extract_strided_slice %380 {offsets = [0, 256], sizes = [2, 9], strides = [1, 1]} : vector<2x512xf32> to vector<2x9xf32>
    %386 = vector.extract_strided_slice %380 {offsets = [0, 384], sizes = [2, 9], strides = [1, 1]} : vector<2x512xf32> to vector<2x9xf32>
    %387 = arith.addf %385, %386 : vector<2x9xf32>
    %388 = arith.negf %387 : vector<2x9xf32>
    %389 = math.exp %388 : vector<2x9xf32>
    %cst_106 = arith.constant 1.000000e+00 : f32
    %390 = vector.broadcast %cst_106 : f32 to vector<2x9xf32>
    %391 = arith.addf %390, %389 : vector<2x9xf32>
    %392 = arith.divf %390, %391 : vector<2x9xf32>
    %393 = arith.subf %384, %382 : vector<2x9xf32>
    %394 = arith.mulf %392, %393 : vector<2x9xf32>
    %395 = arith.addf %382, %394 : vector<2x9xf32>
    %cst_107 = arith.constant dense<0.000000e+00> : vector<2x512xf32>
    %396 = tpu.matmul %395, %6, %cst_107 {dimension_numbers = #tpu.dot_dimension_numbers<[1], [0], [0], [1], [0, 0, 1, 1], [], []>} : vector<2x9xf32>, vector<9x512xf32>, vector<2x512xf32> -> vector<2x512xf32>
    %cst_108 = arith.constant dense<0.000000e+00> : vector<2x512xf32>
    %397 = tpu.matmul %347, %7, %cst_108 {dimension_numbers = #tpu.dot_dimension_numbers<[1], [0], [0], [1], [0, 0, 1, 1], [], []>} : vector<2x8xf32>, vector<8x512xf32>, vector<2x512xf32> -> vector<2x512xf32>
    %398 = arith.addf %396, %397 : vector<2x512xf32>
    %399 = vector.broadcast %8 : vector<1x512xf32> to vector<2x512xf32>
    %400 = arith.addf %398, %399 : vector<2x512xf32>
    %401 = vector.extract_strided_slice %400 {offsets = [0, 0], sizes = [2, 8], strides = [1, 1]} : vector<2x512xf32> to vector<2x8xf32>
    %402 = math.tanh %401 : vector<2x8xf32>
    %403 = vector.extract_strided_slice %400 {offsets = [0, 128], sizes = [2, 8], strides = [1, 1]} : vector<2x512xf32> to vector<2x8xf32>
    %404 = math.tanh %403 : vector<2x8xf32>
    %405 = vector.extract_strided_slice %400 {offsets = [0, 256], sizes = [2, 8], strides = [1, 1]} : vector<2x512xf32> to vector<2x8xf32>
    %406 = vector.extract_strided_slice %400 {offsets = [0, 384], sizes = [2, 8], strides = [1, 1]} : vector<2x512xf32> to vector<2x8xf32>
    %407 = arith.addf %405, %406 : vector<2x8xf32>
    %408 = arith.negf %407 : vector<2x8xf32>
    %409 = math.exp %408 : vector<2x8xf32>
    %cst_109 = arith.constant 1.000000e+00 : f32
    %410 = vector.broadcast %cst_109 : f32 to vector<2x8xf32>
    %411 = arith.addf %410, %409 : vector<2x8xf32>
    %412 = arith.divf %410, %411 : vector<2x8xf32>
    %413 = arith.subf %404, %402 : vector<2x8xf32>
    %414 = arith.mulf %412, %413 : vector<2x8xf32>
    %415 = arith.addf %402, %414 : vector<2x8xf32>
    %cst_110 = arith.constant dense<0.000000e+00> : vector<2x128xf32>
    %416 = tpu.matmul %415, %9, %cst_110 {dimension_numbers = #tpu.dot_dimension_numbers<[1], [0], [0], [1], [0, 0, 1, 1], [], []>} : vector<2x8xf32>, vector<8x128xf32>, vector<2x128xf32> -> vector<2x128xf32>
    %417 = vector.broadcast %10 : vector<1x128xf32> to vector<2x128xf32>
    %418 = arith.addf %416, %417 : vector<2x128xf32>
    %c5_111 = arith.constant 5 : index
    %c0_112 = arith.constant 0 : index
    %c0_113 = arith.constant 0 : index
    %419 = vector.load %arg13[%c5_111, %c0_112, %c0_113] : memref<8x2x128xf32, #tpu.memory_space<vmem>>, vector<1x2x128xf32>
    %420 = vector.shape_cast %419 : vector<1x2x128xf32> to vector<2x128xf32>
    %421 = vector.shape_cast %418 : vector<2x128xf32> to vector<1x2x128xf32>
    tpu.vector_store %arg13[%c5_111, %c0_112, %c0_113], %421 {strides = array<i32>} : memref<8x2x128xf32, #tpu.memory_space<vmem>>, vector<1x2x128xf32>,
    %c6 = arith.constant 6 : index
    %c0_114 = arith.constant 0 : index
    %c0_115 = arith.constant 0 : index
    %422 = vector.load %arg1[%c6, %c0_114, %c0_115] : memref<8x2x4xf32, #tpu.memory_space<vmem>>, vector<1x2x4xf32>
    %423 = vector.shape_cast %422 : vector<1x2x4xf32> to vector<2x4xf32>
    %cst_116 = arith.constant dense<0.000000e+00> : vector<2x512xf32>
    %424 = tpu.matmul %423, %0, %cst_116 {dimension_numbers = #tpu.dot_dimension_numbers<[1], [0], [0], [1], [0, 0, 1, 1], [], []>} : vector<2x4xf32>, vector<4x512xf32>, vector<2x512xf32> -> vector<2x512xf32>
    %cst_117 = arith.constant dense<0.000000e+00> : vector<2x512xf32>
    %425 = tpu.matmul %375, %1, %cst_117 {dimension_numbers = #tpu.dot_dimension_numbers<[1], [0], [0], [1], [0, 0, 1, 1], [], []>} : vector<2x15xf32>, vector<15x512xf32>, vector<2x512xf32> -> vector<2x512xf32>
    %426 = arith.addf %424, %425 : vector<2x512xf32>
    %427 = vector.broadcast %2 : vector<1x512xf32> to vector<2x512xf32>
    %428 = arith.addf %426, %427 : vector<2x512xf32>
    %429 = vector.extract_strided_slice %428 {offsets = [0, 0], sizes = [2, 15], strides = [1, 1]} : vector<2x512xf32> to vector<2x15xf32>
    %430 = math.tanh %429 : vector<2x15xf32>
    %431 = vector.extract_strided_slice %428 {offsets = [0, 128], sizes = [2, 15], strides = [1, 1]} : vector<2x512xf32> to vector<2x15xf32>
    %432 = math.tanh %431 : vector<2x15xf32>
    %433 = vector.extract_strided_slice %428 {offsets = [0, 256], sizes = [2, 15], strides = [1, 1]} : vector<2x512xf32> to vector<2x15xf32>
    %434 = vector.extract_strided_slice %428 {offsets = [0, 384], sizes = [2, 15], strides = [1, 1]} : vector<2x512xf32> to vector<2x15xf32>
    %435 = arith.addf %433, %434 : vector<2x15xf32>
    %436 = arith.negf %435 : vector<2x15xf32>
    %437 = math.exp %436 : vector<2x15xf32>
    %cst_118 = arith.constant 1.000000e+00 : f32
    %438 = vector.broadcast %cst_118 : f32 to vector<2x15xf32>
    %439 = arith.addf %438, %437 : vector<2x15xf32>
    %440 = arith.divf %438, %439 : vector<2x15xf32>
    %441 = arith.subf %432, %430 : vector<2x15xf32>
    %442 = arith.mulf %440, %441 : vector<2x15xf32>
    %443 = arith.addf %430, %442 : vector<2x15xf32>
    %cst_119 = arith.constant dense<0.000000e+00> : vector<2x512xf32>
    %444 = tpu.matmul %443, %3, %cst_119 {dimension_numbers = #tpu.dot_dimension_numbers<[1], [0], [0], [1], [0, 0, 1, 1], [], []>} : vector<2x15xf32>, vector<15x512xf32>, vector<2x512xf32> -> vector<2x512xf32>
    %cst_120 = arith.constant dense<0.000000e+00> : vector<2x512xf32>
    %445 = tpu.matmul %395, %4, %cst_120 {dimension_numbers = #tpu.dot_dimension_numbers<[1], [0], [0], [1], [0, 0, 1, 1], [], []>} : vector<2x9xf32>, vector<9x512xf32>, vector<2x512xf32> -> vector<2x512xf32>
    %446 = arith.addf %444, %445 : vector<2x512xf32>
    %447 = vector.broadcast %5 : vector<1x512xf32> to vector<2x512xf32>
    %448 = arith.addf %446, %447 : vector<2x512xf32>
    %449 = vector.extract_strided_slice %448 {offsets = [0, 0], sizes = [2, 9], strides = [1, 1]} : vector<2x512xf32> to vector<2x9xf32>
    %450 = math.tanh %449 : vector<2x9xf32>
    %451 = vector.extract_strided_slice %448 {offsets = [0, 128], sizes = [2, 9], strides = [1, 1]} : vector<2x512xf32> to vector<2x9xf32>
    %452 = math.tanh %451 : vector<2x9xf32>
    %453 = vector.extract_strided_slice %448 {offsets = [0, 256], sizes = [2, 9], strides = [1, 1]} : vector<2x512xf32> to vector<2x9xf32>
    %454 = vector.extract_strided_slice %448 {offsets = [0, 384], sizes = [2, 9], strides = [1, 1]} : vector<2x512xf32> to vector<2x9xf32>
    %455 = arith.addf %453, %454 : vector<2x9xf32>
    %456 = arith.negf %455 : vector<2x9xf32>
    %457 = math.exp %456 : vector<2x9xf32>
    %cst_121 = arith.constant 1.000000e+00 : f32
    %458 = vector.broadcast %cst_121 : f32 to vector<2x9xf32>
    %459 = arith.addf %458, %457 : vector<2x9xf32>
    %460 = arith.divf %458, %459 : vector<2x9xf32>
    %461 = arith.subf %452, %450 : vector<2x9xf32>
    %462 = arith.mulf %460, %461 : vector<2x9xf32>
    %463 = arith.addf %450, %462 : vector<2x9xf32>
    %cst_122 = arith.constant dense<0.000000e+00> : vector<2x512xf32>
    %464 = tpu.matmul %463, %6, %cst_122 {dimension_numbers = #tpu.dot_dimension_numbers<[1], [0], [0], [1], [0, 0, 1, 1], [], []>} : vector<2x9xf32>, vector<9x512xf32>, vector<2x512xf32> -> vector<2x512xf32>
    %cst_123 = arith.constant dense<0.000000e+00> : vector<2x512xf32>
    %465 = tpu.matmul %415, %7, %cst_123 {dimension_numbers = #tpu.dot_dimension_numbers<[1], [0], [0], [1], [0, 0, 1, 1], [], []>} : vector<2x8xf32>, vector<8x512xf32>, vector<2x512xf32> -> vector<2x512xf32>
    %466 = arith.addf %464, %465 : vector<2x512xf32>
    %467 = vector.broadcast %8 : vector<1x512xf32> to vector<2x512xf32>
    %468 = arith.addf %466, %467 : vector<2x512xf32>
    %469 = vector.extract_strided_slice %468 {offsets = [0, 0], sizes = [2, 8], strides = [1, 1]} : vector<2x512xf32> to vector<2x8xf32>
    %470 = math.tanh %469 : vector<2x8xf32>
    %471 = vector.extract_strided_slice %468 {offsets = [0, 128], sizes = [2, 8], strides = [1, 1]} : vector<2x512xf32> to vector<2x8xf32>
    %472 = math.tanh %471 : vector<2x8xf32>
    %473 = vector.extract_strided_slice %468 {offsets = [0, 256], sizes = [2, 8], strides = [1, 1]} : vector<2x512xf32> to vector<2x8xf32>
    %474 = vector.extract_strided_slice %468 {offsets = [0, 384], sizes = [2, 8], strides = [1, 1]} : vector<2x512xf32> to vector<2x8xf32>
    %475 = arith.addf %473, %474 : vector<2x8xf32>
    %476 = arith.negf %475 : vector<2x8xf32>
    %477 = math.exp %476 : vector<2x8xf32>
    %cst_124 = arith.constant 1.000000e+00 : f32
    %478 = vector.broadcast %cst_124 : f32 to vector<2x8xf32>
    %479 = arith.addf %478, %477 : vector<2x8xf32>
    %480 = arith.divf %478, %479 : vector<2x8xf32>
    %481 = arith.subf %472, %470 : vector<2x8xf32>
    %482 = arith.mulf %480, %481 : vector<2x8xf32>
    %483 = arith.addf %470, %482 : vector<2x8xf32>
    %cst_125 = arith.constant dense<0.000000e+00> : vector<2x128xf32>
    %484 = tpu.matmul %483, %9, %cst_125 {dimension_numbers = #tpu.dot_dimension_numbers<[1], [0], [0], [1], [0, 0, 1, 1], [], []>} : vector<2x8xf32>, vector<8x128xf32>, vector<2x128xf32> -> vector<2x128xf32>
    %485 = vector.broadcast %10 : vector<1x128xf32> to vector<2x128xf32>
    %486 = arith.addf %484, %485 : vector<2x128xf32>
    %c6_126 = arith.constant 6 : index
    %c0_127 = arith.constant 0 : index
    %c0_128 = arith.constant 0 : index
    %487 = vector.load %arg13[%c6_126, %c0_127, %c0_128] : memref<8x2x128xf32, #tpu.memory_space<vmem>>, vector<1x2x128xf32>
    %488 = vector.shape_cast %487 : vector<1x2x128xf32> to vector<2x128xf32>
    %489 = vector.shape_cast %486 : vector<2x128xf32> to vector<1x2x128xf32>
    tpu.vector_store %arg13[%c6_126, %c0_127, %c0_128], %489 {strides = array<i32>} : memref<8x2x128xf32, #tpu.memory_space<vmem>>, vector<1x2x128xf32>,
    %c7 = arith.constant 7 : index
    %c0_129 = arith.constant 0 : index
    %c0_130 = arith.constant 0 : index
    %490 = vector.load %arg1[%c7, %c0_129, %c0_130] : memref<8x2x4xf32, #tpu.memory_space<vmem>>, vector<1x2x4xf32>
    %491 = vector.shape_cast %490 : vector<1x2x4xf32> to vector<2x4xf32>
    %cst_131 = arith.constant dense<0.000000e+00> : vector<2x512xf32>
    %492 = tpu.matmul %491, %0, %cst_131 {dimension_numbers = #tpu.dot_dimension_numbers<[1], [0], [0], [1], [0, 0, 1, 1], [], []>} : vector<2x4xf32>, vector<4x512xf32>, vector<2x512xf32> -> vector<2x512xf32>
    %cst_132 = arith.constant dense<0.000000e+00> : vector<2x512xf32>
    %493 = tpu.matmul %443, %1, %cst_132 {dimension_numbers = #tpu.dot_dimension_numbers<[1], [0], [0], [1], [0, 0, 1, 1], [], []>} : vector<2x15xf32>, vector<15x512xf32>, vector<2x512xf32> -> vector<2x512xf32>
    %494 = arith.addf %492, %493 : vector<2x512xf32>
    %495 = vector.broadcast %2 : vector<1x512xf32> to vector<2x512xf32>
    %496 = arith.addf %494, %495 : vector<2x512xf32>
    %497 = vector.extract_strided_slice %496 {offsets = [0, 0], sizes = [2, 15], strides = [1, 1]} : vector<2x512xf32> to vector<2x15xf32>
    %498 = math.tanh %497 : vector<2x15xf32>
    %499 = vector.extract_strided_slice %496 {offsets = [0, 128], sizes = [2, 15], strides = [1, 1]} : vector<2x512xf32> to vector<2x15xf32>
    %500 = math.tanh %499 : vector<2x15xf32>
    %501 = vector.extract_strided_slice %496 {offsets = [0, 256], sizes = [2, 15], strides = [1, 1]} : vector<2x512xf32> to vector<2x15xf32>
    %502 = vector.extract_strided_slice %496 {offsets = [0, 384], sizes = [2, 15], strides = [1, 1]} : vector<2x512xf32> to vector<2x15xf32>
    %503 = arith.addf %501, %502 : vector<2x15xf32>
    %504 = arith.negf %503 : vector<2x15xf32>
    %505 = math.exp %504 : vector<2x15xf32>
    %cst_133 = arith.constant 1.000000e+00 : f32
    %506 = vector.broadcast %cst_133 : f32 to vector<2x15xf32>
    %507 = arith.addf %506, %505 : vector<2x15xf32>
    %508 = arith.divf %506, %507 : vector<2x15xf32>
    %509 = arith.subf %500, %498 : vector<2x15xf32>
    %510 = arith.mulf %508, %509 : vector<2x15xf32>
    %511 = arith.addf %498, %510 : vector<2x15xf32>
    %cst_134 = arith.constant dense<0.000000e+00> : vector<2x512xf32>
    %512 = tpu.matmul %511, %3, %cst_134 {dimension_numbers = #tpu.dot_dimension_numbers<[1], [0], [0], [1], [0, 0, 1, 1], [], []>} : vector<2x15xf32>, vector<15x512xf32>, vector<2x512xf32> -> vector<2x512xf32>
    %cst_135 = arith.constant dense<0.000000e+00> : vector<2x512xf32>
    %513 = tpu.matmul %463, %4, %cst_135 {dimension_numbers = #tpu.dot_dimension_numbers<[1], [0], [0], [1], [0, 0, 1, 1], [], []>} : vector<2x9xf32>, vector<9x512xf32>, vector<2x512xf32> -> vector<2x512xf32>
    %514 = arith.addf %512, %513 : vector<2x512xf32>
    %515 = vector.broadcast %5 : vector<1x512xf32> to vector<2x512xf32>
    %516 = arith.addf %514, %515 : vector<2x512xf32>
    %517 = vector.extract_strided_slice %516 {offsets = [0, 0], sizes = [2, 9], strides = [1, 1]} : vector<2x512xf32> to vector<2x9xf32>
    %518 = math.tanh %517 : vector<2x9xf32>
    %519 = vector.extract_strided_slice %516 {offsets = [0, 128], sizes = [2, 9], strides = [1, 1]} : vector<2x512xf32> to vector<2x9xf32>
    %520 = math.tanh %519 : vector<2x9xf32>
    %521 = vector.extract_strided_slice %516 {offsets = [0, 256], sizes = [2, 9], strides = [1, 1]} : vector<2x512xf32> to vector<2x9xf32>
    %522 = vector.extract_strided_slice %516 {offsets = [0, 384], sizes = [2, 9], strides = [1, 1]} : vector<2x512xf32> to vector<2x9xf32>
    %523 = arith.addf %521, %522 : vector<2x9xf32>
    %524 = arith.negf %523 : vector<2x9xf32>
    %525 = math.exp %524 : vector<2x9xf32>
    %cst_136 = arith.constant 1.000000e+00 : f32
    %526 = vector.broadcast %cst_136 : f32 to vector<2x9xf32>
    %527 = arith.addf %526, %525 : vector<2x9xf32>
    %528 = arith.divf %526, %527 : vector<2x9xf32>
    %529 = arith.subf %520, %518 : vector<2x9xf32>
    %530 = arith.mulf %528, %529 : vector<2x9xf32>
    %531 = arith.addf %518, %530 : vector<2x9xf32>
    %cst_137 = arith.constant dense<0.000000e+00> : vector<2x512xf32>
    %532 = tpu.matmul %531, %6, %cst_137 {dimension_numbers = #tpu.dot_dimension_numbers<[1], [0], [0], [1], [0, 0, 1, 1], [], []>} : vector<2x9xf32>, vector<9x512xf32>, vector<2x512xf32> -> vector<2x512xf32>
    %cst_138 = arith.constant dense<0.000000e+00> : vector<2x512xf32>
    %533 = tpu.matmul %483, %7, %cst_138 {dimension_numbers = #tpu.dot_dimension_numbers<[1], [0], [0], [1], [0, 0, 1, 1], [], []>} : vector<2x8xf32>, vector<8x512xf32>, vector<2x512xf32> -> vector<2x512xf32>
    %534 = arith.addf %532, %533 : vector<2x512xf32>
    %535 = vector.broadcast %8 : vector<1x512xf32> to vector<2x512xf32>
    %536 = arith.addf %534, %535 : vector<2x512xf32>
    %537 = vector.extract_strided_slice %536 {offsets = [0, 0], sizes = [2, 8], strides = [1, 1]} : vector<2x512xf32> to vector<2x8xf32>
    %538 = math.tanh %537 : vector<2x8xf32>
    %539 = vector.extract_strided_slice %536 {offsets = [0, 128], sizes = [2, 8], strides = [1, 1]} : vector<2x512xf32> to vector<2x8xf32>
    %540 = math.tanh %539 : vector<2x8xf32>
    %541 = vector.extract_strided_slice %536 {offsets = [0, 256], sizes = [2, 8], strides = [1, 1]} : vector<2x512xf32> to vector<2x8xf32>
    %542 = vector.extract_strided_slice %536 {offsets = [0, 384], sizes = [2, 8], strides = [1, 1]} : vector<2x512xf32> to vector<2x8xf32>
    %543 = arith.addf %541, %542 : vector<2x8xf32>
    %544 = arith.negf %543 : vector<2x8xf32>
    %545 = math.exp %544 : vector<2x8xf32>
    %cst_139 = arith.constant 1.000000e+00 : f32
    %546 = vector.broadcast %cst_139 : f32 to vector<2x8xf32>
    %547 = arith.addf %546, %545 : vector<2x8xf32>
    %548 = arith.divf %546, %547 : vector<2x8xf32>
    %549 = arith.subf %540, %538 : vector<2x8xf32>
    %550 = arith.mulf %548, %549 : vector<2x8xf32>
    %551 = arith.addf %538, %550 : vector<2x8xf32>
    %cst_140 = arith.constant dense<0.000000e+00> : vector<2x128xf32>
    %552 = tpu.matmul %551, %9, %cst_140 {dimension_numbers = #tpu.dot_dimension_numbers<[1], [0], [0], [1], [0, 0, 1, 1], [], []>} : vector<2x8xf32>, vector<8x128xf32>, vector<2x128xf32> -> vector<2x128xf32>
    %553 = vector.broadcast %10 : vector<1x128xf32> to vector<2x128xf32>
    %554 = arith.addf %552, %553 : vector<2x128xf32>
    %c7_141 = arith.constant 7 : index
    %c0_142 = arith.constant 0 : index
    %c0_143 = arith.constant 0 : index
    %555 = vector.load %arg13[%c7_141, %c0_142, %c0_143] : memref<8x2x128xf32, #tpu.memory_space<vmem>>, vector<1x2x128xf32>
    %556 = vector.shape_cast %555 : vector<1x2x128xf32> to vector<2x128xf32>
    %557 = vector.shape_cast %554 : vector<2x128xf32> to vector<1x2x128xf32>
    tpu.vector_store %arg13[%c7_141, %c0_142, %c0_143], %557 {strides = array<i32>} : memref<8x2x128xf32, #tpu.memory_space<vmem>>, vector<1x2x128xf32>,
    return
  }
  func.func @transform_0(%arg0: i32) -> (i32, i32, i32) {
    %c0_i32 = arith.constant 0 : i32
    %c0_i32_0 = arith.constant 0 : i32
    %c0_i32_1 = arith.constant 0 : i32
    %c0_i32_2 = arith.constant 0 : i32
    return %c0_i32, %c0_i32_0, %c0_i32_1 : i32, i32, i32
  }
  func.func @transform_1(%arg0: i32) -> (i32, i32) {
    %c0_i32 = arith.constant 0 : i32
    %c0_i32_0 = arith.constant 0 : i32
    %c0_i32_1 = arith.constant 0 : i32
    return %c0_i32, %c0_i32_0 : i32, i32
  }
  func.func @transform_2(%arg0: i32) -> (i32, i32) {
    %c0_i32 = arith.constant 0 : i32
    %c0_i32_0 = arith.constant 0 : i32
    %c0_i32_1 = arith.constant 0 : i32
    return %c0_i32, %c0_i32_0 : i32, i32
  }
  func.func @transform_3(%arg0: i32) -> (i32, i32) {
    %c0_i32 = arith.constant 0 : i32
    %c0_i32_0 = arith.constant 0 : i32
    %c0_i32_1 = arith.constant 0 : i32
    return %c0_i32, %c0_i32_0 : i32, i32
  }
  func.func @transform_4(%arg0: i32) -> (i32, i32) {
    %c0_i32 = arith.constant 0 : i32
    %c0_i32_0 = arith.constant 0 : i32
    %c0_i32_1 = arith.constant 0 : i32
    return %c0_i32, %c0_i32_0 : i32, i32
  }
  func.func @transform_5(%arg0: i32) -> (i32, i32) {
    %c0_i32 = arith.constant 0 : i32
    %c0_i32_0 = arith.constant 0 : i32
    %c0_i32_1 = arith.constant 0 : i32
    return %c0_i32, %c0_i32_0 : i32, i32
  }
  func.func @transform_6(%arg0: i32) -> (i32, i32) {
    %c0_i32 = arith.constant 0 : i32
    %c0_i32_0 = arith.constant 0 : i32
    %c0_i32_1 = arith.constant 0 : i32
    return %c0_i32, %c0_i32_0 : i32, i32
  }
  func.func @transform_7(%arg0: i32) -> (i32, i32) {
    %c0_i32 = arith.constant 0 : i32
    %c0_i32_0 = arith.constant 0 : i32
    %c0_i32_1 = arith.constant 0 : i32
    return %c0_i32, %c0_i32_0 : i32, i32
  }
  func.func @transform_8(%arg0: i32) -> (i32, i32) {
    %c0_i32 = arith.constant 0 : i32
    %c0_i32_0 = arith.constant 0 : i32
    %c0_i32_1 = arith.constant 0 : i32
    return %c0_i32, %c0_i32_0 : i32, i32
  }
  func.func @transform_9(%arg0: i32) -> (i32, i32) {
    %c0_i32 = arith.constant 0 : i32
    %c0_i32_0 = arith.constant 0 : i32
    %c0_i32_1 = arith.constant 0 : i32
    return %c0_i32, %c0_i32_0 : i32, i32
  }
  func.func @transform_10(%arg0: i32) -> (i32, i32) {
    %c0_i32 = arith.constant 0 : i32
    %c0_i32_0 = arith.constant 0 : i32
    %c0_i32_1 = arith.constant 0 : i32
    return %c0_i32, %c0_i32_0 : i32, i32
  }
  func.func @transform_11(%arg0: i32) -> (i32, i32) {
    %c0_i32 = arith.constant 0 : i32
    %c0_i32_0 = arith.constant 0 : i32
    %c0_i32_1 = arith.constant 0 : i32
    return %c0_i32, %c0_i32_0 : i32, i32
  }
  func.func @transform_12(%arg0: i32) -> (i32, i32, i32) {
    %c0_i32 = arith.constant 0 : i32
    %c0_i32_0 = arith.constant 0 : i32
    %c0_i32_1 = arith.constant 0 : i32
    %c0_i32_2 = arith.constant 0 : i32
    return %c0_i32, %c0_i32_0, %c0_i32_1 : i32, i32, i32
  }
}

</mosaic_0001>

<llo_original>
// kernel: tpu_custom_call.1
$region0: #{tpu_custom_call.1}
  #allocation0 [shape = 'u32[]', space=smem, size = 0x4, offset = 0x4, fixed_abs, tag = 'smem constant byte address 0x4 - core index']
  #allocation1 [shape = 'u32[144,128]{1,0:T(1,128)}', space=vmem, size = 0x12000, scoped, tag = 'internal scratch']
  %s0 = inlined_call_operand.vmem [shape: f32[8,2,4], index: 0, kind: input, shape index: {}]
  %s1 = inlined_call_operand.vmem [shape: f32[4,512], index: 1, kind: input, shape index: {}]
  %s2 = inlined_call_operand.hbm [shape: f32[15,512], index: 2, kind: input, shape index: {}]
  %s3 = inlined_call_operand.hbm [shape: f32[1,512], index: 3, kind: input, shape index: {}]
  %s4 = inlined_call_operand.hbm [shape: f32[15,512], index: 4, kind: input, shape index: {}]
  %s5 = inlined_call_operand.hbm [shape: f32[9,512], index: 5, kind: input, shape index: {}]
  %s6 = inlined_call_operand.hbm [shape: f32[1,512], index: 6, kind: input, shape index: {}]
  %s7 = inlined_call_operand.hbm [shape: f32[9,512], index: 7, kind: input, shape index: {}]
  %s8 = inlined_call_operand.vmem [shape: f32[8,512], index: 8, kind: input, shape index: {}]
  %s9 = inlined_call_operand.hbm [shape: f32[1,512], index: 9, kind: input, shape index: {}]
  %s10 = inlined_call_operand.vmem [shape: f32[8,128], index: 10, kind: input, shape index: {}]
  %s11 = inlined_call_operand.vmem [shape: f32[1,128], index: 11, kind: input, shape index: {}]
  %s12 = inlined_call_operand.hbm [shape: f32[8,2,128], index: 12, kind: output, shape index: {}]
  %s13 = sld [smem:[#allocation0]]
  $region86: #{tpu_custom_call.1} parent=0
    _
  %s15 = ssub.s32 1, %s13
  %s16 = scalar_select 0, %s15, %s13
  $region1: #{tpu_custom_call.1} parent=0
    #allocation2 [shape = 'u8[32768]{0}', space=vmem, size = 0x8000, scoped, tag = 'input window, operand 2, single buffered']
    #allocation3 [shape = 's32[1]{0}', space=sflag, size = 0x4, scoped, tag = 'scoped memory for tpu_custom_call.1']
    #allocation4 [shape = 's32[1]{0}', space=sflag, size = 0x4, scoped, tag = 'scoped memory for tpu_custom_call.1']
    #allocation5 [shape = 'u8[2048]{0}', space=vmem, size = 0x800, scoped, tag = 'input window, operand 3, single buffered']
    #allocation6 [shape = 's32[1]{0}', space=sflag, size = 0x4, scoped, tag = 'scoped memory for tpu_custom_call.1']
    #allocation7 [shape = 'u8[32768]{0}', space=vmem, size = 0x8000, scoped, tag = 'input window, operand 4, single buffered']
    #allocation8 [shape = 'u8[32768]{0}', space=vmem, size = 0x8000, scoped, tag = 'input window, operand 5, single buffered']
    #allocation9 [shape = 's32[1]{0}', space=sflag, size = 0x4, scoped, tag = 'scoped memory for tpu_custom_call.1']
    #allocation10 [shape = 'u8[2048]{0}', space=vmem, size = 0x800, scoped, tag = 'input window, operand 6, single buffered']
    #allocation11 [shape = 'u8[32768]{0}', space=vmem, size = 0x8000, scoped, tag = 'input window, operand 7, single buffered']
    #allocation12 [shape = 's32[1]{0}', space=sflag, size = 0x4, scoped, tag = 'scoped memory for tpu_custom_call.1']
    #allocation13 [shape = 'u8[2048]{0}', space=vmem, size = 0x800, scoped, tag = 'input window, operand 9, single buffered']
    #allocation14 [shape = 'u8[8192]{0}', space=vmem, size = 0x2000, scoped, tag = 'output window, operand 0, single buffered']
    %17 = vsyncpa [#allocation3], 0
    %18 = vsyncpa [#allocation6], 0
    %19 = vsyncpa [#allocation9], 0
    %20 = vsyncpa [#allocation12], 0
    %21 = vsyncpa [#allocation4], 0
    // Predicated region
    $region2: #{tpu_custom_call.1} parent=1 // pred_check
      _
    $region3: #{tpu_custom_call.1} parent=1 // pred_check_branch
      %23 = sbr.rel (0) target = $region5
    $region4: #{tpu_custom_call.1} parent=1 // pred_region
      _
    $region5: #{tpu_custom_call.1} parent=1 // pred_fallthru
      _
    // Predicated region
    $region6: #{tpu_custom_call.1} parent=1 // pred_check
      _
    $region7: #{tpu_custom_call.1} parent=1 // pred_check_branch
      %25 = sbr.rel (0) target = $region9
    $region8: #{tpu_custom_call.1} parent=1 // pred_region
      _
    $region9: #{tpu_custom_call.1} parent=1 // pred_fallthru
      _
    // Predicated region
    $region10: #{tpu_custom_call.1} parent=1 // pred_check
      _
    $region11: #{tpu_custom_call.1} parent=1 // pred_check_branch
      %27 = sbr.rel (0) target = $region13
    $region12: #{tpu_custom_call.1} parent=1 // pred_region
      %s29 = ssub.s32 1024, 1024
      %30 = vsyncadd [#allocation3], %s29
      %s31 = sshll.u32 [#allocation2], 4
      %s32 = int_to_ptr.vmem [resolvable:$true] %s31
      %37 = dma.hbm_to_vmem [thread:$0]  %s2, 1024, %s32, [#allocation3], 512, 512, 32
    $region13: #{tpu_custom_call.1} parent=1 // pred_fallthru
      _
    // Predicated region
    $region14: #{tpu_custom_call.1} parent=1 // pred_check
      _
    $region15: #{tpu_custom_call.1} parent=1 // pred_check_branch
      %39 = sbr.rel (0) target = $region17
    $region16: #{tpu_custom_call.1} parent=1 // pred_region
      %s41 = ssub.s32 64, 64
      %42 = vsyncadd [#allocation6], %s41
      %s44 = sshll.u32 [#allocation5], 4
      %s45 = int_to_ptr.vmem [resolvable:$true] %s44
      %47 = dma.hbm_to_vmem [thread:$0]  %s3, 64, %s45, [#allocation6]
    $region17: #{tpu_custom_call.1} parent=1 // pred_fallthru
      _
    // Predicated region
    $region18: #{tpu_custom_call.1} parent=1 // pred_check
      _
    $region19: #{tpu_custom_call.1} parent=1 // pred_check_branch
      %49 = sbr.rel (0) target = $region21
    $region20: #{tpu_custom_call.1} parent=1 // pred_region
      %s51 = ssub.s32 1024, 1024
      %52 = vsyncadd [#allocation6], %s51
      %s53 = sshll.u32 [#allocation7], 4
      %s54 = int_to_ptr.vmem [resolvable:$true] %s53
      %59 = dma.hbm_to_vmem [thread:$0]  %s4, 1024, %s54, [#allocation6], 512, 512, 32
    $region21: #{tpu_custom_call.1} parent=1 // pred_fallthru
      _
    // Predicated region
    $region22: #{tpu_custom_call.1} parent=1 // pred_check
      _
    $region23: #{tpu_custom_call.1} parent=1 // pred_check_branch
      %61 = sbr.rel (0) target = $region25
    $region24: #{tpu_custom_call.1} parent=1 // pred_region
      %s63 = ssub.s32 1024, 1024
      %64 = vsyncadd [#allocation9], %s63
      %s65 = sshll.u32 [#allocation8], 4
      %s66 = int_to_ptr.vmem [resolvable:$true] %s65
      %71 = dma.hbm_to_vmem [thread:$0]  %s5, 1024, %s66, [#allocation9], 512, 512, 32
    $region25: #{tpu_custom_call.1} parent=1 // pred_fallthru
      _
    // Predicated region
    $region26: #{tpu_custom_call.1} parent=1 // pred_check
      _
    $region27: #{tpu_custom_call.1} parent=1 // pred_check_branch
      %73 = sbr.rel (0) target = $region29
    $region28: #{tpu_custom_call.1} parent=1 // pred_region
      %s75 = ssub.s32 64, 64
      %76 = vsyncadd [#allocation9], %s75
      %s78 = sshll.u32 [#allocation10], 4
      %s79 = int_to_ptr.vmem [resolvable:$true] %s78
      %81 = dma.hbm_to_vmem [thread:$0]  %s6, 64, %s79, [#allocation9]
    $region29: #{tpu_custom_call.1} parent=1 // pred_fallthru
      _
    // Predicated region
    $region30: #{tpu_custom_call.1} parent=1 // pred_check
      _
    $region31: #{tpu_custom_call.1} parent=1 // pred_check_branch
      %83 = sbr.rel (0) target = $region33
    $region32: #{tpu_custom_call.1} parent=1 // pred_region
      %s85 = ssub.s32 1024, 1024
      %86 = vsyncadd [#allocation12], %s85
      %s87 = sshll.u32 [#allocation11], 4
      %s88 = int_to_ptr.vmem [resolvable:$true] %s87
      %93 = dma.hbm_to_vmem [thread:$0]  %s7, 1024, %s88, [#allocation12], 512, 512, 32
    $region33: #{tpu_custom_call.1} parent=1 // pred_fallthru
      _
    // Predicated region
    $region34: #{tpu_custom_call.1} parent=1 // pred_check
      _
    $region35: #{tpu_custom_call.1} parent=1 // pred_check_branch
      %95 = sbr.rel (0) target = $region37
    $region36: #{tpu_custom_call.1} parent=1 // pred_region
      _
    $region37: #{tpu_custom_call.1} parent=1 // pred_fallthru
      _
    // Predicated region
    $region38: #{tpu_custom_call.1} parent=1 // pred_check
      _
    $region39: #{tpu_custom_call.1} parent=1 // pred_check_branch
      %97 = sbr.rel (0) target = $region41
    $region40: #{tpu_custom_call.1} parent=1 // pred_region
      %s99 = ssub.s32 64, 64
      %100 = vsyncadd [#allocation12], %s99
      %s102 = sshll.u32 [#allocation13], 4
      %s103 = int_to_ptr.vmem [resolvable:$true] %s102
      %105 = dma.hbm_to_vmem [thread:$0]  %s9, 64, %s103, [#allocation12]
    $region41: #{tpu_custom_call.1} parent=1 // pred_fallthru
      _
    // Predicated region
    $region42: #{tpu_custom_call.1} parent=1 // pred_check
      _
    $region43: #{tpu_custom_call.1} parent=1 // pred_check_branch
      %107 = sbr.rel (0) target = $region45
    $region44: #{tpu_custom_call.1} parent=1 // pred_region
      _
    $region45: #{tpu_custom_call.1} parent=1 // pred_fallthru
      _
    // Predicated region
    $region46: #{tpu_custom_call.1} parent=1 // pred_check
      _
    $region47: #{tpu_custom_call.1} parent=1 // pred_check_branch
      %109 = sbr.rel (0) target = $region49
    $region48: #{tpu_custom_call.1} parent=1 // pred_region
      _
    $region49: #{tpu_custom_call.1} parent=1 // pred_fallthru
      _
    // Predicated region
    $region50: #{tpu_custom_call.1} parent=1 // pred_check
      _
    $region51: #{tpu_custom_call.1} parent=1 // pred_check_branch
      %111 = sbr.rel (0) target = $region53
    $region52: #{tpu_custom_call.1} parent=1 // pred_region
      %112 = dma.done [#allocation3], 1024
    $region53: #{tpu_custom_call.1} parent=1 // pred_fallthru
      _
    // Predicated region
    $region54: #{tpu_custom_call.1} parent=1 // pred_check
      _
    $region55: #{tpu_custom_call.1} parent=1 // pred_check_branch
      %114 = sbr.rel (0) target = $region57
    $region56: #{tpu_custom_call.1} parent=1 // pred_region
      %115 = dma.done [#allocation6], 64
    $region57: #{tpu_custom_call.1} parent=1 // pred_fallthru
      _
    // Predicated region
    $region58: #{tpu_custom_call.1} parent=1 // pred_check
      _
    $region59: #{tpu_custom_call.1} parent=1 // pred_check_branch
      %117 = sbr.rel (0) target = $region61
    $region60: #{tpu_custom_call.1} parent=1 // pred_region
      %118 = dma.done [#allocation6], 1024
    $region61: #{tpu_custom_call.1} parent=1 // pred_fallthru
      _
    // Predicated region
    $region62: #{tpu_custom_call.1} parent=1 // pred_check
      _
    $region63: #{tpu_custom_call.1} parent=1 // pred_check_branch
      %120 = sbr.rel (0) target = $region65
    $region64: #{tpu_custom_call.1} parent=1 // pred_region
      %121 = dma.done [#allocation9], 1024
    $region65: #{tpu_custom_call.1} parent=1 // pred_fallthru
      _
    // Predicated region
    $region66: #{tpu_custom_call.1} parent=1 // pred_check
      _
    $region67: #{tpu_custom_call.1} parent=1 // pred_check_branch
      %123 = sbr.rel (0) target = $region69
    $region68: #{tpu_custom_call.1} parent=1 // pred_region
      %124 = dma.done [#allocation9], 64
    $region69: #{tpu_custom_call.1} parent=1 // pred_fallthru
      _
    // Predicated region
    $region70: #{tpu_custom_call.1} parent=1 // pred_check
      _
    $region71: #{tpu_custom_call.1} parent=1 // pred_check_branch
      %126 = sbr.rel (0) target = $region73
    $region72: #{tpu_custom_call.1} parent=1 // pred_region
      %127 = dma.done [#allocation12], 1024
    $region73: #{tpu_custom_call.1} parent=1 // pred_fallthru
      _
    // Predicated region
    $region74: #{tpu_custom_call.1} parent=1 // pred_check
      _
    $region75: #{tpu_custom_call.1} parent=1 // pred_check_branch
      %129 = sbr.rel (0) target = $region77
    $region76: #{tpu_custom_call.1} parent=1 // pred_region
      %130 = dma.done [#allocation12], 64
    $region77: #{tpu_custom_call.1} parent=1 // pred_fallthru
      _
    %v131 = vld [vmem:[%s1] sm:$0xff]
    %v132 = vld [vmem:[%s1 + $0x8] sm:$0xff]
    %v133 = vld [vmem:[#allocation2] sm:$0xff]
    %v134 = vld [vmem:[#allocation2 + $0x8] sm:$0xff]
    %v135 = vld [vmem:[#allocation2 + $0x10] sm:$0xff]
    %v136 = vld [vmem:[#allocation2 + $0x18] sm:$0xff]
    %v137 = vld [vmem:[#allocation2 + $0x20] sm:$0x7f]
    %v138 = vld [vmem:[#allocation2 + $0x28] sm:$0x7f]
    %v139 = vld [vmem:[#allocation2 + $0x30] sm:$0x7f]
    %v140 = vld [vmem:[#allocation2 + $0x38] sm:$0x7f]
    %v141 = vld [vmem:[#allocation5] sm:$0xf]
    %v142 = vld [vmem:[#allocation7] sm:$0xff]
    %v143 = vld [vmem:[#allocation7 + $0x8] sm:$0xff]
    %v144 = vld [vmem:[#allocation7 + $0x10] sm:$0xff]
    %v145 = vld [vmem:[#allocation7 + $0x18] sm:$0xff]
    %v146 = vld [vmem:[#allocation7 + $0x20] sm:$0x7f]
    %v147 = vld [vmem:[#allocation7 + $0x28] sm:$0x7f]
    %v148 = vld [vmem:[#allocation7 + $0x30] sm:$0x7f]
    %v149 = vld [vmem:[#allocation7 + $0x38] sm:$0x7f]
    %v150 = vld [vmem:[#allocation8] sm:$0xff]
    %v151 = vld [vmem:[#allocation8 + $0x8] sm:$0xff]
    %v152 = vld [vmem:[#allocation8 + $0x10] sm:$0xff]
    %v153 = vld [vmem:[#allocation8 + $0x18] sm:$0xff]
    %v154 = vld [vmem:[#allocation8 + $0x20] sm:$0x1]
    %v155 = vld [vmem:[#allocation8 + $0x28] sm:$0x1]
    %v156 = vld [vmem:[#allocation8 + $0x30] sm:$0x1]
    %v157 = vld [vmem:[#allocation8 + $0x38] sm:$0x1]
    %v158 = vld [vmem:[#allocation10] sm:$0xf]
    %v159 = vld [vmem:[#allocation11] sm:$0xff]
    %v160 = vld [vmem:[#allocation11 + $0x8] sm:$0xff]
    %v161 = vld [vmem:[#allocation11 + $0x10] sm:$0xff]
    %v162 = vld [vmem:[#allocation11 + $0x18] sm:$0xff]
    %v163 = vld [vmem:[#allocation11 + $0x20] sm:$0x1]
    %v164 = vld [vmem:[#allocation11 + $0x28] sm:$0x1]
    %v165 = vld [vmem:[#allocation11 + $0x30] sm:$0x1]
    %v166 = vld [vmem:[#allocation11 + $0x38] sm:$0x1]
    %v167 = vld [vmem:[%s8] sm:$0xff]
    %v168 = vld [vmem:[%s8 + $0x8] sm:$0xff]
    %v169 = vld [vmem:[%s8 + $0x10] sm:$0xff]
    %v170 = vld [vmem:[%s8 + $0x18] sm:$0xff]
    %v171 = vld [vmem:[#allocation13] sm:$0xf]
    %v172 = vld [vmem:[%s10] sm:$0xff]
    %v173 = vld [vmem:[%s11] sm:$0x1]
    %v174 = vld [vmem:[%s0] sm:$0x3]
    %vm175 = vcmask 121856
    %v177 = vsel %vm175, 0.0, 0
    %vm179 = vcmask 1046528
    %v181 = vsel %vm179, %v137, 0
    %v184 = vsel %vm179, %v138, 0
    %v187 = vsel %vm179, %v139, 0
    %v190 = vsel %vm179, %v140, 0
    %192 = vmatprep.subr.mxu0 %v134
    %193 = vmatpush1.msra.mxu0 %v133
    %194 = vmatprep.subr.mxu0 %v184
    %195 = vmatpush1.msra.mxu0 %v181
    %196 = vmatprep.subr.mxu0 0.0
    %197 = vmatpush1.msra.mxu0 0.0
    %198 = vmatprep.subr.mxu0 0.0
    %199 = vmatpush1.msra.mxu0 0.0
    %200 = vmatprep.subr.mxu0 0.0
    %201 = vmatpush1.msra.mxu0 0.0
    %202 = vmatprep.subr.mxu0 0.0
    %203 = vmatpush1.msra.mxu0 0.0
    %204 = vmatprep.subr.mxu0 0.0
    %205 = vmatpush1.msra.mxu0 0.0
    %206 = vmatprep.subr.mxu0 0.0
    %207 = vmatpush1.msra.mxu0 0.0
    %208 = vmatprep.subr.mxu0 0.0
    %209 = vmatpush1.msra.mxu0 0.0
    %210 = vmatprep.subr.mxu0 0.0
    %211 = vmatpush1.msra.mxu0 0.0
    %212 = vmatprep.subr.mxu0 0.0
    %213 = vmatpush1.msra.mxu0 0.0
    %214 = vmatprep.subr.mxu0 0.0
    %215 = vmatpush1.msra.mxu0 0.0
    %216 = vmatprep.subr.mxu0 0.0
    %217 = vmatpush1.msra.mxu0 0.0
    %218 = vmatprep.subr.mxu0 0.0
    %219 = vmatpush1.msra.mxu0 0.0
    %220 = vmatprep.subr.mxu0 0.0
    %221 = vmatpush1.msra.mxu0 0.0
    %222 = vmatprep.subr.mxu0 0.0
    %223 = vmatpush1.msra.mxu0 0.0
    %224 = vmatprep.subr.mxu0 0.0
    %225 = vmatpush1.msra.mxu0 0.0
    %226 = vmatprep.subr.mxu0 0.0
    %227 = vmatpush1.msra.mxu0 0.0
    %228 = vmatprep.subr.mxu0 0.0
    %229 = vmatpush1.msra.mxu0 0.0
    %230 = vmatprep.subr.mxu0 0.0
    %231 = vmatpush1.msra.mxu0 0.0
    %232 = vmatprep.subr.mxu0 0.0
    %233 = vmatpush1.msra.mxu0 0.0
    %234 = vmatprep.subr.mxu0 0.0
    %235 = vmatpush1.msra.mxu0 0.0
    %236 = vmatprep.subr.mxu0 0.0
    %237 = vmatpush1.msra.mxu0 0.0
    %238 = vmatprep.subr.mxu0 0.0
    %239 = vmatpush1.msra.mxu0 0.0
    %240 = vmatprep.subr.mxu0 0.0
    %241 = vmatpush1.msra.mxu0 0.0
    %242 = vmatprep.subr.mxu0 0.0
    %243 = vmatpush1.msra.mxu0 0.0
    %244 = vmatprep.subr.mxu0 0.0
    %245 = vmatpush1.msra.mxu0 0.0
    %246 = vmatprep.subr.mxu0 0.0
    %247 = vmatpush1.msra.mxu0 0.0
    %248 = vmatprep.subr.mxu0 0.0
    %249 = vmatpush1.msra.mxu0 0.0
    %250 = vmatprep.subr.mxu0 0.0
    %251 = vmatpush1.msra.mxu0 0.0
    %252 = vmatprep.subr.mxu0 0.0
    %253 = vmatpush1.msra.mxu0 0.0
    %254 = vmatprep.subr.mxu0 0.0
    %255 = vmatpush1.msra.mxu0 0.0
    %256 = vmatprep.mubr.f32.mxu0 0.0
    %257 = vmatmul.mubr.f32.gmra.mrb[0].mxu0 %v177
    %v258 = vpop.f32.mrb[0].mxu0
    %v259 = vadd.f32 0.0, %v258
    %v260 = vpop.f32.mrb[0].mxu0
    %v261 = vadd.f32 0.0, %v260
    %262 = vdwg.mxu0
    %263 = vmatprep.subr.mxu0 %v136
    %264 = vmatpush1.msra.mxu0 %v135
    %265 = vmatprep.subr.mxu0 %v190
    %266 = vmatpush1.msra.mxu0 %v187
    %267 = vmatprep.subr.mxu0 0.0
    %268 = vmatpush1.msra.mxu0 0.0
    %269 = vmatprep.subr.mxu0 0.0
    %270 = vmatpush1.msra.mxu0 0.0
    %271 = vmatprep.subr.mxu0 0.0
    %272 = vmatpush1.msra.mxu0 0.0
    %273 = vmatprep.subr.mxu0 0.0
    %274 = vmatpush1.msra.mxu0 0.0
    %275 = vmatprep.subr.mxu0 0.0
    %276 = vmatpush1.msra.mxu0 0.0
    %277 = vmatprep.subr.mxu0 0.0
    %278 = vmatpush1.msra.mxu0 0.0
    %279 = vmatprep.subr.mxu0 0.0
    %280 = vmatpush1.msra.mxu0 0.0
    %281 = vmatprep.subr.mxu0 0.0
    %282 = vmatpush1.msra.mxu0 0.0
    %283 = vmatprep.subr.mxu0 0.0
    %284 = vmatpush1.msra.mxu0 0.0
    %285 = vmatprep.subr.mxu0 0.0
    %286 = vmatpush1.msra.mxu0 0.0
    %287 = vmatprep.subr.mxu0 0.0
    %288 = vmatpush1.msra.mxu0 0.0
    %289 = vmatprep.subr.mxu0 0.0
    %290 = vmatpush1.msra.mxu0 0.0
    %291 = vmatprep.subr.mxu0 0.0
    %292 = vmatpush1.msra.mxu0 0.0
    %293 = vmatprep.subr.mxu0 0.0
    %294 = vmatpush1.msra.mxu0 0.0
    %295 = vmatprep.subr.mxu0 0.0
    %296 = vmatpush1.msra.mxu0 0.0
    %297 = vmatprep.subr.mxu0 0.0
    %298 = vmatpush1.msra.mxu0 0.0
    %299 = vmatprep.subr.mxu0 0.0
    %300 = vmatpush1.msra.mxu0 0.0
    %301 = vmatprep.subr.mxu0 0.0
    %302 = vmatpush1.msra.mxu0 0.0
    %303 = vmatprep.subr.mxu0 0.0
    %304 = vmatpush1.msra.mxu0 0.0
    %305 = vmatprep.subr.mxu0 0.0
    %306 = vmatpush1.msra.mxu0 0.0
    %307 = vmatprep.subr.mxu0 0.0
    %308 = vmatpush1.msra.mxu0 0.0
    %309 = vmatprep.subr.mxu0 0.0
    %310 = vmatpush1.msra.mxu0 0.0
    %311 = vmatprep.subr.mxu0 0.0
    %312 = vmatpush1.msra.mxu0 0.0
    %313 = vmatprep.subr.mxu0 0.0
    %314 = vmatpush1.msra.mxu0 0.0
    %315 = vmatprep.subr.mxu0 0.0
    %316 = vmatpush1.msra.mxu0 0.0
    %317 = vmatprep.subr.mxu0 0.0
    %318 = vmatpush1.msra.mxu0 0.0
    %319 = vmatprep.subr.mxu0 0.0
    %320 = vmatpush1.msra.mxu0 0.0
    %321 = vmatprep.subr.mxu0 0.0
    %322 = vmatpush1.msra.mxu0 0.0
    %323 = vmatprep.subr.mxu0 0.0
    %324 = vmatpush1.msra.mxu0 0.0
    %325 = vmatprep.subr.mxu0 0.0
    %326 = vmatpush1.msra.mxu0 0.0
    %327 = vmatprep.mubr.f32.mxu0 0.0
    %328 = vmatmul.mubr.f32.gmra.mrb[0].mxu0 %v177
    %v329 = vpop.f32.mrb[0].mxu0
    %v330 = vadd.f32 0.0, %v329
    %v331 = vpop.f32.mrb[0].mxu0
    %v332 = vadd.f32 0.0, %v331
    %333 = vdwg.mxu0
    %v336 = vcombine.high %v131, %v131
    %v337 = vcombine.high %v132, %v132
    %vm338 = vcmask 31744
    %v340 = vsel %vm338, %v174, 0
    %vm342 = vcmask 1043456
    %v343 = vsel %vm342, %v131, 0
    %v345 = vsel %vm342, %v336, 0
    %v347 = vsel %vm342, %v132, 0
    %v349 = vsel %vm342, %v337, 0
    %351 = vmatprep.subr.mxu0 %v345
    %352 = vmatpush1.msra.mxu0 %v343
    %353 = vmatprep.subr.mxu0 0.0
    %354 = vmatpush1.msra.mxu0 0.0
    %355 = vmatprep.subr.mxu0 0.0
    %356 = vmatpush1.msra.mxu0 0.0
    %357 = vmatprep.subr.mxu0 0.0
    %358 = vmatpush1.msra.mxu0 0.0
    %359 = vmatprep.subr.mxu0 0.0
    %360 = vmatpush1.msra.mxu0 0.0
    %361 = vmatprep.subr.mxu0 0.0
    %362 = vmatpush1.msra.mxu0 0.0
    %363 = vmatprep.subr.mxu0 0.0
    %364 = vmatpush1.msra.mxu0 0.0
    %365 = vmatprep.subr.mxu0 0.0
    %366 = vmatpush1.msra.mxu0 0.0
    %367 = vmatprep.subr.mxu0 0.0
    %368 = vmatpush1.msra.mxu0 0.0
    %369 = vmatprep.subr.mxu0 0.0
    %370 = vmatpush1.msra.mxu0 0.0
    %371 = vmatprep.subr.mxu0 0.0
    %372 = vmatpush1.msra.mxu0 0.0
    %373 = vmatprep.subr.mxu0 0.0
    %374 = vmatpush1.msra.mxu0 0.0
    %375 = vmatprep.subr.mxu0 0.0
    %376 = vmatpush1.msra.mxu0 0.0
    %377 = vmatprep.subr.mxu0 0.0
    %378 = vmatpush1.msra.mxu0 0.0
    %379 = vmatprep.subr.mxu0 0.0
    %380 = vmatpush1.msra.mxu0 0.0
    %381 = vmatprep.subr.mxu0 0.0
    %382 = vmatpush1.msra.mxu0 0.0
    %383 = vmatprep.subr.mxu0 0.0
    %384 = vmatpush1.msra.mxu0 0.0
    %385 = vmatprep.subr.mxu0 0.0
    %386 = vmatpush1.msra.mxu0 0.0
    %387 = vmatprep.subr.mxu0 0.0
    %388 = vmatpush1.msra.mxu0 0.0
    %389 = vmatprep.subr.mxu0 0.0
    %390 = vmatpush1.msra.mxu0 0.0
    %391 = vmatprep.subr.mxu0 0.0
    %392 = vmatpush1.msra.mxu0 0.0
    %393 = vmatprep.subr.mxu0 0.0
    %394 = vmatpush1.msra.mxu0 0.0
    %395 = vmatprep.subr.mxu0 0.0
    %396 = vmatpush1.msra.mxu0 0.0
    %397 = vmatprep.subr.mxu0 0.0
    %398 = vmatpush1.msra.mxu0 0.0
    %399 = vmatprep.subr.mxu0 0.0
    %400 = vmatpush1.msra.mxu0 0.0
    %401 = vmatprep.subr.mxu0 0.0
    %402 = vmatpush1.msra.mxu0 0.0
    %403 = vmatprep.subr.mxu0 0.0
    %404 = vmatpush1.msra.mxu0 0.0
    %405 = vmatprep.subr.mxu0 0.0
    %406 = vmatpush1.msra.mxu0 0.0
    %407 = vmatprep.subr.mxu0 0.0
    %408 = vmatpush1.msra.mxu0 0.0
    %409 = vmatprep.subr.mxu0 0.0
    %410 = vmatpush1.msra.mxu0 0.0
    %411 = vmatprep.subr.mxu0 0.0
    %412 = vmatpush1.msra.mxu0 0.0
    %413 = vmatprep.subr.mxu0 0.0
    %414 = vmatpush1.msra.mxu0 0.0
    %415 = vmatprep.mubr.f32.mxu0 0.0
    %416 = vmatmul.mubr.f32.gmra.mrb[0].mxu0 %v340
    %v417 = vpop.f32.mrb[0].mxu0
    %v418 = vadd.f32 %v259, %v417
    %v419 = vpop.f32.mrb[0].mxu0
    %v420 = vadd.f32 %v261, %v419
    %421 = vdwg.mxu0
    %422 = vmatprep.subr.mxu0 %v349
    %423 = vmatpush1.msra.mxu0 %v347
    %424 = vmatprep.subr.mxu0 0.0
    %425 = vmatpush1.msra.mxu0 0.0
    %426 = vmatprep.subr.mxu0 0.0
    %427 = vmatpush1.msra.mxu0 0.0
    %428 = vmatprep.subr.mxu0 0.0
    %429 = vmatpush1.msra.mxu0 0.0
    %430 = vmatprep.subr.mxu0 0.0
    %431 = vmatpush1.msra.mxu0 0.0
    %432 = vmatprep.subr.mxu0 0.0
    %433 = vmatpush1.msra.mxu0 0.0
    %434 = vmatprep.subr.mxu0 0.0
    %435 = vmatpush1.msra.mxu0 0.0
    %436 = vmatprep.subr.mxu0 0.0
    %437 = vmatpush1.msra.mxu0 0.0
    %438 = vmatprep.subr.mxu0 0.0
    %439 = vmatpush1.msra.mxu0 0.0
    %440 = vmatprep.subr.mxu0 0.0
    %441 = vmatpush1.msra.mxu0 0.0
    %442 = vmatprep.subr.mxu0 0.0
    %443 = vmatpush1.msra.mxu0 0.0
    %444 = vmatprep.subr.mxu0 0.0
    %445 = vmatpush1.msra.mxu0 0.0
    %446 = vmatprep.subr.mxu0 0.0
    %447 = vmatpush1.msra.mxu0 0.0
    %448 = vmatprep.subr.mxu0 0.0
    %449 = vmatpush1.msra.mxu0 0.0
    %450 = vmatprep.subr.mxu0 0.0
    %451 = vmatpush1.msra.mxu0 0.0
    %452 = vmatprep.subr.mxu0 0.0
    %453 = vmatpush1.msra.mxu0 0.0
    %454 = vmatprep.subr.mxu0 0.0
    %455 = vmatpush1.msra.mxu0 0.0
    %456 = vmatprep.subr.mxu0 0.0
    %457 = vmatpush1.msra.mxu0 0.0
    %458 = vmatprep.subr.mxu0 0.0
    %459 = vmatpush1.msra.mxu0 0.0
    %460 = vmatprep.subr.mxu0 0.0
    %461 = vmatpush1.msra.mxu0 0.0
    %462 = vmatprep.subr.mxu0 0.0
    %463 = vmatpush1.msra.mxu0 0.0
    %464 = vmatprep.subr.mxu0 0.0
    %465 = vmatpush1.msra.mxu0 0.0
    %466 = vmatprep.subr.mxu0 0.0
    %467 = vmatpush1.msra.mxu0 0.0
    %468 = vmatprep.subr.mxu0 0.0
    %469 = vmatpush1.msra.mxu0 0.0
    %470 = vmatprep.subr.mxu0 0.0
    %471 = vmatpush1.msra.mxu0 0.0
    %472 = vmatprep.subr.mxu0 0.0
    %473 = vmatpush1.msra.mxu0 0.0
    %474 = vmatprep.subr.mxu0 0.0
    %475 = vmatpush1.msra.mxu0 0.0
    %476 = vmatprep.subr.mxu0 0.0
    %477 = vmatpush1.msra.mxu0 0.0
    %478 = vmatprep.subr.mxu0 0.0
    %479 = vmatpush1.msra.mxu0 0.0
    %480 = vmatprep.subr.mxu0 0.0
    %481 = vmatpush1.msra.mxu0 0.0
    %482 = vmatprep.subr.mxu0 0.0
    %483 = vmatpush1.msra.mxu0 0.0
    %484 = vmatprep.subr.mxu0 0.0
    %485 = vmatpush1.msra.mxu0 0.0
    %486 = vmatprep.mubr.f32.mxu0 0.0
    %487 = vmatmul.mubr.f32.gmra.mrb[0].mxu0 %v340
    %v488 = vpop.f32.mrb[0].mxu0
    %v489 = vadd.f32 %v330, %v488
    %v490 = vpop.f32.mrb[0].mxu0
    %v491 = vadd.f32 %v332, %v490
    %492 = vdwg.mxu0
    %v494 = vlaneseq
    %v495 = vshrl.u32 %v494, 7
    %v496 = vsub.s32 0, %v495
    %v497 = vrot.slane %v141, %v496
    %v498 = vlaneseq
    %v499 = vshrl.u32 %v498, 7
    %v500 = vsub.s32 1, %v499
    %v501 = vrot.slane %v141, %v500
    %v502 = vlaneseq
    %v503 = vshrl.u32 %v502, 7
    %v504 = vsub.s32 2, %v503
    %v505 = vrot.slane %v141, %v504
    %v506 = vlaneseq
    %v507 = vshrl.u32 %v506, 7
    %v508 = vsub.s32 3, %v507
    %v509 = vrot.slane %v141, %v508
    %v514 = vadd.f32 %v418, %v497
    %v515 = vadd.f32 %v420, %v501
    %v516 = vadd.f32 %v489, %v505
    %v517 = vadd.f32 %v491, %v509
    %v518 = vtanh.pop %v514
    %v519 = vtanh.pop %v515
    %v520 = vadd.f32 %v516, %v517
    %v521 = vxor.u32 %v520, 2147483648
    %v522 = vmul.f32 %v521, 1.442695
    %v523 = vpow.pop %v522
    %v524 = vadd.f32 %v523, 1.0
    %v525 = vrcp.pop %v524
    %v526 = vmul.f32 1.0, %v525
    %v527 = vsub.f32 %v519, %v518
    %v528 = vmul.f32 %v526, %v527
    %v529 = vadd.f32 %v518, %v528
    %vm530 = vcmask 72704
    %v531 = vsel %vm530, 0.0, 0
    %vm533 = vcmask 1040384
    %v535 = vsel %vm533, %v154, 0
    %v538 = vsel %vm533, %v155, 0
    %v541 = vsel %vm533, %v156, 0
    %v544 = vsel %vm533, %v157, 0
    %546 = vmatprep.subr.mxu0 %v151
    %547 = vmatpush1.msra.mxu0 %v150
    %548 = vmatprep.subr.mxu0 %v538
    %549 = vmatpush1.msra.mxu0 %v535
    %550 = vmatprep.subr.mxu0 0.0
    %551 = vmatpush1.msra.mxu0 0.0
    %552 = vmatprep.subr.mxu0 0.0
    %553 = vmatpush1.msra.mxu0 0.0
    %554 = vmatprep.subr.mxu0 0.0
    %555 = vmatpush1.msra.mxu0 0.0
    %556 = vmatprep.subr.mxu0 0.0
    %557 = vmatpush1.msra.mxu0 0.0
    %558 = vmatprep.subr.mxu0 0.0
    %559 = vmatpush1.msra.mxu0 0.0
    %560 = vmatprep.subr.mxu0 0.0
    %561 = vmatpush1.msra.mxu0 0.0
    %562 = vmatprep.subr.mxu0 0.0
    %563 = vmatpush1.msra.mxu0 0.0
    %564 = vmatprep.subr.mxu0 0.0
    %565 = vmatpush1.msra.mxu0 0.0
    %566 = vmatprep.subr.mxu0 0.0
    %567 = vmatpush1.msra.mxu0 0.0
    %568 = vmatprep.subr.mxu0 0.0
    %569 = vmatpush1.msra.mxu0 0.0
    %570 = vmatprep.subr.mxu0 0.0
    %571 = vmatpush1.msra.mxu0 0.0
    %572 = vmatprep.subr.mxu0 0.0
    %573 = vmatpush1.msra.mxu0 0.0
    %574 = vmatprep.subr.mxu0 0.0
    %575 = vmatpush1.msra.mxu0 0.0
    %576 = vmatprep.subr.mxu0 0.0
    %577 = vmatpush1.msra.mxu0 0.0
    %578 = vmatprep.subr.mxu0 0.0
    %579 = vmatpush1.msra.mxu0 0.0
    %580 = vmatprep.subr.mxu0 0.0
    %581 = vmatpush1.msra.mxu0 0.0
    %582 = vmatprep.subr.mxu0 0.0
    %583 = vmatpush1.msra.mxu0 0.0
    %584 = vmatprep.subr.mxu0 0.0
    %585 = vmatpush1.msra.mxu0 0.0
    %586 = vmatprep.subr.mxu0 0.0
    %587 = vmatpush1.msra.mxu0 0.0
    %588 = vmatprep.subr.mxu0 0.0
    %589 = vmatpush1.msra.mxu0 0.0
    %590 = vmatprep.subr.mxu0 0.0
    %591 = vmatpush1.msra.mxu0 0.0
    %592 = vmatprep.subr.mxu0 0.0
    %593 = vmatpush1.msra.mxu0 0.0
    %594 = vmatprep.subr.mxu0 0.0
    %595 = vmatpush1.msra.mxu0 0.0
    %596 = vmatprep.subr.mxu0 0.0
    %597 = vmatpush1.msra.mxu0 0.0
    %598 = vmatprep.subr.mxu0 0.0
    %599 = vmatpush1.msra.mxu0 0.0
    %600 = vmatprep.subr.mxu0 0.0
    %601 = vmatpush1.msra.mxu0 0.0
    %602 = vmatprep.subr.mxu0 0.0
    %603 = vmatpush1.msra.mxu0 0.0
    %604 = vmatprep.subr.mxu0 0.0
    %605 = vmatpush1.msra.mxu0 0.0
    %606 = vmatprep.subr.mxu0 0.0
    %607 = vmatpush1.msra.mxu0 0.0
    %608 = vmatprep.subr.mxu0 0.0
    %609 = vmatpush1.msra.mxu0 0.0
    %610 = vmatprep.mubr.f32.mxu0 0.0
    %611 = vmatmul.mubr.f32.gmra.mrb[0].mxu0 %v531
    %v612 = vpop.f32.mrb[0].mxu0
    %v613 = vadd.f32 0.0, %v612
    %v614 = vpop.f32.mrb[0].mxu0
    %v615 = vadd.f32 0.0, %v614
    %616 = vdwg.mxu0
    %617 = vmatprep.subr.mxu0 %v153
    %618 = vmatpush1.msra.mxu0 %v152
    %619 = vmatprep.subr.mxu0 %v544
    %620 = vmatpush1.msra.mxu0 %v541
    %621 = vmatprep.subr.mxu0 0.0
    %622 = vmatpush1.msra.mxu0 0.0
    %623 = vmatprep.subr.mxu0 0.0
    %624 = vmatpush1.msra.mxu0 0.0
    %625 = vmatprep.subr.mxu0 0.0
    %626 = vmatpush1.msra.mxu0 0.0
    %627 = vmatprep.subr.mxu0 0.0
    %628 = vmatpush1.msra.mxu0 0.0
    %629 = vmatprep.subr.mxu0 0.0
    %630 = vmatpush1.msra.mxu0 0.0
    %631 = vmatprep.subr.mxu0 0.0
    %632 = vmatpush1.msra.mxu0 0.0
    %633 = vmatprep.subr.mxu0 0.0
    %634 = vmatpush1.msra.mxu0 0.0
    %635 = vmatprep.subr.mxu0 0.0
    %636 = vmatpush1.msra.mxu0 0.0
    %637 = vmatprep.subr.mxu0 0.0
    %638 = vmatpush1.msra.mxu0 0.0
    %639 = vmatprep.subr.mxu0 0.0
    %640 = vmatpush1.msra.mxu0 0.0
    %641 = vmatprep.subr.mxu0 0.0
    %642 = vmatpush1.msra.mxu0 0.0
    %643 = vmatprep.subr.mxu0 0.0
    %644 = vmatpush1.msra.mxu0 0.0
    %645 = vmatprep.subr.mxu0 0.0
    %646 = vmatpush1.msra.mxu0 0.0
    %647 = vmatprep.subr.mxu0 0.0
    %648 = vmatpush1.msra.mxu0 0.0
    %649 = vmatprep.subr.mxu0 0.0
    %650 = vmatpush1.msra.mxu0 0.0
    %651 = vmatprep.subr.mxu0 0.0
    %652 = vmatpush1.msra.mxu0 0.0
    %653 = vmatprep.subr.mxu0 0.0
    %654 = vmatpush1.msra.mxu0 0.0
    %655 = vmatprep.subr.mxu0 0.0
    %656 = vmatpush1.msra.mxu0 0.0
    %657 = vmatprep.subr.mxu0 0.0
    %658 = vmatpush1.msra.mxu0 0.0
    %659 = vmatprep.subr.mxu0 0.0
    %660 = vmatpush1.msra.mxu0 0.0
    %661 = vmatprep.subr.mxu0 0.0
    %662 = vmatpush1.msra.mxu0 0.0
    %663 = vmatprep.subr.mxu0 0.0
    %664 = vmatpush1.msra.mxu0 0.0
    %665 = vmatprep.subr.mxu0 0.0
    %666 = vmatpush1.msra.mxu0 0.0
    %667 = vmatprep.subr.mxu0 0.0
    %668 = vmatpush1.msra.mxu0 0.0
    %669 = vmatprep.subr.mxu0 0.0
    %670 = vmatpush1.msra.mxu0 0.0
    %671 = vmatprep.subr.mxu0 0.0
    %672 = vmatpush1.msra.mxu0 0.0
    %673 = vmatprep.subr.mxu0 0.0
    %674 = vmatpush1.msra.mxu0 0.0
    %675 = vmatprep.subr.mxu0 0.0
    %676 = vmatpush1.msra.mxu0 0.0
    %677 = vmatprep.subr.mxu0 0.0
    %678 = vmatpush1.msra.mxu0 0.0
    %679 = vmatprep.subr.mxu0 0.0
    %680 = vmatpush1.msra.mxu0 0.0
    %681 = vmatprep.mubr.f32.mxu0 0.0
    %682 = vmatmul.mubr.f32.gmra.mrb[0].mxu0 %v531
    %v683 = vpop.f32.mrb[0].mxu0
    %v684 = vadd.f32 0.0, %v683
    %v685 = vpop.f32.mrb[0].mxu0
    %v686 = vadd.f32 0.0, %v685
    %687 = vdwg.mxu0
    %v689 = vsel %vm175, %v529, 0
    %v692 = vsel %vm179, %v146, 0
    %v695 = vsel %vm179, %v147, 0
    %v698 = vsel %vm179, %v148, 0
    %v701 = vsel %vm179, %v149, 0
    %703 = vmatprep.subr.mxu0 %v143
    %704 = vmatpush1.msra.mxu0 %v142
    %705 = vmatprep.subr.mxu0 %v695
    %706 = vmatpush1.msra.mxu0 %v692
    %707 = vmatprep.subr.mxu0 0.0
    %708 = vmatpush1.msra.mxu0 0.0
    %709 = vmatprep.subr.mxu0 0.0
    %710 = vmatpush1.msra.mxu0 0.0
    %711 = vmatprep.subr.mxu0 0.0
    %712 = vmatpush1.msra.mxu0 0.0
    %713 = vmatprep.subr.mxu0 0.0
    %714 = vmatpush1.msra.mxu0 0.0
    %715 = vmatprep.subr.mxu0 0.0
    %716 = vmatpush1.msra.mxu0 0.0
    %717 = vmatprep.subr.mxu0 0.0
    %718 = vmatpush1.msra.mxu0 0.0
    %719 = vmatprep.subr.mxu0 0.0
    %720 = vmatpush1.msra.mxu0 0.0
    %721 = vmatprep.subr.mxu0 0.0
    %722 = vmatpush1.msra.mxu0 0.0
    %723 = vmatprep.subr.mxu0 0.0
    %724 = vmatpush1.msra.mxu0 0.0
    %725 = vmatprep.subr.mxu0 0.0
    %726 = vmatpush1.msra.mxu0 0.0
    %727 = vmatprep.subr.mxu0 0.0
    %728 = vmatpush1.msra.mxu0 0.0
    %729 = vmatprep.subr.mxu0 0.0
    %730 = vmatpush1.msra.mxu0 0.0
    %731 = vmatprep.subr.mxu0 0.0
    %732 = vmatpush1.msra.mxu0 0.0
    %733 = vmatprep.subr.mxu0 0.0
    %734 = vmatpush1.msra.mxu0 0.0
    %735 = vmatprep.subr.mxu0 0.0
    %736 = vmatpush1.msra.mxu0 0.0
    %737 = vmatprep.subr.mxu0 0.0
    %738 = vmatpush1.msra.mxu0 0.0
    %739 = vmatprep.subr.mxu0 0.0
    %740 = vmatpush1.msra.mxu0 0.0
    %741 = vmatprep.subr.mxu0 0.0
    %742 = vmatpush1.msra.mxu0 0.0
    %743 = vmatprep.subr.mxu0 0.0
    %744 = vmatpush1.msra.mxu0 0.0
    %745 = vmatprep.subr.mxu0 0.0
    %746 = vmatpush1.msra.mxu0 0.0
    %747 = vmatprep.subr.mxu0 0.0
    %748 = vmatpush1.msra.mxu0 0.0
    %749 = vmatprep.subr.mxu0 0.0
    %750 = vmatpush1.msra.mxu0 0.0
    %751 = vmatprep.subr.mxu0 0.0
    %752 = vmatpush1.msra.mxu0 0.0
    %753 = vmatprep.subr.mxu0 0.0
    %754 = vmatpush1.msra.mxu0 0.0
    %755 = vmatprep.subr.mxu0 0.0
    %756 = vmatpush1.msra.mxu0 0.0
    %757 = vmatprep.subr.mxu0 0.0
    %758 = vmatpush1.msra.mxu0 0.0
    %759 = vmatprep.subr.mxu0 0.0
    %760 = vmatpush1.msra.mxu0 0.0
    %761 = vmatprep.subr.mxu0 0.0
    %762 = vmatpush1.msra.mxu0 0.0
    %763 = vmatprep.subr.mxu0 0.0
    %764 = vmatpush1.msra.mxu0 0.0
    %765 = vmatprep.subr.mxu0 0.0
    %766 = vmatpush1.msra.mxu0 0.0
    %767 = vmatprep.mubr.f32.mxu0 0.0
    %768 = vmatmul.mubr.f32.gmra.mrb[0].mxu0 %v689
    %v769 = vpop.f32.mrb[0].mxu0
    %v770 = vadd.f32 %v613, %v769
    %v771 = vpop.f32.mrb[0].mxu0
    %v772 = vadd.f32 %v615, %v771
    %773 = vdwg.mxu0
    %774 = vmatprep.subr.mxu0 %v145
    %775 = vmatpush1.msra.mxu0 %v144
    %776 = vmatprep.subr.mxu0 %v701
    %777 = vmatpush1.msra.mxu0 %v698
    %778 = vmatprep.subr.mxu0 0.0
    %779 = vmatpush1.msra.mxu0 0.0
    %780 = vmatprep.subr.mxu0 0.0
    %781 = vmatpush1.msra.mxu0 0.0
    %782 = vmatprep.subr.mxu0 0.0
    %783 = vmatpush1.msra.mxu0 0.0
    %784 = vmatprep.subr.mxu0 0.0
    %785 = vmatpush1.msra.mxu0 0.0
    %786 = vmatprep.subr.mxu0 0.0
    %787 = vmatpush1.msra.mxu0 0.0
    %788 = vmatprep.subr.mxu0 0.0
    %789 = vmatpush1.msra.mxu0 0.0
    %790 = vmatprep.subr.mxu0 0.0
    %791 = vmatpush1.msra.mxu0 0.0
    %792 = vmatprep.subr.mxu0 0.0
    %793 = vmatpush1.msra.mxu0 0.0
    %794 = vmatprep.subr.mxu0 0.0
    %795 = vmatpush1.msra.mxu0 0.0
    %796 = vmatprep.subr.mxu0 0.0
    %797 = vmatpush1.msra.mxu0 0.0
    %798 = vmatprep.subr.mxu0 0.0
    %799 = vmatpush1.msra.mxu0 0.0
    %800 = vmatprep.subr.mxu0 0.0
    %801 = vmatpush1.msra.mxu0 0.0
    %802 = vmatprep.subr.mxu0 0.0
    %803 = vmatpush1.msra.mxu0 0.0
    %804 = vmatprep.subr.mxu0 0.0
    %805 = vmatpush1.msra.mxu0 0.0
    %806 = vmatprep.subr.mxu0 0.0
    %807 = vmatpush1.msra.mxu0 0.0
    %808 = vmatprep.subr.mxu0 0.0
    %809 = vmatpush1.msra.mxu0 0.0
    %810 = vmatprep.subr.mxu0 0.0
    %811 = vmatpush1.msra.mxu0 0.0
    %812 = vmatprep.subr.mxu0 0.0
    %813 = vmatpush1.msra.mxu0 0.0
    %814 = vmatprep.subr.mxu0 0.0
    %815 = vmatpush1.msra.mxu0 0.0
    %816 = vmatprep.subr.mxu0 0.0
    %817 = vmatpush1.msra.mxu0 0.0
    %818 = vmatprep.subr.mxu0 0.0
    %819 = vmatpush1.msra.mxu0 0.0
    %820 = vmatprep.subr.mxu0 0.0
    %821 = vmatpush1.msra.mxu0 0.0
    %822 = vmatprep.subr.mxu0 0.0
    %823 = vmatpush1.msra.mxu0 0.0
    %824 = vmatprep.subr.mxu0 0.0
    %825 = vmatpush1.msra.mxu0 0.0
    %826 = vmatprep.subr.mxu0 0.0
    %827 = vmatpush1.msra.mxu0 0.0
    %828 = vmatprep.subr.mxu0 0.0
    %829 = vmatpush1.msra.mxu0 0.0
    %830 = vmatprep.subr.mxu0 0.0
    %831 = vmatpush1.msra.mxu0 0.0
    %832 = vmatprep.subr.mxu0 0.0
    %833 = vmatpush1.msra.mxu0 0.0
    %834 = vmatprep.subr.mxu0 0.0
    %835 = vmatpush1.msra.mxu0 0.0
    %836 = vmatprep.subr.mxu0 0.0
    %837 = vmatpush1.msra.mxu0 0.0
    %838 = vmatprep.mubr.f32.mxu0 0.0
    %839 = vmatmul.mubr.f32.gmra.mrb[0].mxu0 %v689
    %v840 = vpop.f32.mrb[0].mxu0
    %v841 = vadd.f32 %v684, %v840
    %v842 = vpop.f32.mrb[0].mxu0
    %v843 = vadd.f32 %v686, %v842
    %844 = vdwg.mxu0
    %v846 = vlaneseq
    %v847 = vshrl.u32 %v846, 7
    %v848 = vsub.s32 0, %v847
    %v849 = vrot.slane %v158, %v848
    %v850 = vlaneseq
    %v851 = vshrl.u32 %v850, 7
    %v852 = vsub.s32 1, %v851
    %v853 = vrot.slane %v158, %v852
    %v854 = vlaneseq
    %v855 = vshrl.u32 %v854, 7
    %v856 = vsub.s32 2, %v855
    %v857 = vrot.slane %v158, %v856
    %v858 = vlaneseq
    %v859 = vshrl.u32 %v858, 7
    %v860 = vsub.s32 3, %v859
    %v861 = vrot.slane %v158, %v860
    %v866 = vadd.f32 %v770, %v849
    %v867 = vadd.f32 %v772, %v853
    %v868 = vadd.f32 %v841, %v857
    %v869 = vadd.f32 %v843, %v861
    %v870 = vtanh.pop %v866
    %v871 = vtanh.pop %v867
    %v872 = vadd.f32 %v868, %v869
    %v873 = vxor.u32 %v872, 2147483648
    %v874 = vmul.f32 %v873, 1.442695
    %v875 = vpow.pop %v874
    %v876 = vadd.f32 %v875, 1.0
    %v877 = vrcp.pop %v876
    %v878 = vmul.f32 1.0, %v877
    %v879 = vsub.f32 %v871, %v870
    %v880 = vmul.f32 %v878, %v879
    %v881 = vadd.f32 %v870, %v880
    %vm882 = vcmask 64512
    %v883 = vsel %vm882, 0.0, 0
    %885 = vmatprep.subr.mxu0 %v168
    %886 = vmatpush1.msra.mxu0 %v167
    %887 = vmatprep.subr.mxu0 0.0
    %888 = vmatpush1.msra.mxu0 0.0
    %889 = vmatprep.subr.mxu0 0.0
    %890 = vmatpush1.msra.mxu0 0.0
    %891 = vmatprep.subr.mxu0 0.0
    %892 = vmatpush1.msra.mxu0 0.0
    %893 = vmatprep.subr.mxu0 0.0
    %894 = vmatpush1.msra.mxu0 0.0
    %895 = vmatprep.subr.mxu0 0.0
    %896 = vmatpush1.msra.mxu0 0.0
    %897 = vmatprep.subr.mxu0 0.0
    %898 = vmatpush1.msra.mxu0 0.0
    %899 = vmatprep.subr.mxu0 0.0
    %900 = vmatpush1.msra.mxu0 0.0
    %901 = vmatprep.subr.mxu0 0.0
    %902 = vmatpush1.msra.mxu0 0.0
    %903 = vmatprep.subr.mxu0 0.0
    %904 = vmatpush1.msra.mxu0 0.0
    %905 = vmatprep.subr.mxu0 0.0
    %906 = vmatpush1.msra.mxu0 0.0
    %907 = vmatprep.subr.mxu0 0.0
    %908 = vmatpush1.msra.mxu0 0.0
    %909 = vmatprep.subr.mxu0 0.0
    %910 = vmatpush1.msra.mxu0 0.0
    %911 = vmatprep.subr.mxu0 0.0
    %912 = vmatpush1.msra.mxu0 0.0
    %913 = vmatprep.subr.mxu0 0.0
    %914 = vmatpush1.msra.mxu0 0.0
    %915 = vmatprep.subr.mxu0 0.0
    %916 = vmatpush1.msra.mxu0 0.0
    %917 = vmatprep.subr.mxu0 0.0
    %918 = vmatpush1.msra.mxu0 0.0
    %919 = vmatprep.subr.mxu0 0.0
    %920 = vmatpush1.msra.mxu0 0.0
    %921 = vmatprep.subr.mxu0 0.0
    %922 = vmatpush1.msra.mxu0 0.0
    %923 = vmatprep.subr.mxu0 0.0
    %924 = vmatpush1.msra.mxu0 0.0
    %925 = vmatprep.subr.mxu0 0.0
    %926 = vmatpush1.msra.mxu0 0.0
    %927 = vmatprep.subr.mxu0 0.0
    %928 = vmatpush1.msra.mxu0 0.0
    %929 = vmatprep.subr.mxu0 0.0
    %930 = vmatpush1.msra.mxu0 0.0
    %931 = vmatprep.subr.mxu0 0.0
    %932 = vmatpush1.msra.mxu0 0.0
    %933 = vmatprep.subr.mxu0 0.0
    %934 = vmatpush1.msra.mxu0 0.0
    %935 = vmatprep.subr.mxu0 0.0
    %936 = vmatpush1.msra.mxu0 0.0
    %937 = vmatprep.subr.mxu0 0.0
    %938 = vmatpush1.msra.mxu0 0.0
    %939 = vmatprep.subr.mxu0 0.0
    %940 = vmatpush1.msra.mxu0 0.0
    %941 = vmatprep.subr.mxu0 0.0
    %942 = vmatpush1.msra.mxu0 0.0
    %943 = vmatprep.subr.mxu0 0.0
    %944 = vmatpush1.msra.mxu0 0.0
    %945 = vmatprep.subr.mxu0 0.0
    %946 = vmatpush1.msra.mxu0 0.0
    %947 = vmatprep.subr.mxu0 0.0
    %948 = vmatpush1.msra.mxu0 0.0
    %949 = vmatprep.mubr.f32.mxu0 0.0
    %950 = vmatmul.mubr.f32.gmra.mrb[0].mxu0 %v883
    %v951 = vpop.f32.mrb[0].mxu0
    %v952 = vadd.f32 0.0, %v951
    %v953 = vpop.f32.mrb[0].mxu0
    %v954 = vadd.f32 0.0, %v953
    %955 = vdwg.mxu0
    %956 = vmatprep.subr.mxu0 %v170
    %957 = vmatpush1.msra.mxu0 %v169
    %958 = vmatprep.subr.mxu0 0.0
    %959 = vmatpush1.msra.mxu0 0.0
    %960 = vmatprep.subr.mxu0 0.0
    %961 = vmatpush1.msra.mxu0 0.0
    %962 = vmatprep.subr.mxu0 0.0
    %963 = vmatpush1.msra.mxu0 0.0
    %964 = vmatprep.subr.mxu0 0.0
    %965 = vmatpush1.msra.mxu0 0.0
    %966 = vmatprep.subr.mxu0 0.0
    %967 = vmatpush1.msra.mxu0 0.0
    %968 = vmatprep.subr.mxu0 0.0
    %969 = vmatpush1.msra.mxu0 0.0
    %970 = vmatprep.subr.mxu0 0.0
    %971 = vmatpush1.msra.mxu0 0.0
    %972 = vmatprep.subr.mxu0 0.0
    %973 = vmatpush1.msra.mxu0 0.0
    %974 = vmatprep.subr.mxu0 0.0
    %975 = vmatpush1.msra.mxu0 0.0
    %976 = vmatprep.subr.mxu0 0.0
    %977 = vmatpush1.msra.mxu0 0.0
    %978 = vmatprep.subr.mxu0 0.0
    %979 = vmatpush1.msra.mxu0 0.0
    %980 = vmatprep.subr.mxu0 0.0
    %981 = vmatpush1.msra.mxu0 0.0
    %982 = vmatprep.subr.mxu0 0.0
    %983 = vmatpush1.msra.mxu0 0.0
    %984 = vmatprep.subr.mxu0 0.0
    %985 = vmatpush1.msra.mxu0 0.0
    %986 = vmatprep.subr.mxu0 0.0
    %987 = vmatpush1.msra.mxu0 0.0
    %988 = vmatprep.subr.mxu0 0.0
    %989 = vmatpush1.msra.mxu0 0.0
    %990 = vmatprep.subr.mxu0 0.0
    %991 = vmatpush1.msra.mxu0 0.0
    %992 = vmatprep.subr.mxu0 0.0
    %993 = vmatpush1.msra.mxu0 0.0
    %994 = vmatprep.subr.mxu0 0.0
    %995 = vmatpush1.msra.mxu0 0.0
    %996 = vmatprep.subr.mxu0 0.0
    %997 = vmatpush1.msra.mxu0 0.0
    %998 = vmatprep.subr.mxu0 0.0
    %999 = vmatpush1.msra.mxu0 0.0
    %1000 = vmatprep.subr.mxu0 0.0
    %1001 = vmatpush1.msra.mxu0 0.0
    %1002 = vmatprep.subr.mxu0 0.0
    %1003 = vmatpush1.msra.mxu0 0.0
    %1004 = vmatprep.subr.mxu0 0.0
    %1005 = vmatpush1.msra.mxu0 0.0
    %1006 = vmatprep.subr.mxu0 0.0
    %1007 = vmatpush1.msra.mxu0 0.0
    %1008 = vmatprep.subr.mxu0 0.0
    %1009 = vmatpush1.msra.mxu0 0.0
    %1010 = vmatprep.subr.mxu0 0.0
    %1011 = vmatpush1.msra.mxu0 0.0
    %1012 = vmatprep.subr.mxu0 0.0
    %1013 = vmatpush1.msra.mxu0 0.0
    %1014 = vmatprep.subr.mxu0 0.0
    %1015 = vmatpush1.msra.mxu0 0.0
    %1016 = vmatprep.subr.mxu0 0.0
    %1017 = vmatpush1.msra.mxu0 0.0
    %1018 = vmatprep.subr.mxu0 0.0
    %1019 = vmatpush1.msra.mxu0 0.0
    %1020 = vmatprep.mubr.f32.mxu0 0.0
    %1021 = vmatmul.mubr.f32.gmra.mrb[0].mxu0 %v883
    %v1022 = vpop.f32.mrb[0].mxu0
    %v1023 = vadd.f32 0.0, %v1022
    %v1024 = vpop.f32.mrb[0].mxu0
    %v1025 = vadd.f32 0.0, %v1024
    %1026 = vdwg.mxu0
    %v1028 = vsel %vm530, %v881, 0
    %v1031 = vsel %vm533, %v163, 0
    %v1034 = vsel %vm533, %v164, 0
    %v1037 = vsel %vm533, %v165, 0
    %v1040 = vsel %vm533, %v166, 0
    %1042 = vmatprep.subr.mxu0 %v160
    %1043 = vmatpush1.msra.mxu0 %v159
    %1044 = vmatprep.subr.mxu0 %v1034
    %1045 = vmatpush1.msra.mxu0 %v1031
    %1046 = vmatprep.subr.mxu0 0.0
    %1047 = vmatpush1.msra.mxu0 0.0
    %1048 = vmatprep.subr.mxu0 0.0
    %1049 = vmatpush1.msra.mxu0 0.0
    %1050 = vmatprep.subr.mxu0 0.0
    %1051 = vmatpush1.msra.mxu0 0.0
    %1052 = vmatprep.subr.mxu0 0.0
    %1053 = vmatpush1.msra.mxu0 0.0
    %1054 = vmatprep.subr.mxu0 0.0
    %1055 = vmatpush1.msra.mxu0 0.0
    %1056 = vmatprep.subr.mxu0 0.0
    %1057 = vmatpush1.msra.mxu0 0.0
    %1058 = vmatprep.subr.mxu0 0.0
    %1059 = vmatpush1.msra.mxu0 0.0
    %1060 = vmatprep.subr.mxu0 0.0
    %1061 = vmatpush1.msra.mxu0 0.0
    %1062 = vmatprep.subr.mxu0 0.0
    %1063 = vmatpush1.msra.mxu0 0.0
    %1064 = vmatprep.subr.mxu0 0.0
    %1065 = vmatpush1.msra.mxu0 0.0
    %1066 = vmatprep.subr.mxu0 0.0
    %1067 = vmatpush1.msra.mxu0 0.0
    %1068 = vmatprep.subr.mxu0 0.0
    %1069 = vmatpush1.msra.mxu0 0.0
    %1070 = vmatprep.subr.mxu0 0.0
    %1071 = vmatpush1.msra.mxu0 0.0
    %1072 = vmatprep.subr.mxu0 0.0
    %1073 = vmatpush1.msra.mxu0 0.0
    %1074 = vmatprep.subr.mxu0 0.0
    %1075 = vmatpush1.msra.mxu0 0.0
    %1076 = vmatprep.subr.mxu0 0.0
    %1077 = vmatpush1.msra.mxu0 0.0
    %1078 = vmatprep.subr.mxu0 0.0
    %1079 = vmatpush1.msra.mxu0 0.0
    %1080 = vmatprep.subr.mxu0 0.0
    %1081 = vmatpush1.msra.mxu0 0.0
    %1082 = vmatprep.subr.mxu0 0.0
    %1083 = vmatpush1.msra.mxu0 0.0
    %1084 = vmatprep.subr.mxu0 0.0
    %1085 = vmatpush1.msra.mxu0 0.0
    %1086 = vmatprep.subr.mxu0 0.0
    %1087 = vmatpush1.msra.mxu0 0.0
    %1088 = vmatprep.subr.mxu0 0.0
    %1089 = vmatpush1.msra.mxu0 0.0
    %1090 = vmatprep.subr.mxu0 0.0
    %1091 = vmatpush1.msra.mxu0 0.0
    %1092 = vmatprep.subr.mxu0 0.0
    %1093 = vmatpush1.msra.mxu0 0.0
    %1094 = vmatprep.subr.mxu0 0.0
    %1095 = vmatpush1.msra.mxu0 0.0
    %1096 = vmatprep.subr.mxu0 0.0
    %1097 = vmatpush1.msra.mxu0 0.0
    %1098 = vmatprep.subr.mxu0 0.0
    %1099 = vmatpush1.msra.mxu0 0.0
    %1100 = vmatprep.subr.mxu0 0.0
    %1101 = vmatpush1.msra.mxu0 0.0
    %1102 = vmatprep.subr.mxu0 0.0
    %1103 = vmatpush1.msra.mxu0 0.0
    %1104 = vmatprep.subr.mxu0 0.0
    %1105 = vmatpush1.msra.mxu0 0.0
    %1106 = vmatprep.mubr.f32.mxu0 0.0
    %1107 = vmatmul.mubr.f32.gmra.mrb[0].mxu0 %v1028
    %v1108 = vpop.f32.mrb[0].mxu0
    %v1109 = vadd.f32 %v952, %v1108
    %v1110 = vpop.f32.mrb[0].mxu0
    %v1111 = vadd.f32 %v954, %v1110
    %1112 = vdwg.mxu0
    %1113 = vmatprep.subr.mxu0 %v162
    %1114 = vmatpush1.msra.mxu0 %v161
    %1115 = vmatprep.subr.mxu0 %v1040
    %1116 = vmatpush1.msra.mxu0 %v1037
    %1117 = vmatprep.subr.mxu0 0.0
    %1118 = vmatpush1.msra.mxu0 0.0
    %1119 = vmatprep.subr.mxu0 0.0
    %1120 = vmatpush1.msra.mxu0 0.0
    %1121 = vmatprep.subr.mxu0 0.0
    %1122 = vmatpush1.msra.mxu0 0.0
    %1123 = vmatprep.subr.mxu0 0.0
    %1124 = vmatpush1.msra.mxu0 0.0
    %1125 = vmatprep.subr.mxu0 0.0
    %1126 = vmatpush1.msra.mxu0 0.0
    %1127 = vmatprep.subr.mxu0 0.0
    %1128 = vmatpush1.msra.mxu0 0.0
    %1129 = vmatprep.subr.mxu0 0.0
    %1130 = vmatpush1.msra.mxu0 0.0
    %1131 = vmatprep.subr.mxu0 0.0
    %1132 = vmatpush1.msra.mxu0 0.0
    %1133 = vmatprep.subr.mxu0 0.0
    %1134 = vmatpush1.msra.mxu0 0.0
    %1135 = vmatprep.subr.mxu0 0.0
    %1136 = vmatpush1.msra.mxu0 0.0
    %1137 = vmatprep.subr.mxu0 0.0
    %1138 = vmatpush1.msra.mxu0 0.0
    %1139 = vmatprep.subr.mxu0 0.0
    %1140 = vmatpush1.msra.mxu0 0.0
    %1141 = vmatprep.subr.mxu0 0.0
    %1142 = vmatpush1.msra.mxu0 0.0
    %1143 = vmatprep.subr.mxu0 0.0
    %1144 = vmatpush1.msra.mxu0 0.0
    %1145 = vmatprep.subr.mxu0 0.0
    %1146 = vmatpush1.msra.mxu0 0.0
    %1147 = vmatprep.subr.mxu0 0.0
    %1148 = vmatpush1.msra.mxu0 0.0
    %1149 = vmatprep.subr.mxu0 0.0
    %1150 = vmatpush1.msra.mxu0 0.0
    %1151 = vmatprep.subr.mxu0 0.0
    %1152 = vmatpush1.msra.mxu0 0.0
    %1153 = vmatprep.subr.mxu0 0.0
    %1154 = vmatpush1.msra.mxu0 0.0
    %1155 = vmatprep.subr.mxu0 0.0
    %1156 = vmatpush1.msra.mxu0 0.0
    %1157 = vmatprep.subr.mxu0 0.0
    %1158 = vmatpush1.msra.mxu0 0.0
    %1159 = vmatprep.subr.mxu0 0.0
    %1160 = vmatpush1.msra.mxu0 0.0
    %1161 = vmatprep.subr.mxu0 0.0
    %1162 = vmatpush1.msra.mxu0 0.0
    %1163 = vmatprep.subr.mxu0 0.0
    %1164 = vmatpush1.msra.mxu0 0.0
    %1165 = vmatprep.subr.mxu0 0.0
    %1166 = vmatpush1.msra.mxu0 0.0
    %1167 = vmatprep.subr.mxu0 0.0
    %1168 = vmatpush1.msra.mxu0 0.0
    %1169 = vmatprep.subr.mxu0 0.0
    %1170 = vmatpush1.msra.mxu0 0.0
    %1171 = vmatprep.subr.mxu0 0.0
    %1172 = vmatpush1.msra.mxu0 0.0
    %1173 = vmatprep.subr.mxu0 0.0
    %1174 = vmatpush1.msra.mxu0 0.0
    %1175 = vmatprep.subr.mxu0 0.0
    %1176 = vmatpush1.msra.mxu0 0.0
    %1177 = vmatprep.mubr.f32.mxu0 0.0
    %1178 = vmatmul.mubr.f32.gmra.mrb[0].mxu0 %v1028
    %v1179 = vpop.f32.mrb[0].mxu0
    %v1180 = vadd.f32 %v1023, %v1179
    %v1181 = vpop.f32.mrb[0].mxu0
    %v1182 = vadd.f32 %v1025, %v1181
    %1183 = vdwg.mxu0
    %v1185 = vlaneseq
    %v1186 = vshrl.u32 %v1185, 7
    %v1187 = vsub.s32 0, %v1186
    %v1188 = vrot.slane %v171, %v1187
    %v1189 = vlaneseq
    %v1190 = vshrl.u32 %v1189, 7
    %v1191 = vsub.s32 1, %v1190
    %v1192 = vrot.slane %v171, %v1191
    %v1193 = vlaneseq
    %v1194 = vshrl.u32 %v1193, 7
    %v1195 = vsub.s32 2, %v1194
    %v1196 = vrot.slane %v171, %v1195
    %v1197 = vlaneseq
    %v1198 = vshrl.u32 %v1197, 7
    %v1199 = vsub.s32 3, %v1198
    %v1200 = vrot.slane %v171, %v1199
    %v1205 = vadd.f32 %v1109, %v1188
    %v1206 = vadd.f32 %v1111, %v1192
    %v1207 = vadd.f32 %v1180, %v1196
    %v1208 = vadd.f32 %v1182, %v1200
    %v1209 = vtanh.pop %v1205
    %v1210 = vtanh.pop %v1206
    %v1211 = vadd.f32 %v1207, %v1208
    %v1212 = vxor.u32 %v1211, 2147483648
    %v1213 = vmul.f32 %v1212, 1.442695
    %v1214 = vpow.pop %v1213
    %v1215 = vadd.f32 %v1214, 1.0
    %v1216 = vrcp.pop %v1215
    %v1217 = vmul.f32 1.0, %v1216
    %v1218 = vsub.f32 %v1210, %v1209
    %v1219 = vmul.f32 %v1217, %v1218
    %v1220 = vadd.f32 %v1209, %v1219
    %v1222 = vlaneseq
    %v1223 = vshrl.u32 %v1222, 7
    %v1224 = vsub.s32 0, %v1223
    %v1225 = vrot.slane %v173, %v1224
    %v1228 = vsel %vm882, %v1220, 0
    %1230 = vmatprep.subr.mxu0 0.0
    %1231 = vmatpush1.msra.mxu0 %v172
    %1232 = vmatprep.subr.mxu0 0.0
    %1233 = vmatpush1.msra.mxu0 0.0
    %1234 = vmatprep.subr.mxu0 0.0
    %1235 = vmatpush1.msra.mxu0 0.0
    %1236 = vmatprep.subr.mxu0 0.0
    %1237 = vmatpush1.msra.mxu0 0.0
    %1238 = vmatprep.subr.mxu0 0.0
    %1239 = vmatpush1.msra.mxu0 0.0
    %1240 = vmatprep.subr.mxu0 0.0
    %1241 = vmatpush1.msra.mxu0 0.0
    %1242 = vmatprep.subr.mxu0 0.0
    %1243 = vmatpush1.msra.mxu0 0.0
    %1244 = vmatprep.subr.mxu0 0.0
    %1245 = vmatpush1.msra.mxu0 0.0
    %1246 = vmatprep.subr.mxu0 0.0
    %1247 = vmatpush1.msra.mxu0 0.0
    %1248 = vmatprep.subr.mxu0 0.0
    %1249 = vmatpush1.msra.mxu0 0.0
    %1250 = vmatprep.subr.mxu0 0.0
    %1251 = vmatpush1.msra.mxu0 0.0
    %1252 = vmatprep.subr.mxu0 0.0
    %1253 = vmatpush1.msra.mxu0 0.0
    %1254 = vmatprep.subr.mxu0 0.0
    %1255 = vmatpush1.msra.mxu0 0.0
    %1256 = vmatprep.subr.mxu0 0.0
    %1257 = vmatpush1.msra.mxu0 0.0
    %1258 = vmatprep.subr.mxu0 0.0
    %1259 = vmatpush1.msra.mxu0 0.0
    %1260 = vmatprep.subr.mxu0 0.0
    %1261 = vmatpush1.msra.mxu0 0.0
    %1262 = vmatprep.subr.mxu0 0.0
    %1263 = vmatpush1.msra.mxu0 0.0
    %1264 = vmatprep.subr.mxu0 0.0
    %1265 = vmatpush1.msra.mxu0 0.0
    %1266 = vmatprep.subr.mxu0 0.0
    %1267 = vmatpush1.msra.mxu0 0.0
    %1268 = vmatprep.subr.mxu0 0.0
    %1269 = vmatpush1.msra.mxu0 0.0
    %1270 = vmatprep.subr.mxu0 0.0
    %1271 = vmatpush1.msra.mxu0 0.0
    %1272 = vmatprep.subr.mxu0 0.0
    %1273 = vmatpush1.msra.mxu0 0.0
    %1274 = vmatprep.subr.mxu0 0.0
    %1275 = vmatpush1.msra.mxu0 0.0
    %1276 = vmatprep.subr.mxu0 0.0
    %1277 = vmatpush1.msra.mxu0 0.0
    %1278 = vmatprep.subr.mxu0 0.0
    %1279 = vmatpush1.msra.mxu0 0.0
    %1280 = vmatprep.subr.mxu0 0.0
    %1281 = vmatpush1.msra.mxu0 0.0
    %1282 = vmatprep.subr.mxu0 0.0
    %1283 = vmatpush1.msra.mxu0 0.0
    %1284 = vmatprep.subr.mxu0 0.0
    %1285 = vmatpush1.msra.mxu0 0.0
    %1286 = vmatprep.subr.mxu0 0.0
    %1287 = vmatpush1.msra.mxu0 0.0
    %1288 = vmatprep.subr.mxu0 0.0
    %1289 = vmatpush1.msra.mxu0 0.0
    %1290 = vmatprep.subr.mxu0 0.0
    %1291 = vmatpush1.msra.mxu0 0.0
    %1292 = vmatprep.subr.mxu0 0.0
    %1293 = vmatpush1.msra.mxu0 0.0
    %1294 = vmatprep.mubr.f32.mxu0 0.0
    %1295 = vmatmul.mubr.f32.gmra.mrb[0].mxu0 %v1228
    %v1296 = vpop.f32.mrb[0].mxu0
    %v1297 = vadd.f32 %v1225, %v1296
    %v1298 = vpop.f32.mrb[0].mxu0
    %1299 = vdwg.mxu0
    %1300 = vst [vmem:[#allocation14] sm:$0x3] %v1297
    %s1301 = scalar_lea.vmem %s0, 2
    %v1302 = vld [vmem:[%s1301] sm:$0x3]
    %1303 = vmatprep.subr.mxu0 %v134
    %1304 = vmatpush1.msra.mxu0 %v133
    %1305 = vmatprep.subr.mxu0 %v184
    %1306 = vmatpush1.msra.mxu0 %v181
    %1307 = vmatprep.subr.mxu0 0.0
    %1308 = vmatpush1.msra.mxu0 0.0
    %1309 = vmatprep.subr.mxu0 0.0
    %1310 = vmatpush1.msra.mxu0 0.0
    %1311 = vmatprep.subr.mxu0 0.0
    %1312 = vmatpush1.msra.mxu0 0.0
    %1313 = vmatprep.subr.mxu0 0.0
    %1314 = vmatpush1.msra.mxu0 0.0
    %1315 = vmatprep.subr.mxu0 0.0
    %1316 = vmatpush1.msra.mxu0 0.0
    %1317 = vmatprep.subr.mxu0 0.0
    %1318 = vmatpush1.msra.mxu0 0.0
    %1319 = vmatprep.subr.mxu0 0.0
    %1320 = vmatpush1.msra.mxu0 0.0
    %1321 = vmatprep.subr.mxu0 0.0
    %1322 = vmatpush1.msra.mxu0 0.0
    %1323 = vmatprep.subr.mxu0 0.0
    %1324 = vmatpush1.msra.mxu0 0.0
    %1325 = vmatprep.subr.mxu0 0.0
    %1326 = vmatpush1.msra.mxu0 0.0
    %1327 = vmatprep.subr.mxu0 0.0
    %1328 = vmatpush1.msra.mxu0 0.0
    %1329 = vmatprep.subr.mxu0 0.0
    %1330 = vmatpush1.msra.mxu0 0.0
    %1331 = vmatprep.subr.mxu0 0.0
    %1332 = vmatpush1.msra.mxu0 0.0
    %1333 = vmatprep.subr.mxu0 0.0
    %1334 = vmatpush1.msra.mxu0 0.0
    %1335 = vmatprep.subr.mxu0 0.0
    %1336 = vmatpush1.msra.mxu0 0.0
    %1337 = vmatprep.subr.mxu0 0.0
    %1338 = vmatpush1.msra.mxu0 0.0
    %1339 = vmatprep.subr.mxu0 0.0
    %1340 = vmatpush1.msra.mxu0 0.0
    %1341 = vmatprep.subr.mxu0 0.0
    %1342 = vmatpush1.msra.mxu0 0.0
    %1343 = vmatprep.subr.mxu0 0.0
    %1344 = vmatpush1.msra.mxu0 0.0
    %1345 = vmatprep.subr.mxu0 0.0
    %1346 = vmatpush1.msra.mxu0 0.0
    %1347 = vmatprep.subr.mxu0 0.0
    %1348 = vmatpush1.msra.mxu0 0.0
    %1349 = vmatprep.subr.mxu0 0.0
    %1350 = vmatpush1.msra.mxu0 0.0
    %1351 = vmatprep.subr.mxu0 0.0
    %1352 = vmatpush1.msra.mxu0 0.0
    %1353 = vmatprep.subr.mxu0 0.0
    %1354 = vmatpush1.msra.mxu0 0.0
    %1355 = vmatprep.subr.mxu0 0.0
    %1356 = vmatpush1.msra.mxu0 0.0
    %1357 = vmatprep.subr.mxu0 0.0
    %1358 = vmatpush1.msra.mxu0 0.0
    %1359 = vmatprep.subr.mxu0 0.0
    %1360 = vmatpush1.msra.mxu0 0.0
    %1361 = vmatprep.subr.mxu0 0.0
    %1362 = vmatpush1.msra.mxu0 0.0
    %1363 = vmatprep.subr.mxu0 0.0
    %1364 = vmatpush1.msra.mxu0 0.0
    %1365 = vmatprep.subr.mxu0 0.0
    %1366 = vmatpush1.msra.mxu0 0.0
    %1367 = vmatprep.mubr.f32.mxu0 0.0
    %1368 = vmatmul.mubr.f32.gmra.mrb[0].mxu0 %v689
    %v1369 = vpop.f32.mrb[0].mxu0
    %v1370 = vadd.f32 0.0, %v1369
    %v1371 = vpop.f32.mrb[0].mxu0
    %v1372 = vadd.f32 0.0, %v1371
    %1373 = vdwg.mxu0
    %1374 = vmatprep.subr.mxu0 %v136
    %1375 = vmatpush1.msra.mxu0 %v135
    %1376 = vmatprep.subr.mxu0 %v190
    %1377 = vmatpush1.msra.mxu0 %v187
    %1378 = vmatprep.subr.mxu0 0.0
    %1379 = vmatpush1.msra.mxu0 0.0
    %1380 = vmatprep.subr.mxu0 0.0
    %1381 = vmatpush1.msra.mxu0 0.0
    %1382 = vmatprep.subr.mxu0 0.0
    %1383 = vmatpush1.msra.mxu0 0.0
    %1384 = vmatprep.subr.mxu0 0.0
    %1385 = vmatpush1.msra.mxu0 0.0
    %1386 = vmatprep.subr.mxu0 0.0
    %1387 = vmatpush1.msra.mxu0 0.0
    %1388 = vmatprep.subr.mxu0 0.0
    %1389 = vmatpush1.msra.mxu0 0.0
    %1390 = vmatprep.subr.mxu0 0.0
    %1391 = vmatpush1.msra.mxu0 0.0
    %1392 = vmatprep.subr.mxu0 0.0
    %1393 = vmatpush1.msra.mxu0 0.0
    %1394 = vmatprep.subr.mxu0 0.0
    %1395 = vmatpush1.msra.mxu0 0.0
    %1396 = vmatprep.subr.mxu0 0.0
    %1397 = vmatpush1.msra.mxu0 0.0
    %1398 = vmatprep.subr.mxu0 0.0
    %1399 = vmatpush1.msra.mxu0 0.0
    %1400 = vmatprep.subr.mxu0 0.0
    %1401 = vmatpush1.msra.mxu0 0.0
    %1402 = vmatprep.subr.mxu0 0.0
    %1403 = vmatpush1.msra.mxu0 0.0
    %1404 = vmatprep.subr.mxu0 0.0
    %1405 = vmatpush1.msra.mxu0 0.0
    %1406 = vmatprep.subr.mxu0 0.0
    %1407 = vmatpush1.msra.mxu0 0.0
    %1408 = vmatprep.subr.mxu0 0.0
    %1409 = vmatpush1.msra.mxu0 0.0
    %1410 = vmatprep.subr.mxu0 0.0
    %1411 = vmatpush1.msra.mxu0 0.0
    %1412 = vmatprep.subr.mxu0 0.0
    %1413 = vmatpush1.msra.mxu0 0.0
    %1414 = vmatprep.subr.mxu0 0.0
    %1415 = vmatpush1.msra.mxu0 0.0
    %1416 = vmatprep.subr.mxu0 0.0
    %1417 = vmatpush1.msra.mxu0 0.0
    %1418 = vmatprep.subr.mxu0 0.0
    %1419 = vmatpush1.msra.mxu0 0.0
    %1420 = vmatprep.subr.mxu0 0.0
    %1421 = vmatpush1.msra.mxu0 0.0
    %1422 = vmatprep.subr.mxu0 0.0
    %1423 = vmatpush1.msra.mxu0 0.0
    %1424 = vmatprep.subr.mxu0 0.0
    %1425 = vmatpush1.msra.mxu0 0.0
    %1426 = vmatprep.subr.mxu0 0.0
    %1427 = vmatpush1.msra.mxu0 0.0
    %1428 = vmatprep.subr.mxu0 0.0
    %1429 = vmatpush1.msra.mxu0 0.0
    %1430 = vmatprep.subr.mxu0 0.0
    %1431 = vmatpush1.msra.mxu0 0.0
    %1432 = vmatprep.subr.mxu0 0.0
    %1433 = vmatpush1.msra.mxu0 0.0
    %1434 = vmatprep.subr.mxu0 0.0
    %1435 = vmatpush1.msra.mxu0 0.0
    %1436 = vmatprep.subr.mxu0 0.0
    %1437 = vmatpush1.msra.mxu0 0.0
    %1438 = vmatprep.mubr.f32.mxu0 0.0
    %1439 = vmatmul.mubr.f32.gmra.mrb[0].mxu0 %v689
    %v1440 = vpop.f32.mrb[0].mxu0
    %v1441 = vadd.f32 0.0, %v1440
    %v1442 = vpop.f32.mrb[0].mxu0
    %v1443 = vadd.f32 0.0, %v1442
    %1444 = vdwg.mxu0
    %v1446 = vsel %vm338, %v1302, 0
    %1448 = vmatprep.subr.mxu0 %v345
    %1449 = vmatpush1.msra.mxu0 %v343
    %1450 = vmatprep.subr.mxu0 0.0
    %1451 = vmatpush1.msra.mxu0 0.0
    %1452 = vmatprep.subr.mxu0 0.0
    %1453 = vmatpush1.msra.mxu0 0.0
    %1454 = vmatprep.subr.mxu0 0.0
    %1455 = vmatpush1.msra.mxu0 0.0
    %1456 = vmatprep.subr.mxu0 0.0
    %1457 = vmatpush1.msra.mxu0 0.0
    %1458 = vmatprep.subr.mxu0 0.0
    %1459 = vmatpush1.msra.mxu0 0.0
    %1460 = vmatprep.subr.mxu0 0.0
    %1461 = vmatpush1.msra.mxu0 0.0
    %1462 = vmatprep.subr.mxu0 0.0
    %1463 = vmatpush1.msra.mxu0 0.0
    %1464 = vmatprep.subr.mxu0 0.0
    %1465 = vmatpush1.msra.mxu0 0.0
    %1466 = vmatprep.subr.mxu0 0.0
    %1467 = vmatpush1.msra.mxu0 0.0
    %1468 = vmatprep.subr.mxu0 0.0
    %1469 = vmatpush1.msra.mxu0 0.0
    %1470 = vmatprep.subr.mxu0 0.0
    %1471 = vmatpush1.msra.mxu0 0.0
    %1472 = vmatprep.subr.mxu0 0.0
    %1473 = vmatpush1.msra.mxu0 0.0
    %1474 = vmatprep.subr.mxu0 0.0
    %1475 = vmatpush1.msra.mxu0 0.0
    %1476 = vmatprep.subr.mxu0 0.0
    %1477 = vmatpush1.msra.mxu0 0.0
    %1478 = vmatprep.subr.mxu0 0.0
    %1479 = vmatpush1.msra.mxu0 0.0
    %1480 = vmatprep.subr.mxu0 0.0
    %1481 = vmatpush1.msra.mxu0 0.0
    %1482 = vmatprep.subr.mxu0 0.0
    %1483 = vmatpush1.msra.mxu0 0.0
    %1484 = vmatprep.subr.mxu0 0.0
    %1485 = vmatpush1.msra.mxu0 0.0
    %1486 = vmatprep.subr.mxu0 0.0
    %1487 = vmatpush1.msra.mxu0 0.0
    %1488 = vmatprep.subr.mxu0 0.0
    %1489 = vmatpush1.msra.mxu0 0.0
    %1490 = vmatprep.subr.mxu0 0.0
    %1491 = vmatpush1.msra.mxu0 0.0
    %1492 = vmatprep.subr.mxu0 0.0
    %1493 = vmatpush1.msra.mxu0 0.0
    %1494 = vmatprep.subr.mxu0 0.0
    %1495 = vmatpush1.msra.mxu0 0.0
    %1496 = vmatprep.subr.mxu0 0.0
    %1497 = vmatpush1.msra.mxu0 0.0
    %1498 = vmatprep.subr.mxu0 0.0
    %1499 = vmatpush1.msra.mxu0 0.0
    %1500 = vmatprep.subr.mxu0 0.0
    %1501 = vmatpush1.msra.mxu0 0.0
    %1502 = vmatprep.subr.mxu0 0.0
    %1503 = vmatpush1.msra.mxu0 0.0
    %1504 = vmatprep.subr.mxu0 0.0
    %1505 = vmatpush1.msra.mxu0 0.0
    %1506 = vmatprep.subr.mxu0 0.0
    %1507 = vmatpush1.msra.mxu0 0.0
    %1508 = vmatprep.subr.mxu0 0.0
    %1509 = vmatpush1.msra.mxu0 0.0
    %1510 = vmatprep.subr.mxu0 0.0
    %1511 = vmatpush1.msra.mxu0 0.0
    %1512 = vmatprep.mubr.f32.mxu0 0.0
    %1513 = vmatmul.mubr.f32.gmra.mrb[0].mxu0 %v1446
    %v1514 = vpop.f32.mrb[0].mxu0
    %v1515 = vadd.f32 %v1370, %v1514
    %v1516 = vpop.f32.mrb[0].mxu0
    %v1517 = vadd.f32 %v1372, %v1516
    %1518 = vdwg.mxu0
    %1519 = vmatprep.subr.mxu0 %v349
    %1520 = vmatpush1.msra.mxu0 %v347
    %1521 = vmatprep.subr.mxu0 0.0
    %1522 = vmatpush1.msra.mxu0 0.0
    %1523 = vmatprep.subr.mxu0 0.0
    %1524 = vmatpush1.msra.mxu0 0.0
    %1525 = vmatprep.subr.mxu0 0.0
    %1526 = vmatpush1.msra.mxu0 0.0
    %1527 = vmatprep.subr.mxu0 0.0
    %1528 = vmatpush1.msra.mxu0 0.0
    %1529 = vmatprep.subr.mxu0 0.0
    %1530 = vmatpush1.msra.mxu0 0.0
    %1531 = vmatprep.subr.mxu0 0.0
    %1532 = vmatpush1.msra.mxu0 0.0
    %1533 = vmatprep.subr.mxu0 0.0
    %1534 = vmatpush1.msra.mxu0 0.0
    %1535 = vmatprep.subr.mxu0 0.0
    %1536 = vmatpush1.msra.mxu0 0.0
    %1537 = vmatprep.subr.mxu0 0.0
    %1538 = vmatpush1.msra.mxu0 0.0
    %1539 = vmatprep.subr.mxu0 0.0
    %1540 = vmatpush1.msra.mxu0 0.0
    %1541 = vmatprep.subr.mxu0 0.0
    %1542 = vmatpush1.msra.mxu0 0.0
    %1543 = vmatprep.subr.mxu0 0.0
    %1544 = vmatpush1.msra.mxu0 0.0
    %1545 = vmatprep.subr.mxu0 0.0
    %1546 = vmatpush1.msra.mxu0 0.0
    %1547 = vmatprep.subr.mxu0 0.0
    %1548 = vmatpush1.msra.mxu0 0.0
    %1549 = vmatprep.subr.mxu0 0.0
    %1550 = vmatpush1.msra.mxu0 0.0
    %1551 = vmatprep.subr.mxu0 0.0
    %1552 = vmatpush1.msra.mxu0 0.0
    %1553 = vmatprep.subr.mxu0 0.0
    %1554 = vmatpush1.msra.mxu0 0.0
    %1555 = vmatprep.subr.mxu0 0.0
    %1556 = vmatpush1.msra.mxu0 0.0
    %1557 = vmatprep.subr.mxu0 0.0
    %1558 = vmatpush1.msra.mxu0 0.0
    %1559 = vmatprep.subr.mxu0 0.0
    %1560 = vmatpush1.msra.mxu0 0.0
    %1561 = vmatprep.subr.mxu0 0.0
    %1562 = vmatpush1.msra.mxu0 0.0
    %1563 = vmatprep.subr.mxu0 0.0
    %1564 = vmatpush1.msra.mxu0 0.0
    %1565 = vmatprep.subr.mxu0 0.0
    %1566 = vmatpush1.msra.mxu0 0.0
    %1567 = vmatprep.subr.mxu0 0.0
    %1568 = vmatpush1.msra.mxu0 0.0
    %1569 = vmatprep.subr.mxu0 0.0
    %1570 = vmatpush1.msra.mxu0 0.0
    %1571 = vmatprep.subr.mxu0 0.0
    %1572 = vmatpush1.msra.mxu0 0.0
    %1573 = vmatprep.subr.mxu0 0.0
    %1574 = vmatpush1.msra.mxu0 0.0
    %1575 = vmatprep.subr.mxu0 0.0
    %1576 = vmatpush1.msra.mxu0 0.0
    %1577 = vmatprep.subr.mxu0 0.0
    %1578 = vmatpush1.msra.mxu0 0.0
    %1579 = vmatprep.subr.mxu0 0.0
    %1580 = vmatpush1.msra.mxu0 0.0
    %1581 = vmatprep.subr.mxu0 0.0
    %1582 = vmatpush1.msra.mxu0 0.0
    %1583 = vmatprep.mubr.f32.mxu0 0.0
    %1584 = vmatmul.mubr.f32.gmra.mrb[0].mxu0 %v1446
    %v1585 = vpop.f32.mrb[0].mxu0
    %v1586 = vadd.f32 %v1441, %v1585
    %v1587 = vpop.f32.mrb[0].mxu0
    %v1588 = vadd.f32 %v1443, %v1587
    %1589 = vdwg.mxu0
    %v1590 = vadd.f32 %v1515, %v497
    %v1591 = vadd.f32 %v1517, %v501
    %v1592 = vadd.f32 %v1586, %v505
    %v1593 = vadd.f32 %v1588, %v509
    %v1594 = vtanh.pop %v1590
    %v1595 = vtanh.pop %v1591
    %v1596 = vadd.f32 %v1592, %v1593
    %v1597 = vxor.u32 %v1596, 2147483648
    %v1598 = vmul.f32 %v1597, 1.442695
    %v1599 = vpow.pop %v1598
    %v1600 = vadd.f32 %v1599, 1.0
    %v1601 = vrcp.pop %v1600
    %v1602 = vmul.f32 1.0, %v1601
    %v1603 = vsub.f32 %v1595, %v1594
    %v1604 = vmul.f32 %v1602, %v1603
    %v1605 = vadd.f32 %v1594, %v1604
    %1606 = vmatprep.subr.mxu0 %v151
    %1607 = vmatpush1.msra.mxu0 %v150
    %1608 = vmatprep.subr.mxu0 %v538
    %1609 = vmatpush1.msra.mxu0 %v535
    %1610 = vmatprep.subr.mxu0 0.0
    %1611 = vmatpush1.msra.mxu0 0.0
    %1612 = vmatprep.subr.mxu0 0.0
    %1613 = vmatpush1.msra.mxu0 0.0
    %1614 = vmatprep.subr.mxu0 0.0
    %1615 = vmatpush1.msra.mxu0 0.0
    %1616 = vmatprep.subr.mxu0 0.0
    %1617 = vmatpush1.msra.mxu0 0.0
    %1618 = vmatprep.subr.mxu0 0.0
    %1619 = vmatpush1.msra.mxu0 0.0
    %1620 = vmatprep.subr.mxu0 0.0
    %1621 = vmatpush1.msra.mxu0 0.0
    %1622 = vmatprep.subr.mxu0 0.0
    %1623 = vmatpush1.msra.mxu0 0.0
    %1624 = vmatprep.subr.mxu0 0.0
    %1625 = vmatpush1.msra.mxu0 0.0
    %1626 = vmatprep.subr.mxu0 0.0
    %1627 = vmatpush1.msra.mxu0 0.0
    %1628 = vmatprep.subr.mxu0 0.0
    %1629 = vmatpush1.msra.mxu0 0.0
    %1630 = vmatprep.subr.mxu0 0.0
    %1631 = vmatpush1.msra.mxu0 0.0
    %1632 = vmatprep.subr.mxu0 0.0
    %1633 = vmatpush1.msra.mxu0 0.0
    %1634 = vmatprep.subr.mxu0 0.0
    %1635 = vmatpush1.msra.mxu0 0.0
    %1636 = vmatprep.subr.mxu0 0.0
    %1637 = vmatpush1.msra.mxu0 0.0
    %1638 = vmatprep.subr.mxu0 0.0
    %1639 = vmatpush1.msra.mxu0 0.0
    %1640 = vmatprep.subr.mxu0 0.0
    %1641 = vmatpush1.msra.mxu0 0.0
    %1642 = vmatprep.subr.mxu0 0.0
    %1643 = vmatpush1.msra.mxu0 0.0
    %1644 = vmatprep.subr.mxu0 0.0
    %1645 = vmatpush1.msra.mxu0 0.0
    %1646 = vmatprep.subr.mxu0 0.0
    %1647 = vmatpush1.msra.mxu0 0.0
    %1648 = vmatprep.subr.mxu0 0.0
    %1649 = vmatpush1.msra.mxu0 0.0
    %1650 = vmatprep.subr.mxu0 0.0
    %1651 = vmatpush1.msra.mxu0 0.0
    %1652 = vmatprep.subr.mxu0 0.0
    %1653 = vmatpush1.msra.mxu0 0.0
    %1654 = vmatprep.subr.mxu0 0.0
    %1655 = vmatpush1.msra.mxu0 0.0
    %1656 = vmatprep.subr.mxu0 0.0
    %1657 = vmatpush1.msra.mxu0 0.0
    %1658 = vmatprep.subr.mxu0 0.0
    %1659 = vmatpush1.msra.mxu0 0.0
    %1660 = vmatprep.subr.mxu0 0.0
    %1661 = vmatpush1.msra.mxu0 0.0
    %1662 = vmatprep.subr.mxu0 0.0
    %1663 = vmatpush1.msra.mxu0 0.0
    %1664 = vmatprep.subr.mxu0 0.0
    %1665 = vmatpush1.msra.mxu0 0.0
    %1666 = vmatprep.subr.mxu0 0.0
    %1667 = vmatpush1.msra.mxu0 0.0
    %1668 = vmatprep.subr.mxu0 0.0
    %1669 = vmatpush1.msra.mxu0 0.0
    %1670 = vmatprep.mubr.f32.mxu0 0.0
    %1671 = vmatmul.mubr.f32.gmra.mrb[0].mxu0 %v1028
    %v1672 = vpop.f32.mrb[0].mxu0
    %v1673 = vadd.f32 0.0, %v1672
    %v1674 = vpop.f32.mrb[0].mxu0
    %v1675 = vadd.f32 0.0, %v1674
    %1676 = vdwg.mxu0
    %1677 = vmatprep.subr.mxu0 %v153
    %1678 = vmatpush1.msra.mxu0 %v152
    %1679 = vmatprep.subr.mxu0 %v544
    %1680 = vmatpush1.msra.mxu0 %v541
    %1681 = vmatprep.subr.mxu0 0.0
    %1682 = vmatpush1.msra.mxu0 0.0
    %1683 = vmatprep.subr.mxu0 0.0
    %1684 = vmatpush1.msra.mxu0 0.0
    %1685 = vmatprep.subr.mxu0 0.0
    %1686 = vmatpush1.msra.mxu0 0.0
    %1687 = vmatprep.subr.mxu0 0.0
    %1688 = vmatpush1.msra.mxu0 0.0
    %1689 = vmatprep.subr.mxu0 0.0
    %1690 = vmatpush1.msra.mxu0 0.0
    %1691 = vmatprep.subr.mxu0 0.0
    %1692 = vmatpush1.msra.mxu0 0.0
    %1693 = vmatprep.subr.mxu0 0.0
    %1694 = vmatpush1.msra.mxu0 0.0
    %1695 = vmatprep.subr.mxu0 0.0
    %1696 = vmatpush1.msra.mxu0 0.0
    %1697 = vmatprep.subr.mxu0 0.0
    %1698 = vmatpush1.msra.mxu0 0.0
    %1699 = vmatprep.subr.mxu0 0.0
    %1700 = vmatpush1.msra.mxu0 0.0
    %1701 = vmatprep.subr.mxu0 0.0
    %1702 = vmatpush1.msra.mxu0 0.0
    %1703 = vmatprep.subr.mxu0 0.0
    %1704 = vmatpush1.msra.mxu0 0.0
    %1705 = vmatprep.subr.mxu0 0.0
    %1706 = vmatpush1.msra.mxu0 0.0
    %1707 = vmatprep.subr.mxu0 0.0
    %1708 = vmatpush1.msra.mxu0 0.0
    %1709 = vmatprep.subr.mxu0 0.0
    %1710 = vmatpush1.msra.mxu0 0.0
    %1711 = vmatprep.subr.mxu0 0.0
    %1712 = vmatpush1.msra.mxu0 0.0
    %1713 = vmatprep.subr.mxu0 0.0
    %1714 = vmatpush1.msra.mxu0 0.0
    %1715 = vmatprep.subr.mxu0 0.0
    %1716 = vmatpush1.msra.mxu0 0.0
    %1717 = vmatprep.subr.mxu0 0.0
    %1718 = vmatpush1.msra.mxu0 0.0
    %1719 = vmatprep.subr.mxu0 0.0
    %1720 = vmatpush1.msra.mxu0 0.0
    %1721 = vmatprep.subr.mxu0 0.0
    %1722 = vmatpush1.msra.mxu0 0.0
    %1723 = vmatprep.subr.mxu0 0.0
    %1724 = vmatpush1.msra.mxu0 0.0
    %1725 = vmatprep.subr.mxu0 0.0
    %1726 = vmatpush1.msra.mxu0 0.0
    %1727 = vmatprep.subr.mxu0 0.0
    %1728 = vmatpush1.msra.mxu0 0.0
    %1729 = vmatprep.subr.mxu0 0.0
    %1730 = vmatpush1.msra.mxu0 0.0
    %1731 = vmatprep.subr.mxu0 0.0
    %1732 = vmatpush1.msra.mxu0 0.0
    %1733 = vmatprep.subr.mxu0 0.0
    %1734 = vmatpush1.msra.mxu0 0.0
    %1735 = vmatprep.subr.mxu0 0.0
    %1736 = vmatpush1.msra.mxu0 0.0
    %1737 = vmatprep.subr.mxu0 0.0
    %1738 = vmatpush1.msra.mxu0 0.0
    %1739 = vmatprep.subr.mxu0 0.0
    %1740 = vmatpush1.msra.mxu0 0.0
    %1741 = vmatprep.mubr.f32.mxu0 0.0
    %1742 = vmatmul.mubr.f32.gmra.mrb[0].mxu0 %v1028
    %v1743 = vpop.f32.mrb[0].mxu0
    %v1744 = vadd.f32 0.0, %v1743
    %v1745 = vpop.f32.mrb[0].mxu0
    %v1746 = vadd.f32 0.0, %v1745
    %1747 = vdwg.mxu0
    %v1749 = vsel %vm175, %v1605, 0
    %1751 = vmatprep.subr.mxu0 %v143
    %1752 = vmatpush1.msra.mxu0 %v142
    %1753 = vmatprep.subr.mxu0 %v695
    %1754 = vmatpush1.msra.mxu0 %v692
    %1755 = vmatprep.subr.mxu0 0.0
    %1756 = vmatpush1.msra.mxu0 0.0
    %1757 = vmatprep.subr.mxu0 0.0
    %1758 = vmatpush1.msra.mxu0 0.0
    %1759 = vmatprep.subr.mxu0 0.0
    %1760 = vmatpush1.msra.mxu0 0.0
    %1761 = vmatprep.subr.mxu0 0.0
    %1762 = vmatpush1.msra.mxu0 0.0
    %1763 = vmatprep.subr.mxu0 0.0
    %1764 = vmatpush1.msra.mxu0 0.0
    %1765 = vmatprep.subr.mxu0 0.0
    %1766 = vmatpush1.msra.mxu0 0.0
    %1767 = vmatprep.subr.mxu0 0.0
    %1768 = vmatpush1.msra.mxu0 0.0
    %1769 = vmatprep.subr.mxu0 0.0
    %1770 = vmatpush1.msra.mxu0 0.0
    %1771 = vmatprep.subr.mxu0 0.0
    %1772 = vmatpush1.msra.mxu0 0.0
    %1773 = vmatprep.subr.mxu0 0.0
    %1774 = vmatpush1.msra.mxu0 0.0
    %1775 = vmatprep.subr.mxu0 0.0
    %1776 = vmatpush1.msra.mxu0 0.0
    %1777 = vmatprep.subr.mxu0 0.0
    %1778 = vmatpush1.msra.mxu0 0.0
    %1779 = vmatprep.subr.mxu0 0.0
    %1780 = vmatpush1.msra.mxu0 0.0
    %1781 = vmatprep.subr.mxu0 0.0
    %1782 = vmatpush1.msra.mxu0 0.0
    %1783 = vmatprep.subr.mxu0 0.0
    %1784 = vmatpush1.msra.mxu0 0.0
    %1785 = vmatprep.subr.mxu0 0.0
    %1786 = vmatpush1.msra.mxu0 0.0
    %1787 = vmatprep.subr.mxu0 0.0
    %1788 = vmatpush1.msra.mxu0 0.0
    %1789 = vmatprep.subr.mxu0 0.0
    %1790 = vmatpush1.msra.mxu0 0.0
    %1791 = vmatprep.subr.mxu0 0.0
    %1792 = vmatpush1.msra.mxu0 0.0
    %1793 = vmatprep.subr.mxu0 0.0
    %1794 = vmatpush1.msra.mxu0 0.0
    %1795 = vmatprep.subr.mxu0 0.0
    %1796 = vmatpush1.msra.mxu0 0.0
    %1797 = vmatprep.subr.mxu0 0.0
    %1798 = vmatpush1.msra.mxu0 0.0
    %1799 = vmatprep.subr.mxu0 0.0
    %1800 = vmatpush1.msra.mxu0 0.0
    %1801 = vmatprep.subr.mxu0 0.0
    %1802 = vmatpush1.msra.mxu0 0.0
    %1803 = vmatprep.subr.mxu0 0.0
    %1804 = vmatpush1.msra.mxu0 0.0
    %1805 = vmatprep.subr.mxu0 0.0
    %1806 = vmatpush1.msra.mxu0 0.0
    %1807 = vmatprep.subr.mxu0 0.0
    %1808 = vmatpush1.msra.mxu0 0.0
    %1809 = vmatprep.subr.mxu0 0.0
    %1810 = vmatpush1.msra.mxu0 0.0
    %1811 = vmatprep.subr.mxu0 0.0
    %1812 = vmatpush1.msra.mxu0 0.0
    %1813 = vmatprep.subr.mxu0 0.0
    %1814 = vmatpush1.msra.mxu0 0.0
    %1815 = vmatprep.mubr.f32.mxu0 0.0
    %1816 = vmatmul.mubr.f32.gmra.mrb[0].mxu0 %v1749
    %v1817 = vpop.f32.mrb[0].mxu0
    %v1818 = vadd.f32 %v1673, %v1817
    %v1819 = vpop.f32.mrb[0].mxu0
    %v1820 = vadd.f32 %v1675, %v1819
    %1821 = vdwg.mxu0
    %1822 = vmatprep.subr.mxu0 %v145
    %1823 = vmatpush1.msra.mxu0 %v144
    %1824 = vmatprep.subr.mxu0 %v701
    %1825 = vmatpush1.msra.mxu0 %v698
    %1826 = vmatprep.subr.mxu0 0.0
    %1827 = vmatpush1.msra.mxu0 0.0
    %1828 = vmatprep.subr.mxu0 0.0
    %1829 = vmatpush1.msra.mxu0 0.0
    %1830 = vmatprep.subr.mxu0 0.0
    %1831 = vmatpush1.msra.mxu0 0.0
    %1832 = vmatprep.subr.mxu0 0.0
    %1833 = vmatpush1.msra.mxu0 0.0
    %1834 = vmatprep.subr.mxu0 0.0
    %1835 = vmatpush1.msra.mxu0 0.0
    %1836 = vmatprep.subr.mxu0 0.0
    %1837 = vmatpush1.msra.mxu0 0.0
    %1838 = vmatprep.subr.mxu0 0.0
    %1839 = vmatpush1.msra.mxu0 0.0
    %1840 = vmatprep.subr.mxu0 0.0
    %1841 = vmatpush1.msra.mxu0 0.0
    %1842 = vmatprep.subr.mxu0 0.0
    %1843 = vmatpush1.msra.mxu0 0.0
    %1844 = vmatprep.subr.mxu0 0.0
    %1845 = vmatpush1.msra.mxu0 0.0
    %1846 = vmatprep.subr.mxu0 0.0
    %1847 = vmatpush1.msra.mxu0 0.0
    %1848 = vmatprep.subr.mxu0 0.0
    %1849 = vmatpush1.msra.mxu0 0.0
    %1850 = vmatprep.subr.mxu0 0.0
    %1851 = vmatpush1.msra.mxu0 0.0
    %1852 = vmatprep.subr.mxu0 0.0
    %1853 = vmatpush1.msra.mxu0 0.0
    %1854 = vmatprep.subr.mxu0 0.0
    %1855 = vmatpush1.msra.mxu0 0.0
    %1856 = vmatprep.subr.mxu0 0.0
    %1857 = vmatpush1.msra.mxu0 0.0
    %1858 = vmatprep.subr.mxu0 0.0
    %1859 = vmatpush1.msra.mxu0 0.0
    %1860 = vmatprep.subr.mxu0 0.0
    %1861 = vmatpush1.msra.mxu0 0.0
    %1862 = vmatprep.subr.mxu0 0.0
    %1863 = vmatpush1.msra.mxu0 0.0
    %1864 = vmatprep.subr.mxu0 0.0
    %1865 = vmatpush1.msra.mxu0 0.0
    %1866 = vmatprep.subr.mxu0 0.0
    %1867 = vmatpush1.msra.mxu0 0.0
    %1868 = vmatprep.subr.mxu0 0.0
    %1869 = vmatpush1.msra.mxu0 0.0
    %1870 = vmatprep.subr.mxu0 0.0
    %1871 = vmatpush1.msra.mxu0 0.0
    %1872 = vmatprep.subr.mxu0 0.0
    %1873 = vmatpush1.msra.mxu0 0.0
    %1874 = vmatprep.subr.mxu0 0.0
    %1875 = vmatpush1.msra.mxu0 0.0
    %1876 = vmatprep.subr.mxu0 0.0
    %1877 = vmatpush1.msra.mxu0 0.0
    %1878 = vmatprep.subr.mxu0 0.0
    %1879 = vmatpush1.msra.mxu0 0.0
    %1880 = vmatprep.subr.mxu0 0.0
    %1881 = vmatpush1.msra.mxu0 0.0
    %1882 = vmatprep.subr.mxu0 0.0
    %1883 = vmatpush1.msra.mxu0 0.0
    %1884 = vmatprep.subr.mxu0 0.0
    %1885 = vmatpush1.msra.mxu0 0.0
    %1886 = vmatprep.mubr.f32.mxu0 0.0
    %1887 = vmatmul.mubr.f32.gmra.mrb[0].mxu0 %v1749
    %v1888 = vpop.f32.mrb[0].mxu0
    %v1889 = vadd.f32 %v1744, %v1888
    %v1890 = vpop.f32.mrb[0].mxu0
    %v1891 = vadd.f32 %v1746, %v1890
    %1892 = vdwg.mxu0
    %v1893 = vadd.f32 %v1818, %v849
    %v1894 = vadd.f32 %v1820, %v853
    %v1895 = vadd.f32 %v1889, %v857
    %v1896 = vadd.f32 %v1891, %v861
    %v1897 = vtanh.pop %v1893
    %v1898 = vtanh.pop %v1894
    %v1899 = vadd.f32 %v1895, %v1896
    %v1900 = vxor.u32 %v1899, 2147483648
    %v1901 = vmul.f32 %v1900, 1.442695
    %v1902 = vpow.pop %v1901
    %v1903 = vadd.f32 %v1902, 1.0
    %v1904 = vrcp.pop %v1903
    %v1905 = vmul.f32 1.0, %v1904
    %v1906 = vsub.f32 %v1898, %v1897
    %v1907 = vmul.f32 %v1905, %v1906
    %v1908 = vadd.f32 %v1897, %v1907
    %1909 = vmatprep.subr.mxu0 %v168
    %1910 = vmatpush1.msra.mxu0 %v167
    %1911 = vmatprep.subr.mxu0 0.0
    %1912 = vmatpush1.msra.mxu0 0.0
    %1913 = vmatprep.subr.mxu0 0.0
    %1914 = vmatpush1.msra.mxu0 0.0
    %1915 = vmatprep.subr.mxu0 0.0
    %1916 = vmatpush1.msra.mxu0 0.0
    %1917 = vmatprep.subr.mxu0 0.0
    %1918 = vmatpush1.msra.mxu0 0.0
    %1919 = vmatprep.subr.mxu0 0.0
    %1920 = vmatpush1.msra.mxu0 0.0
    %1921 = vmatprep.subr.mxu0 0.0
    %1922 = vmatpush1.msra.mxu0 0.0
    %1923 = vmatprep.subr.mxu0 0.0
    %1924 = vmatpush1.msra.mxu0 0.0
    %1925 = vmatprep.subr.mxu0 0.0
    %1926 = vmatpush1.msra.mxu0 0.0
    %1927 = vmatprep.subr.mxu0 0.0
    %1928 = vmatpush1.msra.mxu0 0.0
    %1929 = vmatprep.subr.mxu0 0.0
    %1930 = vmatpush1.msra.mxu0 0.0
    %1931 = vmatprep.subr.mxu0 0.0
    %1932 = vmatpush1.msra.mxu0 0.0
    %1933 = vmatprep.subr.mxu0 0.0
    %1934 = vmatpush1.msra.mxu0 0.0
    %1935 = vmatprep.subr.mxu0 0.0
    %1936 = vmatpush1.msra.mxu0 0.0
    %1937 = vmatprep.subr.mxu0 0.0
    %1938 = vmatpush1.msra.mxu0 0.0
    %1939 = vmatprep.subr.mxu0 0.0
    %1940 = vmatpush1.msra.mxu0 0.0
    %1941 = vmatprep.subr.mxu0 0.0
    %1942 = vmatpush1.msra.mxu0 0.0
    %1943 = vmatprep.subr.mxu0 0.0
    %1944 = vmatpush1.msra.mxu0 0.0
    %1945 = vmatprep.subr.mxu0 0.0
    %1946 = vmatpush1.msra.mxu0 0.0
    %1947 = vmatprep.subr.mxu0 0.0
    %1948 = vmatpush1.msra.mxu0 0.0
    %1949 = vmatprep.subr.mxu0 0.0
    %1950 = vmatpush1.msra.mxu0 0.0
    %1951 = vmatprep.subr.mxu0 0.0
    %1952 = vmatpush1.msra.mxu0 0.0
    %1953 = vmatprep.subr.mxu0 0.0
    %1954 = vmatpush1.msra.mxu0 0.0
    %1955 = vmatprep.subr.mxu0 0.0
    %1956 = vmatpush1.msra.mxu0 0.0
    %1957 = vmatprep.subr.mxu0 0.0
    %1958 = vmatpush1.msra.mxu0 0.0
    %1959 = vmatprep.subr.mxu0 0.0
    %1960 = vmatpush1.msra.mxu0 0.0
    %1961 = vmatprep.subr.mxu0 0.0
    %1962 = vmatpush1.msra.mxu0 0.0
    %1963 = vmatprep.subr.mxu0 0.0
    %1964 = vmatpush1.msra.mxu0 0.0
    %1965 = vmatprep.subr.mxu0 0.0
    %1966 = vmatpush1.msra.mxu0 0.0
    %1967 = vmatprep.subr.mxu0 0.0
    %1968 = vmatpush1.msra.mxu0 0.0
    %1969 = vmatprep.subr.mxu0 0.0
    %1970 = vmatpush1.msra.mxu0 0.0
    %1971 = vmatprep.subr.mxu0 0.0
    %1972 = vmatpush1.msra.mxu0 0.0
    %1973 = vmatprep.mubr.f32.mxu0 0.0
    %1974 = vmatmul.mubr.f32.gmra.mrb[0].mxu0 %v1228
    %v1975 = vpop.f32.mrb[0].mxu0
    %v1976 = vadd.f32 0.0, %v1975
    %v1977 = vpop.f32.mrb[0].mxu0
    %v1978 = vadd.f32 0.0, %v1977
    %1979 = vdwg.mxu0
    %1980 = vmatprep.subr.mxu0 %v170
    %1981 = vmatpush1.msra.mxu0 %v169
    %1982 = vmatprep.subr.mxu0 0.0
    %1983 = vmatpush1.msra.mxu0 0.0
    %1984 = vmatprep.subr.mxu0 0.0
    %1985 = vmatpush1.msra.mxu0 0.0
    %1986 = vmatprep.subr.mxu0 0.0
    %1987 = vmatpush1.msra.mxu0 0.0
    %1988 = vmatprep.subr.mxu0 0.0
    %1989 = vmatpush1.msra.mxu0 0.0
    %1990 = vmatprep.subr.mxu0 0.0
    %1991 = vmatpush1.msra.mxu0 0.0
    %1992 = vmatprep.subr.mxu0 0.0
    %1993 = vmatpush1.msra.mxu0 0.0
    %1994 = vmatprep.subr.mxu0 0.0
    %1995 = vmatpush1.msra.mxu0 0.0
    %1996 = vmatprep.subr.mxu0 0.0
    %1997 = vmatpush1.msra.mxu0 0.0
    %1998 = vmatprep.subr.mxu0 0.0
    %1999 = vmatpush1.msra.mxu0 0.0
    %2000 = vmatprep.subr.mxu0 0.0
    %2001 = vmatpush1.msra.mxu0 0.0
    %2002 = vmatprep.subr.mxu0 0.0
    %2003 = vmatpush1.msra.mxu0 0.0
    %2004 = vmatprep.subr.mxu0 0.0
    %2005 = vmatpush1.msra.mxu0 0.0
    %2006 = vmatprep.subr.mxu0 0.0
    %2007 = vmatpush1.msra.mxu0 0.0
    %2008 = vmatprep.subr.mxu0 0.0
    %2009 = vmatpush1.msra.mxu0 0.0
    %2010 = vmatprep.subr.mxu0 0.0
    %2011 = vmatpush1.msra.mxu0 0.0
    %2012 = vmatprep.subr.mxu0 0.0
    %2013 = vmatpush1.msra.mxu0 0.0
    %2014 = vmatprep.subr.mxu0 0.0
    %2015 = vmatpush1.msra.mxu0 0.0
    %2016 = vmatprep.subr.mxu0 0.0
    %2017 = vmatpush1.msra.mxu0 0.0
    %2018 = vmatprep.subr.mxu0 0.0
    %2019 = vmatpush1.msra.mxu0 0.0
    %2020 = vmatprep.subr.mxu0 0.0
    %2021 = vmatpush1.msra.mxu0 0.0
    %2022 = vmatprep.subr.mxu0 0.0
    %2023 = vmatpush1.msra.mxu0 0.0
    %2024 = vmatprep.subr.mxu0 0.0
    %2025 = vmatpush1.msra.mxu0 0.0
    %2026 = vmatprep.subr.mxu0 0.0
    %2027 = vmatpush1.msra.mxu0 0.0
    %2028 = vmatprep.subr.mxu0 0.0
    %2029 = vmatpush1.msra.mxu0 0.0
    %2030 = vmatprep.subr.mxu0 0.0
    %2031 = vmatpush1.msra.mxu0 0.0
    %2032 = vmatprep.subr.mxu0 0.0
    %2033 = vmatpush1.msra.mxu0 0.0
    %2034 = vmatprep.subr.mxu0 0.0
    %2035 = vmatpush1.msra.mxu0 0.0
    %2036 = vmatprep.subr.mxu0 0.0
    %2037 = vmatpush1.msra.mxu0 0.0
    %2038 = vmatprep.subr.mxu0 0.0
    %2039 = vmatpush1.msra.mxu0 0.0
    %2040 = vmatprep.subr.mxu0 0.0
    %2041 = vmatpush1.msra.mxu0 0.0
    %2042 = vmatprep.subr.mxu0 0.0
    %2043 = vmatpush1.msra.mxu0 0.0
    %2044 = vmatprep.mubr.f32.mxu0 0.0
    %2045 = vmatmul.mubr.f32.gmra.mrb[0].mxu0 %v1228
    %v2046 = vpop.f32.mrb[0].mxu0
    %v2047 = vadd.f32 0.0, %v2046
    %v2048 = vpop.f32.mrb[0].mxu0
    %v2049 = vadd.f32 0.0, %v2048
    %2050 = vdwg.mxu0
    %v2052 = vsel %vm530, %v1908, 0
    %2054 = vmatprep.subr.mxu0 %v160
    %2055 = vmatpush1.msra.mxu0 %v159
    %2056 = vmatprep.subr.mxu0 %v1034
    %2057 = vmatpush1.msra.mxu0 %v1031
    %2058 = vmatprep.subr.mxu0 0.0
    %2059 = vmatpush1.msra.mxu0 0.0
    %2060 = vmatprep.subr.mxu0 0.0
    %2061 = vmatpush1.msra.mxu0 0.0
    %2062 = vmatprep.subr.mxu0 0.0
    %2063 = vmatpush1.msra.mxu0 0.0
    %2064 = vmatprep.subr.mxu0 0.0
    %2065 = vmatpush1.msra.mxu0 0.0
    %2066 = vmatprep.subr.mxu0 0.0
    %2067 = vmatpush1.msra.mxu0 0.0
    %2068 = vmatprep.subr.mxu0 0.0
    %2069 = vmatpush1.msra.mxu0 0.0
    %2070 = vmatprep.subr.mxu0 0.0
    %2071 = vmatpush1.msra.mxu0 0.0
    %2072 = vmatprep.subr.mxu0 0.0
    %2073 = vmatpush1.msra.mxu0 0.0
    %2074 = vmatprep.subr.mxu0 0.0
    %2075 = vmatpush1.msra.mxu0 0.0
    %2076 = vmatprep.subr.mxu0 0.0
    %2077 = vmatpush1.msra.mxu0 0.0
    %2078 = vmatprep.subr.mxu0 0.0
    %2079 = vmatpush1.msra.mxu0 0.0
    %2080 = vmatprep.subr.mxu0 0.0
    %2081 = vmatpush1.msra.mxu0 0.0
    %2082 = vmatprep.subr.mxu0 0.0
    %2083 = vmatpush1.msra.mxu0 0.0
    %2084 = vmatprep.subr.mxu0 0.0
    %2085 = vmatpush1.msra.mxu0 0.0
    %2086 = vmatprep.subr.mxu0 0.0
    %2087 = vmatpush1.msra.mxu0 0.0
    %2088 = vmatprep.subr.mxu0 0.0
    %2089 = vmatpush1.msra.mxu0 0.0
    %2090 = vmatprep.subr.mxu0 0.0
    %2091 = vmatpush1.msra.mxu0 0.0
    %2092 = vmatprep.subr.mxu0 0.0
    %2093 = vmatpush1.msra.mxu0 0.0
    %2094 = vmatprep.subr.mxu0 0.0
    %2095 = vmatpush1.msra.mxu0 0.0
    %2096 = vmatprep.subr.mxu0 0.0
    %2097 = vmatpush1.msra.mxu0 0.0
    %2098 = vmatprep.subr.mxu0 0.0
    %2099 = vmatpush1.msra.mxu0 0.0
    %2100 = vmatprep.subr.mxu0 0.0
    %2101 = vmatpush1.msra.mxu0 0.0
    %2102 = vmatprep.subr.mxu0 0.0
    %2103 = vmatpush1.msra.mxu0 0.0
    %2104 = vmatprep.subr.mxu0 0.0
    %2105 = vmatpush1.msra.mxu0 0.0
    %2106 = vmatprep.subr.mxu0 0.0
    %2107 = vmatpush1.msra.mxu0 0.0
    %2108 = vmatprep.subr.mxu0 0.0
    %2109 = vmatpush1.msra.mxu0 0.0
    %2110 = vmatprep.subr.mxu0 0.0
    %2111 = vmatpush1.msra.mxu0 0.0
    %2112 = vmatprep.subr.mxu0 0.0
    %2113 = vmatpush1.msra.mxu0 0.0
    %2114 = vmatprep.subr.mxu0 0.0
    %2115 = vmatpush1.msra.mxu0 0.0
    %2116 = vmatprep.subr.mxu0 0.0
    %2117 = vmatpush1.msra.mxu0 0.0
    %2118 = vmatprep.mubr.f32.mxu0 0.0
    %2119 = vmatmul.mubr.f32.gmra.mrb[0].mxu0 %v2052
    %v2120 = vpop.f32.mrb[0].mxu0
    %v2121 = vadd.f32 %v1976, %v2120
    %v2122 = vpop.f32.mrb[0].mxu0
    %v2123 = vadd.f32 %v1978, %v2122
    %2124 = vdwg.mxu0
    %2125 = vmatprep.subr.mxu0 %v162
    %2126 = vmatpush1.msra.mxu0 %v161
    %2127 = vmatprep.subr.mxu0 %v1040
    %2128 = vmatpush1.msra.mxu0 %v1037
    %2129 = vmatprep.subr.mxu0 0.0
    %2130 = vmatpush1.msra.mxu0 0.0
    %2131 = vmatprep.subr.mxu0 0.0
    %2132 = vmatpush1.msra.mxu0 0.0
    %2133 = vmatprep.subr.mxu0 0.0
    %2134 = vmatpush1.msra.mxu0 0.0
    %2135 = vmatprep.subr.mxu0 0.0
    %2136 = vmatpush1.msra.mxu0 0.0
    %2137 = vmatprep.subr.mxu0 0.0
    %2138 = vmatpush1.msra.mxu0 0.0
    %2139 = vmatprep.subr.mxu0 0.0
    %2140 = vmatpush1.msra.mxu0 0.0
    %2141 = vmatprep.subr.mxu0 0.0
    %2142 = vmatpush1.msra.mxu0 0.0
    %2143 = vmatprep.subr.mxu0 0.0
    %2144 = vmatpush1.msra.mxu0 0.0
    %2145 = vmatprep.subr.mxu0 0.0
    %2146 = vmatpush1.msra.mxu0 0.0
    %2147 = vmatprep.subr.mxu0 0.0
    %2148 = vmatpush1.msra.mxu0 0.0
    %2149 = vmatprep.subr.mxu0 0.0
    %2150 = vmatpush1.msra.mxu0 0.0
    %2151 = vmatprep.subr.mxu0 0.0
    %2152 = vmatpush1.msra.mxu0 0.0
    %2153 = vmatprep.subr.mxu0 0.0
    %2154 = vmatpush1.msra.mxu0 0.0
    %2155 = vmatprep.subr.mxu0 0.0
    %2156 = vmatpush1.msra.mxu0 0.0
    %2157 = vmatprep.subr.mxu0 0.0
    %2158 = vmatpush1.msra.mxu0 0.0
    %2159 = vmatprep.subr.mxu0 0.0
    %2160 = vmatpush1.msra.mxu0 0.0
    %2161 = vmatprep.subr.mxu0 0.0
    %2162 = vmatpush1.msra.mxu0 0.0
    %2163 = vmatprep.subr.mxu0 0.0
    %2164 = vmatpush1.msra.mxu0 0.0
    %2165 = vmatprep.subr.mxu0 0.0
    %2166 = vmatpush1.msra.mxu0 0.0
    %2167 = vmatprep.subr.mxu0 0.0
    %2168 = vmatpush1.msra.mxu0 0.0
    %2169 = vmatprep.subr.mxu0 0.0
    %2170 = vmatpush1.msra.mxu0 0.0
    %2171 = vmatprep.subr.mxu0 0.0
    %2172 = vmatpush1.msra.mxu0 0.0
    %2173 = vmatprep.subr.mxu0 0.0
    %2174 = vmatpush1.msra.mxu0 0.0
    %2175 = vmatprep.subr.mxu0 0.0
    %2176 = vmatpush1.msra.mxu0 0.0
    %2177 = vmatprep.subr.mxu0 0.0
    %2178 = vmatpush1.msra.mxu0 0.0
    %2179 = vmatprep.subr.mxu0 0.0
    %2180 = vmatpush1.msra.mxu0 0.0
    %2181 = vmatprep.subr.mxu0 0.0
    %2182 = vmatpush1.msra.mxu0 0.0
    %2183 = vmatprep.subr.mxu0 0.0
    %2184 = vmatpush1.msra.mxu0 0.0
    %2185 = vmatprep.subr.mxu0 0.0
    %2186 = vmatpush1.msra.mxu0 0.0
    %2187 = vmatprep.subr.mxu0 0.0
    %2188 = vmatpush1.msra.mxu0 0.0
    %2189 = vmatprep.mubr.f32.mxu0 0.0
    %2190 = vmatmul.mubr.f32.gmra.mrb[0].mxu0 %v2052
    %v2191 = vpop.f32.mrb[0].mxu0
    %v2192 = vadd.f32 %v2047, %v2191
    %v2193 = vpop.f32.mrb[0].mxu0
    %v2194 = vadd.f32 %v2049, %v2193
    %2195 = vdwg.mxu0
    %v2196 = vadd.f32 %v2121, %v1188
    %v2197 = vadd.f32 %v2123, %v1192
    %v2198 = vadd.f32 %v2192, %v1196
    %v2199 = vadd.f32 %v2194, %v1200
    %v2200 = vtanh.pop %v2196
    %v2201 = vtanh.pop %v2197
    %v2202 = vadd.f32 %v2198, %v2199
    %v2203 = vxor.u32 %v2202, 2147483648
    %v2204 = vmul.f32 %v2203, 1.442695
    %v2205 = vpow.pop %v2204
    %v2206 = vadd.f32 %v2205, 1.0
    %v2207 = vrcp.pop %v2206
    %v2208 = vmul.f32 1.0, %v2207
    %v2209 = vsub.f32 %v2201, %v2200
    %v2210 = vmul.f32 %v2208, %v2209
    %v2211 = vadd.f32 %v2200, %v2210
    %v2213 = vsel %vm882, %v2211, 0
    %2215 = vmatprep.subr.mxu0 0.0
    %2216 = vmatpush1.msra.mxu0 %v172
    %2217 = vmatprep.subr.mxu0 0.0
    %2218 = vmatpush1.msra.mxu0 0.0
    %2219 = vmatprep.subr.mxu0 0.0
    %2220 = vmatpush1.msra.mxu0 0.0
    %2221 = vmatprep.subr.mxu0 0.0
    %2222 = vmatpush1.msra.mxu0 0.0
    %2223 = vmatprep.subr.mxu0 0.0
    %2224 = vmatpush1.msra.mxu0 0.0
    %2225 = vmatprep.subr.mxu0 0.0
    %2226 = vmatpush1.msra.mxu0 0.0
    %2227 = vmatprep.subr.mxu0 0.0
    %2228 = vmatpush1.msra.mxu0 0.0
    %2229 = vmatprep.subr.mxu0 0.0
    %2230 = vmatpush1.msra.mxu0 0.0
    %2231 = vmatprep.subr.mxu0 0.0
    %2232 = vmatpush1.msra.mxu0 0.0
    %2233 = vmatprep.subr.mxu0 0.0
    %2234 = vmatpush1.msra.mxu0 0.0
    %2235 = vmatprep.subr.mxu0 0.0
    %2236 = vmatpush1.msra.mxu0 0.0
    %2237 = vmatprep.subr.mxu0 0.0
    %2238 = vmatpush1.msra.mxu0 0.0
    %2239 = vmatprep.subr.mxu0 0.0
    %2240 = vmatpush1.msra.mxu0 0.0
    %2241 = vmatprep.subr.mxu0 0.0
    %2242 = vmatpush1.msra.mxu0 0.0
    %2243 = vmatprep.subr.mxu0 0.0
    %2244 = vmatpush1.msra.mxu0 0.0
    %2245 = vmatprep.subr.mxu0 0.0
    %2246 = vmatpush1.msra.mxu0 0.0
    %2247 = vmatprep.subr.mxu0 0.0
    %2248 = vmatpush1.msra.mxu0 0.0
    %2249 = vmatprep.subr.mxu0 0.0
    %2250 = vmatpush1.msra.mxu0 0.0
    %2251 = vmatprep.subr.mxu0 0.0
    %2252 = vmatpush1.msra.mxu0 0.0
    %2253 = vmatprep.subr.mxu0 0.0
    %2254 = vmatpush1.msra.mxu0 0.0
    %2255 = vmatprep.subr.mxu0 0.0
    %2256 = vmatpush1.msra.mxu0 0.0
    %2257 = vmatprep.subr.mxu0 0.0
    %2258 = vmatpush1.msra.mxu0 0.0
    %2259 = vmatprep.subr.mxu0 0.0
    %2260 = vmatpush1.msra.mxu0 0.0
    %2261 = vmatprep.subr.mxu0 0.0
    %2262 = vmatpush1.msra.mxu0 0.0
    %2263 = vmatprep.subr.mxu0 0.0
    %2264 = vmatpush1.msra.mxu0 0.0
    %2265 = vmatprep.subr.mxu0 0.0
    %2266 = vmatpush1.msra.mxu0 0.0
    %2267 = vmatprep.subr.mxu0 0.0
    %2268 = vmatpush1.msra.mxu0 0.0
    %2269 = vmatprep.subr.mxu0 0.0
    %2270 = vmatpush1.msra.mxu0 0.0
    %2271 = vmatprep.subr.mxu0 0.0
    %2272 = vmatpush1.msra.mxu0 0.0
    %2273 = vmatprep.subr.mxu0 0.0
    %2274 = vmatpush1.msra.mxu0 0.0
    %2275 = vmatprep.subr.mxu0 0.0
    %2276 = vmatpush1.msra.mxu0 0.0
    %2277 = vmatprep.subr.mxu0 0.0
    %2278 = vmatpush1.msra.mxu0 0.0
    %2279 = vmatprep.mubr.f32.mxu0 0.0
    %2280 = vmatmul.mubr.f32.gmra.mrb[0].mxu0 %v2213
    %v2281 = vpop.f32.mrb[0].mxu0
    %v2282 = vadd.f32 %v1225, %v2281
    %v2283 = vpop.f32.mrb[0].mxu0
    %2284 = vdwg.mxu0
    %s2285 = scalar_lea.vmem [#allocation14], 2
    %2286 = vst [vmem:[%s2285] sm:$0x3] %v2282
    %s2287 = scalar_lea.vmem %s0, 4
    %v2288 = vld [vmem:[%s2287] sm:$0x3]
    %2289 = vmatprep.subr.mxu0 %v134
    %2290 = vmatpush1.msra.mxu0 %v133
    %2291 = vmatprep.subr.mxu0 %v184
    %2292 = vmatpush1.msra.mxu0 %v181
    %2293 = vmatprep.subr.mxu0 0.0
    %2294 = vmatpush1.msra.mxu0 0.0
    %2295 = vmatprep.subr.mxu0 0.0
    %2296 = vmatpush1.msra.mxu0 0.0
    %2297 = vmatprep.subr.mxu0 0.0
    %2298 = vmatpush1.msra.mxu0 0.0
    %2299 = vmatprep.subr.mxu0 0.0
    %2300 = vmatpush1.msra.mxu0 0.0
    %2301 = vmatprep.subr.mxu0 0.0
    %2302 = vmatpush1.msra.mxu0 0.0
    %2303 = vmatprep.subr.mxu0 0.0
    %2304 = vmatpush1.msra.mxu0 0.0
    %2305 = vmatprep.subr.mxu0 0.0
    %2306 = vmatpush1.msra.mxu0 0.0
    %2307 = vmatprep.subr.mxu0 0.0
    %2308 = vmatpush1.msra.mxu0 0.0
    %2309 = vmatprep.subr.mxu0 0.0
    %2310 = vmatpush1.msra.mxu0 0.0
    %2311 = vmatprep.subr.mxu0 0.0
    %2312 = vmatpush1.msra.mxu0 0.0
    %2313 = vmatprep.subr.mxu0 0.0
    %2314 = vmatpush1.msra.mxu0 0.0
    %2315 = vmatprep.subr.mxu0 0.0
    %2316 = vmatpush1.msra.mxu0 0.0
    %2317 = vmatprep.subr.mxu0 0.0
    %2318 = vmatpush1.msra.mxu0 0.0
    %2319 = vmatprep.subr.mxu0 0.0
    %2320 = vmatpush1.msra.mxu0 0.0
    %2321 = vmatprep.subr.mxu0 0.0
    %2322 = vmatpush1.msra.mxu0 0.0
    %2323 = vmatprep.subr.mxu0 0.0
    %2324 = vmatpush1.msra.mxu0 0.0
    %2325 = vmatprep.subr.mxu0 0.0
    %2326 = vmatpush1.msra.mxu0 0.0
    %2327 = vmatprep.subr.mxu0 0.0
    %2328 = vmatpush1.msra.mxu0 0.0
    %2329 = vmatprep.subr.mxu0 0.0
    %2330 = vmatpush1.msra.mxu0 0.0
    %2331 = vmatprep.subr.mxu0 0.0
    %2332 = vmatpush1.msra.mxu0 0.0
    %2333 = vmatprep.subr.mxu0 0.0
    %2334 = vmatpush1.msra.mxu0 0.0
    %2335 = vmatprep.subr.mxu0 0.0
    %2336 = vmatpush1.msra.mxu0 0.0
    %2337 = vmatprep.subr.mxu0 0.0
    %2338 = vmatpush1.msra.mxu0 0.0
    %2339 = vmatprep.subr.mxu0 0.0
    %2340 = vmatpush1.msra.mxu0 0.0
    %2341 = vmatprep.subr.mxu0 0.0
    %2342 = vmatpush1.msra.mxu0 0.0
    %2343 = vmatprep.subr.mxu0 0.0
    %2344 = vmatpush1.msra.mxu0 0.0
    %2345 = vmatprep.subr.mxu0 0.0
    %2346 = vmatpush1.msra.mxu0 0.0
    %2347 = vmatprep.subr.mxu0 0.0
    %2348 = vmatpush1.msra.mxu0 0.0
    %2349 = vmatprep.subr.mxu0 0.0
    %2350 = vmatpush1.msra.mxu0 0.0
    %2351 = vmatprep.subr.mxu0 0.0
    %2352 = vmatpush1.msra.mxu0 0.0
    %2353 = vmatprep.mubr.f32.mxu0 0.0
    %2354 = vmatmul.mubr.f32.gmra.mrb[0].mxu0 %v1749
    %v2355 = vpop.f32.mrb[0].mxu0
    %v2356 = vadd.f32 0.0, %v2355
    %v2357 = vpop.f32.mrb[0].mxu0
    %v2358 = vadd.f32 0.0, %v2357
    %2359 = vdwg.mxu0
    %2360 = vmatprep.subr.mxu0 %v136
    %2361 = vmatpush1.msra.mxu0 %v135
    %2362 = vmatprep.subr.mxu0 %v190
    %2363 = vmatpush1.msra.mxu0 %v187
    %2364 = vmatprep.subr.mxu0 0.0
    %2365 = vmatpush1.msra.mxu0 0.0
    %2366 = vmatprep.subr.mxu0 0.0
    %2367 = vmatpush1.msra.mxu0 0.0
    %2368 = vmatprep.subr.mxu0 0.0
    %2369 = vmatpush1.msra.mxu0 0.0
    %2370 = vmatprep.subr.mxu0 0.0
    %2371 = vmatpush1.msra.mxu0 0.0
    %2372 = vmatprep.subr.mxu0 0.0
    %2373 = vmatpush1.msra.mxu0 0.0
    %2374 = vmatprep.subr.mxu0 0.0
    %2375 = vmatpush1.msra.mxu0 0.0
    %2376 = vmatprep.subr.mxu0 0.0
    %2377 = vmatpush1.msra.mxu0 0.0
    %2378 = vmatprep.subr.mxu0 0.0
    %2379 = vmatpush1.msra.mxu0 0.0
    %2380 = vmatprep.subr.mxu0 0.0
    %2381 = vmatpush1.msra.mxu0 0.0
    %2382 = vmatprep.subr.mxu0 0.0
    %2383 = vmatpush1.msra.mxu0 0.0
    %2384 = vmatprep.subr.mxu0 0.0
    %2385 = vmatpush1.msra.mxu0 0.0
    %2386 = vmatprep.subr.mxu0 0.0
    %2387 = vmatpush1.msra.mxu0 0.0
    %2388 = vmatprep.subr.mxu0 0.0
    %2389 = vmatpush1.msra.mxu0 0.0
    %2390 = vmatprep.subr.mxu0 0.0
    %2391 = vmatpush1.msra.mxu0 0.0
    %2392 = vmatprep.subr.mxu0 0.0
    %2393 = vmatpush1.msra.mxu0 0.0
    %2394 = vmatprep.subr.mxu0 0.0
    %2395 = vmatpush1.msra.mxu0 0.0
    %2396 = vmatprep.subr.mxu0 0.0
    %2397 = vmatpush1.msra.mxu0 0.0
    %2398 = vmatprep.subr.mxu0 0.0
    %2399 = vmatpush1.msra.mxu0 0.0
    %2400 = vmatprep.subr.mxu0 0.0
    %2401 = vmatpush1.msra.mxu0 0.0
    %2402 = vmatprep.subr.mxu0 0.0
    %2403 = vmatpush1.msra.mxu0 0.0
    %2404 = vmatprep.subr.mxu0 0.0
    %2405 = vmatpush1.msra.mxu0 0.0
    %2406 = vmatprep.subr.mxu0 0.0
    %2407 = vmatpush1.msra.mxu0 0.0
    %2408 = vmatprep.subr.mxu0 0.0
    %2409 = vmatpush1.msra.mxu0 0.0
    %2410 = vmatprep.subr.mxu0 0.0
    %2411 = vmatpush1.msra.mxu0 0.0
    %2412 = vmatprep.subr.mxu0 0.0
    %2413 = vmatpush1.msra.mxu0 0.0
    %2414 = vmatprep.subr.mxu0 0.0
    %2415 = vmatpush1.msra.mxu0 0.0
    %2416 = vmatprep.subr.mxu0 0.0
    %2417 = vmatpush1.msra.mxu0 0.0
    %2418 = vmatprep.subr.mxu0 0.0
    %2419 = vmatpush1.msra.mxu0 0.0
    %2420 = vmatprep.subr.mxu0 0.0
    %2421 = vmatpush1.msra.mxu0 0.0
    %2422 = vmatprep.subr.mxu0 0.0
    %2423 = vmatpush1.msra.mxu0 0.0
    %2424 = vmatprep.mubr.f32.mxu0 0.0
    %2425 = vmatmul.mubr.f32.gmra.mrb[0].mxu0 %v1749
    %v2426 = vpop.f32.mrb[0].mxu0
    %v2427 = vadd.f32 0.0, %v2426
    %v2428 = vpop.f32.mrb[0].mxu0
    %v2429 = vadd.f32 0.0, %v2428
    %2430 = vdwg.mxu0
    %v2432 = vsel %vm338, %v2288, 0
    %2434 = vmatprep.subr.mxu0 %v345
    %2435 = vmatpush1.msra.mxu0 %v343
    %2436 = vmatprep.subr.mxu0 0.0
    %2437 = vmatpush1.msra.mxu0 0.0
    %2438 = vmatprep.subr.mxu0 0.0
    %2439 = vmatpush1.msra.mxu0 0.0
    %2440 = vmatprep.subr.mxu0 0.0
    %2441 = vmatpush1.msra.mxu0 0.0
    %2442 = vmatprep.subr.mxu0 0.0
    %2443 = vmatpush1.msra.mxu0 0.0
    %2444 = vmatprep.subr.mxu0 0.0
    %2445 = vmatpush1.msra.mxu0 0.0
    %2446 = vmatprep.subr.mxu0 0.0
    %2447 = vmatpush1.msra.mxu0 0.0
    %2448 = vmatprep.subr.mxu0 0.0
    %2449 = vmatpush1.msra.mxu0 0.0
    %2450 = vmatprep.subr.mxu0 0.0
    %2451 = vmatpush1.msra.mxu0 0.0
    %2452 = vmatprep.subr.mxu0 0.0
    %2453 = vmatpush1.msra.mxu0 0.0
    %2454 = vmatprep.subr.mxu0 0.0
    %2455 = vmatpush1.msra.mxu0 0.0
    %2456 = vmatprep.subr.mxu0 0.0
    %2457 = vmatpush1.msra.mxu0 0.0
    %2458 = vmatprep.subr.mxu0 0.0
    %2459 = vmatpush1.msra.mxu0 0.0
    %2460 = vmatprep.subr.mxu0 0.0
    %2461 = vmatpush1.msra.mxu0 0.0
    %2462 = vmatprep.subr.mxu0 0.0
    %2463 = vmatpush1.msra.mxu0 0.0
    %2464 = vmatprep.subr.mxu0 0.0
    %2465 = vmatpush1.msra.mxu0 0.0
    %2466 = vmatprep.subr.mxu0 0.0
    %2467 = vmatpush1.msra.mxu0 0.0
    %2468 = vmatprep.subr.mxu0 0.0
    %2469 = vmatpush1.msra.mxu0 0.0
    %2470 = vmatprep.subr.mxu0 0.0
    %2471 = vmatpush1.msra.mxu0 0.0
    %2472 = vmatprep.subr.mxu0 0.0
    %2473 = vmatpush1.msra.mxu0 0.0
    %2474 = vmatprep.subr.mxu0 0.0
    %2475 = vmatpush1.msra.mxu0 0.0
    %2476 = vmatprep.subr.mxu0 0.0
    %2477 = vmatpush1.msra.mxu0 0.0
    %2478 = vmatprep.subr.mxu0 0.0
    %2479 = vmatpush1.msra.mxu0 0.0
    %2480 = vmatprep.subr.mxu0 0.0
    %2481 = vmatpush1.msra.mxu0 0.0
    %2482 = vmatprep.subr.mxu0 0.0
    %2483 = vmatpush1.msra.mxu0 0.0
    %2484 = vmatprep.subr.mxu0 0.0
    %2485 = vmatpush1.msra.mxu0 0.0
    %2486 = vmatprep.subr.mxu0 0.0
    %2487 = vmatpush1.msra.mxu0 0.0
    %2488 = vmatprep.subr.mxu0 0.0
    %2489 = vmatpush1.msra.mxu0 0.0
    %2490 = vmatprep.subr.mxu0 0.0
    %2491 = vmatpush1.msra.mxu0 0.0
    %2492 = vmatprep.subr.mxu0 0.0
    %2493 = vmatpush1.msra.mxu0 0.0
    %2494 = vmatprep.subr.mxu0 0.0
    %2495 = vmatpush1.msra.mxu0 0.0
    %2496 = vmatprep.subr.mxu0 0.0
    %2497 = vmatpush1.msra.mxu0 0.0
    %2498 = vmatprep.mubr.f32.mxu0 0.0
    %2499 = vmatmul.mubr.f32.gmra.mrb[0].mxu0 %v2432
    %v2500 = vpop.f32.mrb[0].mxu0
    %v2501 = vadd.f32 %v2356, %v2500
    %v2502 = vpop.f32.mrb[0].mxu0
    %v2503 = vadd.f32 %v2358, %v2502
    %2504 = vdwg.mxu0
    %2505 = vmatprep.subr.mxu0 %v349
    %2506 = vmatpush1.msra.mxu0 %v347
    %2507 = vmatprep.subr.mxu0 0.0
    %2508 = vmatpush1.msra.mxu0 0.0
    %2509 = vmatprep.subr.mxu0 0.0
    %2510 = vmatpush1.msra.mxu0 0.0
    %2511 = vmatprep.subr.mxu0 0.0
    %2512 = vmatpush1.msra.mxu0 0.0
    %2513 = vmatprep.subr.mxu0 0.0
    %2514 = vmatpush1.msra.mxu0 0.0
    %2515 = vmatprep.subr.mxu0 0.0
    %2516 = vmatpush1.msra.mxu0 0.0
    %2517 = vmatprep.subr.mxu0 0.0
    %2518 = vmatpush1.msra.mxu0 0.0
    %2519 = vmatprep.subr.mxu0 0.0
    %2520 = vmatpush1.msra.mxu0 0.0
    %2521 = vmatprep.subr.mxu0 0.0
    %2522 = vmatpush1.msra.mxu0 0.0
    %2523 = vmatprep.subr.mxu0 0.0
    %2524 = vmatpush1.msra.mxu0 0.0
    %2525 = vmatprep.subr.mxu0 0.0
    %2526 = vmatpush1.msra.mxu0 0.0
    %2527 = vmatprep.subr.mxu0 0.0
    %2528 = vmatpush1.msra.mxu0 0.0
    %2529 = vmatprep.subr.mxu0 0.0
    %2530 = vmatpush1.msra.mxu0 0.0
    %2531 = vmatprep.subr.mxu0 0.0
    %2532 = vmatpush1.msra.mxu0 0.0
    %2533 = vmatprep.subr.mxu0 0.0
    %2534 = vmatpush1.msra.mxu0 0.0
    %2535 = vmatprep.subr.mxu0 0.0
    %2536 = vmatpush1.msra.mxu0 0.0
    %2537 = vmatprep.subr.mxu0 0.0
    %2538 = vmatpush1.msra.mxu0 0.0
    %2539 = vmatprep.subr.mxu0 0.0
    %2540 = vmatpush1.msra.mxu0 0.0
    %2541 = vmatprep.subr.mxu0 0.0
    %2542 = vmatpush1.msra.mxu0 0.0
    %2543 = vmatprep.subr.mxu0 0.0
    %2544 = vmatpush1.msra.mxu0 0.0
    %2545 = vmatprep.subr.mxu0 0.0
    %2546 = vmatpush1.msra.mxu0 0.0
    %2547 = vmatprep.subr.mxu0 0.0
    %2548 = vmatpush1.msra.mxu0 0.0
    %2549 = vmatprep.subr.mxu0 0.0
    %2550 = vmatpush1.msra.mxu0 0.0
    %2551 = vmatprep.subr.mxu0 0.0
    %2552 = vmatpush1.msra.mxu0 0.0
    %2553 = vmatprep.subr.mxu0 0.0
    %2554 = vmatpush1.msra.mxu0 0.0
    %2555 = vmatprep.subr.mxu0 0.0
    %2556 = vmatpush1.msra.mxu0 0.0
    %2557 = vmatprep.subr.mxu0 0.0
    %2558 = vmatpush1.msra.mxu0 0.0
    %2559 = vmatprep.subr.mxu0 0.0
    %2560 = vmatpush1.msra.mxu0 0.0
    %2561 = vmatprep.subr.mxu0 0.0
    %2562 = vmatpush1.msra.mxu0 0.0
    %2563 = vmatprep.subr.mxu0 0.0
    %2564 = vmatpush1.msra.mxu0 0.0
    %2565 = vmatprep.subr.mxu0 0.0
    %2566 = vmatpush1.msra.mxu0 0.0
    %2567 = vmatprep.subr.mxu0 0.0
    %2568 = vmatpush1.msra.mxu0 0.0
    %2569 = vmatprep.mubr.f32.mxu0 0.0
    %2570 = vmatmul.mubr.f32.gmra.mrb[0].mxu0 %v2432
    %v2571 = vpop.f32.mrb[0].mxu0
    %v2572 = vadd.f32 %v2427, %v2571
    %v2573 = vpop.f32.mrb[0].mxu0
    %v2574 = vadd.f32 %v2429, %v2573
    %2575 = vdwg.mxu0
    %v2576 = vadd.f32 %v2501, %v497
    %v2577 = vadd.f32 %v2503, %v501
    %v2578 = vadd.f32 %v2572, %v505
    %v2579 = vadd.f32 %v2574, %v509
    %v2580 = vtanh.pop %v2576
    %v2581 = vtanh.pop %v2577
    %v2582 = vadd.f32 %v2578, %v2579
    %v2583 = vxor.u32 %v2582, 2147483648
    %v2584 = vmul.f32 %v2583, 1.442695
    %v2585 = vpow.pop %v2584
    %v2586 = vadd.f32 %v2585, 1.0
    %v2587 = vrcp.pop %v2586
    %v2588 = vmul.f32 1.0, %v2587
    %v2589 = vsub.f32 %v2581, %v2580
    %v2590 = vmul.f32 %v2588, %v2589
    %v2591 = vadd.f32 %v2580, %v2590
    %2592 = vmatprep.subr.mxu0 %v151
    %2593 = vmatpush1.msra.mxu0 %v150
    %2594 = vmatprep.subr.mxu0 %v538
    %2595 = vmatpush1.msra.mxu0 %v535
    %2596 = vmatprep.subr.mxu0 0.0
    %2597 = vmatpush1.msra.mxu0 0.0
    %2598 = vmatprep.subr.mxu0 0.0
    %2599 = vmatpush1.msra.mxu0 0.0
    %2600 = vmatprep.subr.mxu0 0.0
    %2601 = vmatpush1.msra.mxu0 0.0
    %2602 = vmatprep.subr.mxu0 0.0
    %2603 = vmatpush1.msra.mxu0 0.0
    %2604 = vmatprep.subr.mxu0 0.0
    %2605 = vmatpush1.msra.mxu0 0.0
    %2606 = vmatprep.subr.mxu0 0.0
    %2607 = vmatpush1.msra.mxu0 0.0
    %2608 = vmatprep.subr.mxu0 0.0
    %2609 = vmatpush1.msra.mxu0 0.0
    %2610 = vmatprep.subr.mxu0 0.0
    %2611 = vmatpush1.msra.mxu0 0.0
    %2612 = vmatprep.subr.mxu0 0.0
    %2613 = vmatpush1.msra.mxu0 0.0
    %2614 = vmatprep.subr.mxu0 0.0
    %2615 = vmatpush1.msra.mxu0 0.0
    %2616 = vmatprep.subr.mxu0 0.0
    %2617 = vmatpush1.msra.mxu0 0.0
    %2618 = vmatprep.subr.mxu0 0.0
    %2619 = vmatpush1.msra.mxu0 0.0
    %2620 = vmatprep.subr.mxu0 0.0
    %2621 = vmatpush1.msra.mxu0 0.0
    %2622 = vmatprep.subr.mxu0 0.0
    %2623 = vmatpush1.msra.mxu0 0.0
    %2624 = vmatprep.subr.mxu0 0.0
    %2625 = vmatpush1.msra.mxu0 0.0
    %2626 = vmatprep.subr.mxu0 0.0
    %2627 = vmatpush1.msra.mxu0 0.0
    %2628 = vmatprep.subr.mxu0 0.0
    %2629 = vmatpush1.msra.mxu0 0.0
    %2630 = vmatprep.subr.mxu0 0.0
    %2631 = vmatpush1.msra.mxu0 0.0
    %2632 = vmatprep.subr.mxu0 0.0
    %2633 = vmatpush1.msra.mxu0 0.0
    %2634 = vmatprep.subr.mxu0 0.0
    %2635 = vmatpush1.msra.mxu0 0.0
    %2636 = vmatprep.subr.mxu0 0.0
    %2637 = vmatpush1.msra.mxu0 0.0
    %2638 = vmatprep.subr.mxu0 0.0
    %2639 = vmatpush1.msra.mxu0 0.0
    %2640 = vmatprep.subr.mxu0 0.0
    %2641 = vmatpush1.msra.mxu0 0.0
    %2642 = vmatprep.subr.mxu0 0.0
    %2643 = vmatpush1.msra.mxu0 0.0
    %2644 = vmatprep.subr.mxu0 0.0
    %2645 = vmatpush1.msra.mxu0 0.0
    %2646 = vmatprep.subr.mxu0 0.0
    %2647 = vmatpush1.msra.mxu0 0.0
    %2648 = vmatprep.subr.mxu0 0.0
    %2649 = vmatpush1.msra.mxu0 0.0
    %2650 = vmatprep.subr.mxu0 0.0
    %2651 = vmatpush1.msra.mxu0 0.0
    %2652 = vmatprep.subr.mxu0 0.0
    %2653 = vmatpush1.msra.mxu0 0.0
    %2654 = vmatprep.subr.mxu0 0.0
    %2655 = vmatpush1.msra.mxu0 0.0
    %2656 = vmatprep.mubr.f32.mxu0 0.0
    %2657 = vmatmul.mubr.f32.gmra.mrb[0].mxu0 %v2052
    %v2658 = vpop.f32.mrb[0].mxu0
    %v2659 = vadd.f32 0.0, %v2658
    %v2660 = vpop.f32.mrb[0].mxu0
    %v2661 = vadd.f32 0.0, %v2660
    %2662 = vdwg.mxu0
    %2663 = vmatprep.subr.mxu0 %v153
    %2664 = vmatpush1.msra.mxu0 %v152
    %2665 = vmatprep.subr.mxu0 %v544
    %2666 = vmatpush1.msra.mxu0 %v541
    %2667 = vmatprep.subr.mxu0 0.0
    %2668 = vmatpush1.msra.mxu0 0.0
    %2669 = vmatprep.subr.mxu0 0.0
    %2670 = vmatpush1.msra.mxu0 0.0
    %2671 = vmatprep.subr.mxu0 0.0
    %2672 = vmatpush1.msra.mxu0 0.0
    %2673 = vmatprep.subr.mxu0 0.0
    %2674 = vmatpush1.msra.mxu0 0.0
    %2675 = vmatprep.subr.mxu0 0.0
    %2676 = vmatpush1.msra.mxu0 0.0
    %2677 = vmatprep.subr.mxu0 0.0
    %2678 = vmatpush1.msra.mxu0 0.0
    %2679 = vmatprep.subr.mxu0 0.0
    %2680 = vmatpush1.msra.mxu0 0.0
    %2681 = vmatprep.subr.mxu0 0.0
    %2682 = vmatpush1.msra.mxu0 0.0
    %2683 = vmatprep.subr.mxu0 0.0
    %2684 = vmatpush1.msra.mxu0 0.0
    %2685 = vmatprep.subr.mxu0 0.0
    %2686 = vmatpush1.msra.mxu0 0.0
    %2687 = vmatprep.subr.mxu0 0.0
    %2688 = vmatpush1.msra.mxu0 0.0
    %2689 = vmatprep.subr.mxu0 0.0
    %2690 = vmatpush1.msra.mxu0 0.0
    %2691 = vmatprep.subr.mxu0 0.0
    %2692 = vmatpush1.msra.mxu0 0.0
    %2693 = vmatprep.subr.mxu0 0.0
    %2694 = vmatpush1.msra.mxu0 0.0
    %2695 = vmatprep.subr.mxu0 0.0
    %2696 = vmatpush1.msra.mxu0 0.0
    %2697 = vmatprep.subr.mxu0 0.0
    %2698 = vmatpush1.msra.mxu0 0.0
    %2699 = vmatprep.subr.mxu0 0.0
    %2700 = vmatpush1.msra.mxu0 0.0
    %2701 = vmatprep.subr.mxu0 0.0
    %2702 = vmatpush1.msra.mxu0 0.0
    %2703 = vmatprep.subr.mxu0 0.0
    %2704 = vmatpush1.msra.mxu0 0.0
    %2705 = vmatprep.subr.mxu0 0.0
    %2706 = vmatpush1.msra.mxu0 0.0
    %2707 = vmatprep.subr.mxu0 0.0
    %2708 = vmatpush1.msra.mxu0 0.0
    %2709 = vmatprep.subr.mxu0 0.0
    %2710 = vmatpush1.msra.mxu0 0.0
    %2711 = vmatprep.subr.mxu0 0.0
    %2712 = vmatpush1.msra.mxu0 0.0
    %2713 = vmatprep.subr.mxu0 0.0
    %2714 = vmatpush1.msra.mxu0 0.0
    %2715 = vmatprep.subr.mxu0 0.0
    %2716 = vmatpush1.msra.mxu0 0.0
    %2717 = vmatprep.subr.mxu0 0.0
    %2718 = vmatpush1.msra.mxu0 0.0
    %2719 = vmatprep.subr.mxu0 0.0
    %2720 = vmatpush1.msra.mxu0 0.0
    %2721 = vmatprep.subr.mxu0 0.0
    %2722 = vmatpush1.msra.mxu0 0.0
    %2723 = vmatprep.subr.mxu0 0.0
    %2724 = vmatpush1.msra.mxu0 0.0
    %2725 = vmatprep.subr.mxu0 0.0
    %2726 = vmatpush1.msra.mxu0 0.0
    %2727 = vmatprep.mubr.f32.mxu0 0.0
    %2728 = vmatmul.mubr.f32.gmra.mrb[0].mxu0 %v2052
    %v2729 = vpop.f32.mrb[0].mxu0
    %v2730 = vadd.f32 0.0, %v2729
    %v2731 = vpop.f32.mrb[0].mxu0
    %v2732 = vadd.f32 0.0, %v2731
    %2733 = vdwg.mxu0
    %v2735 = vsel %vm175, %v2591, 0
    %2737 = vmatprep.subr.mxu0 %v143
    %2738 = vmatpush1.msra.mxu0 %v142
    %2739 = vmatprep.subr.mxu0 %v695
    %2740 = vmatpush1.msra.mxu0 %v692
    %2741 = vmatprep.subr.mxu0 0.0
    %2742 = vmatpush1.msra.mxu0 0.0
    %2743 = vmatprep.subr.mxu0 0.0
    %2744 = vmatpush1.msra.mxu0 0.0
    %2745 = vmatprep.subr.mxu0 0.0
    %2746 = vmatpush1.msra.mxu0 0.0
    %2747 = vmatprep.subr.mxu0 0.0
    %2748 = vmatpush1.msra.mxu0 0.0
    %2749 = vmatprep.subr.mxu0 0.0
    %2750 = vmatpush1.msra.mxu0 0.0
    %2751 = vmatprep.subr.mxu0 0.0
    %2752 = vmatpush1.msra.mxu0 0.0
    %2753 = vmatprep.subr.mxu0 0.0
    %2754 = vmatpush1.msra.mxu0 0.0
    %2755 = vmatprep.subr.mxu0 0.0
    %2756 = vmatpush1.msra.mxu0 0.0
    %2757 = vmatprep.subr.mxu0 0.0
    %2758 = vmatpush1.msra.mxu0 0.0
    %2759 = vmatprep.subr.mxu0 0.0
    %2760 = vmatpush1.msra.mxu0 0.0
    %2761 = vmatprep.subr.mxu0 0.0
    %2762 = vmatpush1.msra.mxu0 0.0
    %2763 = vmatprep.subr.mxu0 0.0
    %2764 = vmatpush1.msra.mxu0 0.0
    %2765 = vmatprep.subr.mxu0 0.0
    %2766 = vmatpush1.msra.mxu0 0.0
    %2767 = vmatprep.subr.mxu0 0.0
    %2768 = vmatpush1.msra.mxu0 0.0
    %2769 = vmatprep.subr.mxu0 0.0
    %2770 = vmatpush1.msra.mxu0 0.0
    %2771 = vmatprep.subr.mxu0 0.0
    %2772 = vmatpush1.msra.mxu0 0.0
    %2773 = vmatprep.subr.mxu0 0.0
    %2774 = vmatpush1.msra.mxu0 0.0
    %2775 = vmatprep.subr.mxu0 0.0
    %2776 = vmatpush1.msra.mxu0 0.0
    %2777 = vmatprep.subr.mxu0 0.0
    %2778 = vmatpush1.msra.mxu0 0.0
    %2779 = vmatprep.subr.mxu0 0.0
    %2780 = vmatpush1.msra.mxu0 0.0
    %2781 = vmatprep.subr.mxu0 0.0
    %2782 = vmatpush1.msra.mxu0 0.0
    %2783 = vmatprep.subr.mxu0 0.0
    %2784 = vmatpush1.msra.mxu0 0.0
    %2785 = vmatprep.subr.mxu0 0.0
    %2786 = vmatpush1.msra.mxu0 0.0
    %2787 = vmatprep.subr.mxu0 0.0
    %2788 = vmatpush1.msra.mxu0 0.0
    %2789 = vmatprep.subr.mxu0 0.0
    %2790 = vmatpush1.msra.mxu0 0.0
    %2791 = vmatprep.subr.mxu0 0.0
    %2792 = vmatpush1.msra.mxu0 0.0
    %2793 = vmatprep.subr.mxu0 0.0
    %2794 = vmatpush1.msra.mxu0 0.0
    %2795 = vmatprep.subr.mxu0 0.0
    %2796 = vmatpush1.msra.mxu0 0.0
    %2797 = vmatprep.subr.mxu0 0.0
    %2798 = vmatpush1.msra.mxu0 0.0
    %2799 = vmatprep.subr.mxu0 0.0
    %2800 = vmatpush1.msra.mxu0 0.0
    %2801 = vmatprep.mubr.f32.mxu0 0.0
    %2802 = vmatmul.mubr.f32.gmra.mrb[0].mxu0 %v2735
    %v2803 = vpop.f32.mrb[0].mxu0
    %v2804 = vadd.f32 %v2659, %v2803
    %v2805 = vpop.f32.mrb[0].mxu0
    %v2806 = vadd.f32 %v2661, %v2805
    %2807 = vdwg.mxu0
    %2808 = vmatprep.subr.mxu0 %v145
    %2809 = vmatpush1.msra.mxu0 %v144
    %2810 = vmatprep.subr.mxu0 %v701
    %2811 = vmatpush1.msra.mxu0 %v698
    %2812 = vmatprep.subr.mxu0 0.0
    %2813 = vmatpush1.msra.mxu0 0.0
    %2814 = vmatprep.subr.mxu0 0.0
    %2815 = vmatpush1.msra.mxu0 0.0
    %2816 = vmatprep.subr.mxu0 0.0
    %2817 = vmatpush1.msra.mxu0 0.0
    %2818 = vmatprep.subr.mxu0 0.0
    %2819 = vmatpush1.msra.mxu0 0.0
    %2820 = vmatprep.subr.mxu0 0.0
    %2821 = vmatpush1.msra.mxu0 0.0
    %2822 = vmatprep.subr.mxu0 0.0
    %2823 = vmatpush1.msra.mxu0 0.0
    %2824 = vmatprep.subr.mxu0 0.0
    %2825 = vmatpush1.msra.mxu0 0.0
    %2826 = vmatprep.subr.mxu0 0.0
    %2827 = vmatpush1.msra.mxu0 0.0
    %2828 = vmatprep.subr.mxu0 0.0
    %2829 = vmatpush1.msra.mxu0 0.0
    %2830 = vmatprep.subr.mxu0 0.0
    %2831 = vmatpush1.msra.mxu0 0.0
    %2832 = vmatprep.subr.mxu0 0.0
    %2833 = vmatpush1.msra.mxu0 0.0
    %2834 = vmatprep.subr.mxu0 0.0
    %2835 = vmatpush1.msra.mxu0 0.0
    %2836 = vmatprep.subr.mxu0 0.0
    %2837 = vmatpush1.msra.mxu0 0.0
    %2838 = vmatprep.subr.mxu0 0.0
    %2839 = vmatpush1.msra.mxu0 0.0
    %2840 = vmatprep.subr.mxu0 0.0
    %2841 = vmatpush1.msra.mxu0 0.0
    %2842 = vmatprep.subr.mxu0 0.0
    %2843 = vmatpush1.msra.mxu0 0.0
    %2844 = vmatprep.subr.mxu0 0.0
    %2845 = vmatpush1.msra.mxu0 0.0
    %2846 = vmatprep.subr.mxu0 0.0
    %2847 = vmatpush1.msra.mxu0 0.0
    %2848 = vmatprep.subr.mxu0 0.0
    %2849 = vmatpush1.msra.mxu0 0.0
    %2850 = vmatprep.subr.mxu0 0.0
    %2851 = vmatpush1.msra.mxu0 0.0
    %2852 = vmatprep.subr.mxu0 0.0
    %2853 = vmatpush1.msra.mxu0 0.0
    %2854 = vmatprep.subr.mxu0 0.0
    %2855 = vmatpush1.msra.mxu0 0.0
    %2856 = vmatprep.subr.mxu0 0.0
    %2857 = vmatpush1.msra.mxu0 0.0
    %2858 = vmatprep.subr.mxu0 0.0
    %2859 = vmatpush1.msra.mxu0 0.0
    %2860 = vmatprep.subr.mxu0 0.0
    %2861 = vmatpush1.msra.mxu0 0.0
    %2862 = vmatprep.subr.mxu0 0.0
    %2863 = vmatpush1.msra.mxu0 0.0
    %2864 = vmatprep.subr.mxu0 0.0
    %2865 = vmatpush1.msra.mxu0 0.0
    %2866 = vmatprep.subr.mxu0 0.0
    %2867 = vmatpush1.msra.mxu0 0.0
    %2868 = vmatprep.subr.mxu0 0.0
    %2869 = vmatpush1.msra.mxu0 0.0
    %2870 = vmatprep.subr.mxu0 0.0
    %2871 = vmatpush1.msra.mxu0 0.0
    %2872 = vmatprep.mubr.f32.mxu0 0.0
    %2873 = vmatmul.mubr.f32.gmra.mrb[0].mxu0 %v2735
    %v2874 = vpop.f32.mrb[0].mxu0
    %v2875 = vadd.f32 %v2730, %v2874
    %v2876 = vpop.f32.mrb[0].mxu0
    %v2877 = vadd.f32 %v2732, %v2876
    %2878 = vdwg.mxu0
    %v2879 = vadd.f32 %v2804, %v849
    %v2880 = vadd.f32 %v2806, %v853
    %v2881 = vadd.f32 %v2875, %v857
    %v2882 = vadd.f32 %v2877, %v861
    %v2883 = vtanh.pop %v2879
    %v2884 = vtanh.pop %v2880
    %v2885 = vadd.f32 %v2881, %v2882
    %v2886 = vxor.u32 %v2885, 2147483648
    %v2887 = vmul.f32 %v2886, 1.442695
    %v2888 = vpow.pop %v2887
    %v2889 = vadd.f32 %v2888, 1.0
    %v2890 = vrcp.pop %v2889
    %v2891 = vmul.f32 1.0, %v2890
    %v2892 = vsub.f32 %v2884, %v2883
    %v2893 = vmul.f32 %v2891, %v2892
    %v2894 = vadd.f32 %v2883, %v2893
    %2895 = vmatprep.subr.mxu0 %v168
    %2896 = vmatpush1.msra.mxu0 %v167
    %2897 = vmatprep.subr.mxu0 0.0
    %2898 = vmatpush1.msra.mxu0 0.0
    %2899 = vmatprep.subr.mxu0 0.0
    %2900 = vmatpush1.msra.mxu0 0.0
    %2901 = vmatprep.subr.mxu0 0.0
    %2902 = vmatpush1.msra.mxu0 0.0
    %2903 = vmatprep.subr.mxu0 0.0
    %2904 = vmatpush1.msra.mxu0 0.0
    %2905 = vmatprep.subr.mxu0 0.0
    %2906 = vmatpush1.msra.mxu0 0.0
    %2907 = vmatprep.subr.mxu0 0.0
    %2908 = vmatpush1.msra.mxu0 0.0
    %2909 = vmatprep.subr.mxu0 0.0
    %2910 = vmatpush1.msra.mxu0 0.0
    %2911 = vmatprep.subr.mxu0 0.0
    %2912 = vmatpush1.msra.mxu0 0.0
    %2913 = vmatprep.subr.mxu0 0.0
    %2914 = vmatpush1.msra.mxu0 0.0
    %2915 = vmatprep.subr.mxu0 0.0
    %2916 = vmatpush1.msra.mxu0 0.0
    %2917 = vmatprep.subr.mxu0 0.0
    %2918 = vmatpush1.msra.mxu0 0.0
    %2919 = vmatprep.subr.mxu0 0.0
    %2920 = vmatpush1.msra.mxu0 0.0
    %2921 = vmatprep.subr.mxu0 0.0
    %2922 = vmatpush1.msra.mxu0 0.0
    %2923 = vmatprep.subr.mxu0 0.0
    %2924 = vmatpush1.msra.mxu0 0.0
    %2925 = vmatprep.subr.mxu0 0.0
    %2926 = vmatpush1.msra.mxu0 0.0
    %2927 = vmatprep.subr.mxu0 0.0
    %2928 = vmatpush1.msra.mxu0 0.0
    %2929 = vmatprep.subr.mxu0 0.0
    %2930 = vmatpush1.msra.mxu0 0.0
    %2931 = vmatprep.subr.mxu0 0.0
    %2932 = vmatpush1.msra.mxu0 0.0
    %2933 = vmatprep.subr.mxu0 0.0
    %2934 = vmatpush1.msra.mxu0 0.0
    %2935 = vmatprep.subr.mxu0 0.0
    %2936 = vmatpush1.msra.mxu0 0.0
    %2937 = vmatprep.subr.mxu0 0.0
    %2938 = vmatpush1.msra.mxu0 0.0
    %2939 = vmatprep.subr.mxu0 0.0
    %2940 = vmatpush1.msra.mxu0 0.0
    %2941 = vmatprep.subr.mxu0 0.0
    %2942 = vmatpush1.msra.mxu0 0.0
    %2943 = vmatprep.subr.mxu0 0.0
    %2944 = vmatpush1.msra.mxu0 0.0
    %2945 = vmatprep.subr.mxu0 0.0
    %2946 = vmatpush1.msra.mxu0 0.0
    %2947 = vmatprep.subr.mxu0 0.0
    %2948 = vmatpush1.msra.mxu0 0.0
    %2949 = vmatprep.subr.mxu0 0.0
    %2950 = vmatpush1.msra.mxu0 0.0
    %2951 = vmatprep.subr.mxu0 0.0
    %2952 = vmatpush1.msra.mxu0 0.0
    %2953 = vmatprep.subr.mxu0 0.0
    %2954 = vmatpush1.msra.mxu0 0.0
    %2955 = vmatprep.subr.mxu0 0.0
    %2956 = vmatpush1.msra.mxu0 0.0
    %2957 = vmatprep.subr.mxu0 0.0
    %2958 = vmatpush1.msra.mxu0 0.0
    %2959 = vmatprep.mubr.f32.mxu0 0.0
    %2960 = vmatmul.mubr.f32.gmra.mrb[0].mxu0 %v2213
    %v2961 = vpop.f32.mrb[0].mxu0
    %v2962 = vadd.f32 0.0, %v2961
    %v2963 = vpop.f32.mrb[0].mxu0
    %v2964 = vadd.f32 0.0, %v2963
    %2965 = vdwg.mxu0
    %2966 = vmatprep.subr.mxu0 %v170
    %2967 = vmatpush1.msra.mxu0 %v169
    %2968 = vmatprep.subr.mxu0 0.0
    %2969 = vmatpush1.msra.mxu0 0.0
    %2970 = vmatprep.subr.mxu0 0.0
    %2971 = vmatpush1.msra.mxu0 0.0
    %2972 = vmatprep.subr.mxu0 0.0
    %2973 = vmatpush1.msra.mxu0 0.0
    %2974 = vmatprep.subr.mxu0 0.0
    %2975 = vmatpush1.msra.mxu0 0.0
    %2976 = vmatprep.subr.mxu0 0.0
    %2977 = vmatpush1.msra.mxu0 0.0
    %2978 = vmatprep.subr.mxu0 0.0
    %2979 = vmatpush1.msra.mxu0 0.0
    %2980 = vmatprep.subr.mxu0 0.0
    %2981 = vmatpush1.msra.mxu0 0.0
    %2982 = vmatprep.subr.mxu0 0.0
    %2983 = vmatpush1.msra.mxu0 0.0
    %2984 = vmatprep.subr.mxu0 0.0
    %2985 = vmatpush1.msra.mxu0 0.0
    %2986 = vmatprep.subr.mxu0 0.0
    %2987 = vmatpush1.msra.mxu0 0.0
    %2988 = vmatprep.subr.mxu0 0.0
    %2989 = vmatpush1.msra.mxu0 0.0
    %2990 = vmatprep.subr.mxu0 0.0
    %2991 = vmatpush1.msra.mxu0 0.0
    %2992 = vmatprep.subr.mxu0 0.0
    %2993 = vmatpush1.msra.mxu0 0.0
    %2994 = vmatprep.subr.mxu0 0.0
    %2995 = vmatpush1.msra.mxu0 0.0
    %2996 = vmatprep.subr.mxu0 0.0
    %2997 = vmatpush1.msra.mxu0 0.0
    %2998 = vmatprep.subr.mxu0 0.0
    %2999 = vmatpush1.msra.mxu0 0.0
    %3000 = vmatprep.subr.mxu0 0.0
    %3001 = vmatpush1.msra.mxu0 0.0
    %3002 = vmatprep.subr.mxu0 0.0
    %3003 = vmatpush1.msra.mxu0 0.0
    %3004 = vmatprep.subr.mxu0 0.0
    %3005 = vmatpush1.msra.mxu0 0.0
    %3006 = vmatprep.subr.mxu0 0.0
    %3007 = vmatpush1.msra.mxu0 0.0
    %3008 = vmatprep.subr.mxu0 0.0
    %3009 = vmatpush1.msra.mxu0 0.0
    %3010 = vmatprep.subr.mxu0 0.0
    %3011 = vmatpush1.msra.mxu0 0.0
    %3012 = vmatprep.subr.mxu0 0.0
    %3013 = vmatpush1.msra.mxu0 0.0
    %3014 = vmatprep.subr.mxu0 0.0
    %3015 = vmatpush1.msra.mxu0 0.0
    %3016 = vmatprep.subr.mxu0 0.0
    %3017 = vmatpush1.msra.mxu0 0.0
    %3018 = vmatprep.subr.mxu0 0.0
    %3019 = vmatpush1.msra.mxu0 0.0
    %3020 = vmatprep.subr.mxu0 0.0
    %3021 = vmatpush1.msra.mxu0 0.0
    %3022 = vmatprep.subr.mxu0 0.0
    %3023 = vmatpush1.msra.mxu0 0.0
    %3024 = vmatprep.subr.mxu0 0.0
    %3025 = vmatpush1.msra.mxu0 0.0
    %3026 = vmatprep.subr.mxu0 0.0
    %3027 = vmatpush1.msra.mxu0 0.0
    %3028 = vmatprep.subr.mxu0 0.0
    %3029 = vmatpush1.msra.mxu0 0.0
    %3030 = vmatprep.mubr.f32.mxu0 0.0
    %3031 = vmatmul.mubr.f32.gmra.mrb[0].mxu0 %v2213
    %v3032 = vpop.f32.mrb[0].mxu0
    %v3033 = vadd.f32 0.0, %v3032
    %v3034 = vpop.f32.mrb[0].mxu0
    %v3035 = vadd.f32 0.0, %v3034
    %3036 = vdwg.mxu0
    %v3038 = vsel %vm530, %v2894, 0
    %3040 = vmatprep.subr.mxu0 %v160
    %3041 = vmatpush1.msra.mxu0 %v159
    %3042 = vmatprep.subr.mxu0 %v1034
    %3043 = vmatpush1.msra.mxu0 %v1031
    %3044 = vmatprep.subr.mxu0 0.0
    %3045 = vmatpush1.msra.mxu0 0.0
    %3046 = vmatprep.subr.mxu0 0.0
    %3047 = vmatpush1.msra.mxu0 0.0
    %3048 = vmatprep.subr.mxu0 0.0
    %3049 = vmatpush1.msra.mxu0 0.0
    %3050 = vmatprep.subr.mxu0 0.0
    %3051 = vmatpush1.msra.mxu0 0.0
    %3052 = vmatprep.subr.mxu0 0.0
    %3053 = vmatpush1.msra.mxu0 0.0
    %3054 = vmatprep.subr.mxu0 0.0
    %3055 = vmatpush1.msra.mxu0 0.0
    %3056 = vmatprep.subr.mxu0 0.0
    %3057 = vmatpush1.msra.mxu0 0.0
    %3058 = vmatprep.subr.mxu0 0.0
    %3059 = vmatpush1.msra.mxu0 0.0
    %3060 = vmatprep.subr.mxu0 0.0
    %3061 = vmatpush1.msra.mxu0 0.0
    %3062 = vmatprep.subr.mxu0 0.0
    %3063 = vmatpush1.msra.mxu0 0.0
    %3064 = vmatprep.subr.mxu0 0.0
    %3065 = vmatpush1.msra.mxu0 0.0
    %3066 = vmatprep.subr.mxu0 0.0
    %3067 = vmatpush1.msra.mxu0 0.0
    %3068 = vmatprep.subr.mxu0 0.0
    %3069 = vmatpush1.msra.mxu0 0.0
    %3070 = vmatprep.subr.mxu0 0.0
    %3071 = vmatpush1.msra.mxu0 0.0
    %3072 = vmatprep.subr.mxu0 0.0
    %3073 = vmatpush1.msra.mxu0 0.0
    %3074 = vmatprep.subr.mxu0 0.0
    %3075 = vmatpush1.msra.mxu0 0.0
    %3076 = vmatprep.subr.mxu0 0.0
    %3077 = vmatpush1.msra.mxu0 0.0
    %3078 = vmatprep.subr.mxu0 0.0
    %3079 = vmatpush1.msra.mxu0 0.0
    %3080 = vmatprep.subr.mxu0 0.0
    %3081 = vmatpush1.msra.mxu0 0.0
    %3082 = vmatprep.subr.mxu0 0.0
    %3083 = vmatpush1.msra.mxu0 0.0
    %3084 = vmatprep.subr.mxu0 0.0
    %3085 = vmatpush1.msra.mxu0 0.0
    %3086 = vmatprep.subr.mxu0 0.0
    %3087 = vmatpush1.msra.mxu0 0.0
    %3088 = vmatprep.subr.mxu0 0.0
    %3089 = vmatpush1.msra.mxu0 0.0
    %3090 = vmatprep.subr.mxu0 0.0
    %3091 = vmatpush1.msra.mxu0 0.0
    %3092 = vmatprep.subr.mxu0 0.0
    %3093 = vmatpush1.msra.mxu0 0.0
    %3094 = vmatprep.subr.mxu0 0.0
    %3095 = vmatpush1.msra.mxu0 0.0
    %3096 = vmatprep.subr.mxu0 0.0
    %3097 = vmatpush1.msra.mxu0 0.0
    %3098 = vmatprep.subr.mxu0 0.0
    %3099 = vmatpush1.msra.mxu0 0.0
    %3100 = vmatprep.subr.mxu0 0.0
    %3101 = vmatpush1.msra.mxu0 0.0
    %3102 = vmatprep.subr.mxu0 0.0
    %3103 = vmatpush1.msra.mxu0 0.0
    %3104 = vmatprep.mubr.f32.mxu0 0.0
    %3105 = vmatmul.mubr.f32.gmra.mrb[0].mxu0 %v3038
    %v3106 = vpop.f32.mrb[0].mxu0
    %v3107 = vadd.f32 %v2962, %v3106
    %v3108 = vpop.f32.mrb[0].mxu0
    %v3109 = vadd.f32 %v2964, %v3108
    %3110 = vdwg.mxu0
    %3111 = vmatprep.subr.mxu0 %v162
    %3112 = vmatpush1.msra.mxu0 %v161
    %3113 = vmatprep.subr.mxu0 %v1040
    %3114 = vmatpush1.msra.mxu0 %v1037
    %3115 = vmatprep.subr.mxu0 0.0
    %3116 = vmatpush1.msra.mxu0 0.0
    %3117 = vmatprep.subr.mxu0 0.0
    %3118 = vmatpush1.msra.mxu0 0.0
    %3119 = vmatprep.subr.mxu0 0.0
    %3120 = vmatpush1.msra.mxu0 0.0
    %3121 = vmatprep.subr.mxu0 0.0
    %3122 = vmatpush1.msra.mxu0 0.0
    %3123 = vmatprep.subr.mxu0 0.0
    %3124 = vmatpush1.msra.mxu0 0.0
    %3125 = vmatprep.subr.mxu0 0.0
    %3126 = vmatpush1.msra.mxu0 0.0
    %3127 = vmatprep.subr.mxu0 0.0
    %3128 = vmatpush1.msra.mxu0 0.0
    %3129 = vmatprep.subr.mxu0 0.0
    %3130 = vmatpush1.msra.mxu0 0.0
    %3131 = vmatprep.subr.mxu0 0.0
    %3132 = vmatpush1.msra.mxu0 0.0
    %3133 = vmatprep.subr.mxu0 0.0
    %3134 = vmatpush1.msra.mxu0 0.0
    %3135 = vmatprep.subr.mxu0 0.0
    %3136 = vmatpush1.msra.mxu0 0.0
    %3137 = vmatprep.subr.mxu0 0.0
    %3138 = vmatpush1.msra.mxu0 0.0
    %3139 = vmatprep.subr.mxu0 0.0
    %3140 = vmatpush1.msra.mxu0 0.0
    %3141 = vmatprep.subr.mxu0 0.0
    %3142 = vmatpush1.msra.mxu0 0.0
    %3143 = vmatprep.subr.mxu0 0.0
    %3144 = vmatpush1.msra.mxu0 0.0
    %3145 = vmatprep.subr.mxu0 0.0
    %3146 = vmatpush1.msra.mxu0 0.0
    %3147 = vmatprep.subr.mxu0 0.0
    %3148 = vmatpush1.msra.mxu0 0.0
    %3149 = vmatprep.subr.mxu0 0.0
    %3150 = vmatpush1.msra.mxu0 0.0
    %3151 = vmatprep.subr.mxu0 0.0
    %3152 = vmatpush1.msra.mxu0 0.0
    %3153 = vmatprep.subr.mxu0 0.0
    %3154 = vmatpush1.msra.mxu0 0.0
    %3155 = vmatprep.subr.mxu0 0.0
    %3156 = vmatpush1.msra.mxu0 0.0
    %3157 = vmatprep.subr.mxu0 0.0
    %3158 = vmatpush1.msra.mxu0 0.0
    %3159 = vmatprep.subr.mxu0 0.0
    %3160 = vmatpush1.msra.mxu0 0.0
    %3161 = vmatprep.subr.mxu0 0.0
    %3162 = vmatpush1.msra.mxu0 0.0
    %3163 = vmatprep.subr.mxu0 0.0
    %3164 = vmatpush1.msra.mxu0 0.0
    %3165 = vmatprep.subr.mxu0 0.0
    %3166 = vmatpush1.msra.mxu0 0.0
    %3167 = vmatprep.subr.mxu0 0.0
    %3168 = vmatpush1.msra.mxu0 0.0
    %3169 = vmatprep.subr.mxu0 0.0
    %3170 = vmatpush1.msra.mxu0 0.0
    %3171 = vmatprep.subr.mxu0 0.0
    %3172 = vmatpush1.msra.mxu0 0.0
    %3173 = vmatprep.subr.mxu0 0.0
    %3174 = vmatpush1.msra.mxu0 0.0
    %3175 = vmatprep.mubr.f32.mxu0 0.0
    %3176 = vmatmul.mubr.f32.gmra.mrb[0].mxu0 %v3038
    %v3177 = vpop.f32.mrb[0].mxu0
    %v3178 = vadd.f32 %v3033, %v3177
    %v3179 = vpop.f32.mrb[0].mxu0
    %v3180 = vadd.f32 %v3035, %v3179
    %3181 = vdwg.mxu0
    %v3182 = vadd.f32 %v3107, %v1188
    %v3183 = vadd.f32 %v3109, %v1192
    %v3184 = vadd.f32 %v3178, %v1196
    %v3185 = vadd.f32 %v3180, %v1200
    %v3186 = vtanh.pop %v3182
    %v3187 = vtanh.pop %v3183
    %v3188 = vadd.f32 %v3184, %v3185
    %v3189 = vxor.u32 %v3188, 2147483648
    %v3190 = vmul.f32 %v3189, 1.442695
    %v3191 = vpow.pop %v3190
    %v3192 = vadd.f32 %v3191, 1.0
    %v3193 = vrcp.pop %v3192
    %v3194 = vmul.f32 1.0, %v3193
    %v3195 = vsub.f32 %v3187, %v3186
    %v3196 = vmul.f32 %v3194, %v3195
    %v3197 = vadd.f32 %v3186, %v3196
    %v3199 = vsel %vm882, %v3197, 0
    %3201 = vmatprep.subr.mxu0 0.0
    %3202 = vmatpush1.msra.mxu0 %v172
    %3203 = vmatprep.subr.mxu0 0.0
    %3204 = vmatpush1.msra.mxu0 0.0
    %3205 = vmatprep.subr.mxu0 0.0
    %3206 = vmatpush1.msra.mxu0 0.0
    %3207 = vmatprep.subr.mxu0 0.0
    %3208 = vmatpush1.msra.mxu0 0.0
    %3209 = vmatprep.subr.mxu0 0.0
    %3210 = vmatpush1.msra.mxu0 0.0
    %3211 = vmatprep.subr.mxu0 0.0
    %3212 = vmatpush1.msra.mxu0 0.0
    %3213 = vmatprep.subr.mxu0 0.0
    %3214 = vmatpush1.msra.mxu0 0.0
    %3215 = vmatprep.subr.mxu0 0.0
    %3216 = vmatpush1.msra.mxu0 0.0
    %3217 = vmatprep.subr.mxu0 0.0
    %3218 = vmatpush1.msra.mxu0 0.0
    %3219 = vmatprep.subr.mxu0 0.0
    %3220 = vmatpush1.msra.mxu0 0.0
    %3221 = vmatprep.subr.mxu0 0.0
    %3222 = vmatpush1.msra.mxu0 0.0
    %3223 = vmatprep.subr.mxu0 0.0
    %3224 = vmatpush1.msra.mxu0 0.0
    %3225 = vmatprep.subr.mxu0 0.0
    %3226 = vmatpush1.msra.mxu0 0.0
    %3227 = vmatprep.subr.mxu0 0.0
    %3228 = vmatpush1.msra.mxu0 0.0
    %3229 = vmatprep.subr.mxu0 0.0
    %3230 = vmatpush1.msra.mxu0 0.0
    %3231 = vmatprep.subr.mxu0 0.0
    %3232 = vmatpush1.msra.mxu0 0.0
    %3233 = vmatprep.subr.mxu0 0.0
    %3234 = vmatpush1.msra.mxu0 0.0
    %3235 = vmatprep.subr.mxu0 0.0
    %3236 = vmatpush1.msra.mxu0 0.0
    %3237 = vmatprep.subr.mxu0 0.0
    %3238 = vmatpush1.msra.mxu0 0.0
    %3239 = vmatprep.subr.mxu0 0.0
    %3240 = vmatpush1.msra.mxu0 0.0
    %3241 = vmatprep.subr.mxu0 0.0
    %3242 = vmatpush1.msra.mxu0 0.0
    %3243 = vmatprep.subr.mxu0 0.0
    %3244 = vmatpush1.msra.mxu0 0.0
    %3245 = vmatprep.subr.mxu0 0.0
    %3246 = vmatpush1.msra.mxu0 0.0
    %3247 = vmatprep.subr.mxu0 0.0
    %3248 = vmatpush1.msra.mxu0 0.0
    %3249 = vmatprep.subr.mxu0 0.0
    %3250 = vmatpush1.msra.mxu0 0.0
    %3251 = vmatprep.subr.mxu0 0.0
    %3252 = vmatpush1.msra.mxu0 0.0
    %3253 = vmatprep.subr.mxu0 0.0
    %3254 = vmatpush1.msra.mxu0 0.0
    %3255 = vmatprep.subr.mxu0 0.0
    %3256 = vmatpush1.msra.mxu0 0.0
    %3257 = vmatprep.subr.mxu0 0.0
    %3258 = vmatpush1.msra.mxu0 0.0
    %3259 = vmatprep.subr.mxu0 0.0
    %3260 = vmatpush1.msra.mxu0 0.0
    %3261 = vmatprep.subr.mxu0 0.0
    %3262 = vmatpush1.msra.mxu0 0.0
    %3263 = vmatprep.subr.mxu0 0.0
    %3264 = vmatpush1.msra.mxu0 0.0
    %3265 = vmatprep.mubr.f32.mxu0 0.0
    %3266 = vmatmul.mubr.f32.gmra.mrb[0].mxu0 %v3199
    %v3267 = vpop.f32.mrb[0].mxu0
    %v3268 = vadd.f32 %v1225, %v3267
    %v3269 = vpop.f32.mrb[0].mxu0
    %3270 = vdwg.mxu0
    %s3271 = scalar_lea.vmem [#allocation14], 4
    %3272 = vst [vmem:[%s3271] sm:$0x3] %v3268
    %s3273 = scalar_lea.vmem %s0, 6
    %v3274 = vld [vmem:[%s3273] sm:$0x3]
    %3275 = vmatprep.subr.mxu0 %v134
    %3276 = vmatpush1.msra.mxu0 %v133
    %3277 = vmatprep.subr.mxu0 %v184
    %3278 = vmatpush1.msra.mxu0 %v181
    %3279 = vmatprep.subr.mxu0 0.0
    %3280 = vmatpush1.msra.mxu0 0.0
    %3281 = vmatprep.subr.mxu0 0.0
    %3282 = vmatpush1.msra.mxu0 0.0
    %3283 = vmatprep.subr.mxu0 0.0
    %3284 = vmatpush1.msra.mxu0 0.0
    %3285 = vmatprep.subr.mxu0 0.0
    %3286 = vmatpush1.msra.mxu0 0.0
    %3287 = vmatprep.subr.mxu0 0.0
    %3288 = vmatpush1.msra.mxu0 0.0
    %3289 = vmatprep.subr.mxu0 0.0
    %3290 = vmatpush1.msra.mxu0 0.0
    %3291 = vmatprep.subr.mxu0 0.0
    %3292 = vmatpush1.msra.mxu0 0.0
    %3293 = vmatprep.subr.mxu0 0.0
    %3294 = vmatpush1.msra.mxu0 0.0
    %3295 = vmatprep.subr.mxu0 0.0
    %3296 = vmatpush1.msra.mxu0 0.0
    %3297 = vmatprep.subr.mxu0 0.0
    %3298 = vmatpush1.msra.mxu0 0.0
    %3299 = vmatprep.subr.mxu0 0.0
    %3300 = vmatpush1.msra.mxu0 0.0
    %3301 = vmatprep.subr.mxu0 0.0
    %3302 = vmatpush1.msra.mxu0 0.0
    %3303 = vmatprep.subr.mxu0 0.0
    %3304 = vmatpush1.msra.mxu0 0.0
    %3305 = vmatprep.subr.mxu0 0.0
    %3306 = vmatpush1.msra.mxu0 0.0
    %3307 = vmatprep.subr.mxu0 0.0
    %3308 = vmatpush1.msra.mxu0 0.0
    %3309 = vmatprep.subr.mxu0 0.0
    %3310 = vmatpush1.msra.mxu0 0.0
    %3311 = vmatprep.subr.mxu0 0.0
    %3312 = vmatpush1.msra.mxu0 0.0
    %3313 = vmatprep.subr.mxu0 0.0
    %3314 = vmatpush1.msra.mxu0 0.0
    %3315 = vmatprep.subr.mxu0 0.0
    %3316 = vmatpush1.msra.mxu0 0.0
    %3317 = vmatprep.subr.mxu0 0.0
    %3318 = vmatpush1.msra.mxu0 0.0
    %3319 = vmatprep.subr.mxu0 0.0
    %3320 = vmatpush1.msra.mxu0 0.0
    %3321 = vmatprep.subr.mxu0 0.0
    %3322 = vmatpush1.msra.mxu0 0.0
    %3323 = vmatprep.subr.mxu0 0.0
    %3324 = vmatpush1.msra.mxu0 0.0
    %3325 = vmatprep.subr.mxu0 0.0
    %3326 = vmatpush1.msra.mxu0 0.0
    %3327 = vmatprep.subr.mxu0 0.0
    %3328 = vmatpush1.msra.mxu0 0.0
    %3329 = vmatprep.subr.mxu0 0.0
    %3330 = vmatpush1.msra.mxu0 0.0
    %3331 = vmatprep.subr.mxu0 0.0
    %3332 = vmatpush1.msra.mxu0 0.0
    %3333 = vmatprep.subr.mxu0 0.0
    %3334 = vmatpush1.msra.mxu0 0.0
    %3335 = vmatprep.subr.mxu0 0.0
    %3336 = vmatpush1.msra.mxu0 0.0
    %3337 = vmatprep.subr.mxu0 0.0
    %3338 = vmatpush1.msra.mxu0 0.0
    %3339 = vmatprep.mubr.f32.mxu0 0.0
    %3340 = vmatmul.mubr.f32.gmra.mrb[0].mxu0 %v2735
    %v3341 = vpop.f32.mrb[0].mxu0
    %v3342 = vadd.f32 0.0, %v3341
    %v3343 = vpop.f32.mrb[0].mxu0
    %v3344 = vadd.f32 0.0, %v3343
    %3345 = vdwg.mxu0
    %3346 = vmatprep.subr.mxu0 %v136
    %3347 = vmatpush1.msra.mxu0 %v135
    %3348 = vmatprep.subr.mxu0 %v190
    %3349 = vmatpush1.msra.mxu0 %v187
    %3350 = vmatprep.subr.mxu0 0.0
    %3351 = vmatpush1.msra.mxu0 0.0
    %3352 = vmatprep.subr.mxu0 0.0
    %3353 = vmatpush1.msra.mxu0 0.0
    %3354 = vmatprep.subr.mxu0 0.0
    %3355 = vmatpush1.msra.mxu0 0.0
    %3356 = vmatprep.subr.mxu0 0.0
    %3357 = vmatpush1.msra.mxu0 0.0
    %3358 = vmatprep.subr.mxu0 0.0
    %3359 = vmatpush1.msra.mxu0 0.0
    %3360 = vmatprep.subr.mxu0 0.0
    %3361 = vmatpush1.msra.mxu0 0.0
    %3362 = vmatprep.subr.mxu0 0.0
    %3363 = vmatpush1.msra.mxu0 0.0
    %3364 = vmatprep.subr.mxu0 0.0
    %3365 = vmatpush1.msra.mxu0 0.0
    %3366 = vmatprep.subr.mxu0 0.0
    %3367 = vmatpush1.msra.mxu0 0.0
    %3368 = vmatprep.subr.mxu0 0.0
    %3369 = vmatpush1.msra.mxu0 0.0
    %3370 = vmatprep.subr.mxu0 0.0
    %3371 = vmatpush1.msra.mxu0 0.0
    %3372 = vmatprep.subr.mxu0 0.0
    %3373 = vmatpush1.msra.mxu0 0.0
    %3374 = vmatprep.subr.mxu0 0.0
    %3375 = vmatpush1.msra.mxu0 0.0
    %3376 = vmatprep.subr.mxu0 0.0
    %3377 = vmatpush1.msra.mxu0 0.0
    %3378 = vmatprep.subr.mxu0 0.0
    %3379 = vmatpush1.msra.mxu0 0.0
    %3380 = vmatprep.subr.mxu0 0.0
    %3381 = vmatpush1.msra.mxu0 0.0
    %3382 = vmatprep.subr.mxu0 0.0
    %3383 = vmatpush1.msra.mxu0 0.0
    %3384 = vmatprep.subr.mxu0 0.0
    %3385 = vmatpush1.msra.mxu0 0.0
    %3386 = vmatprep.subr.mxu0 0.0
    %3387 = vmatpush1.msra.mxu0 0.0
    %3388 = vmatprep.subr.mxu0 0.0
    %3389 = vmatpush1.msra.mxu0 0.0
    %3390 = vmatprep.subr.mxu0 0.0
    %3391 = vmatpush1.msra.mxu0 0.0
    %3392 = vmatprep.subr.mxu0 0.0
    %3393 = vmatpush1.msra.mxu0 0.0
    %3394 = vmatprep.subr.mxu0 0.0
    %3395 = vmatpush1.msra.mxu0 0.0
    %3396 = vmatprep.subr.mxu0 0.0
    %3397 = vmatpush1.msra.mxu0 0.0
    %3398 = vmatprep.subr.mxu0 0.0
    %3399 = vmatpush1.msra.mxu0 0.0
    %3400 = vmatprep.subr.mxu0 0.0
    %3401 = vmatpush1.msra.mxu0 0.0
    %3402 = vmatprep.subr.mxu0 0.0
    %3403 = vmatpush1.msra.mxu0 0.0
    %3404 = vmatprep.subr.mxu0 0.0
    %3405 = vmatpush1.msra.mxu0 0.0
    %3406 = vmatprep.subr.mxu0 0.0
    %3407 = vmatpush1.msra.mxu0 0.0
    %3408 = vmatprep.subr.mxu0 0.0
    %3409 = vmatpush1.msra.mxu0 0.0
    %3410 = vmatprep.mubr.f32.mxu0 0.0
    %3411 = vmatmul.mubr.f32.gmra.mrb[0].mxu0 %v2735
    %v3412 = vpop.f32.mrb[0].mxu0
    %v3413 = vadd.f32 0.0, %v3412
    %v3414 = vpop.f32.mrb[0].mxu0
    %v3415 = vadd.f32 0.0, %v3414
    %3416 = vdwg.mxu0
    %v3418 = vsel %vm338, %v3274, 0
    %3420 = vmatprep.subr.mxu0 %v345
    %3421 = vmatpush1.msra.mxu0 %v343
    %3422 = vmatprep.subr.mxu0 0.0
    %3423 = vmatpush1.msra.mxu0 0.0
    %3424 = vmatprep.subr.mxu0 0.0
    %3425 = vmatpush1.msra.mxu0 0.0
    %3426 = vmatprep.subr.mxu0 0.0
    %3427 = vmatpush1.msra.mxu0 0.0
    %3428 = vmatprep.subr.mxu0 0.0
    %3429 = vmatpush1.msra.mxu0 0.0
    %3430 = vmatprep.subr.mxu0 0.0
    %3431 = vmatpush1.msra.mxu0 0.0
    %3432 = vmatprep.subr.mxu0 0.0
    %3433 = vmatpush1.msra.mxu0 0.0
    %3434 = vmatprep.subr.mxu0 0.0
    %3435 = vmatpush1.msra.mxu0 0.0
    %3436 = vmatprep.subr.mxu0 0.0
    %3437 = vmatpush1.msra.mxu0 0.0
    %3438 = vmatprep.subr.mxu0 0.0
    %3439 = vmatpush1.msra.mxu0 0.0
    %3440 = vmatprep.subr.mxu0 0.0
    %3441 = vmatpush1.msra.mxu0 0.0
    %3442 = vmatprep.subr.mxu0 0.0
    %3443 = vmatpush1.msra.mxu0 0.0
    %3444 = vmatprep.subr.mxu0 0.0
    %3445 = vmatpush1.msra.mxu0 0.0
    %3446 = vmatprep.subr.mxu0 0.0
    %3447 = vmatpush1.msra.mxu0 0.0
    %3448 = vmatprep.subr.mxu0 0.0
    %3449 = vmatpush1.msra.mxu0 0.0
    %3450 = vmatprep.subr.mxu0 0.0
    %3451 = vmatpush1.msra.mxu0 0.0
    %3452 = vmatprep.subr.mxu0 0.0
    %3453 = vmatpush1.msra.mxu0 0.0
    %3454 = vmatprep.subr.mxu0 0.0
    %3455 = vmatpush1.msra.mxu0 0.0
    %3456 = vmatprep.subr.mxu0 0.0
    %3457 = vmatpush1.msra.mxu0 0.0
    %3458 = vmatprep.subr.mxu0 0.0
    %3459 = vmatpush1.msra.mxu0 0.0
    %3460 = vmatprep.subr.mxu0 0.0
    %3461 = vmatpush1.msra.mxu0 0.0
    %3462 = vmatprep.subr.mxu0 0.0
    %3463 = vmatpush1.msra.mxu0 0.0
    %3464 = vmatprep.subr.mxu0 0.0
    %3465 = vmatpush1.msra.mxu0 0.0
    %3466 = vmatprep.subr.mxu0 0.0
    %3467 = vmatpush1.msra.mxu0 0.0
    %3468 = vmatprep.subr.mxu0 0.0
    %3469 = vmatpush1.msra.mxu0 0.0
    %3470 = vmatprep.subr.mxu0 0.0
    %3471 = vmatpush1.msra.mxu0 0.0
    %3472 = vmatprep.subr.mxu0 0.0
    %3473 = vmatpush1.msra.mxu0 0.0
    %3474 = vmatprep.subr.mxu0 0.0
    %3475 = vmatpush1.msra.mxu0 0.0
    %3476 = vmatprep.subr.mxu0 0.0
    %3477 = vmatpush1.msra.mxu0 0.0
    %3478 = vmatprep.subr.mxu0 0.0
    %3479 = vmatpush1.msra.mxu0 0.0
    %3480 = vmatprep.subr.mxu0 0.0
    %3481 = vmatpush1.msra.mxu0 0.0
    %3482 = vmatprep.subr.mxu0 0.0
    %3483 = vmatpush1.msra.mxu0 0.0
    %3484 = vmatprep.mubr.f32.mxu0 0.0
    %3485 = vmatmul.mubr.f32.gmra.mrb[0].mxu0 %v3418
    %v3486 = vpop.f32.mrb[0].mxu0
    %v3487 = vadd.f32 %v3342, %v3486
    %v3488 = vpop.f32.mrb[0].mxu0
    %v3489 = vadd.f32 %v3344, %v3488
    %3490 = vdwg.mxu0
    %3491 = vmatprep.subr.mxu0 %v349
    %3492 = vmatpush1.msra.mxu0 %v347
    %3493 = vmatprep.subr.mxu0 0.0
    %3494 = vmatpush1.msra.mxu0 0.0
    %3495 = vmatprep.subr.mxu0 0.0
    %3496 = vmatpush1.msra.mxu0 0.0
    %3497 = vmatprep.subr.mxu0 0.0
    %3498 = vmatpush1.msra.mxu0 0.0
    %3499 = vmatprep.subr.mxu0 0.0
    %3500 = vmatpush1.msra.mxu0 0.0
    %3501 = vmatprep.subr.mxu0 0.0
    %3502 = vmatpush1.msra.mxu0 0.0
    %3503 = vmatprep.subr.mxu0 0.0
    %3504 = vmatpush1.msra.mxu0 0.0
    %3505 = vmatprep.subr.mxu0 0.0
    %3506 = vmatpush1.msra.mxu0 0.0
    %3507 = vmatprep.subr.mxu0 0.0
    %3508 = vmatpush1.msra.mxu0 0.0
    %3509 = vmatprep.subr.mxu0 0.0
    %3510 = vmatpush1.msra.mxu0 0.0
    %3511 = vmatprep.subr.mxu0 0.0
    %3512 = vmatpush1.msra.mxu0 0.0
    %3513 = vmatprep.subr.mxu0 0.0
    %3514 = vmatpush1.msra.mxu0 0.0
    %3515 = vmatprep.subr.mxu0 0.0
    %3516 = vmatpush1.msra.mxu0 0.0
    %3517 = vmatprep.subr.mxu0 0.0
    %3518 = vmatpush1.msra.mxu0 0.0
    %3519 = vmatprep.subr.mxu0 0.0
    %3520 = vmatpush1.msra.mxu0 0.0
    %3521 = vmatprep.subr.mxu0 0.0
    %3522 = vmatpush1.msra.mxu0 0.0
    %3523 = vmatprep.subr.mxu0 0.0
    %3524 = vmatpush1.msra.mxu0 0.0
    %3525 = vmatprep.subr.mxu0 0.0
    %3526 = vmatpush1.msra.mxu0 0.0
    %3527 = vmatprep.subr.mxu0 0.0
    %3528 = vmatpush1.msra.mxu0 0.0
    %3529 = vmatprep.subr.mxu0 0.0
    %3530 = vmatpush1.msra.mxu0 0.0
    %3531 = vmatprep.subr.mxu0 0.0
    %3532 = vmatpush1.msra.mxu0 0.0
    %3533 = vmatprep.subr.mxu0 0.0
    %3534 = vmatpush1.msra.mxu0 0.0
    %3535 = vmatprep.subr.mxu0 0.0
    %3536 = vmatpush1.msra.mxu0 0.0
    %3537 = vmatprep.subr.mxu0 0.0
    %3538 = vmatpush1.msra.mxu0 0.0
    %3539 = vmatprep.subr.mxu0 0.0
    %3540 = vmatpush1.msra.mxu0 0.0
    %3541 = vmatprep.subr.mxu0 0.0
    %3542 = vmatpush1.msra.mxu0 0.0
    %3543 = vmatprep.subr.mxu0 0.0
    %3544 = vmatpush1.msra.mxu0 0.0
    %3545 = vmatprep.subr.mxu0 0.0
    %3546 = vmatpush1.msra.mxu0 0.0
    %3547 = vmatprep.subr.mxu0 0.0
    %3548 = vmatpush1.msra.mxu0 0.0
    %3549 = vmatprep.subr.mxu0 0.0
    %3550 = vmatpush1.msra.mxu0 0.0
    %3551 = vmatprep.subr.mxu0 0.0
    %3552 = vmatpush1.msra.mxu0 0.0
    %3553 = vmatprep.subr.mxu0 0.0
    %3554 = vmatpush1.msra.mxu0 0.0
    %3555 = vmatprep.mubr.f32.mxu0 0.0
    %3556 = vmatmul.mubr.f32.gmra.mrb[0].mxu0 %v3418
    %v3557 = vpop.f32.mrb[0].mxu0
    %v3558 = vadd.f32 %v3413, %v3557
    %v3559 = vpop.f32.mrb[0].mxu0
    %v3560 = vadd.f32 %v3415, %v3559
    %3561 = vdwg.mxu0
    %v3562 = vadd.f32 %v3487, %v497
    %v3563 = vadd.f32 %v3489, %v501
    %v3564 = vadd.f32 %v3558, %v505
    %v3565 = vadd.f32 %v3560, %v509
    %v3566 = vtanh.pop %v3562
    %v3567 = vtanh.pop %v3563
    %v3568 = vadd.f32 %v3564, %v3565
    %v3569 = vxor.u32 %v3568, 2147483648
    %v3570 = vmul.f32 %v3569, 1.442695
    %v3571 = vpow.pop %v3570
    %v3572 = vadd.f32 %v3571, 1.0
    %v3573 = vrcp.pop %v3572
    %v3574 = vmul.f32 1.0, %v3573
    %v3575 = vsub.f32 %v3567, %v3566
    %v3576 = vmul.f32 %v3574, %v3575
    %v3577 = vadd.f32 %v3566, %v3576
    %3578 = vmatprep.subr.mxu0 %v151
    %3579 = vmatpush1.msra.mxu0 %v150
    %3580 = vmatprep.subr.mxu0 %v538
    %3581 = vmatpush1.msra.mxu0 %v535
    %3582 = vmatprep.subr.mxu0 0.0
    %3583 = vmatpush1.msra.mxu0 0.0
    %3584 = vmatprep.subr.mxu0 0.0
    %3585 = vmatpush1.msra.mxu0 0.0
    %3586 = vmatprep.subr.mxu0 0.0
    %3587 = vmatpush1.msra.mxu0 0.0
    %3588 = vmatprep.subr.mxu0 0.0
    %3589 = vmatpush1.msra.mxu0 0.0
    %3590 = vmatprep.subr.mxu0 0.0
    %3591 = vmatpush1.msra.mxu0 0.0
    %3592 = vmatprep.subr.mxu0 0.0
    %3593 = vmatpush1.msra.mxu0 0.0
    %3594 = vmatprep.subr.mxu0 0.0
    %3595 = vmatpush1.msra.mxu0 0.0
    %3596 = vmatprep.subr.mxu0 0.0
    %3597 = vmatpush1.msra.mxu0 0.0
    %3598 = vmatprep.subr.mxu0 0.0
    %3599 = vmatpush1.msra.mxu0 0.0
    %3600 = vmatprep.subr.mxu0 0.0
    %3601 = vmatpush1.msra.mxu0 0.0
    %3602 = vmatprep.subr.mxu0 0.0
    %3603 = vmatpush1.msra.mxu0 0.0
    %3604 = vmatprep.subr.mxu0 0.0
    %3605 = vmatpush1.msra.mxu0 0.0
    %3606 = vmatprep.subr.mxu0 0.0
    %3607 = vmatpush1.msra.mxu0 0.0
    %3608 = vmatprep.subr.mxu0 0.0
    %3609 = vmatpush1.msra.mxu0 0.0
    %3610 = vmatprep.subr.mxu0 0.0
    %3611 = vmatpush1.msra.mxu0 0.0
    %3612 = vmatprep.subr.mxu0 0.0
    %3613 = vmatpush1.msra.mxu0 0.0
    %3614 = vmatprep.subr.mxu0 0.0
    %3615 = vmatpush1.msra.mxu0 0.0
    %3616 = vmatprep.subr.mxu0 0.0
    %3617 = vmatpush1.msra.mxu0 0.0
    %3618 = vmatprep.subr.mxu0 0.0
    %3619 = vmatpush1.msra.mxu0 0.0
    %3620 = vmatprep.subr.mxu0 0.0
    %3621 = vmatpush1.msra.mxu0 0.0
    %3622 = vmatprep.subr.mxu0 0.0
    %3623 = vmatpush1.msra.mxu0 0.0
    %3624 = vmatprep.subr.mxu0 0.0
    %3625 = vmatpush1.msra.mxu0 0.0
    %3626 = vmatprep.subr.mxu0 0.0
    %3627 = vmatpush1.msra.mxu0 0.0
    %3628 = vmatprep.subr.mxu0 0.0
    %3629 = vmatpush1.msra.mxu0 0.0
    %3630 = vmatprep.subr.mxu0 0.0
    %3631 = vmatpush1.msra.mxu0 0.0
    %3632 = vmatprep.subr.mxu0 0.0
    %3633 = vmatpush1.msra.mxu0 0.0
    %3634 = vmatprep.subr.mxu0 0.0
    %3635 = vmatpush1.msra.mxu0 0.0
    %3636 = vmatprep.subr.mxu0 0.0
    %3637 = vmatpush1.msra.mxu0 0.0
    %3638 = vmatprep.subr.mxu0 0.0
    %3639 = vmatpush1.msra.mxu0 0.0
    %3640 = vmatprep.subr.mxu0 0.0
    %3641 = vmatpush1.msra.mxu0 0.0
    %3642 = vmatprep.mubr.f32.mxu0 0.0
    %3643 = vmatmul.mubr.f32.gmra.mrb[0].mxu0 %v3038
    %v3644 = vpop.f32.mrb[0].mxu0
    %v3645 = vadd.f32 0.0, %v3644
    %v3646 = vpop.f32.mrb[0].mxu0
    %v3647 = vadd.f32 0.0, %v3646
    %3648 = vdwg.mxu0
    %3649 = vmatprep.subr.mxu0 %v153
    %3650 = vmatpush1.msra.mxu0 %v152
    %3651 = vmatprep.subr.mxu0 %v544
    %3652 = vmatpush1.msra.mxu0 %v541
    %3653 = vmatprep.subr.mxu0 0.0
    %3654 = vmatpush1.msra.mxu0 0.0
    %3655 = vmatprep.subr.mxu0 0.0
    %3656 = vmatpush1.msra.mxu0 0.0
    %3657 = vmatprep.subr.mxu0 0.0
    %3658 = vmatpush1.msra.mxu0 0.0
    %3659 = vmatprep.subr.mxu0 0.0
    %3660 = vmatpush1.msra.mxu0 0.0
    %3661 = vmatprep.subr.mxu0 0.0
    %3662 = vmatpush1.msra.mxu0 0.0
    %3663 = vmatprep.subr.mxu0 0.0
    %3664 = vmatpush1.msra.mxu0 0.0
    %3665 = vmatprep.subr.mxu0 0.0
    %3666 = vmatpush1.msra.mxu0 0.0
    %3667 = vmatprep.subr.mxu0 0.0
    %3668 = vmatpush1.msra.mxu0 0.0
    %3669 = vmatprep.subr.mxu0 0.0
    %3670 = vmatpush1.msra.mxu0 0.0
    %3671 = vmatprep.subr.mxu0 0.0
    %3672 = vmatpush1.msra.mxu0 0.0
    %3673 = vmatprep.subr.mxu0 0.0
    %3674 = vmatpush1.msra.mxu0 0.0
    %3675 = vmatprep.subr.mxu0 0.0
    %3676 = vmatpush1.msra.mxu0 0.0
    %3677 = vmatprep.subr.mxu0 0.0
    %3678 = vmatpush1.msra.mxu0 0.0
    %3679 = vmatprep.subr.mxu0 0.0
    %3680 = vmatpush1.msra.mxu0 0.0
    %3681 = vmatprep.subr.mxu0 0.0
    %3682 = vmatpush1.msra.mxu0 0.0
    %3683 = vmatprep.subr.mxu0 0.0
    %3684 = vmatpush1.msra.mxu0 0.0
    %3685 = vmatprep.subr.mxu0 0.0
    %3686 = vmatpush1.msra.mxu0 0.0
    %3687 = vmatprep.subr.mxu0 0.0
    %3688 = vmatpush1.msra.mxu0 0.0
    %3689 = vmatprep.subr.mxu0 0.0
    %3690 = vmatpush1.msra.mxu0 0.0
    %3691 = vmatprep.subr.mxu0 0.0
    %3692 = vmatpush1.msra.mxu0 0.0
    %3693 = vmatprep.subr.mxu0 0.0
    %3694 = vmatpush1.msra.mxu0 0.0
    %3695 = vmatprep.subr.mxu0 0.0
    %3696 = vmatpush1.msra.mxu0 0.0
    %3697 = vmatprep.subr.mxu0 0.0
    %3698 = vmatpush1.msra.mxu0 0.0
    %3699 = vmatprep.subr.mxu0 0.0
    %3700 = vmatpush1.msra.mxu0 0.0
    %3701 = vmatprep.subr.mxu0 0.0
    %3702 = vmatpush1.msra.mxu0 0.0
    %3703 = vmatprep.subr.mxu0 0.0
    %3704 = vmatpush1.msra.mxu0 0.0
    %3705 = vmatprep.subr.mxu0 0.0
    %3706 = vmatpush1.msra.mxu0 0.0
    %3707 = vmatprep.subr.mxu0 0.0
    %3708 = vmatpush1.msra.mxu0 0.0
    %3709 = vmatprep.subr.mxu0 0.0
    %3710 = vmatpush1.msra.mxu0 0.0
    %3711 = vmatprep.subr.mxu0 0.0
    %3712 = vmatpush1.msra.mxu0 0.0
    %3713 = vmatprep.mubr.f32.mxu0 0.0
    %3714 = vmatmul.mubr.f32.gmra.mrb[0].mxu0 %v3038
    %v3715 = vpop.f32.mrb[0].mxu0
    %v3716 = vadd.f32 0.0, %v3715
    %v3717 = vpop.f32.mrb[0].mxu0
    %v3718 = vadd.f32 0.0, %v3717
    %3719 = vdwg.mxu0
    %v3721 = vsel %vm175, %v3577, 0
    %3723 = vmatprep.subr.mxu0 %v143
    %3724 = vmatpush1.msra.mxu0 %v142
    %3725 = vmatprep.subr.mxu0 %v695
    %3726 = vmatpush1.msra.mxu0 %v692
    %3727 = vmatprep.subr.mxu0 0.0
    %3728 = vmatpush1.msra.mxu0 0.0
    %3729 = vmatprep.subr.mxu0 0.0
    %3730 = vmatpush1.msra.mxu0 0.0
    %3731 = vmatprep.subr.mxu0 0.0
    %3732 = vmatpush1.msra.mxu0 0.0
    %3733 = vmatprep.subr.mxu0 0.0
    %3734 = vmatpush1.msra.mxu0 0.0
    %3735 = vmatprep.subr.mxu0 0.0
    %3736 = vmatpush1.msra.mxu0 0.0
    %3737 = vmatprep.subr.mxu0 0.0
    %3738 = vmatpush1.msra.mxu0 0.0
    %3739 = vmatprep.subr.mxu0 0.0
    %3740 = vmatpush1.msra.mxu0 0.0
    %3741 = vmatprep.subr.mxu0 0.0
    %3742 = vmatpush1.msra.mxu0 0.0
    %3743 = vmatprep.subr.mxu0 0.0
    %3744 = vmatpush1.msra.mxu0 0.0
    %3745 = vmatprep.subr.mxu0 0.0
    %3746 = vmatpush1.msra.mxu0 0.0
    %3747 = vmatprep.subr.mxu0 0.0
    %3748 = vmatpush1.msra.mxu0 0.0
    %3749 = vmatprep.subr.mxu0 0.0
    %3750 = vmatpush1.msra.mxu0 0.0
    %3751 = vmatprep.subr.mxu0 0.0
    %3752 = vmatpush1.msra.mxu0 0.0
    %3753 = vmatprep.subr.mxu0 0.0
    %3754 = vmatpush1.msra.mxu0 0.0
    %3755 = vmatprep.subr.mxu0 0.0
    %3756 = vmatpush1.msra.mxu0 0.0
    %3757 = vmatprep.subr.mxu0 0.0
    %3758 = vmatpush1.msra.mxu0 0.0
    %3759 = vmatprep.subr.mxu0 0.0
    %3760 = vmatpush1.msra.mxu0 0.0
    %3761 = vmatprep.subr.mxu0 0.0
    %3762 = vmatpush1.msra.mxu0 0.0
    %3763 = vmatprep.subr.mxu0 0.0
    %3764 = vmatpush1.msra.mxu0 0.0
    %3765 = vmatprep.subr.mxu0 0.0
    %3766 = vmatpush1.msra.mxu0 0.0
    %3767 = vmatprep.subr.mxu0 0.0
    %3768 = vmatpush1.msra.mxu0 0.0
    %3769 = vmatprep.subr.mxu0 0.0
    %3770 = vmatpush1.msra.mxu0 0.0
    %3771 = vmatprep.subr.mxu0 0.0
    %3772 = vmatpush1.msra.mxu0 0.0
    %3773 = vmatprep.subr.mxu0 0.0
    %3774 = vmatpush1.msra.mxu0 0.0
    %3775 = vmatprep.subr.mxu0 0.0
    %3776 = vmatpush1.msra.mxu0 0.0
    %3777 = vmatprep.subr.mxu0 0.0
    %3778 = vmatpush1.msra.mxu0 0.0
    %3779 = vmatprep.subr.mxu0 0.0
    %3780 = vmatpush1.msra.mxu0 0.0
    %3781 = vmatprep.subr.mxu0 0.0
    %3782 = vmatpush1.msra.mxu0 0.0
    %3783 = vmatprep.subr.mxu0 0.0
    %3784 = vmatpush1.msra.mxu0 0.0
    %3785 = vmatprep.subr.mxu0 0.0
    %3786 = vmatpush1.msra.mxu0 0.0
    %3787 = vmatprep.mubr.f32.mxu0 0.0
    %3788 = vmatmul.mubr.f32.gmra.mrb[0].mxu0 %v3721
    %v3789 = vpop.f32.mrb[0].mxu0
    %v3790 = vadd.f32 %v3645, %v3789
    %v3791 = vpop.f32.mrb[0].mxu0
    %v3792 = vadd.f32 %v3647, %v3791
    %3793 = vdwg.mxu0
    %3794 = vmatprep.subr.mxu0 %v145
    %3795 = vmatpush1.msra.mxu0 %v144
    %3796 = vmatprep.subr.mxu0 %v701
    %3797 = vmatpush1.msra.mxu0 %v698
    %3798 = vmatprep.subr.mxu0 0.0
    %3799 = vmatpush1.msra.mxu0 0.0
    %3800 = vmatprep.subr.mxu0 0.0
    %3801 = vmatpush1.msra.mxu0 0.0
    %3802 = vmatprep.subr.mxu0 0.0
    %3803 = vmatpush1.msra.mxu0 0.0
    %3804 = vmatprep.subr.mxu0 0.0
    %3805 = vmatpush1.msra.mxu0 0.0
    %3806 = vmatprep.subr.mxu0 0.0
    %3807 = vmatpush1.msra.mxu0 0.0
    %3808 = vmatprep.subr.mxu0 0.0
    %3809 = vmatpush1.msra.mxu0 0.0
    %3810 = vmatprep.subr.mxu0 0.0
    %3811 = vmatpush1.msra.mxu0 0.0
    %3812 = vmatprep.subr.mxu0 0.0
    %3813 = vmatpush1.msra.mxu0 0.0
    %3814 = vmatprep.subr.mxu0 0.0
    %3815 = vmatpush1.msra.mxu0 0.0
    %3816 = vmatprep.subr.mxu0 0.0
    %3817 = vmatpush1.msra.mxu0 0.0
    %3818 = vmatprep.subr.mxu0 0.0
    %3819 = vmatpush1.msra.mxu0 0.0
    %3820 = vmatprep.subr.mxu0 0.0
    %3821 = vmatpush1.msra.mxu0 0.0
    %3822 = vmatprep.subr.mxu0 0.0
    %3823 = vmatpush1.msra.mxu0 0.0
    %3824 = vmatprep.subr.mxu0 0.0
    %3825 = vmatpush1.msra.mxu0 0.0
    %3826 = vmatprep.subr.mxu0 0.0
    %3827 = vmatpush1.msra.mxu0 0.0
    %3828 = vmatprep.subr.mxu0 0.0
    %3829 = vmatpush1.msra.mxu0 0.0
    %3830 = vmatprep.subr.mxu0 0.0
    %3831 = vmatpush1.msra.mxu0 0.0
    %3832 = vmatprep.subr.mxu0 0.0
    %3833 = vmatpush1.msra.mxu0 0.0
    %3834 = vmatprep.subr.mxu0 0.0
    %3835 = vmatpush1.msra.mxu0 0.0
    %3836 = vmatprep.subr.mxu0 0.0
    %3837 = vmatpush1.msra.mxu0 0.0
    %3838 = vmatprep.subr.mxu0 0.0
    %3839 = vmatpush1.msra.mxu0 0.0
    %3840 = vmatprep.subr.mxu0 0.0
    %3841 = vmatpush1.msra.mxu0 0.0
    %3842 = vmatprep.subr.mxu0 0.0
    %3843 = vmatpush1.msra.mxu0 0.0
    %3844 = vmatprep.subr.mxu0 0.0
    %3845 = vmatpush1.msra.mxu0 0.0
    %3846 = vmatprep.subr.mxu0 0.0
    %3847 = vmatpush1.msra.mxu0 0.0
    %3848 = vmatprep.subr.mxu0 0.0
    %3849 = vmatpush1.msra.mxu0 0.0
    %3850 = vmatprep.subr.mxu0 0.0
    %3851 = vmatpush1.msra.mxu0 0.0
    %3852 = vmatprep.subr.mxu0 0.0
    %3853 = vmatpush1.msra.mxu0 0.0
    %3854 = vmatprep.subr.mxu0 0.0
    %3855 = vmatpush1.msra.mxu0 0.0
    %3856 = vmatprep.subr.mxu0 0.0
    %3857 = vmatpush1.msra.mxu0 0.0
    %3858 = vmatprep.mubr.f32.mxu0 0.0
    %3859 = vmatmul.mubr.f32.gmra.mrb[0].mxu0 %v3721
    %v3860 = vpop.f32.mrb[0].mxu0
    %v3861 = vadd.f32 %v3716, %v3860
    %v3862 = vpop.f32.mrb[0].mxu0
    %v3863 = vadd.f32 %v3718, %v3862
    %3864 = vdwg.mxu0
    %v3865 = vadd.f32 %v3790, %v849
    %v3866 = vadd.f32 %v3792, %v853
    %v3867 = vadd.f32 %v3861, %v857
    %v3868 = vadd.f32 %v3863, %v861
    %v3869 = vtanh.pop %v3865
    %v3870 = vtanh.pop %v3866
    %v3871 = vadd.f32 %v3867, %v3868
    %v3872 = vxor.u32 %v3871, 2147483648
    %v3873 = vmul.f32 %v3872, 1.442695
    %v3874 = vpow.pop %v3873
    %v3875 = vadd.f32 %v3874, 1.0
    %v3876 = vrcp.pop %v3875
    %v3877 = vmul.f32 1.0, %v3876
    %v3878 = vsub.f32 %v3870, %v3869
    %v3879 = vmul.f32 %v3877, %v3878
    %v3880 = vadd.f32 %v3869, %v3879
    %3881 = vmatprep.subr.mxu0 %v168
    %3882 = vmatpush1.msra.mxu0 %v167
    %3883 = vmatprep.subr.mxu0 0.0
    %3884 = vmatpush1.msra.mxu0 0.0
    %3885 = vmatprep.subr.mxu0 0.0
    %3886 = vmatpush1.msra.mxu0 0.0
    %3887 = vmatprep.subr.mxu0 0.0
    %3888 = vmatpush1.msra.mxu0 0.0
    %3889 = vmatprep.subr.mxu0 0.0
    %3890 = vmatpush1.msra.mxu0 0.0
    %3891 = vmatprep.subr.mxu0 0.0
    %3892 = vmatpush1.msra.mxu0 0.0
    %3893 = vmatprep.subr.mxu0 0.0
    %3894 = vmatpush1.msra.mxu0 0.0
    %3895 = vmatprep.subr.mxu0 0.0
    %3896 = vmatpush1.msra.mxu0 0.0
    %3897 = vmatprep.subr.mxu0 0.0
    %3898 = vmatpush1.msra.mxu0 0.0
    %3899 = vmatprep.subr.mxu0 0.0
    %3900 = vmatpush1.msra.mxu0 0.0
    %3901 = vmatprep.subr.mxu0 0.0
    %3902 = vmatpush1.msra.mxu0 0.0
    %3903 = vmatprep.subr.mxu0 0.0
    %3904 = vmatpush1.msra.mxu0 0.0
    %3905 = vmatprep.subr.mxu0 0.0
    %3906 = vmatpush1.msra.mxu0 0.0
    %3907 = vmatprep.subr.mxu0 0.0
    %3908 = vmatpush1.msra.mxu0 0.0
    %3909 = vmatprep.subr.mxu0 0.0
    %3910 = vmatpush1.msra.mxu0 0.0
    %3911 = vmatprep.subr.mxu0 0.0
    %3912 = vmatpush1.msra.mxu0 0.0
    %3913 = vmatprep.subr.mxu0 0.0
    %3914 = vmatpush1.msra.mxu0 0.0
    %3915 = vmatprep.subr.mxu0 0.0
    %3916 = vmatpush1.msra.mxu0 0.0
    %3917 = vmatprep.subr.mxu0 0.0
    %3918 = vmatpush1.msra.mxu0 0.0
    %3919 = vmatprep.subr.mxu0 0.0
    %3920 = vmatpush1.msra.mxu0 0.0
    %3921 = vmatprep.subr.mxu0 0.0
    %3922 = vmatpush1.msra.mxu0 0.0
    %3923 = vmatprep.subr.mxu0 0.0
    %3924 = vmatpush1.msra.mxu0 0.0
    %3925 = vmatprep.subr.mxu0 0.0
    %3926 = vmatpush1.msra.mxu0 0.0
    %3927 = vmatprep.subr.mxu0 0.0
    %3928 = vmatpush1.msra.mxu0 0.0
    %3929 = vmatprep.subr.mxu0 0.0
    %3930 = vmatpush1.msra.mxu0 0.0
    %3931 = vmatprep.subr.mxu0 0.0
    %3932 = vmatpush1.msra.mxu0 0.0
    %3933 = vmatprep.subr.mxu0 0.0
    %3934 = vmatpush1.msra.mxu0 0.0
    %3935 = vmatprep.subr.mxu0 0.0
    %3936 = vmatpush1.msra.mxu0 0.0
    %3937 = vmatprep.subr.mxu0 0.0
    %3938 = vmatpush1.msra.mxu0 0.0
    %3939 = vmatprep.subr.mxu0 0.0
    %3940 = vmatpush1.msra.mxu0 0.0
    %3941 = vmatprep.subr.mxu0 0.0
    %3942 = vmatpush1.msra.mxu0 0.0
    %3943 = vmatprep.subr.mxu0 0.0
    %3944 = vmatpush1.msra.mxu0 0.0
    %3945 = vmatprep.mubr.f32.mxu0 0.0
    %3946 = vmatmul.mubr.f32.gmra.mrb[0].mxu0 %v3199
    %v3947 = vpop.f32.mrb[0].mxu0
    %v3948 = vadd.f32 0.0, %v3947
    %v3949 = vpop.f32.mrb[0].mxu0
    %v3950 = vadd.f32 0.0, %v3949
    %3951 = vdwg.mxu0
    %3952 = vmatprep.subr.mxu0 %v170
    %3953 = vmatpush1.msra.mxu0 %v169
    %3954 = vmatprep.subr.mxu0 0.0
    %3955 = vmatpush1.msra.mxu0 0.0
    %3956 = vmatprep.subr.mxu0 0.0
    %3957 = vmatpush1.msra.mxu0 0.0
    %3958 = vmatprep.subr.mxu0 0.0
    %3959 = vmatpush1.msra.mxu0 0.0
    %3960 = vmatprep.subr.mxu0 0.0
    %3961 = vmatpush1.msra.mxu0 0.0
    %3962 = vmatprep.subr.mxu0 0.0
    %3963 = vmatpush1.msra.mxu0 0.0
    %3964 = vmatprep.subr.mxu0 0.0
    %3965 = vmatpush1.msra.mxu0 0.0
    %3966 = vmatprep.subr.mxu0 0.0
    %3967 = vmatpush1.msra.mxu0 0.0
    %3968 = vmatprep.subr.mxu0 0.0
    %3969 = vmatpush1.msra.mxu0 0.0
    %3970 = vmatprep.subr.mxu0 0.0
    %3971 = vmatpush1.msra.mxu0 0.0
    %3972 = vmatprep.subr.mxu0 0.0
    %3973 = vmatpush1.msra.mxu0 0.0
    %3974 = vmatprep.subr.mxu0 0.0
    %3975 = vmatpush1.msra.mxu0 0.0
    %3976 = vmatprep.subr.mxu0 0.0
    %3977 = vmatpush1.msra.mxu0 0.0
    %3978 = vmatprep.subr.mxu0 0.0
    %3979 = vmatpush1.msra.mxu0 0.0
    %3980 = vmatprep.subr.mxu0 0.0
    %3981 = vmatpush1.msra.mxu0 0.0
    %3982 = vmatprep.subr.mxu0 0.0
    %3983 = vmatpush1.msra.mxu0 0.0
    %3984 = vmatprep.subr.mxu0 0.0
    %3985 = vmatpush1.msra.mxu0 0.0
    %3986 = vmatprep.subr.mxu0 0.0
    %3987 = vmatpush1.msra.mxu0 0.0
    %3988 = vmatprep.subr.mxu0 0.0
    %3989 = vmatpush1.msra.mxu0 0.0
    %3990 = vmatprep.subr.mxu0 0.0
    %3991 = vmatpush1.msra.mxu0 0.0
    %3992 = vmatprep.subr.mxu0 0.0
    %3993 = vmatpush1.msra.mxu0 0.0
    %3994 = vmatprep.subr.mxu0 0.0
    %3995 = vmatpush1.msra.mxu0 0.0
    %3996 = vmatprep.subr.mxu0 0.0
    %3997 = vmatpush1.msra.mxu0 0.0
    %3998 = vmatprep.subr.mxu0 0.0
    %3999 = vmatpush1.msra.mxu0 0.0
    %4000 = vmatprep.subr.mxu0 0.0
    %4001 = vmatpush1.msra.mxu0 0.0
    %4002 = vmatprep.subr.mxu0 0.0
    %4003 = vmatpush1.msra.mxu0 0.0
    %4004 = vmatprep.subr.mxu0 0.0
    %4005 = vmatpush1.msra.mxu0 0.0
    %4006 = vmatprep.subr.mxu0 0.0
    %4007 = vmatpush1.msra.mxu0 0.0
    %4008 = vmatprep.subr.mxu0 0.0
    %4009 = vmatpush1.msra.mxu0 0.0
    %4010 = vmatprep.subr.mxu0 0.0
    %4011 = vmatpush1.msra.mxu0 0.0
    %4012 = vmatprep.subr.mxu0 0.0
    %4013 = vmatpush1.msra.mxu0 0.0
    %4014 = vmatprep.subr.mxu0 0.0
    %4015 = vmatpush1.msra.mxu0 0.0
    %4016 = vmatprep.mubr.f32.mxu0 0.0
    %4017 = vmatmul.mubr.f32.gmra.mrb[0].mxu0 %v3199
    %v4018 = vpop.f32.mrb[0].mxu0
    %v4019 = vadd.f32 0.0, %v4018
    %v4020 = vpop.f32.mrb[0].mxu0
    %v4021 = vadd.f32 0.0, %v4020
    %4022 = vdwg.mxu0
    %v4024 = vsel %vm530, %v3880, 0
    %4026 = vmatprep.subr.mxu0 %v160
    %4027 = vmatpush1.msra.mxu0 %v159
    %4028 = vmatprep.subr.mxu0 %v1034
    %4029 = vmatpush1.msra.mxu0 %v1031
    %4030 = vmatprep.subr.mxu0 0.0
    %4031 = vmatpush1.msra.mxu0 0.0
    %4032 = vmatprep.subr.mxu0 0.0
    %4033 = vmatpush1.msra.mxu0 0.0
    %4034 = vmatprep.subr.mxu0 0.0
    %4035 = vmatpush1.msra.mxu0 0.0
    %4036 = vmatprep.subr.mxu0 0.0
    %4037 = vmatpush1.msra.mxu0 0.0
    %4038 = vmatprep.subr.mxu0 0.0
    %4039 = vmatpush1.msra.mxu0 0.0
    %4040 = vmatprep.subr.mxu0 0.0
    %4041 = vmatpush1.msra.mxu0 0.0
    %4042 = vmatprep.subr.mxu0 0.0
    %4043 = vmatpush1.msra.mxu0 0.0
    %4044 = vmatprep.subr.mxu0 0.0
    %4045 = vmatpush1.msra.mxu0 0.0
    %4046 = vmatprep.subr.mxu0 0.0
    %4047 = vmatpush1.msra.mxu0 0.0
    %4048 = vmatprep.subr.mxu0 0.0
    %4049 = vmatpush1.msra.mxu0 0.0
    %4050 = vmatprep.subr.mxu0 0.0
    %4051 = vmatpush1.msra.mxu0 0.0
    %4052 = vmatprep.subr.mxu0 0.0
    %4053 = vmatpush1.msra.mxu0 0.0
    %4054 = vmatprep.subr.mxu0 0.0
    %4055 = vmatpush1.msra.mxu0 0.0
    %4056 = vmatprep.subr.mxu0 0.0
    %4057 = vmatpush1.msra.mxu0 0.0
    %4058 = vmatprep.subr.mxu0 0.0
    %4059 = vmatpush1.msra.mxu0 0.0
    %4060 = vmatprep.subr.mxu0 0.0
    %4061 = vmatpush1.msra.mxu0 0.0
    %4062 = vmatprep.subr.mxu0 0.0
    %4063 = vmatpush1.msra.mxu0 0.0
    %4064 = vmatprep.subr.mxu0 0.0
    %4065 = vmatpush1.msra.mxu0 0.0
    %4066 = vmatprep.subr.mxu0 0.0
    %4067 = vmatpush1.msra.mxu0 0.0
    %4068 = vmatprep.subr.mxu0 0.0
    %4069 = vmatpush1.msra.mxu0 0.0
    %4070 = vmatprep.subr.mxu0 0.0
    %4071 = vmatpush1.msra.mxu0 0.0
    %4072 = vmatprep.subr.mxu0 0.0
    %4073 = vmatpush1.msra.mxu0 0.0
    %4074 = vmatprep.subr.mxu0 0.0
    %4075 = vmatpush1.msra.mxu0 0.0
    %4076 = vmatprep.subr.mxu0 0.0
    %4077 = vmatpush1.msra.mxu0 0.0
    %4078 = vmatprep.subr.mxu0 0.0
    %4079 = vmatpush1.msra.mxu0 0.0
    %4080 = vmatprep.subr.mxu0 0.0
    %4081 = vmatpush1.msra.mxu0 0.0
    %4082 = vmatprep.subr.mxu0 0.0
    %4083 = vmatpush1.msra.mxu0 0.0
    %4084 = vmatprep.subr.mxu0 0.0
    %4085 = vmatpush1.msra.mxu0 0.0
    %4086 = vmatprep.subr.mxu0 0.0
    %4087 = vmatpush1.msra.mxu0 0.0
    %4088 = vmatprep.subr.mxu0 0.0
    %4089 = vmatpush1.msra.mxu0 0.0
    %4090 = vmatprep.mubr.f32.mxu0 0.0
    %4091 = vmatmul.mubr.f32.gmra.mrb[0].mxu0 %v4024
    %v4092 = vpop.f32.mrb[0].mxu0
    %v4093 = vadd.f32 %v3948, %v4092
    %v4094 = vpop.f32.mrb[0].mxu0
    %v4095 = vadd.f32 %v3950, %v4094
    %4096 = vdwg.mxu0
    %4097 = vmatprep.subr.mxu0 %v162
    %4098 = vmatpush1.msra.mxu0 %v161
    %4099 = vmatprep.subr.mxu0 %v1040
    %4100 = vmatpush1.msra.mxu0 %v1037
    %4101 = vmatprep.subr.mxu0 0.0
    %4102 = vmatpush1.msra.mxu0 0.0
    %4103 = vmatprep.subr.mxu0 0.0
    %4104 = vmatpush1.msra.mxu0 0.0
    %4105 = vmatprep.subr.mxu0 0.0
    %4106 = vmatpush1.msra.mxu0 0.0
    %4107 = vmatprep.subr.mxu0 0.0
    %4108 = vmatpush1.msra.mxu0 0.0
    %4109 = vmatprep.subr.mxu0 0.0
    %4110 = vmatpush1.msra.mxu0 0.0
    %4111 = vmatprep.subr.mxu0 0.0
    %4112 = vmatpush1.msra.mxu0 0.0
    %4113 = vmatprep.subr.mxu0 0.0
    %4114 = vmatpush1.msra.mxu0 0.0
    %4115 = vmatprep.subr.mxu0 0.0
    %4116 = vmatpush1.msra.mxu0 0.0
    %4117 = vmatprep.subr.mxu0 0.0
    %4118 = vmatpush1.msra.mxu0 0.0
    %4119 = vmatprep.subr.mxu0 0.0
    %4120 = vmatpush1.msra.mxu0 0.0
    %4121 = vmatprep.subr.mxu0 0.0
    %4122 = vmatpush1.msra.mxu0 0.0
    %4123 = vmatprep.subr.mxu0 0.0
    %4124 = vmatpush1.msra.mxu0 0.0
    %4125 = vmatprep.subr.mxu0 0.0
    %4126 = vmatpush1.msra.mxu0 0.0
    %4127 = vmatprep.subr.mxu0 0.0
    %4128 = vmatpush1.msra.mxu0 0.0
    %4129 = vmatprep.subr.mxu0 0.0
    %4130 = vmatpush1.msra.mxu0 0.0
    %4131 = vmatprep.subr.mxu0 0.0
    %4132 = vmatpush1.msra.mxu0 0.0
    %4133 = vmatprep.subr.mxu0 0.0
    %4134 = vmatpush1.msra.mxu0 0.0
    %4135 = vmatprep.subr.mxu0 0.0
    %4136 = vmatpush1.msra.mxu0 0.0
    %4137 = vmatprep.subr.mxu0 0.0
    %4138 = vmatpush1.msra.mxu0 0.0
    %4139 = vmatprep.subr.mxu0 0.0
    %4140 = vmatpush1.msra.mxu0 0.0
    %4141 = vmatprep.subr.mxu0 0.0
    %4142 = vmatpush1.msra.mxu0 0.0
    %4143 = vmatprep.subr.mxu0 0.0
    %4144 = vmatpush1.msra.mxu0 0.0
    %4145 = vmatprep.subr.mxu0 0.0
    %4146 = vmatpush1.msra.mxu0 0.0
    %4147 = vmatprep.subr.mxu0 0.0
    %4148 = vmatpush1.msra.mxu0 0.0
    %4149 = vmatprep.subr.mxu0 0.0
    %4150 = vmatpush1.msra.mxu0 0.0
    %4151 = vmatprep.subr.mxu0 0.0
    %4152 = vmatpush1.msra.mxu0 0.0
    %4153 = vmatprep.subr.mxu0 0.0
    %4154 = vmatpush1.msra.mxu0 0.0
    %4155 = vmatprep.subr.mxu0 0.0
    %4156 = vmatpush1.msra.mxu0 0.0
    %4157 = vmatprep.subr.mxu0 0.0
    %4158 = vmatpush1.msra.mxu0 0.0
    %4159 = vmatprep.subr.mxu0 0.0
    %4160 = vmatpush1.msra.mxu0 0.0
    %4161 = vmatprep.mubr.f32.mxu0 0.0
    %4162 = vmatmul.mubr.f32.gmra.mrb[0].mxu0 %v4024
    %v4163 = vpop.f32.mrb[0].mxu0
    %v4164 = vadd.f32 %v4019, %v4163
    %v4165 = vpop.f32.mrb[0].mxu0
    %v4166 = vadd.f32 %v4021, %v4165
    %4167 = vdwg.mxu0
    %v4168 = vadd.f32 %v4093, %v1188
    %v4169 = vadd.f32 %v4095, %v1192
    %v4170 = vadd.f32 %v4164, %v1196
    %v4171 = vadd.f32 %v4166, %v1200
    %v4172 = vtanh.pop %v4168
    %v4173 = vtanh.pop %v4169
    %v4174 = vadd.f32 %v4170, %v4171
    %v4175 = vxor.u32 %v4174, 2147483648
    %v4176 = vmul.f32 %v4175, 1.442695
    %v4177 = vpow.pop %v4176
    %v4178 = vadd.f32 %v4177, 1.0
    %v4179 = vrcp.pop %v4178
    %v4180 = vmul.f32 1.0, %v4179
    %v4181 = vsub.f32 %v4173, %v4172
    %v4182 = vmul.f32 %v4180, %v4181
    %v4183 = vadd.f32 %v4172, %v4182
    %v4185 = vsel %vm882, %v4183, 0
    %4187 = vmatprep.subr.mxu0 0.0
    %4188 = vmatpush1.msra.mxu0 %v172
    %4189 = vmatprep.subr.mxu0 0.0
    %4190 = vmatpush1.msra.mxu0 0.0
    %4191 = vmatprep.subr.mxu0 0.0
    %4192 = vmatpush1.msra.mxu0 0.0
    %4193 = vmatprep.subr.mxu0 0.0
    %4194 = vmatpush1.msra.mxu0 0.0
    %4195 = vmatprep.subr.mxu0 0.0
    %4196 = vmatpush1.msra.mxu0 0.0
    %4197 = vmatprep.subr.mxu0 0.0
    %4198 = vmatpush1.msra.mxu0 0.0
    %4199 = vmatprep.subr.mxu0 0.0
    %4200 = vmatpush1.msra.mxu0 0.0
    %4201 = vmatprep.subr.mxu0 0.0
    %4202 = vmatpush1.msra.mxu0 0.0
    %4203 = vmatprep.subr.mxu0 0.0
    %4204 = vmatpush1.msra.mxu0 0.0
    %4205 = vmatprep.subr.mxu0 0.0
    %4206 = vmatpush1.msra.mxu0 0.0
    %4207 = vmatprep.subr.mxu0 0.0
    %4208 = vmatpush1.msra.mxu0 0.0
    %4209 = vmatprep.subr.mxu0 0.0
    %4210 = vmatpush1.msra.mxu0 0.0
    %4211 = vmatprep.subr.mxu0 0.0
    %4212 = vmatpush1.msra.mxu0 0.0
    %4213 = vmatprep.subr.mxu0 0.0
    %4214 = vmatpush1.msra.mxu0 0.0
    %4215 = vmatprep.subr.mxu0 0.0
    %4216 = vmatpush1.msra.mxu0 0.0
    %4217 = vmatprep.subr.mxu0 0.0
    %4218 = vmatpush1.msra.mxu0 0.0
    %4219 = vmatprep.subr.mxu0 0.0
    %4220 = vmatpush1.msra.mxu0 0.0
    %4221 = vmatprep.subr.mxu0 0.0
    %4222 = vmatpush1.msra.mxu0 0.0
    %4223 = vmatprep.subr.mxu0 0.0
    %4224 = vmatpush1.msra.mxu0 0.0
    %4225 = vmatprep.subr.mxu0 0.0
    %4226 = vmatpush1.msra.mxu0 0.0
    %4227 = vmatprep.subr.mxu0 0.0
    %4228 = vmatpush1.msra.mxu0 0.0
    %4229 = vmatprep.subr.mxu0 0.0
    %4230 = vmatpush1.msra.mxu0 0.0
    %4231 = vmatprep.subr.mxu0 0.0
    %4232 = vmatpush1.msra.mxu0 0.0
    %4233 = vmatprep.subr.mxu0 0.0
    %4234 = vmatpush1.msra.mxu0 0.0
    %4235 = vmatprep.subr.mxu0 0.0
    %4236 = vmatpush1.msra.mxu0 0.0
    %4237 = vmatprep.subr.mxu0 0.0
    %4238 = vmatpush1.msra.mxu0 0.0
    %4239 = vmatprep.subr.mxu0 0.0
    %4240 = vmatpush1.msra.mxu0 0.0
    %4241 = vmatprep.subr.mxu0 0.0
    %4242 = vmatpush1.msra.mxu0 0.0
    %4243 = vmatprep.subr.mxu0 0.0
    %4244 = vmatpush1.msra.mxu0 0.0
    %4245 = vmatprep.subr.mxu0 0.0
    %4246 = vmatpush1.msra.mxu0 0.0
    %4247 = vmatprep.subr.mxu0 0.0
    %4248 = vmatpush1.msra.mxu0 0.0
    %4249 = vmatprep.subr.mxu0 0.0
    %4250 = vmatpush1.msra.mxu0 0.0
    %4251 = vmatprep.mubr.f32.mxu0 0.0
    %4252 = vmatmul.mubr.f32.gmra.mrb[0].mxu0 %v4185
    %v4253 = vpop.f32.mrb[0].mxu0
    %v4254 = vadd.f32 %v1225, %v4253
    %v4255 = vpop.f32.mrb[0].mxu0
    %4256 = vdwg.mxu0
    %s4257 = scalar_lea.vmem [#allocation14], 6
    %4258 = vst [vmem:[%s4257] sm:$0x3] %v4254
    %s4259 = scalar_lea.vmem %s0, 8
    %v4260 = vld [vmem:[%s4259] sm:$0x3]
    %4261 = vmatprep.subr.mxu0 %v134
    %4262 = vmatpush1.msra.mxu0 %v133
    %4263 = vmatprep.subr.mxu0 %v184
    %4264 = vmatpush1.msra.mxu0 %v181
    %4265 = vmatprep.subr.mxu0 0.0
    %4266 = vmatpush1.msra.mxu0 0.0
    %4267 = vmatprep.subr.mxu0 0.0
    %4268 = vmatpush1.msra.mxu0 0.0
    %4269 = vmatprep.subr.mxu0 0.0
    %4270 = vmatpush1.msra.mxu0 0.0
    %4271 = vmatprep.subr.mxu0 0.0
    %4272 = vmatpush1.msra.mxu0 0.0
    %4273 = vmatprep.subr.mxu0 0.0
    %4274 = vmatpush1.msra.mxu0 0.0
    %4275 = vmatprep.subr.mxu0 0.0
    %4276 = vmatpush1.msra.mxu0 0.0
    %4277 = vmatprep.subr.mxu0 0.0
    %4278 = vmatpush1.msra.mxu0 0.0
    %4279 = vmatprep.subr.mxu0 0.0
    %4280 = vmatpush1.msra.mxu0 0.0
    %4281 = vmatprep.subr.mxu0 0.0
    %4282 = vmatpush1.msra.mxu0 0.0
    %4283 = vmatprep.subr.mxu0 0.0
    %4284 = vmatpush1.msra.mxu0 0.0
    %4285 = vmatprep.subr.mxu0 0.0
    %4286 = vmatpush1.msra.mxu0 0.0
    %4287 = vmatprep.subr.mxu0 0.0
    %4288 = vmatpush1.msra.mxu0 0.0
    %4289 = vmatprep.subr.mxu0 0.0
    %4290 = vmatpush1.msra.mxu0 0.0
    %4291 = vmatprep.subr.mxu0 0.0
    %4292 = vmatpush1.msra.mxu0 0.0
    %4293 = vmatprep.subr.mxu0 0.0
    %4294 = vmatpush1.msra.mxu0 0.0
    %4295 = vmatprep.subr.mxu0 0.0
    %4296 = vmatpush1.msra.mxu0 0.0
    %4297 = vmatprep.subr.mxu0 0.0
    %4298 = vmatpush1.msra.mxu0 0.0
    %4299 = vmatprep.subr.mxu0 0.0
    %4300 = vmatpush1.msra.mxu0 0.0
    %4301 = vmatprep.subr.mxu0 0.0
    %4302 = vmatpush1.msra.mxu0 0.0
    %4303 = vmatprep.subr.mxu0 0.0
    %4304 = vmatpush1.msra.mxu0 0.0
    %4305 = vmatprep.subr.mxu0 0.0
    %4306 = vmatpush1.msra.mxu0 0.0
    %4307 = vmatprep.subr.mxu0 0.0
    %4308 = vmatpush1.msra.mxu0 0.0
    %4309 = vmatprep.subr.mxu0 0.0
    %4310 = vmatpush1.msra.mxu0 0.0
    %4311 = vmatprep.subr.mxu0 0.0
    %4312 = vmatpush1.msra.mxu0 0.0
    %4313 = vmatprep.subr.mxu0 0.0
    %4314 = vmatpush1.msra.mxu0 0.0
    %4315 = vmatprep.subr.mxu0 0.0
    %4316 = vmatpush1.msra.mxu0 0.0
    %4317 = vmatprep.subr.mxu0 0.0
    %4318 = vmatpush1.msra.mxu0 0.0
    %4319 = vmatprep.subr.mxu0 0.0
    %4320 = vmatpush1.msra.mxu0 0.0
    %4321 = vmatprep.subr.mxu0 0.0
    %4322 = vmatpush1.msra.mxu0 0.0
    %4323 = vmatprep.subr.mxu0 0.0
    %4324 = vmatpush1.msra.mxu0 0.0
    %4325 = vmatprep.mubr.f32.mxu0 0.0
    %4326 = vmatmul.mubr.f32.gmra.mrb[0].mxu0 %v3721
    %v4327 = vpop.f32.mrb[0].mxu0
    %v4328 = vadd.f32 0.0, %v4327
    %v4329 = vpop.f32.mrb[0].mxu0
    %v4330 = vadd.f32 0.0, %v4329
    %4331 = vdwg.mxu0
    %4332 = vmatprep.subr.mxu0 %v136
    %4333 = vmatpush1.msra.mxu0 %v135
    %4334 = vmatprep.subr.mxu0 %v190
    %4335 = vmatpush1.msra.mxu0 %v187
    %4336 = vmatprep.subr.mxu0 0.0
    %4337 = vmatpush1.msra.mxu0 0.0
    %4338 = vmatprep.subr.mxu0 0.0
    %4339 = vmatpush1.msra.mxu0 0.0
    %4340 = vmatprep.subr.mxu0 0.0
    %4341 = vmatpush1.msra.mxu0 0.0
    %4342 = vmatprep.subr.mxu0 0.0
    %4343 = vmatpush1.msra.mxu0 0.0
    %4344 = vmatprep.subr.mxu0 0.0
    %4345 = vmatpush1.msra.mxu0 0.0
    %4346 = vmatprep.subr.mxu0 0.0
    %4347 = vmatpush1.msra.mxu0 0.0
    %4348 = vmatprep.subr.mxu0 0.0
    %4349 = vmatpush1.msra.mxu0 0.0
    %4350 = vmatprep.subr.mxu0 0.0
    %4351 = vmatpush1.msra.mxu0 0.0
    %4352 = vmatprep.subr.mxu0 0.0
    %4353 = vmatpush1.msra.mxu0 0.0
    %4354 = vmatprep.subr.mxu0 0.0
    %4355 = vmatpush1.msra.mxu0 0.0
    %4356 = vmatprep.subr.mxu0 0.0
    %4357 = vmatpush1.msra.mxu0 0.0
    %4358 = vmatprep.subr.mxu0 0.0
    %4359 = vmatpush1.msra.mxu0 0.0
    %4360 = vmatprep.subr.mxu0 0.0
    %4361 = vmatpush1.msra.mxu0 0.0
    %4362 = vmatprep.subr.mxu0 0.0
    %4363 = vmatpush1.msra.mxu0 0.0
    %4364 = vmatprep.subr.mxu0 0.0
    %4365 = vmatpush1.msra.mxu0 0.0
    %4366 = vmatprep.subr.mxu0 0.0
    %4367 = vmatpush1.msra.mxu0 0.0
    %4368 = vmatprep.subr.mxu0 0.0
    %4369 = vmatpush1.msra.mxu0 0.0
    %4370 = vmatprep.subr.mxu0 0.0
    %4371 = vmatpush1.msra.mxu0 0.0
    %4372 = vmatprep.subr.mxu0 0.0
    %4373 = vmatpush1.msra.mxu0 0.0
    %4374 = vmatprep.subr.mxu0 0.0
    %4375 = vmatpush1.msra.mxu0 0.0
    %4376 = vmatprep.subr.mxu0 0.0
    %4377 = vmatpush1.msra.mxu0 0.0
    %4378 = vmatprep.subr.mxu0 0.0
    %4379 = vmatpush1.msra.mxu0 0.0
    %4380 = vmatprep.subr.mxu0 0.0
    %4381 = vmatpush1.msra.mxu0 0.0
    %4382 = vmatprep.subr.mxu0 0.0
    %4383 = vmatpush1.msra.mxu0 0.0
    %4384 = vmatprep.subr.mxu0 0.0
    %4385 = vmatpush1.msra.mxu0 0.0
    %4386 = vmatprep.subr.mxu0 0.0
    %4387 = vmatpush1.msra.mxu0 0.0
    %4388 = vmatprep.subr.mxu0 0.0
    %4389 = vmatpush1.msra.mxu0 0.0
    %4390 = vmatprep.subr.mxu0 0.0
    %4391 = vmatpush1.msra.mxu0 0.0
    %4392 = vmatprep.subr.mxu0 0.0
    %4393 = vmatpush1.msra.mxu0 0.0
    %4394 = vmatprep.subr.mxu0 0.0
    %4395 = vmatpush1.msra.mxu0 0.0
    %4396 = vmatprep.mubr.f32.mxu0 0.0
    %4397 = vmatmul.mubr.f32.gmra.mrb[0].mxu0 %v3721
    %v4398 = vpop.f32.mrb[0].mxu0
    %v4399 = vadd.f32 0.0, %v4398
    %v4400 = vpop.f32.mrb[0].mxu0
    %v4401 = vadd.f32 0.0, %v4400
    %4402 = vdwg.mxu0
    %v4404 = vsel %vm338, %v4260, 0
    %4406 = vmatprep.subr.mxu0 %v345
    %4407 = vmatpush1.msra.mxu0 %v343
    %4408 = vmatprep.subr.mxu0 0.0
    %4409 = vmatpush1.msra.mxu0 0.0
    %4410 = vmatprep.subr.mxu0 0.0
    %4411 = vmatpush1.msra.mxu0 0.0
    %4412 = vmatprep.subr.mxu0 0.0
    %4413 = vmatpush1.msra.mxu0 0.0
    %4414 = vmatprep.subr.mxu0 0.0
    %4415 = vmatpush1.msra.mxu0 0.0
    %4416 = vmatprep.subr.mxu0 0.0
    %4417 = vmatpush1.msra.mxu0 0.0
    %4418 = vmatprep.subr.mxu0 0.0
    %4419 = vmatpush1.msra.mxu0 0.0
    %4420 = vmatprep.subr.mxu0 0.0
    %4421 = vmatpush1.msra.mxu0 0.0
    %4422 = vmatprep.subr.mxu0 0.0
    %4423 = vmatpush1.msra.mxu0 0.0
    %4424 = vmatprep.subr.mxu0 0.0
    %4425 = vmatpush1.msra.mxu0 0.0
    %4426 = vmatprep.subr.mxu0 0.0
    %4427 = vmatpush1.msra.mxu0 0.0
    %4428 = vmatprep.subr.mxu0 0.0
    %4429 = vmatpush1.msra.mxu0 0.0
    %4430 = vmatprep.subr.mxu0 0.0
    %4431 = vmatpush1.msra.mxu0 0.0
    %4432 = vmatprep.subr.mxu0 0.0
    %4433 = vmatpush1.msra.mxu0 0.0
    %4434 = vmatprep.subr.mxu0 0.0
    %4435 = vmatpush1.msra.mxu0 0.0
    %4436 = vmatprep.subr.mxu0 0.0
    %4437 = vmatpush1.msra.mxu0 0.0
    %4438 = vmatprep.subr.mxu0 0.0
    %4439 = vmatpush1.msra.mxu0 0.0
    %4440 = vmatprep.subr.mxu0 0.0
    %4441 = vmatpush1.msra.mxu0 0.0
    %4442 = vmatprep.subr.mxu0 0.0
    %4443 = vmatpush1.msra.mxu0 0.0
    %4444 = vmatprep.subr.mxu0 0.0
    %4445 = vmatpush1.msra.mxu0 0.0
    %4446 = vmatprep.subr.mxu0 0.0
    %4447 = vmatpush1.msra.mxu0 0.0
    %4448 = vmatprep.subr.mxu0 0.0
    %4449 = vmatpush1.msra.mxu0 0.0
    %4450 = vmatprep.subr.mxu0 0.0
    %4451 = vmatpush1.msra.mxu0 0.0
    %4452 = vmatprep.subr.mxu0 0.0
    %4453 = vmatpush1.msra.mxu0 0.0
    %4454 = vmatprep.subr.mxu0 0.0
    %4455 = vmatpush1.msra.mxu0 0.0
    %4456 = vmatprep.subr.mxu0 0.0
    %4457 = vmatpush1.msra.mxu0 0.0
    %4458 = vmatprep.subr.mxu0 0.0
    %4459 = vmatpush1.msra.mxu0 0.0
    %4460 = vmatprep.subr.mxu0 0.0
    %4461 = vmatpush1.msra.mxu0 0.0
    %4462 = vmatprep.subr.mxu0 0.0
    %4463 = vmatpush1.msra.mxu0 0.0
    %4464 = vmatprep.subr.mxu0 0.0
    %4465 = vmatpush1.msra.mxu0 0.0
    %4466 = vmatprep.subr.mxu0 0.0
    %4467 = vmatpush1.msra.mxu0 0.0
    %4468 = vmatprep.subr.mxu0 0.0
    %4469 = vmatpush1.msra.mxu0 0.0
    %4470 = vmatprep.mubr.f32.mxu0 0.0
    %4471 = vmatmul.mubr.f32.gmra.mrb[0].mxu0 %v4404
    %v4472 = vpop.f32.mrb[0].mxu0
    %v4473 = vadd.f32 %v4328, %v4472
    %v4474 = vpop.f32.mrb[0].mxu0
    %v4475 = vadd.f32 %v4330, %v4474
    %4476 = vdwg.mxu0
    %4477 = vmatprep.subr.mxu0 %v349
    %4478 = vmatpush1.msra.mxu0 %v347
    %4479 = vmatprep.subr.mxu0 0.0
    %4480 = vmatpush1.msra.mxu0 0.0
    %4481 = vmatprep.subr.mxu0 0.0
    %4482 = vmatpush1.msra.mxu0 0.0
    %4483 = vmatprep.subr.mxu0 0.0
    %4484 = vmatpush1.msra.mxu0 0.0
    %4485 = vmatprep.subr.mxu0 0.0
    %4486 = vmatpush1.msra.mxu0 0.0
    %4487 = vmatprep.subr.mxu0 0.0
    %4488 = vmatpush1.msra.mxu0 0.0
    %4489 = vmatprep.subr.mxu0 0.0
    %4490 = vmatpush1.msra.mxu0 0.0
    %4491 = vmatprep.subr.mxu0 0.0
    %4492 = vmatpush1.msra.mxu0 0.0
    %4493 = vmatprep.subr.mxu0 0.0
    %4494 = vmatpush1.msra.mxu0 0.0
    %4495 = vmatprep.subr.mxu0 0.0
    %4496 = vmatpush1.msra.mxu0 0.0
    %4497 = vmatprep.subr.mxu0 0.0
    %4498 = vmatpush1.msra.mxu0 0.0
    %4499 = vmatprep.subr.mxu0 0.0
    %4500 = vmatpush1.msra.mxu0 0.0
    %4501 = vmatprep.subr.mxu0 0.0
    %4502 = vmatpush1.msra.mxu0 0.0
    %4503 = vmatprep.subr.mxu0 0.0
    %4504 = vmatpush1.msra.mxu0 0.0
    %4505 = vmatprep.subr.mxu0 0.0
    %4506 = vmatpush1.msra.mxu0 0.0
    %4507 = vmatprep.subr.mxu0 0.0
    %4508 = vmatpush1.msra.mxu0 0.0
    %4509 = vmatprep.subr.mxu0 0.0
    %4510 = vmatpush1.msra.mxu0 0.0
    %4511 = vmatprep.subr.mxu0 0.0
    %4512 = vmatpush1.msra.mxu0 0.0
    %4513 = vmatprep.subr.mxu0 0.0
    %4514 = vmatpush1.msra.mxu0 0.0
    %4515 = vmatprep.subr.mxu0 0.0
    %4516 = vmatpush1.msra.mxu0 0.0
    %4517 = vmatprep.subr.mxu0 0.0
    %4518 = vmatpush1.msra.mxu0 0.0
    %4519 = vmatprep.subr.mxu0 0.0
    %4520 = vmatpush1.msra.mxu0 0.0
    %4521 = vmatprep.subr.mxu0 0.0
    %4522 = vmatpush1.msra.mxu0 0.0
    %4523 = vmatprep.subr.mxu0 0.0
    %4524 = vmatpush1.msra.mxu0 0.0
    %4525 = vmatprep.subr.mxu0 0.0
    %4526 = vmatpush1.msra.mxu0 0.0
    %4527 = vmatprep.subr.mxu0 0.0
    %4528 = vmatpush1.msra.mxu0 0.0
    %4529 = vmatprep.subr.mxu0 0.0
    %4530 = vmatpush1.msra.mxu0 0.0
    %4531 = vmatprep.subr.mxu0 0.0
    %4532 = vmatpush1.msra.mxu0 0.0
    %4533 = vmatprep.subr.mxu0 0.0
    %4534 = vmatpush1.msra.mxu0 0.0
    %4535 = vmatprep.subr.mxu0 0.0
    %4536 = vmatpush1.msra.mxu0 0.0
    %4537 = vmatprep.subr.mxu0 0.0
    %4538 = vmatpush1.msra.mxu0 0.0
    %4539 = vmatprep.subr.mxu0 0.0
    %4540 = vmatpush1.msra.mxu0 0.0
    %4541 = vmatprep.mubr.f32.mxu0 0.0
    %4542 = vmatmul.mubr.f32.gmra.mrb[0].mxu0 %v4404
    %v4543 = vpop.f32.mrb[0].mxu0
    %v4544 = vadd.f32 %v4399, %v4543
    %v4545 = vpop.f32.mrb[0].mxu0
    %v4546 = vadd.f32 %v4401, %v4545
    %4547 = vdwg.mxu0
    %v4548 = vadd.f32 %v4473, %v497
    %v4549 = vadd.f32 %v4475, %v501
    %v4550 = vadd.f32 %v4544, %v505
    %v4551 = vadd.f32 %v4546, %v509
    %v4552 = vtanh.pop %v4548
    %v4553 = vtanh.pop %v4549
    %v4554 = vadd.f32 %v4550, %v4551
    %v4555 = vxor.u32 %v4554, 2147483648
    %v4556 = vmul.f32 %v4555, 1.442695
    %v4557 = vpow.pop %v4556
    %v4558 = vadd.f32 %v4557, 1.0
    %v4559 = vrcp.pop %v4558
    %v4560 = vmul.f32 1.0, %v4559
    %v4561 = vsub.f32 %v4553, %v4552
    %v4562 = vmul.f32 %v4560, %v4561
    %v4563 = vadd.f32 %v4552, %v4562
    %4564 = vmatprep.subr.mxu0 %v151
    %4565 = vmatpush1.msra.mxu0 %v150
    %4566 = vmatprep.subr.mxu0 %v538
    %4567 = vmatpush1.msra.mxu0 %v535
    %4568 = vmatprep.subr.mxu0 0.0
    %4569 = vmatpush1.msra.mxu0 0.0
    %4570 = vmatprep.subr.mxu0 0.0
    %4571 = vmatpush1.msra.mxu0 0.0
    %4572 = vmatprep.subr.mxu0 0.0
    %4573 = vmatpush1.msra.mxu0 0.0
    %4574 = vmatprep.subr.mxu0 0.0
    %4575 = vmatpush1.msra.mxu0 0.0
    %4576 = vmatprep.subr.mxu0 0.0
    %4577 = vmatpush1.msra.mxu0 0.0
    %4578 = vmatprep.subr.mxu0 0.0
    %4579 = vmatpush1.msra.mxu0 0.0
    %4580 = vmatprep.subr.mxu0 0.0
    %4581 = vmatpush1.msra.mxu0 0.0
    %4582 = vmatprep.subr.mxu0 0.0
    %4583 = vmatpush1.msra.mxu0 0.0
    %4584 = vmatprep.subr.mxu0 0.0
    %4585 = vmatpush1.msra.mxu0 0.0
    %4586 = vmatprep.subr.mxu0 0.0
    %4587 = vmatpush1.msra.mxu0 0.0
    %4588 = vmatprep.subr.mxu0 0.0
    %4589 = vmatpush1.msra.mxu0 0.0
    %4590 = vmatprep.subr.mxu0 0.0
    %4591 = vmatpush1.msra.mxu0 0.0
    %4592 = vmatprep.subr.mxu0 0.0
    %4593 = vmatpush1.msra.mxu0 0.0
    %4594 = vmatprep.subr.mxu0 0.0
    %4595 = vmatpush1.msra.mxu0 0.0
    %4596 = vmatprep.subr.mxu0 0.0
    %4597 = vmatpush1.msra.mxu0 0.0
    %4598 = vmatprep.subr.mxu0 0.0
    %4599 = vmatpush1.msra.mxu0 0.0
    %4600 = vmatprep.subr.mxu0 0.0
    %4601 = vmatpush1.msra.mxu0 0.0
    %4602 = vmatprep.subr.mxu0 0.0
    %4603 = vmatpush1.msra.mxu0 0.0
    %4604 = vmatprep.subr.mxu0 0.0
    %4605 = vmatpush1.msra.mxu0 0.0
    %4606 = vmatprep.subr.mxu0 0.0
    %4607 = vmatpush1.msra.mxu0 0.0
    %4608 = vmatprep.subr.mxu0 0.0
    %4609 = vmatpush1.msra.mxu0 0.0
    %4610 = vmatprep.subr.mxu0 0.0
    %4611 = vmatpush1.msra.mxu0 0.0
    %4612 = vmatprep.subr.mxu0 0.0
    %4613 = vmatpush1.msra.mxu0 0.0
    %4614 = vmatprep.subr.mxu0 0.0
    %4615 = vmatpush1.msra.mxu0 0.0
    %4616 = vmatprep.subr.mxu0 0.0
    %4617 = vmatpush1.msra.mxu0 0.0
    %4618 = vmatprep.subr.mxu0 0.0
    %4619 = vmatpush1.msra.mxu0 0.0
    %4620 = vmatprep.subr.mxu0 0.0
    %4621 = vmatpush1.msra.mxu0 0.0
    %4622 = vmatprep.subr.mxu0 0.0
    %4623 = vmatpush1.msra.mxu0 0.0
    %4624 = vmatprep.subr.mxu0 0.0
    %4625 = vmatpush1.msra.mxu0 0.0
    %4626 = vmatprep.subr.mxu0 0.0
    %4627 = vmatpush1.msra.mxu0 0.0
    %4628 = vmatprep.mubr.f32.mxu0 0.0
    %4629 = vmatmul.mubr.f32.gmra.mrb[0].mxu0 %v4024
    %v4630 = vpop.f32.mrb[0].mxu0
    %v4631 = vadd.f32 0.0, %v4630
    %v4632 = vpop.f32.mrb[0].mxu0
    %v4633 = vadd.f32 0.0, %v4632
    %4634 = vdwg.mxu0
    %4635 = vmatprep.subr.mxu0 %v153
    %4636 = vmatpush1.msra.mxu0 %v152
    %4637 = vmatprep.subr.mxu0 %v544
    %4638 = vmatpush1.msra.mxu0 %v541
    %4639 = vmatprep.subr.mxu0 0.0
    %4640 = vmatpush1.msra.mxu0 0.0
    %4641 = vmatprep.subr.mxu0 0.0
    %4642 = vmatpush1.msra.mxu0 0.0
    %4643 = vmatprep.subr.mxu0 0.0
    %4644 = vmatpush1.msra.mxu0 0.0
    %4645 = vmatprep.subr.mxu0 0.0
    %4646 = vmatpush1.msra.mxu0 0.0
    %4647 = vmatprep.subr.mxu0 0.0
    %4648 = vmatpush1.msra.mxu0 0.0
    %4649 = vmatprep.subr.mxu0 0.0
    %4650 = vmatpush1.msra.mxu0 0.0
    %4651 = vmatprep.subr.mxu0 0.0
    %4652 = vmatpush1.msra.mxu0 0.0
    %4653 = vmatprep.subr.mxu0 0.0
    %4654 = vmatpush1.msra.mxu0 0.0
    %4655 = vmatprep.subr.mxu0 0.0
    %4656 = vmatpush1.msra.mxu0 0.0
    %4657 = vmatprep.subr.mxu0 0.0
    %4658 = vmatpush1.msra.mxu0 0.0
    %4659 = vmatprep.subr.mxu0 0.0
    %4660 = vmatpush1.msra.mxu0 0.0
    %4661 = vmatprep.subr.mxu0 0.0
    %4662 = vmatpush1.msra.mxu0 0.0
    %4663 = vmatprep.subr.mxu0 0.0
    %4664 = vmatpush1.msra.mxu0 0.0
    %4665 = vmatprep.subr.mxu0 0.0
    %4666 = vmatpush1.msra.mxu0 0.0
    %4667 = vmatprep.subr.mxu0 0.0
    %4668 = vmatpush1.msra.mxu0 0.0
    %4669 = vmatprep.subr.mxu0 0.0
    %4670 = vmatpush1.msra.mxu0 0.0
    %4671 = vmatprep.subr.mxu0 0.0
    %4672 = vmatpush1.msra.mxu0 0.0
    %4673 = vmatprep.subr.mxu0 0.0
    %4674 = vmatpush1.msra.mxu0 0.0
    %4675 = vmatprep.subr.mxu0 0.0
    %4676 = vmatpush1.msra.mxu0 0.0
    %4677 = vmatprep.subr.mxu0 0.0
    %4678 = vmatpush1.msra.mxu0 0.0
    %4679 = vmatprep.subr.mxu0 0.0
    %4680 = vmatpush1.msra.mxu0 0.0
    %4681 = vmatprep.subr.mxu0 0.0
    %4682 = vmatpush1.msra.mxu0 0.0
    %4683 = vmatprep.subr.mxu0 0.0
    %4684 = vmatpush1.msra.mxu0 0.0
    %4685 = vmatprep.subr.mxu0 0.0
    %4686 = vmatpush1.msra.mxu0 0.0
    %4687 = vmatprep.subr.mxu0 0.0
    %4688 = vmatpush1.msra.mxu0 0.0
    %4689 = vmatprep.subr.mxu0 0.0
    %4690 = vmatpush1.msra.mxu0 0.0
    %4691 = vmatprep.subr.mxu0 0.0
    %4692 = vmatpush1.msra.mxu0 0.0
    %4693 = vmatprep.subr.mxu0 0.0
    %4694 = vmatpush1.msra.mxu0 0.0
    %4695 = vmatprep.subr.mxu0 0.0
    %4696 = vmatpush1.msra.mxu0 0.0
    %4697 = vmatprep.subr.mxu0 0.0
    %4698 = vmatpush1.msra.mxu0 0.0
    %4699 = vmatprep.mubr.f32.mxu0 0.0
    %4700 = vmatmul.mubr.f32.gmra.mrb[0].mxu0 %v4024
    %v4701 = vpop.f32.mrb[0].mxu0
    %v4702 = vadd.f32 0.0, %v4701
    %v4703 = vpop.f32.mrb[0].mxu0
    %v4704 = vadd.f32 0.0, %v4703
    %4705 = vdwg.mxu0
    %v4707 = vsel %vm175, %v4563, 0
    %4709 = vmatprep.subr.mxu0 %v143
    %4710 = vmatpush1.msra.mxu0 %v142
    %4711 = vmatprep.subr.mxu0 %v695
    %4712 = vmatpush1.msra.mxu0 %v692
    %4713 = vmatprep.subr.mxu0 0.0
    %4714 = vmatpush1.msra.mxu0 0.0
    %4715 = vmatprep.subr.mxu0 0.0
    %4716 = vmatpush1.msra.mxu0 0.0
    %4717 = vmatprep.subr.mxu0 0.0
    %4718 = vmatpush1.msra.mxu0 0.0
    %4719 = vmatprep.subr.mxu0 0.0
    %4720 = vmatpush1.msra.mxu0 0.0
    %4721 = vmatprep.subr.mxu0 0.0
    %4722 = vmatpush1.msra.mxu0 0.0
    %4723 = vmatprep.subr.mxu0 0.0
    %4724 = vmatpush1.msra.mxu0 0.0
    %4725 = vmatprep.subr.mxu0 0.0
    %4726 = vmatpush1.msra.mxu0 0.0
    %4727 = vmatprep.subr.mxu0 0.0
    %4728 = vmatpush1.msra.mxu0 0.0
    %4729 = vmatprep.subr.mxu0 0.0
    %4730 = vmatpush1.msra.mxu0 0.0
    %4731 = vmatprep.subr.mxu0 0.0
    %4732 = vmatpush1.msra.mxu0 0.0
    %4733 = vmatprep.subr.mxu0 0.0
    %4734 = vmatpush1.msra.mxu0 0.0
    %4735 = vmatprep.subr.mxu0 0.0
    %4736 = vmatpush1.msra.mxu0 0.0
    %4737 = vmatprep.subr.mxu0 0.0
    %4738 = vmatpush1.msra.mxu0 0.0
    %4739 = vmatprep.subr.mxu0 0.0
    %4740 = vmatpush1.msra.mxu0 0.0
    %4741 = vmatprep.subr.mxu0 0.0
    %4742 = vmatpush1.msra.mxu0 0.0
    %4743 = vmatprep.subr.mxu0 0.0
    %4744 = vmatpush1.msra.mxu0 0.0
    %4745 = vmatprep.subr.mxu0 0.0
    %4746 = vmatpush1.msra.mxu0 0.0
    %4747 = vmatprep.subr.mxu0 0.0
    %4748 = vmatpush1.msra.mxu0 0.0
    %4749 = vmatprep.subr.mxu0 0.0
    %4750 = vmatpush1.msra.mxu0 0.0
    %4751 = vmatprep.subr.mxu0 0.0
    %4752 = vmatpush1.msra.mxu0 0.0
    %4753 = vmatprep.subr.mxu0 0.0
    %4754 = vmatpush1.msra.mxu0 0.0
    %4755 = vmatprep.subr.mxu0 0.0
    %4756 = vmatpush1.msra.mxu0 0.0
    %4757 = vmatprep.subr.mxu0 0.0
    %4758 = vmatpush1.msra.mxu0 0.0
    %4759 = vmatprep.subr.mxu0 0.0
    %4760 = vmatpush1.msra.mxu0 0.0
    %4761 = vmatprep.subr.mxu0 0.0
    %4762 = vmatpush1.msra.mxu0 0.0
    %4763 = vmatprep.subr.mxu0 0.0
    %4764 = vmatpush1.msra.mxu0 0.0
    %4765 = vmatprep.subr.mxu0 0.0
    %4766 = vmatpush1.msra.mxu0 0.0
    %4767 = vmatprep.subr.mxu0 0.0
    %4768 = vmatpush1.msra.mxu0 0.0
    %4769 = vmatprep.subr.mxu0 0.0
    %4770 = vmatpush1.msra.mxu0 0.0
    %4771 = vmatprep.subr.mxu0 0.0
    %4772 = vmatpush1.msra.mxu0 0.0
    %4773 = vmatprep.mubr.f32.mxu0 0.0
    %4774 = vmatmul.mubr.f32.gmra.mrb[0].mxu0 %v4707
    %v4775 = vpop.f32.mrb[0].mxu0
    %v4776 = vadd.f32 %v4631, %v4775
    %v4777 = vpop.f32.mrb[0].mxu0
    %v4778 = vadd.f32 %v4633, %v4777
    %4779 = vdwg.mxu0
    %4780 = vmatprep.subr.mxu0 %v145
    %4781 = vmatpush1.msra.mxu0 %v144
    %4782 = vmatprep.subr.mxu0 %v701
    %4783 = vmatpush1.msra.mxu0 %v698
    %4784 = vmatprep.subr.mxu0 0.0
    %4785 = vmatpush1.msra.mxu0 0.0
    %4786 = vmatprep.subr.mxu0 0.0
    %4787 = vmatpush1.msra.mxu0 0.0
    %4788 = vmatprep.subr.mxu0 0.0
    %4789 = vmatpush1.msra.mxu0 0.0
    %4790 = vmatprep.subr.mxu0 0.0
    %4791 = vmatpush1.msra.mxu0 0.0
    %4792 = vmatprep.subr.mxu0 0.0
    %4793 = vmatpush1.msra.mxu0 0.0
    %4794 = vmatprep.subr.mxu0 0.0
    %4795 = vmatpush1.msra.mxu0 0.0
    %4796 = vmatprep.subr.mxu0 0.0
    %4797 = vmatpush1.msra.mxu0 0.0
    %4798 = vmatprep.subr.mxu0 0.0
    %4799 = vmatpush1.msra.mxu0 0.0
    %4800 = vmatprep.subr.mxu0 0.0
    %4801 = vmatpush1.msra.mxu0 0.0
    %4802 = vmatprep.subr.mxu0 0.0
    %4803 = vmatpush1.msra.mxu0 0.0
    %4804 = vmatprep.subr.mxu0 0.0
    %4805 = vmatpush1.msra.mxu0 0.0
    %4806 = vmatprep.subr.mxu0 0.0
    %4807 = vmatpush1.msra.mxu0 0.0
    %4808 = vmatprep.subr.mxu0 0.0
    %4809 = vmatpush1.msra.mxu0 0.0
    %4810 = vmatprep.subr.mxu0 0.0
    %4811 = vmatpush1.msra.mxu0 0.0
    %4812 = vmatprep.subr.mxu0 0.0
    %4813 = vmatpush1.msra.mxu0 0.0
    %4814 = vmatprep.subr.mxu0 0.0
    %4815 = vmatpush1.msra.mxu0 0.0
    %4816 = vmatprep.subr.mxu0 0.0
    %4817 = vmatpush1.msra.mxu0 0.0
    %4818 = vmatprep.subr.mxu0 0.0
    %4819 = vmatpush1.msra.mxu0 0.0
    %4820 = vmatprep.subr.mxu0 0.0
    %4821 = vmatpush1.msra.mxu0 0.0
    %4822 = vmatprep.subr.mxu0 0.0
    %4823 = vmatpush1.msra.mxu0 0.0
    %4824 = vmatprep.subr.mxu0 0.0
    %4825 = vmatpush1.msra.mxu0 0.0
    %4826 = vmatprep.subr.mxu0 0.0
    %4827 = vmatpush1.msra.mxu0 0.0
    %4828 = vmatprep.subr.mxu0 0.0
    %4829 = vmatpush1.msra.mxu0 0.0
    %4830 = vmatprep.subr.mxu0 0.0
    %4831 = vmatpush1.msra.mxu0 0.0
    %4832 = vmatprep.subr.mxu0 0.0
    %4833 = vmatpush1.msra.mxu0 0.0
    %4834 = vmatprep.subr.mxu0 0.0
    %4835 = vmatpush1.msra.mxu0 0.0
    %4836 = vmatprep.subr.mxu0 0.0
    %4837 = vmatpush1.msra.mxu0 0.0
    %4838 = vmatprep.subr.mxu0 0.0
    %4839 = vmatpush1.msra.mxu0 0.0
    %4840 = vmatprep.subr.mxu0 0.0
    %4841 = vmatpush1.msra.mxu0 0.0
    %4842 = vmatprep.subr.mxu0 0.0
    %4843 = vmatpush1.msra.mxu0 0.0
    %4844 = vmatprep.mubr.f32.mxu0 0.0
    %4845 = vmatmul.mubr.f32.gmra.mrb[0].mxu0 %v4707
    %v4846 = vpop.f32.mrb[0].mxu0
    %v4847 = vadd.f32 %v4702, %v4846
    %v4848 = vpop.f32.mrb[0].mxu0
    %v4849 = vadd.f32 %v4704, %v4848
    %4850 = vdwg.mxu0
    %v4851 = vadd.f32 %v4776, %v849
    %v4852 = vadd.f32 %v4778, %v853
    %v4853 = vadd.f32 %v4847, %v857
    %v4854 = vadd.f32 %v4849, %v861
    %v4855 = vtanh.pop %v4851
    %v4856 = vtanh.pop %v4852
    %v4857 = vadd.f32 %v4853, %v4854
    %v4858 = vxor.u32 %v4857, 2147483648
    %v4859 = vmul.f32 %v4858, 1.442695
    %v4860 = vpow.pop %v4859
    %v4861 = vadd.f32 %v4860, 1.0
    %v4862 = vrcp.pop %v4861
    %v4863 = vmul.f32 1.0, %v4862
    %v4864 = vsub.f32 %v4856, %v4855
    %v4865 = vmul.f32 %v4863, %v4864
    %v4866 = vadd.f32 %v4855, %v4865
    %4867 = vmatprep.subr.mxu0 %v168
    %4868 = vmatpush1.msra.mxu0 %v167
    %4869 = vmatprep.subr.mxu0 0.0
    %4870 = vmatpush1.msra.mxu0 0.0
    %4871 = vmatprep.subr.mxu0 0.0
    %4872 = vmatpush1.msra.mxu0 0.0
    %4873 = vmatprep.subr.mxu0 0.0
    %4874 = vmatpush1.msra.mxu0 0.0
    %4875 = vmatprep.subr.mxu0 0.0
    %4876 = vmatpush1.msra.mxu0 0.0
    %4877 = vmatprep.subr.mxu0 0.0
    %4878 = vmatpush1.msra.mxu0 0.0
    %4879 = vmatprep.subr.mxu0 0.0
    %4880 = vmatpush1.msra.mxu0 0.0
    %4881 = vmatprep.subr.mxu0 0.0
    %4882 = vmatpush1.msra.mxu0 0.0
    %4883 = vmatprep.subr.mxu0 0.0
    %4884 = vmatpush1.msra.mxu0 0.0
    %4885 = vmatprep.subr.mxu0 0.0
    %4886 = vmatpush1.msra.mxu0 0.0
    %4887 = vmatprep.subr.mxu0 0.0
    %4888 = vmatpush1.msra.mxu0 0.0
    %4889 = vmatprep.subr.mxu0 0.0
    %4890 = vmatpush1.msra.mxu0 0.0
    %4891 = vmatprep.subr.mxu0 0.0
    %4892 = vmatpush1.msra.mxu0 0.0
    %4893 = vmatprep.subr.mxu0 0.0
    %4894 = vmatpush1.msra.mxu0 0.0
    %4895 = vmatprep.subr.mxu0 0.0
    %4896 = vmatpush1.msra.mxu0 0.0
    %4897 = vmatprep.subr.mxu0 0.0
    %4898 = vmatpush1.msra.mxu0 0.0
    %4899 = vmatprep.subr.mxu0 0.0
    %4900 = vmatpush1.msra.mxu0 0.0
    %4901 = vmatprep.subr.mxu0 0.0
    %4902 = vmatpush1.msra.mxu0 0.0
    %4903 = vmatprep.subr.mxu0 0.0
    %4904 = vmatpush1.msra.mxu0 0.0
    %4905 = vmatprep.subr.mxu0 0.0
    %4906 = vmatpush1.msra.mxu0 0.0
    %4907 = vmatprep.subr.mxu0 0.0
    %4908 = vmatpush1.msra.mxu0 0.0
    %4909 = vmatprep.subr.mxu0 0.0
    %4910 = vmatpush1.msra.mxu0 0.0
    %4911 = vmatprep.subr.mxu0 0.0
    %4912 = vmatpush1.msra.mxu0 0.0
    %4913 = vmatprep.subr.mxu0 0.0
    %4914 = vmatpush1.msra.mxu0 0.0
    %4915 = vmatprep.subr.mxu0 0.0
    %4916 = vmatpush1.msra.mxu0 0.0
    %4917 = vmatprep.subr.mxu0 0.0
    %4918 = vmatpush1.msra.mxu0 0.0
    %4919 = vmatprep.subr.mxu0 0.0
    %4920 = vmatpush1.msra.mxu0 0.0
    %4921 = vmatprep.subr.mxu0 0.0
    %4922 = vmatpush1.msra.mxu0 0.0
    %4923 = vmatprep.subr.mxu0 0.0
    %4924 = vmatpush1.msra.mxu0 0.0
    %4925 = vmatprep.subr.mxu0 0.0
    %4926 = vmatpush1.msra.mxu0 0.0
    %4927 = vmatprep.subr.mxu0 0.0
    %4928 = vmatpush1.msra.mxu0 0.0
    %4929 = vmatprep.subr.mxu0 0.0
    %4930 = vmatpush1.msra.mxu0 0.0
    %4931 = vmatprep.mubr.f32.mxu0 0.0
    %4932 = vmatmul.mubr.f32.gmra.mrb[0].mxu0 %v4185
    %v4933 = vpop.f32.mrb[0].mxu0
    %v4934 = vadd.f32 0.0, %v4933
    %v4935 = vpop.f32.mrb[0].mxu0
    %v4936 = vadd.f32 0.0, %v4935
    %4937 = vdwg.mxu0
    %4938 = vmatprep.subr.mxu0 %v170
    %4939 = vmatpush1.msra.mxu0 %v169
    %4940 = vmatprep.subr.mxu0 0.0
    %4941 = vmatpush1.msra.mxu0 0.0
    %4942 = vmatprep.subr.mxu0 0.0
    %4943 = vmatpush1.msra.mxu0 0.0
    %4944 = vmatprep.subr.mxu0 0.0
    %4945 = vmatpush1.msra.mxu0 0.0
    %4946 = vmatprep.subr.mxu0 0.0
    %4947 = vmatpush1.msra.mxu0 0.0
    %4948 = vmatprep.subr.mxu0 0.0
    %4949 = vmatpush1.msra.mxu0 0.0
    %4950 = vmatprep.subr.mxu0 0.0
    %4951 = vmatpush1.msra.mxu0 0.0
    %4952 = vmatprep.subr.mxu0 0.0
    %4953 = vmatpush1.msra.mxu0 0.0
    %4954 = vmatprep.subr.mxu0 0.0
    %4955 = vmatpush1.msra.mxu0 0.0
    %4956 = vmatprep.subr.mxu0 0.0
    %4957 = vmatpush1.msra.mxu0 0.0
    %4958 = vmatprep.subr.mxu0 0.0
    %4959 = vmatpush1.msra.mxu0 0.0
    %4960 = vmatprep.subr.mxu0 0.0
    %4961 = vmatpush1.msra.mxu0 0.0
    %4962 = vmatprep.subr.mxu0 0.0
    %4963 = vmatpush1.msra.mxu0 0.0
    %4964 = vmatprep.subr.mxu0 0.0
    %4965 = vmatpush1.msra.mxu0 0.0
    %4966 = vmatprep.subr.mxu0 0.0
    %4967 = vmatpush1.msra.mxu0 0.0
    %4968 = vmatprep.subr.mxu0 0.0
    %4969 = vmatpush1.msra.mxu0 0.0
    %4970 = vmatprep.subr.mxu0 0.0
    %4971 = vmatpush1.msra.mxu0 0.0
    %4972 = vmatprep.subr.mxu0 0.0
    %4973 = vmatpush1.msra.mxu0 0.0
    %4974 = vmatprep.subr.mxu0 0.0
    %4975 = vmatpush1.msra.mxu0 0.0
    %4976 = vmatprep.subr.mxu0 0.0
    %4977 = vmatpush1.msra.mxu0 0.0
    %4978 = vmatprep.subr.mxu0 0.0
    %4979 = vmatpush1.msra.mxu0 0.0
    %4980 = vmatprep.subr.mxu0 0.0
    %4981 = vmatpush1.msra.mxu0 0.0
    %4982 = vmatprep.subr.mxu0 0.0
    %4983 = vmatpush1.msra.mxu0 0.0
    %4984 = vmatprep.subr.mxu0 0.0
    %4985 = vmatpush1.msra.mxu0 0.0
    %4986 = vmatprep.subr.mxu0 0.0
    %4987 = vmatpush1.msra.mxu0 0.0
    %4988 = vmatprep.subr.mxu0 0.0
    %4989 = vmatpush1.msra.mxu0 0.0
    %4990 = vmatprep.subr.mxu0 0.0
    %4991 = vmatpush1.msra.mxu0 0.0
    %4992 = vmatprep.subr.mxu0 0.0
    %4993 = vmatpush1.msra.mxu0 0.0
    %4994 = vmatprep.subr.mxu0 0.0
    %4995 = vmatpush1.msra.mxu0 0.0
    %4996 = vmatprep.subr.mxu0 0.0
    %4997 = vmatpush1.msra.mxu0 0.0
    %4998 = vmatprep.subr.mxu0 0.0
    %4999 = vmatpush1.msra.mxu0 0.0
    %5000 = vmatprep.subr.mxu0 0.0
    %5001 = vmatpush1.msra.mxu0 0.0
    %5002 = vmatprep.mubr.f32.mxu0 0.0
    %5003 = vmatmul.mubr.f32.gmra.mrb[0].mxu0 %v4185
    %v5004 = vpop.f32.mrb[0].mxu0
    %v5005 = vadd.f32 0.0, %v5004
    %v5006 = vpop.f32.mrb[0].mxu0
    %v5007 = vadd.f32 0.0, %v5006
    %5008 = vdwg.mxu0
    %v5010 = vsel %vm530, %v4866, 0
    %5012 = vmatprep.subr.mxu0 %v160
    %5013 = vmatpush1.msra.mxu0 %v159
    %5014 = vmatprep.subr.mxu0 %v1034
    %5015 = vmatpush1.msra.mxu0 %v1031
    %5016 = vmatprep.subr.mxu0 0.0
    %5017 = vmatpush1.msra.mxu0 0.0
    %5018 = vmatprep.subr.mxu0 0.0
    %5019 = vmatpush1.msra.mxu0 0.0
    %5020 = vmatprep.subr.mxu0 0.0
    %5021 = vmatpush1.msra.mxu0 0.0
    %5022 = vmatprep.subr.mxu0 0.0
    %5023 = vmatpush1.msra.mxu0 0.0
    %5024 = vmatprep.subr.mxu0 0.0
    %5025 = vmatpush1.msra.mxu0 0.0
    %5026 = vmatprep.subr.mxu0 0.0
    %5027 = vmatpush1.msra.mxu0 0.0
    %5028 = vmatprep.subr.mxu0 0.0
    %5029 = vmatpush1.msra.mxu0 0.0
    %5030 = vmatprep.subr.mxu0 0.0
    %5031 = vmatpush1.msra.mxu0 0.0
    %5032 = vmatprep.subr.mxu0 0.0
    %5033 = vmatpush1.msra.mxu0 0.0
    %5034 = vmatprep.subr.mxu0 0.0
    %5035 = vmatpush1.msra.mxu0 0.0
    %5036 = vmatprep.subr.mxu0 0.0
    %5037 = vmatpush1.msra.mxu0 0.0
    %5038 = vmatprep.subr.mxu0 0.0
    %5039 = vmatpush1.msra.mxu0 0.0
    %5040 = vmatprep.subr.mxu0 0.0
    %5041 = vmatpush1.msra.mxu0 0.0
    %5042 = vmatprep.subr.mxu0 0.0
    %5043 = vmatpush1.msra.mxu0 0.0
    %5044 = vmatprep.subr.mxu0 0.0
    %5045 = vmatpush1.msra.mxu0 0.0
    %5046 = vmatprep.subr.mxu0 0.0
    %5047 = vmatpush1.msra.mxu0 0.0
    %5048 = vmatprep.subr.mxu0 0.0
    %5049 = vmatpush1.msra.mxu0 0.0
    %5050 = vmatprep.subr.mxu0 0.0
    %5051 = vmatpush1.msra.mxu0 0.0
    %5052 = vmatprep.subr.mxu0 0.0
    %5053 = vmatpush1.msra.mxu0 0.0
    %5054 = vmatprep.subr.mxu0 0.0
    %5055 = vmatpush1.msra.mxu0 0.0
    %5056 = vmatprep.subr.mxu0 0.0
    %5057 = vmatpush1.msra.mxu0 0.0
    %5058 = vmatprep.subr.mxu0 0.0
    %5059 = vmatpush1.msra.mxu0 0.0
    %5060 = vmatprep.subr.mxu0 0.0
    %5061 = vmatpush1.msra.mxu0 0.0
    %5062 = vmatprep.subr.mxu0 0.0
    %5063 = vmatpush1.msra.mxu0 0.0
    %5064 = vmatprep.subr.mxu0 0.0
    %5065 = vmatpush1.msra.mxu0 0.0
    %5066 = vmatprep.subr.mxu0 0.0
    %5067 = vmatpush1.msra.mxu0 0.0
    %5068 = vmatprep.subr.mxu0 0.0
    %5069 = vmatpush1.msra.mxu0 0.0
    %5070 = vmatprep.subr.mxu0 0.0
    %5071 = vmatpush1.msra.mxu0 0.0
    %5072 = vmatprep.subr.mxu0 0.0
    %5073 = vmatpush1.msra.mxu0 0.0
    %5074 = vmatprep.subr.mxu0 0.0
    %5075 = vmatpush1.msra.mxu0 0.0
    %5076 = vmatprep.mubr.f32.mxu0 0.0
    %5077 = vmatmul.mubr.f32.gmra.mrb[0].mxu0 %v5010
    %v5078 = vpop.f32.mrb[0].mxu0
    %v5079 = vadd.f32 %v4934, %v5078
    %v5080 = vpop.f32.mrb[0].mxu0
    %v5081 = vadd.f32 %v4936, %v5080
    %5082 = vdwg.mxu0
    %5083 = vmatprep.subr.mxu0 %v162
    %5084 = vmatpush1.msra.mxu0 %v161
    %5085 = vmatprep.subr.mxu0 %v1040
    %5086 = vmatpush1.msra.mxu0 %v1037
    %5087 = vmatprep.subr.mxu0 0.0
    %5088 = vmatpush1.msra.mxu0 0.0
    %5089 = vmatprep.subr.mxu0 0.0
    %5090 = vmatpush1.msra.mxu0 0.0
    %5091 = vmatprep.subr.mxu0 0.0
    %5092 = vmatpush1.msra.mxu0 0.0
    %5093 = vmatprep.subr.mxu0 0.0
    %5094 = vmatpush1.msra.mxu0 0.0
    %5095 = vmatprep.subr.mxu0 0.0
    %5096 = vmatpush1.msra.mxu0 0.0
    %5097 = vmatprep.subr.mxu0 0.0
    %5098 = vmatpush1.msra.mxu0 0.0
    %5099 = vmatprep.subr.mxu0 0.0
    %5100 = vmatpush1.msra.mxu0 0.0
    %5101 = vmatprep.subr.mxu0 0.0
    %5102 = vmatpush1.msra.mxu0 0.0
    %5103 = vmatprep.subr.mxu0 0.0
    %5104 = vmatpush1.msra.mxu0 0.0
    %5105 = vmatprep.subr.mxu0 0.0
    %5106 = vmatpush1.msra.mxu0 0.0
    %5107 = vmatprep.subr.mxu0 0.0
    %5108 = vmatpush1.msra.mxu0 0.0
    %5109 = vmatprep.subr.mxu0 0.0
    %5110 = vmatpush1.msra.mxu0 0.0
    %5111 = vmatprep.subr.mxu0 0.0
    %5112 = vmatpush1.msra.mxu0 0.0
    %5113 = vmatprep.subr.mxu0 0.0
    %5114 = vmatpush1.msra.mxu0 0.0
    %5115 = vmatprep.subr.mxu0 0.0
    %5116 = vmatpush1.msra.mxu0 0.0
    %5117 = vmatprep.subr.mxu0 0.0
    %5118 = vmatpush1.msra.mxu0 0.0
    %5119 = vmatprep.subr.mxu0 0.0
    %5120 = vmatpush1.msra.mxu0 0.0
    %5121 = vmatprep.subr.mxu0 0.0
    %5122 = vmatpush1.msra.mxu0 0.0
    %5123 = vmatprep.subr.mxu0 0.0
    %5124 = vmatpush1.msra.mxu0 0.0
    %5125 = vmatprep.subr.mxu0 0.0
    %5126 = vmatpush1.msra.mxu0 0.0
    %5127 = vmatprep.subr.mxu0 0.0
    %5128 = vmatpush1.msra.mxu0 0.0
    %5129 = vmatprep.subr.mxu0 0.0
    %5130 = vmatpush1.msra.mxu0 0.0
    %5131 = vmatprep.subr.mxu0 0.0
    %5132 = vmatpush1.msra.mxu0 0.0
    %5133 = vmatprep.subr.mxu0 0.0
    %5134 = vmatpush1.msra.mxu0 0.0
    %5135 = vmatprep.subr.mxu0 0.0
    %5136 = vmatpush1.msra.mxu0 0.0
    %5137 = vmatprep.subr.mxu0 0.0
    %5138 = vmatpush1.msra.mxu0 0.0
    %5139 = vmatprep.subr.mxu0 0.0
    %5140 = vmatpush1.msra.mxu0 0.0
    %5141 = vmatprep.subr.mxu0 0.0
    %5142 = vmatpush1.msra.mxu0 0.0
    %5143 = vmatprep.subr.mxu0 0.0
    %5144 = vmatpush1.msra.mxu0 0.0
    %5145 = vmatprep.subr.mxu0 0.0
    %5146 = vmatpush1.msra.mxu0 0.0
    %5147 = vmatprep.mubr.f32.mxu0 0.0
    %5148 = vmatmul.mubr.f32.gmra.mrb[0].mxu0 %v5010
    %v5149 = vpop.f32.mrb[0].mxu0
    %v5150 = vadd.f32 %v5005, %v5149
    %v5151 = vpop.f32.mrb[0].mxu0
    %v5152 = vadd.f32 %v5007, %v5151
    %5153 = vdwg.mxu0
    %v5154 = vadd.f32 %v5079, %v1188
    %v5155 = vadd.f32 %v5081, %v1192
    %v5156 = vadd.f32 %v5150, %v1196
    %v5157 = vadd.f32 %v5152, %v1200
    %v5158 = vtanh.pop %v5154
    %v5159 = vtanh.pop %v5155
    %v5160 = vadd.f32 %v5156, %v5157
    %v5161 = vxor.u32 %v5160, 2147483648
    %v5162 = vmul.f32 %v5161, 1.442695
    %v5163 = vpow.pop %v5162
    %v5164 = vadd.f32 %v5163, 1.0
    %v5165 = vrcp.pop %v5164
    %v5166 = vmul.f32 1.0, %v5165
    %v5167 = vsub.f32 %v5159, %v5158
    %v5168 = vmul.f32 %v5166, %v5167
    %v5169 = vadd.f32 %v5158, %v5168
    %v5171 = vsel %vm882, %v5169, 0
    %5173 = vmatprep.subr.mxu0 0.0
    %5174 = vmatpush1.msra.mxu0 %v172
    %5175 = vmatprep.subr.mxu0 0.0
    %5176 = vmatpush1.msra.mxu0 0.0
    %5177 = vmatprep.subr.mxu0 0.0
    %5178 = vmatpush1.msra.mxu0 0.0
    %5179 = vmatprep.subr.mxu0 0.0
    %5180 = vmatpush1.msra.mxu0 0.0
    %5181 = vmatprep.subr.mxu0 0.0
    %5182 = vmatpush1.msra.mxu0 0.0
    %5183 = vmatprep.subr.mxu0 0.0
    %5184 = vmatpush1.msra.mxu0 0.0
    %5185 = vmatprep.subr.mxu0 0.0
    %5186 = vmatpush1.msra.mxu0 0.0
    %5187 = vmatprep.subr.mxu0 0.0
    %5188 = vmatpush1.msra.mxu0 0.0
    %5189 = vmatprep.subr.mxu0 0.0
    %5190 = vmatpush1.msra.mxu0 0.0
    %5191 = vmatprep.subr.mxu0 0.0
    %5192 = vmatpush1.msra.mxu0 0.0
    %5193 = vmatprep.subr.mxu0 0.0
    %5194 = vmatpush1.msra.mxu0 0.0
    %5195 = vmatprep.subr.mxu0 0.0
    %5196 = vmatpush1.msra.mxu0 0.0
    %5197 = vmatprep.subr.mxu0 0.0
    %5198 = vmatpush1.msra.mxu0 0.0
    %5199 = vmatprep.subr.mxu0 0.0
    %5200 = vmatpush1.msra.mxu0 0.0
    %5201 = vmatprep.subr.mxu0 0.0
    %5202 = vmatpush1.msra.mxu0 0.0
    %5203 = vmatprep.subr.mxu0 0.0
    %5204 = vmatpush1.msra.mxu0 0.0
    %5205 = vmatprep.subr.mxu0 0.0
    %5206 = vmatpush1.msra.mxu0 0.0
    %5207 = vmatprep.subr.mxu0 0.0
    %5208 = vmatpush1.msra.mxu0 0.0
    %5209 = vmatprep.subr.mxu0 0.0
    %5210 = vmatpush1.msra.mxu0 0.0
    %5211 = vmatprep.subr.mxu0 0.0
    %5212 = vmatpush1.msra.mxu0 0.0
    %5213 = vmatprep.subr.mxu0 0.0
    %5214 = vmatpush1.msra.mxu0 0.0
    %5215 = vmatprep.subr.mxu0 0.0
    %5216 = vmatpush1.msra.mxu0 0.0
    %5217 = vmatprep.subr.mxu0 0.0
    %5218 = vmatpush1.msra.mxu0 0.0
    %5219 = vmatprep.subr.mxu0 0.0
    %5220 = vmatpush1.msra.mxu0 0.0
    %5221 = vmatprep.subr.mxu0 0.0
    %5222 = vmatpush1.msra.mxu0 0.0
    %5223 = vmatprep.subr.mxu0 0.0
    %5224 = vmatpush1.msra.mxu0 0.0
    %5225 = vmatprep.subr.mxu0 0.0
    %5226 = vmatpush1.msra.mxu0 0.0
    %5227 = vmatprep.subr.mxu0 0.0
    %5228 = vmatpush1.msra.mxu0 0.0
    %5229 = vmatprep.subr.mxu0 0.0
    %5230 = vmatpush1.msra.mxu0 0.0
    %5231 = vmatprep.subr.mxu0 0.0
    %5232 = vmatpush1.msra.mxu0 0.0
    %5233 = vmatprep.subr.mxu0 0.0
    %5234 = vmatpush1.msra.mxu0 0.0
    %5235 = vmatprep.subr.mxu0 0.0
    %5236 = vmatpush1.msra.mxu0 0.0
    %5237 = vmatprep.mubr.f32.mxu0 0.0
    %5238 = vmatmul.mubr.f32.gmra.mrb[0].mxu0 %v5171
    %v5239 = vpop.f32.mrb[0].mxu0
    %v5240 = vadd.f32 %v1225, %v5239
    %v5241 = vpop.f32.mrb[0].mxu0
    %5242 = vdwg.mxu0
    %s5243 = scalar_lea.vmem [#allocation14], 8
    %5244 = vst [vmem:[%s5243] sm:$0x3] %v5240
    %s5245 = scalar_lea.vmem %s0, 10
    %v5246 = vld [vmem:[%s5245] sm:$0x3]
    %5247 = vmatprep.subr.mxu0 %v134
    %5248 = vmatpush1.msra.mxu0 %v133
    %5249 = vmatprep.subr.mxu0 %v184
    %5250 = vmatpush1.msra.mxu0 %v181
    %5251 = vmatprep.subr.mxu0 0.0
    %5252 = vmatpush1.msra.mxu0 0.0
    %5253 = vmatprep.subr.mxu0 0.0
    %5254 = vmatpush1.msra.mxu0 0.0
    %5255 = vmatprep.subr.mxu0 0.0
    %5256 = vmatpush1.msra.mxu0 0.0
    %5257 = vmatprep.subr.mxu0 0.0
    %5258 = vmatpush1.msra.mxu0 0.0
    %5259 = vmatprep.subr.mxu0 0.0
    %5260 = vmatpush1.msra.mxu0 0.0
    %5261 = vmatprep.subr.mxu0 0.0
    %5262 = vmatpush1.msra.mxu0 0.0
    %5263 = vmatprep.subr.mxu0 0.0
    %5264 = vmatpush1.msra.mxu0 0.0
    %5265 = vmatprep.subr.mxu0 0.0
    %5266 = vmatpush1.msra.mxu0 0.0
    %5267 = vmatprep.subr.mxu0 0.0
    %5268 = vmatpush1.msra.mxu0 0.0
    %5269 = vmatprep.subr.mxu0 0.0
    %5270 = vmatpush1.msra.mxu0 0.0
    %5271 = vmatprep.subr.mxu0 0.0
    %5272 = vmatpush1.msra.mxu0 0.0
    %5273 = vmatprep.subr.mxu0 0.0
    %5274 = vmatpush1.msra.mxu0 0.0
    %5275 = vmatprep.subr.mxu0 0.0
    %5276 = vmatpush1.msra.mxu0 0.0
    %5277 = vmatprep.subr.mxu0 0.0
    %5278 = vmatpush1.msra.mxu0 0.0
    %5279 = vmatprep.subr.mxu0 0.0
    %5280 = vmatpush1.msra.mxu0 0.0
    %5281 = vmatprep.subr.mxu0 0.0
    %5282 = vmatpush1.msra.mxu0 0.0
    %5283 = vmatprep.subr.mxu0 0.0
    %5284 = vmatpush1.msra.mxu0 0.0
    %5285 = vmatprep.subr.mxu0 0.0
    %5286 = vmatpush1.msra.mxu0 0.0
    %5287 = vmatprep.subr.mxu0 0.0
    %5288 = vmatpush1.msra.mxu0 0.0
    %5289 = vmatprep.subr.mxu0 0.0
    %5290 = vmatpush1.msra.mxu0 0.0
    %5291 = vmatprep.subr.mxu0 0.0
    %5292 = vmatpush1.msra.mxu0 0.0
    %5293 = vmatprep.subr.mxu0 0.0
    %5294 = vmatpush1.msra.mxu0 0.0
    %5295 = vmatprep.subr.mxu0 0.0
    %5296 = vmatpush1.msra.mxu0 0.0
    %5297 = vmatprep.subr.mxu0 0.0
    %5298 = vmatpush1.msra.mxu0 0.0
    %5299 = vmatprep.subr.mxu0 0.0
    %5300 = vmatpush1.msra.mxu0 0.0
    %5301 = vmatprep.subr.mxu0 0.0
    %5302 = vmatpush1.msra.mxu0 0.0
    %5303 = vmatprep.subr.mxu0 0.0
    %5304 = vmatpush1.msra.mxu0 0.0
    %5305 = vmatprep.subr.mxu0 0.0
    %5306 = vmatpush1.msra.mxu0 0.0
    %5307 = vmatprep.subr.mxu0 0.0
    %5308 = vmatpush1.msra.mxu0 0.0
    %5309 = vmatprep.subr.mxu0 0.0
    %5310 = vmatpush1.msra.mxu0 0.0
    %5311 = vmatprep.mubr.f32.mxu0 0.0
    %5312 = vmatmul.mubr.f32.gmra.mrb[0].mxu0 %v4707
    %v5313 = vpop.f32.mrb[0].mxu0
    %v5314 = vadd.f32 0.0, %v5313
    %v5315 = vpop.f32.mrb[0].mxu0
    %v5316 = vadd.f32 0.0, %v5315
    %5317 = vdwg.mxu0
    %5318 = vmatprep.subr.mxu0 %v136
    %5319 = vmatpush1.msra.mxu0 %v135
    %5320 = vmatprep.subr.mxu0 %v190
    %5321 = vmatpush1.msra.mxu0 %v187
    %5322 = vmatprep.subr.mxu0 0.0
    %5323 = vmatpush1.msra.mxu0 0.0
    %5324 = vmatprep.subr.mxu0 0.0
    %5325 = vmatpush1.msra.mxu0 0.0
    %5326 = vmatprep.subr.mxu0 0.0
    %5327 = vmatpush1.msra.mxu0 0.0
    %5328 = vmatprep.subr.mxu0 0.0
    %5329 = vmatpush1.msra.mxu0 0.0
    %5330 = vmatprep.subr.mxu0 0.0
    %5331 = vmatpush1.msra.mxu0 0.0
    %5332 = vmatprep.subr.mxu0 0.0
    %5333 = vmatpush1.msra.mxu0 0.0
    %5334 = vmatprep.subr.mxu0 0.0
    %5335 = vmatpush1.msra.mxu0 0.0
    %5336 = vmatprep.subr.mxu0 0.0
    %5337 = vmatpush1.msra.mxu0 0.0
    %5338 = vmatprep.subr.mxu0 0.0
    %5339 = vmatpush1.msra.mxu0 0.0
    %5340 = vmatprep.subr.mxu0 0.0
    %5341 = vmatpush1.msra.mxu0 0.0
    %5342 = vmatprep.subr.mxu0 0.0
    %5343 = vmatpush1.msra.mxu0 0.0
    %5344 = vmatprep.subr.mxu0 0.0
    %5345 = vmatpush1.msra.mxu0 0.0
    %5346 = vmatprep.subr.mxu0 0.0
    %5347 = vmatpush1.msra.mxu0 0.0
    %5348 = vmatprep.subr.mxu0 0.0
    %5349 = vmatpush1.msra.mxu0 0.0
    %5350 = vmatprep.subr.mxu0 0.0
    %5351 = vmatpush1.msra.mxu0 0.0
    %5352 = vmatprep.subr.mxu0 0.0
    %5353 = vmatpush1.msra.mxu0 0.0
    %5354 = vmatprep.subr.mxu0 0.0
    %5355 = vmatpush1.msra.mxu0 0.0
    %5356 = vmatprep.subr.mxu0 0.0
    %5357 = vmatpush1.msra.mxu0 0.0
    %5358 = vmatprep.subr.mxu0 0.0
    %5359 = vmatpush1.msra.mxu0 0.0
    %5360 = vmatprep.subr.mxu0 0.0
    %5361 = vmatpush1.msra.mxu0 0.0
    %5362 = vmatprep.subr.mxu0 0.0
    %5363 = vmatpush1.msra.mxu0 0.0
    %5364 = vmatprep.subr.mxu0 0.0
    %5365 = vmatpush1.msra.mxu0 0.0
    %5366 = vmatprep.subr.mxu0 0.0
    %5367 = vmatpush1.msra.mxu0 0.0
    %5368 = vmatprep.subr.mxu0 0.0
    %5369 = vmatpush1.msra.mxu0 0.0
    %5370 = vmatprep.subr.mxu0 0.0
    %5371 = vmatpush1.msra.mxu0 0.0
    %5372 = vmatprep.subr.mxu0 0.0
    %5373 = vmatpush1.msra.mxu0 0.0
    %5374 = vmatprep.subr.mxu0 0.0
    %5375 = vmatpush1.msra.mxu0 0.0
    %5376 = vmatprep.subr.mxu0 0.0
    %5377 = vmatpush1.msra.mxu0 0.0
    %5378 = vmatprep.subr.mxu0 0.0
    %5379 = vmatpush1.msra.mxu0 0.0
    %5380 = vmatprep.subr.mxu0 0.0
    %5381 = vmatpush1.msra.mxu0 0.0
    %5382 = vmatprep.mubr.f32.mxu0 0.0
    %5383 = vmatmul.mubr.f32.gmra.mrb[0].mxu0 %v4707
    %v5384 = vpop.f32.mrb[0].mxu0
    %v5385 = vadd.f32 0.0, %v5384
    %v5386 = vpop.f32.mrb[0].mxu0
    %v5387 = vadd.f32 0.0, %v5386
    %5388 = vdwg.mxu0
    %v5390 = vsel %vm338, %v5246, 0
    %5392 = vmatprep.subr.mxu0 %v345
    %5393 = vmatpush1.msra.mxu0 %v343
    %5394 = vmatprep.subr.mxu0 0.0
    %5395 = vmatpush1.msra.mxu0 0.0
    %5396 = vmatprep.subr.mxu0 0.0
    %5397 = vmatpush1.msra.mxu0 0.0
    %5398 = vmatprep.subr.mxu0 0.0
    %5399 = vmatpush1.msra.mxu0 0.0
    %5400 = vmatprep.subr.mxu0 0.0
    %5401 = vmatpush1.msra.mxu0 0.0
    %5402 = vmatprep.subr.mxu0 0.0
    %5403 = vmatpush1.msra.mxu0 0.0
    %5404 = vmatprep.subr.mxu0 0.0
    %5405 = vmatpush1.msra.mxu0 0.0
    %5406 = vmatprep.subr.mxu0 0.0
    %5407 = vmatpush1.msra.mxu0 0.0
    %5408 = vmatprep.subr.mxu0 0.0
    %5409 = vmatpush1.msra.mxu0 0.0
    %5410 = vmatprep.subr.mxu0 0.0
    %5411 = vmatpush1.msra.mxu0 0.0
    %5412 = vmatprep.subr.mxu0 0.0
    %5413 = vmatpush1.msra.mxu0 0.0
    %5414 = vmatprep.subr.mxu0 0.0
    %5415 = vmatpush1.msra.mxu0 0.0
    %5416 = vmatprep.subr.mxu0 0.0
    %5417 = vmatpush1.msra.mxu0 0.0
    %5418 = vmatprep.subr.mxu0 0.0
    %5419 = vmatpush1.msra.mxu0 0.0
    %5420 = vmatprep.subr.mxu0 0.0
    %5421 = vmatpush1.msra.mxu0 0.0
    %5422 = vmatprep.subr.mxu0 0.0
    %5423 = vmatpush1.msra.mxu0 0.0
    %5424 = vmatprep.subr.mxu0 0.0
    %5425 = vmatpush1.msra.mxu0 0.0
    %5426 = vmatprep.subr.mxu0 0.0
    %5427 = vmatpush1.msra.mxu0 0.0
    %5428 = vmatprep.subr.mxu0 0.0
    %5429 = vmatpush1.msra.mxu0 0.0
    %5430 = vmatprep.subr.mxu0 0.0
    %5431 = vmatpush1.msra.mxu0 0.0
    %5432 = vmatprep.subr.mxu0 0.0
    %5433 = vmatpush1.msra.mxu0 0.0
    %5434 = vmatprep.subr.mxu0 0.0
    %5435 = vmatpush1.msra.mxu0 0.0
    %5436 = vmatprep.subr.mxu0 0.0
    %5437 = vmatpush1.msra.mxu0 0.0
    %5438 = vmatprep.subr.mxu0 0.0
    %5439 = vmatpush1.msra.mxu0 0.0
    %5440 = vmatprep.subr.mxu0 0.0
    %5441 = vmatpush1.msra.mxu0 0.0
    %5442 = vmatprep.subr.mxu0 0.0
    %5443 = vmatpush1.msra.mxu0 0.0
    %5444 = vmatprep.subr.mxu0 0.0
    %5445 = vmatpush1.msra.mxu0 0.0
    %5446 = vmatprep.subr.mxu0 0.0
    %5447 = vmatpush1.msra.mxu0 0.0
    %5448 = vmatprep.subr.mxu0 0.0
    %5449 = vmatpush1.msra.mxu0 0.0
    %5450 = vmatprep.subr.mxu0 0.0
    %5451 = vmatpush1.msra.mxu0 0.0
    %5452 = vmatprep.subr.mxu0 0.0
    %5453 = vmatpush1.msra.mxu0 0.0
    %5454 = vmatprep.subr.mxu0 0.0
    %5455 = vmatpush1.msra.mxu0 0.0
    %5456 = vmatprep.mubr.f32.mxu0 0.0
    %5457 = vmatmul.mubr.f32.gmra.mrb[0].mxu0 %v5390
    %v5458 = vpop.f32.mrb[0].mxu0
    %v5459 = vadd.f32 %v5314, %v5458
    %v5460 = vpop.f32.mrb[0].mxu0
    %v5461 = vadd.f32 %v5316, %v5460
    %5462 = vdwg.mxu0
    %5463 = vmatprep.subr.mxu0 %v349
    %5464 = vmatpush1.msra.mxu0 %v347
    %5465 = vmatprep.subr.mxu0 0.0
    %5466 = vmatpush1.msra.mxu0 0.0
    %5467 = vmatprep.subr.mxu0 0.0
    %5468 = vmatpush1.msra.mxu0 0.0
    %5469 = vmatprep.subr.mxu0 0.0
    %5470 = vmatpush1.msra.mxu0 0.0
    %5471 = vmatprep.subr.mxu0 0.0
    %5472 = vmatpush1.msra.mxu0 0.0
    %5473 = vmatprep.subr.mxu0 0.0
    %5474 = vmatpush1.msra.mxu0 0.0
    %5475 = vmatprep.subr.mxu0 0.0
    %5476 = vmatpush1.msra.mxu0 0.0
    %5477 = vmatprep.subr.mxu0 0.0
    %5478 = vmatpush1.msra.mxu0 0.0
    %5479 = vmatprep.subr.mxu0 0.0
    %5480 = vmatpush1.msra.mxu0 0.0
    %5481 = vmatprep.subr.mxu0 0.0
    %5482 = vmatpush1.msra.mxu0 0.0
    %5483 = vmatprep.subr.mxu0 0.0
    %5484 = vmatpush1.msra.mxu0 0.0
    %5485 = vmatprep.subr.mxu0 0.0
    %5486 = vmatpush1.msra.mxu0 0.0
    %5487 = vmatprep.subr.mxu0 0.0
    %5488 = vmatpush1.msra.mxu0 0.0
    %5489 = vmatprep.subr.mxu0 0.0
    %5490 = vmatpush1.msra.mxu0 0.0
    %5491 = vmatprep.subr.mxu0 0.0
    %5492 = vmatpush1.msra.mxu0 0.0
    %5493 = vmatprep.subr.mxu0 0.0
    %5494 = vmatpush1.msra.mxu0 0.0
    %5495 = vmatprep.subr.mxu0 0.0
    %5496 = vmatpush1.msra.mxu0 0.0
    %5497 = vmatprep.subr.mxu0 0.0
    %5498 = vmatpush1.msra.mxu0 0.0
    %5499 = vmatprep.subr.mxu0 0.0
    %5500 = vmatpush1.msra.mxu0 0.0
    %5501 = vmatprep.subr.mxu0 0.0
    %5502 = vmatpush1.msra.mxu0 0.0
    %5503 = vmatprep.subr.mxu0 0.0
    %5504 = vmatpush1.msra.mxu0 0.0
    %5505 = vmatprep.subr.mxu0 0.0
    %5506 = vmatpush1.msra.mxu0 0.0
    %5507 = vmatprep.subr.mxu0 0.0
    %5508 = vmatpush1.msra.mxu0 0.0
    %5509 = vmatprep.subr.mxu0 0.0
    %5510 = vmatpush1.msra.mxu0 0.0
    %5511 = vmatprep.subr.mxu0 0.0
    %5512 = vmatpush1.msra.mxu0 0.0
    %5513 = vmatprep.subr.mxu0 0.0
    %5514 = vmatpush1.msra.mxu0 0.0
    %5515 = vmatprep.subr.mxu0 0.0
    %5516 = vmatpush1.msra.mxu0 0.0
    %5517 = vmatprep.subr.mxu0 0.0
    %5518 = vmatpush1.msra.mxu0 0.0
    %5519 = vmatprep.subr.mxu0 0.0
    %5520 = vmatpush1.msra.mxu0 0.0
    %5521 = vmatprep.subr.mxu0 0.0
    %5522 = vmatpush1.msra.mxu0 0.0
    %5523 = vmatprep.subr.mxu0 0.0
    %5524 = vmatpush1.msra.mxu0 0.0
    %5525 = vmatprep.subr.mxu0 0.0
    %5526 = vmatpush1.msra.mxu0 0.0
    %5527 = vmatprep.mubr.f32.mxu0 0.0
    %5528 = vmatmul.mubr.f32.gmra.mrb[0].mxu0 %v5390
    %v5529 = vpop.f32.mrb[0].mxu0
    %v5530 = vadd.f32 %v5385, %v5529
    %v5531 = vpop.f32.mrb[0].mxu0
    %v5532 = vadd.f32 %v5387, %v5531
    %5533 = vdwg.mxu0
    %v5534 = vadd.f32 %v5459, %v497
    %v5535 = vadd.f32 %v5461, %v501
    %v5536 = vadd.f32 %v5530, %v505
    %v5537 = vadd.f32 %v5532, %v509
    %v5538 = vtanh.pop %v5534
    %v5539 = vtanh.pop %v5535
    %v5540 = vadd.f32 %v5536, %v5537
    %v5541 = vxor.u32 %v5540, 2147483648
    %v5542 = vmul.f32 %v5541, 1.442695
    %v5543 = vpow.pop %v5542
    %v5544 = vadd.f32 %v5543, 1.0
    %v5545 = vrcp.pop %v5544
    %v5546 = vmul.f32 1.0, %v5545
    %v5547 = vsub.f32 %v5539, %v5538
    %v5548 = vmul.f32 %v5546, %v5547
    %v5549 = vadd.f32 %v5538, %v5548
    %5550 = vmatprep.subr.mxu0 %v151
    %5551 = vmatpush1.msra.mxu0 %v150
    %5552 = vmatprep.subr.mxu0 %v538
    %5553 = vmatpush1.msra.mxu0 %v535
    %5554 = vmatprep.subr.mxu0 0.0
    %5555 = vmatpush1.msra.mxu0 0.0
    %5556 = vmatprep.subr.mxu0 0.0
    %5557 = vmatpush1.msra.mxu0 0.0
    %5558 = vmatprep.subr.mxu0 0.0
    %5559 = vmatpush1.msra.mxu0 0.0
    %5560 = vmatprep.subr.mxu0 0.0
    %5561 = vmatpush1.msra.mxu0 0.0
    %5562 = vmatprep.subr.mxu0 0.0
    %5563 = vmatpush1.msra.mxu0 0.0
    %5564 = vmatprep.subr.mxu0 0.0
    %5565 = vmatpush1.msra.mxu0 0.0
    %5566 = vmatprep.subr.mxu0 0.0
    %5567 = vmatpush1.msra.mxu0 0.0
    %5568 = vmatprep.subr.mxu0 0.0
    %5569 = vmatpush1.msra.mxu0 0.0
    %5570 = vmatprep.subr.mxu0 0.0
    %5571 = vmatpush1.msra.mxu0 0.0
    %5572 = vmatprep.subr.mxu0 0.0
    %5573 = vmatpush1.msra.mxu0 0.0
    %5574 = vmatprep.subr.mxu0 0.0
    %5575 = vmatpush1.msra.mxu0 0.0
    %5576 = vmatprep.subr.mxu0 0.0
    %5577 = vmatpush1.msra.mxu0 0.0
    %5578 = vmatprep.subr.mxu0 0.0
    %5579 = vmatpush1.msra.mxu0 0.0
    %5580 = vmatprep.subr.mxu0 0.0
    %5581 = vmatpush1.msra.mxu0 0.0
    %5582 = vmatprep.subr.mxu0 0.0
    %5583 = vmatpush1.msra.mxu0 0.0
    %5584 = vmatprep.subr.mxu0 0.0
    %5585 = vmatpush1.msra.mxu0 0.0
    %5586 = vmatprep.subr.mxu0 0.0
    %5587 = vmatpush1.msra.mxu0 0.0
    %5588 = vmatprep.subr.mxu0 0.0
    %5589 = vmatpush1.msra.mxu0 0.0
    %5590 = vmatprep.subr.mxu0 0.0
    %5591 = vmatpush1.msra.mxu0 0.0
    %5592 = vmatprep.subr.mxu0 0.0
    %5593 = vmatpush1.msra.mxu0 0.0
    %5594 = vmatprep.subr.mxu0 0.0
    %5595 = vmatpush1.msra.mxu0 0.0
    %5596 = vmatprep.subr.mxu0 0.0
    %5597 = vmatpush1.msra.mxu0 0.0
    %5598 = vmatprep.subr.mxu0 0.0
    %5599 = vmatpush1.msra.mxu0 0.0
    %5600 = vmatprep.subr.mxu0 0.0
    %5601 = vmatpush1.msra.mxu0 0.0
    %5602 = vmatprep.subr.mxu0 0.0
    %5603 = vmatpush1.msra.mxu0 0.0
    %5604 = vmatprep.subr.mxu0 0.0
    %5605 = vmatpush1.msra.mxu0 0.0
    %5606 = vmatprep.subr.mxu0 0.0
    %5607 = vmatpush1.msra.mxu0 0.0
    %5608 = vmatprep.subr.mxu0 0.0
    %5609 = vmatpush1.msra.mxu0 0.0
    %5610 = vmatprep.subr.mxu0 0.0
    %5611 = vmatpush1.msra.mxu0 0.0
    %5612 = vmatprep.subr.mxu0 0.0
    %5613 = vmatpush1.msra.mxu0 0.0
    %5614 = vmatprep.mubr.f32.mxu0 0.0
    %5615 = vmatmul.mubr.f32.gmra.mrb[0].mxu0 %v5010
    %v5616 = vpop.f32.mrb[0].mxu0
    %v5617 = vadd.f32 0.0, %v5616
    %v5618 = vpop.f32.mrb[0].mxu0
    %v5619 = vadd.f32 0.0, %v5618
    %5620 = vdwg.mxu0
    %5621 = vmatprep.subr.mxu0 %v153
    %5622 = vmatpush1.msra.mxu0 %v152
    %5623 = vmatprep.subr.mxu0 %v544
    %5624 = vmatpush1.msra.mxu0 %v541
    %5625 = vmatprep.subr.mxu0 0.0
    %5626 = vmatpush1.msra.mxu0 0.0
    %5627 = vmatprep.subr.mxu0 0.0
    %5628 = vmatpush1.msra.mxu0 0.0
    %5629 = vmatprep.subr.mxu0 0.0
    %5630 = vmatpush1.msra.mxu0 0.0
    %5631 = vmatprep.subr.mxu0 0.0
    %5632 = vmatpush1.msra.mxu0 0.0
    %5633 = vmatprep.subr.mxu0 0.0
    %5634 = vmatpush1.msra.mxu0 0.0
    %5635 = vmatprep.subr.mxu0 0.0
    %5636 = vmatpush1.msra.mxu0 0.0
    %5637 = vmatprep.subr.mxu0 0.0
    %5638 = vmatpush1.msra.mxu0 0.0
    %5639 = vmatprep.subr.mxu0 0.0
    %5640 = vmatpush1.msra.mxu0 0.0
    %5641 = vmatprep.subr.mxu0 0.0
    %5642 = vmatpush1.msra.mxu0 0.0
    %5643 = vmatprep.subr.mxu0 0.0
    %5644 = vmatpush1.msra.mxu0 0.0
    %5645 = vmatprep.subr.mxu0 0.0
    %5646 = vmatpush1.msra.mxu0 0.0
    %5647 = vmatprep.subr.mxu0 0.0
    %5648 = vmatpush1.msra.mxu0 0.0
    %5649 = vmatprep.subr.mxu0 0.0
    %5650 = vmatpush1.msra.mxu0 0.0
    %5651 = vmatprep.subr.mxu0 0.0
    %5652 = vmatpush1.msra.mxu0 0.0
    %5653 = vmatprep.subr.mxu0 0.0
    %5654 = vmatpush1.msra.mxu0 0.0
    %5655 = vmatprep.subr.mxu0 0.0
    %5656 = vmatpush1.msra.mxu0 0.0
    %5657 = vmatprep.subr.mxu0 0.0
    %5658 = vmatpush1.msra.mxu0 0.0
    %5659 = vmatprep.subr.mxu0 0.0
    %5660 = vmatpush1.msra.mxu0 0.0
    %5661 = vmatprep.subr.mxu0 0.0
    %5662 = vmatpush1.msra.mxu0 0.0
    %5663 = vmatprep.subr.mxu0 0.0
    %5664 = vmatpush1.msra.mxu0 0.0
    %5665 = vmatprep.subr.mxu0 0.0
    %5666 = vmatpush1.msra.mxu0 0.0
    %5667 = vmatprep.subr.mxu0 0.0
    %5668 = vmatpush1.msra.mxu0 0.0
    %5669 = vmatprep.subr.mxu0 0.0
    %5670 = vmatpush1.msra.mxu0 0.0
    %5671 = vmatprep.subr.mxu0 0.0
    %5672 = vmatpush1.msra.mxu0 0.0
    %5673 = vmatprep.subr.mxu0 0.0
    %5674 = vmatpush1.msra.mxu0 0.0
    %5675 = vmatprep.subr.mxu0 0.0
    %5676 = vmatpush1.msra.mxu0 0.0
    %5677 = vmatprep.subr.mxu0 0.0
    %5678 = vmatpush1.msra.mxu0 0.0
    %5679 = vmatprep.subr.mxu0 0.0
    %5680 = vmatpush1.msra.mxu0 0.0
    %5681 = vmatprep.subr.mxu0 0.0
    %5682 = vmatpush1.msra.mxu0 0.0
    %5683 = vmatprep.subr.mxu0 0.0
    %5684 = vmatpush1.msra.mxu0 0.0
    %5685 = vmatprep.mubr.f32.mxu0 0.0
    %5686 = vmatmul.mubr.f32.gmra.mrb[0].mxu0 %v5010
    %v5687 = vpop.f32.mrb[0].mxu0
    %v5688 = vadd.f32 0.0, %v5687
    %v5689 = vpop.f32.mrb[0].mxu0
    %v5690 = vadd.f32 0.0, %v5689
    %5691 = vdwg.mxu0
    %v5693 = vsel %vm175, %v5549, 0
    %5695 = vmatprep.subr.mxu0 %v143
    %5696 = vmatpush1.msra.mxu0 %v142
    %5697 = vmatprep.subr.mxu0 %v695
    %5698 = vmatpush1.msra.mxu0 %v692
    %5699 = vmatprep.subr.mxu0 0.0
    %5700 = vmatpush1.msra.mxu0 0.0
    %5701 = vmatprep.subr.mxu0 0.0
    %5702 = vmatpush1.msra.mxu0 0.0
    %5703 = vmatprep.subr.mxu0 0.0
    %5704 = vmatpush1.msra.mxu0 0.0
    %5705 = vmatprep.subr.mxu0 0.0
    %5706 = vmatpush1.msra.mxu0 0.0
    %5707 = vmatprep.subr.mxu0 0.0
    %5708 = vmatpush1.msra.mxu0 0.0
    %5709 = vmatprep.subr.mxu0 0.0
    %5710 = vmatpush1.msra.mxu0 0.0
    %5711 = vmatprep.subr.mxu0 0.0
    %5712 = vmatpush1.msra.mxu0 0.0
    %5713 = vmatprep.subr.mxu0 0.0
    %5714 = vmatpush1.msra.mxu0 0.0
    %5715 = vmatprep.subr.mxu0 0.0
    %5716 = vmatpush1.msra.mxu0 0.0
    %5717 = vmatprep.subr.mxu0 0.0
    %5718 = vmatpush1.msra.mxu0 0.0
    %5719 = vmatprep.subr.mxu0 0.0
    %5720 = vmatpush1.msra.mxu0 0.0
    %5721 = vmatprep.subr.mxu0 0.0
    %5722 = vmatpush1.msra.mxu0 0.0
    %5723 = vmatprep.subr.mxu0 0.0
    %5724 = vmatpush1.msra.mxu0 0.0
    %5725 = vmatprep.subr.mxu0 0.0
    %5726 = vmatpush1.msra.mxu0 0.0
    %5727 = vmatprep.subr.mxu0 0.0
    %5728 = vmatpush1.msra.mxu0 0.0
    %5729 = vmatprep.subr.mxu0 0.0
    %5730 = vmatpush1.msra.mxu0 0.0
    %5731 = vmatprep.subr.mxu0 0.0
    %5732 = vmatpush1.msra.mxu0 0.0
    %5733 = vmatprep.subr.mxu0 0.0
    %5734 = vmatpush1.msra.mxu0 0.0
    %5735 = vmatprep.subr.mxu0 0.0
    %5736 = vmatpush1.msra.mxu0 0.0
    %5737 = vmatprep.subr.mxu0 0.0
    %5738 = vmatpush1.msra.mxu0 0.0
    %5739 = vmatprep.subr.mxu0 0.0
    %5740 = vmatpush1.msra.mxu0 0.0
    %5741 = vmatprep.subr.mxu0 0.0
    %5742 = vmatpush1.msra.mxu0 0.0
    %5743 = vmatprep.subr.mxu0 0.0
    %5744 = vmatpush1.msra.mxu0 0.0
    %5745 = vmatprep.subr.mxu0 0.0
    %5746 = vmatpush1.msra.mxu0 0.0
    %5747 = vmatprep.subr.mxu0 0.0
    %5748 = vmatpush1.msra.mxu0 0.0
    %5749 = vmatprep.subr.mxu0 0.0
    %5750 = vmatpush1.msra.mxu0 0.0
    %5751 = vmatprep.subr.mxu0 0.0
    %5752 = vmatpush1.msra.mxu0 0.0
    %5753 = vmatprep.subr.mxu0 0.0
    %5754 = vmatpush1.msra.mxu0 0.0
    %5755 = vmatprep.subr.mxu0 0.0
    %5756 = vmatpush1.msra.mxu0 0.0
    %5757 = vmatprep.subr.mxu0 0.0
    %5758 = vmatpush1.msra.mxu0 0.0
    %5759 = vmatprep.mubr.f32.mxu0 0.0
    %5760 = vmatmul.mubr.f32.gmra.mrb[0].mxu0 %v5693
    %v5761 = vpop.f32.mrb[0].mxu0
    %v5762 = vadd.f32 %v5617, %v5761
    %v5763 = vpop.f32.mrb[0].mxu0
    %v5764 = vadd.f32 %v5619, %v5763
    %5765 = vdwg.mxu0
    %5766 = vmatprep.subr.mxu0 %v145
    %5767 = vmatpush1.msra.mxu0 %v144
    %5768 = vmatprep.subr.mxu0 %v701
    %5769 = vmatpush1.msra.mxu0 %v698
    %5770 = vmatprep.subr.mxu0 0.0
    %5771 = vmatpush1.msra.mxu0 0.0
    %5772 = vmatprep.subr.mxu0 0.0
    %5773 = vmatpush1.msra.mxu0 0.0
    %5774 = vmatprep.subr.mxu0 0.0
    %5775 = vmatpush1.msra.mxu0 0.0
    %5776 = vmatprep.subr.mxu0 0.0
    %5777 = vmatpush1.msra.mxu0 0.0
    %5778 = vmatprep.subr.mxu0 0.0
    %5779 = vmatpush1.msra.mxu0 0.0
    %5780 = vmatprep.subr.mxu0 0.0
    %5781 = vmatpush1.msra.mxu0 0.0
    %5782 = vmatprep.subr.mxu0 0.0
    %5783 = vmatpush1.msra.mxu0 0.0
    %5784 = vmatprep.subr.mxu0 0.0
    %5785 = vmatpush1.msra.mxu0 0.0
    %5786 = vmatprep.subr.mxu0 0.0
    %5787 = vmatpush1.msra.mxu0 0.0
    %5788 = vmatprep.subr.mxu0 0.0
    %5789 = vmatpush1.msra.mxu0 0.0
    %5790 = vmatprep.subr.mxu0 0.0
    %5791 = vmatpush1.msra.mxu0 0.0
    %5792 = vmatprep.subr.mxu0 0.0
    %5793 = vmatpush1.msra.mxu0 0.0
    %5794 = vmatprep.subr.mxu0 0.0
    %5795 = vmatpush1.msra.mxu0 0.0
    %5796 = vmatprep.subr.mxu0 0.0
    %5797 = vmatpush1.msra.mxu0 0.0
    %5798 = vmatprep.subr.mxu0 0.0
    %5799 = vmatpush1.msra.mxu0 0.0
    %5800 = vmatprep.subr.mxu0 0.0
    %5801 = vmatpush1.msra.mxu0 0.0
    %5802 = vmatprep.subr.mxu0 0.0
    %5803 = vmatpush1.msra.mxu0 0.0
    %5804 = vmatprep.subr.mxu0 0.0
    %5805 = vmatpush1.msra.mxu0 0.0
    %5806 = vmatprep.subr.mxu0 0.0
    %5807 = vmatpush1.msra.mxu0 0.0
    %5808 = vmatprep.subr.mxu0 0.0
    %5809 = vmatpush1.msra.mxu0 0.0
    %5810 = vmatprep.subr.mxu0 0.0
    %5811 = vmatpush1.msra.mxu0 0.0
    %5812 = vmatprep.subr.mxu0 0.0
    %5813 = vmatpush1.msra.mxu0 0.0
    %5814 = vmatprep.subr.mxu0 0.0
    %5815 = vmatpush1.msra.mxu0 0.0
    %5816 = vmatprep.subr.mxu0 0.0
    %5817 = vmatpush1.msra.mxu0 0.0
    %5818 = vmatprep.subr.mxu0 0.0
    %5819 = vmatpush1.msra.mxu0 0.0
    %5820 = vmatprep.subr.mxu0 0.0
    %5821 = vmatpush1.msra.mxu0 0.0
    %5822 = vmatprep.subr.mxu0 0.0
    %5823 = vmatpush1.msra.mxu0 0.0
    %5824 = vmatprep.subr.mxu0 0.0
    %5825 = vmatpush1.msra.mxu0 0.0
    %5826 = vmatprep.subr.mxu0 0.0
    %5827 = vmatpush1.msra.mxu0 0.0
    %5828 = vmatprep.subr.mxu0 0.0
    %5829 = vmatpush1.msra.mxu0 0.0
    %5830 = vmatprep.mubr.f32.mxu0 0.0
    %5831 = vmatmul.mubr.f32.gmra.mrb[0].mxu0 %v5693
    %v5832 = vpop.f32.mrb[0].mxu0
    %v5833 = vadd.f32 %v5688, %v5832
    %v5834 = vpop.f32.mrb[0].mxu0
    %v5835 = vadd.f32 %v5690, %v5834
    %5836 = vdwg.mxu0
    %v5837 = vadd.f32 %v5762, %v849
    %v5838 = vadd.f32 %v5764, %v853
    %v5839 = vadd.f32 %v5833, %v857
    %v5840 = vadd.f32 %v5835, %v861
    %v5841 = vtanh.pop %v5837
    %v5842 = vtanh.pop %v5838
    %v5843 = vadd.f32 %v5839, %v5840
    %v5844 = vxor.u32 %v5843, 2147483648
    %v5845 = vmul.f32 %v5844, 1.442695
    %v5846 = vpow.pop %v5845
    %v5847 = vadd.f32 %v5846, 1.0
    %v5848 = vrcp.pop %v5847
    %v5849 = vmul.f32 1.0, %v5848
    %v5850 = vsub.f32 %v5842, %v5841
    %v5851 = vmul.f32 %v5849, %v5850
    %v5852 = vadd.f32 %v5841, %v5851
    %5853 = vmatprep.subr.mxu0 %v168
    %5854 = vmatpush1.msra.mxu0 %v167
    %5855 = vmatprep.subr.mxu0 0.0
    %5856 = vmatpush1.msra.mxu0 0.0
    %5857 = vmatprep.subr.mxu0 0.0
    %5858 = vmatpush1.msra.mxu0 0.0
    %5859 = vmatprep.subr.mxu0 0.0
    %5860 = vmatpush1.msra.mxu0 0.0
    %5861 = vmatprep.subr.mxu0 0.0
    %5862 = vmatpush1.msra.mxu0 0.0
    %5863 = vmatprep.subr.mxu0 0.0
    %5864 = vmatpush1.msra.mxu0 0.0
    %5865 = vmatprep.subr.mxu0 0.0
    %5866 = vmatpush1.msra.mxu0 0.0
    %5867 = vmatprep.subr.mxu0 0.0
    %5868 = vmatpush1.msra.mxu0 0.0
    %5869 = vmatprep.subr.mxu0 0.0
    %5870 = vmatpush1.msra.mxu0 0.0
    %5871 = vmatprep.subr.mxu0 0.0
    %5872 = vmatpush1.msra.mxu0 0.0
    %5873 = vmatprep.subr.mxu0 0.0
    %5874 = vmatpush1.msra.mxu0 0.0
    %5875 = vmatprep.subr.mxu0 0.0
    %5876 = vmatpush1.msra.mxu0 0.0
    %5877 = vmatprep.subr.mxu0 0.0
    %5878 = vmatpush1.msra.mxu0 0.0
    %5879 = vmatprep.subr.mxu0 0.0
    %5880 = vmatpush1.msra.mxu0 0.0
    %5881 = vmatprep.subr.mxu0 0.0
    %5882 = vmatpush1.msra.mxu0 0.0
    %5883 = vmatprep.subr.mxu0 0.0
    %5884 = vmatpush1.msra.mxu0 0.0
    %5885 = vmatprep.subr.mxu0 0.0
    %5886 = vmatpush1.msra.mxu0 0.0
    %5887 = vmatprep.subr.mxu0 0.0
    %5888 = vmatpush1.msra.mxu0 0.0
    %5889 = vmatprep.subr.mxu0 0.0
    %5890 = vmatpush1.msra.mxu0 0.0
    %5891 = vmatprep.subr.mxu0 0.0
    %5892 = vmatpush1.msra.mxu0 0.0
    %5893 = vmatprep.subr.mxu0 0.0
    %5894 = vmatpush1.msra.mxu0 0.0
    %5895 = vmatprep.subr.mxu0 0.0
    %5896 = vmatpush1.msra.mxu0 0.0
    %5897 = vmatprep.subr.mxu0 0.0
    %5898 = vmatpush1.msra.mxu0 0.0
    %5899 = vmatprep.subr.mxu0 0.0
    %5900 = vmatpush1.msra.mxu0 0.0
    %5901 = vmatprep.subr.mxu0 0.0
    %5902 = vmatpush1.msra.mxu0 0.0
    %5903 = vmatprep.subr.mxu0 0.0
    %5904 = vmatpush1.msra.mxu0 0.0
    %5905 = vmatprep.subr.mxu0 0.0
    %5906 = vmatpush1.msra.mxu0 0.0
    %5907 = vmatprep.subr.mxu0 0.0
    %5908 = vmatpush1.msra.mxu0 0.0
    %5909 = vmatprep.subr.mxu0 0.0
    %5910 = vmatpush1.msra.mxu0 0.0
    %5911 = vmatprep.subr.mxu0 0.0
    %5912 = vmatpush1.msra.mxu0 0.0
    %5913 = vmatprep.subr.mxu0 0.0
    %5914 = vmatpush1.msra.mxu0 0.0
    %5915 = vmatprep.subr.mxu0 0.0
    %5916 = vmatpush1.msra.mxu0 0.0
    %5917 = vmatprep.mubr.f32.mxu0 0.0
    %5918 = vmatmul.mubr.f32.gmra.mrb[0].mxu0 %v5171
    %v5919 = vpop.f32.mrb[0].mxu0
    %v5920 = vadd.f32 0.0, %v5919
    %v5921 = vpop.f32.mrb[0].mxu0
    %v5922 = vadd.f32 0.0, %v5921
    %5923 = vdwg.mxu0
    %5924 = vmatprep.subr.mxu0 %v170
    %5925 = vmatpush1.msra.mxu0 %v169
    %5926 = vmatprep.subr.mxu0 0.0
    %5927 = vmatpush1.msra.mxu0 0.0
    %5928 = vmatprep.subr.mxu0 0.0
    %5929 = vmatpush1.msra.mxu0 0.0
    %5930 = vmatprep.subr.mxu0 0.0
    %5931 = vmatpush1.msra.mxu0 0.0
    %5932 = vmatprep.subr.mxu0 0.0
    %5933 = vmatpush1.msra.mxu0 0.0
    %5934 = vmatprep.subr.mxu0 0.0
    %5935 = vmatpush1.msra.mxu0 0.0
    %5936 = vmatprep.subr.mxu0 0.0
    %5937 = vmatpush1.msra.mxu0 0.0
    %5938 = vmatprep.subr.mxu0 0.0
    %5939 = vmatpush1.msra.mxu0 0.0
    %5940 = vmatprep.subr.mxu0 0.0
    %5941 = vmatpush1.msra.mxu0 0.0
    %5942 = vmatprep.subr.mxu0 0.0
    %5943 = vmatpush1.msra.mxu0 0.0
    %5944 = vmatprep.subr.mxu0 0.0
    %5945 = vmatpush1.msra.mxu0 0.0
    %5946 = vmatprep.subr.mxu0 0.0
    %5947 = vmatpush1.msra.mxu0 0.0
    %5948 = vmatprep.subr.mxu0 0.0
    %5949 = vmatpush1.msra.mxu0 0.0
    %5950 = vmatprep.subr.mxu0 0.0
    %5951 = vmatpush1.msra.mxu0 0.0
    %5952 = vmatprep.subr.mxu0 0.0
    %5953 = vmatpush1.msra.mxu0 0.0
    %5954 = vmatprep.subr.mxu0 0.0
    %5955 = vmatpush1.msra.mxu0 0.0
    %5956 = vmatprep.subr.mxu0 0.0
    %5957 = vmatpush1.msra.mxu0 0.0
    %5958 = vmatprep.subr.mxu0 0.0
    %5959 = vmatpush1.msra.mxu0 0.0
    %5960 = vmatprep.subr.mxu0 0.0
    %5961 = vmatpush1.msra.mxu0 0.0
    %5962 = vmatprep.subr.mxu0 0.0
    %5963 = vmatpush1.msra.mxu0 0.0
    %5964 = vmatprep.subr.mxu0 0.0
    %5965 = vmatpush1.msra.mxu0 0.0
    %5966 = vmatprep.subr.mxu0 0.0
    %5967 = vmatpush1.msra.mxu0 0.0
    %5968 = vmatprep.subr.mxu0 0.0
    %5969 = vmatpush1.msra.mxu0 0.0
    %5970 = vmatprep.subr.mxu0 0.0
    %5971 = vmatpush1.msra.mxu0 0.0
    %5972 = vmatprep.subr.mxu0 0.0
    %5973 = vmatpush1.msra.mxu0 0.0
    %5974 = vmatprep.subr.mxu0 0.0
    %5975 = vmatpush1.msra.mxu0 0.0
    %5976 = vmatprep.subr.mxu0 0.0
    %5977 = vmatpush1.msra.mxu0 0.0
    %5978 = vmatprep.subr.mxu0 0.0
    %5979 = vmatpush1.msra.mxu0 0.0
    %5980 = vmatprep.subr.mxu0 0.0
    %5981 = vmatpush1.msra.mxu0 0.0
    %5982 = vmatprep.subr.mxu0 0.0
    %5983 = vmatpush1.msra.mxu0 0.0
    %5984 = vmatprep.subr.mxu0 0.0
    %5985 = vmatpush1.msra.mxu0 0.0
    %5986 = vmatprep.subr.mxu0 0.0
    %5987 = vmatpush1.msra.mxu0 0.0
    %5988 = vmatprep.mubr.f32.mxu0 0.0
    %5989 = vmatmul.mubr.f32.gmra.mrb[0].mxu0 %v5171
    %v5990 = vpop.f32.mrb[0].mxu0
    %v5991 = vadd.f32 0.0, %v5990
    %v5992 = vpop.f32.mrb[0].mxu0
    %v5993 = vadd.f32 0.0, %v5992
    %5994 = vdwg.mxu0
    %v5996 = vsel %vm530, %v5852, 0
    %5998 = vmatprep.subr.mxu0 %v160
    %5999 = vmatpush1.msra.mxu0 %v159
    %6000 = vmatprep.subr.mxu0 %v1034
    %6001 = vmatpush1.msra.mxu0 %v1031
    %6002 = vmatprep.subr.mxu0 0.0
    %6003 = vmatpush1.msra.mxu0 0.0
    %6004 = vmatprep.subr.mxu0 0.0
    %6005 = vmatpush1.msra.mxu0 0.0
    %6006 = vmatprep.subr.mxu0 0.0
    %6007 = vmatpush1.msra.mxu0 0.0
    %6008 = vmatprep.subr.mxu0 0.0
    %6009 = vmatpush1.msra.mxu0 0.0
    %6010 = vmatprep.subr.mxu0 0.0
    %6011 = vmatpush1.msra.mxu0 0.0
    %6012 = vmatprep.subr.mxu0 0.0
    %6013 = vmatpush1.msra.mxu0 0.0
    %6014 = vmatprep.subr.mxu0 0.0
    %6015 = vmatpush1.msra.mxu0 0.0
    %6016 = vmatprep.subr.mxu0 0.0
    %6017 = vmatpush1.msra.mxu0 0.0
    %6018 = vmatprep.subr.mxu0 0.0
    %6019 = vmatpush1.msra.mxu0 0.0
    %6020 = vmatprep.subr.mxu0 0.0
    %6021 = vmatpush1.msra.mxu0 0.0
    %6022 = vmatprep.subr.mxu0 0.0
    %6023 = vmatpush1.msra.mxu0 0.0
    %6024 = vmatprep.subr.mxu0 0.0
    %6025 = vmatpush1.msra.mxu0 0.0
    %6026 = vmatprep.subr.mxu0 0.0
    %6027 = vmatpush1.msra.mxu0 0.0
    %6028 = vmatprep.subr.mxu0 0.0
    %6029 = vmatpush1.msra.mxu0 0.0
    %6030 = vmatprep.subr.mxu0 0.0
    %6031 = vmatpush1.msra.mxu0 0.0
    %6032 = vmatprep.subr.mxu0 0.0
    %6033 = vmatpush1.msra.mxu0 0.0
    %6034 = vmatprep.subr.mxu0 0.0
    %6035 = vmatpush1.msra.mxu0 0.0
    %6036 = vmatprep.subr.mxu0 0.0
    %6037 = vmatpush1.msra.mxu0 0.0
    %6038 = vmatprep.subr.mxu0 0.0
    %6039 = vmatpush1.msra.mxu0 0.0
    %6040 = vmatprep.subr.mxu0 0.0
    %6041 = vmatpush1.msra.mxu0 0.0
    %6042 = vmatprep.subr.mxu0 0.0
    %6043 = vmatpush1.msra.mxu0 0.0
    %6044 = vmatprep.subr.mxu0 0.0
    %6045 = vmatpush1.msra.mxu0 0.0
    %6046 = vmatprep.subr.mxu0 0.0
    %6047 = vmatpush1.msra.mxu0 0.0
    %6048 = vmatprep.subr.mxu0 0.0
    %6049 = vmatpush1.msra.mxu0 0.0
    %6050 = vmatprep.subr.mxu0 0.0
    %6051 = vmatpush1.msra.mxu0 0.0
    %6052 = vmatprep.subr.mxu0 0.0
    %6053 = vmatpush1.msra.mxu0 0.0
    %6054 = vmatprep.subr.mxu0 0.0
    %6055 = vmatpush1.msra.mxu0 0.0
    %6056 = vmatprep.subr.mxu0 0.0
    %6057 = vmatpush1.msra.mxu0 0.0
    %6058 = vmatprep.subr.mxu0 0.0
    %6059 = vmatpush1.msra.mxu0 0.0
    %6060 = vmatprep.subr.mxu0 0.0
    %6061 = vmatpush1.msra.mxu0 0.0
    %6062 = vmatprep.mubr.f32.mxu0 0.0
    %6063 = vmatmul.mubr.f32.gmra.mrb[0].mxu0 %v5996
    %v6064 = vpop.f32.mrb[0].mxu0
    %v6065 = vadd.f32 %v5920, %v6064
    %v6066 = vpop.f32.mrb[0].mxu0
    %v6067 = vadd.f32 %v5922, %v6066
    %6068 = vdwg.mxu0
    %6069 = vmatprep.subr.mxu0 %v162
    %6070 = vmatpush1.msra.mxu0 %v161
    %6071 = vmatprep.subr.mxu0 %v1040
    %6072 = vmatpush1.msra.mxu0 %v1037
    %6073 = vmatprep.subr.mxu0 0.0
    %6074 = vmatpush1.msra.mxu0 0.0
    %6075 = vmatprep.subr.mxu0 0.0
    %6076 = vmatpush1.msra.mxu0 0.0
    %6077 = vmatprep.subr.mxu0 0.0
    %6078 = vmatpush1.msra.mxu0 0.0
    %6079 = vmatprep.subr.mxu0 0.0
    %6080 = vmatpush1.msra.mxu0 0.0
    %6081 = vmatprep.subr.mxu0 0.0
    %6082 = vmatpush1.msra.mxu0 0.0
    %6083 = vmatprep.subr.mxu0 0.0
    %6084 = vmatpush1.msra.mxu0 0.0
    %6085 = vmatprep.subr.mxu0 0.0
    %6086 = vmatpush1.msra.mxu0 0.0
    %6087 = vmatprep.subr.mxu0 0.0
    %6088 = vmatpush1.msra.mxu0 0.0
    %6089 = vmatprep.subr.mxu0 0.0
    %6090 = vmatpush1.msra.mxu0 0.0
    %6091 = vmatprep.subr.mxu0 0.0
    %6092 = vmatpush1.msra.mxu0 0.0
    %6093 = vmatprep.subr.mxu0 0.0
    %6094 = vmatpush1.msra.mxu0 0.0
    %6095 = vmatprep.subr.mxu0 0.0
    %6096 = vmatpush1.msra.mxu0 0.0
    %6097 = vmatprep.subr.mxu0 0.0
    %6098 = vmatpush1.msra.mxu0 0.0
    %6099 = vmatprep.subr.mxu0 0.0
    %6100 = vmatpush1.msra.mxu0 0.0
    %6101 = vmatprep.subr.mxu0 0.0
    %6102 = vmatpush1.msra.mxu0 0.0
    %6103 = vmatprep.subr.mxu0 0.0
    %6104 = vmatpush1.msra.mxu0 0.0
    %6105 = vmatprep.subr.mxu0 0.0
    %6106 = vmatpush1.msra.mxu0 0.0
    %6107 = vmatprep.subr.mxu0 0.0
    %6108 = vmatpush1.msra.mxu0 0.0
    %6109 = vmatprep.subr.mxu0 0.0
    %6110 = vmatpush1.msra.mxu0 0.0
    %6111 = vmatprep.subr.mxu0 0.0
    %6112 = vmatpush1.msra.mxu0 0.0
    %6113 = vmatprep.subr.mxu0 0.0
    %6114 = vmatpush1.msra.mxu0 0.0
    %6115 = vmatprep.subr.mxu0 0.0
    %6116 = vmatpush1.msra.mxu0 0.0
    %6117 = vmatprep.subr.mxu0 0.0
    %6118 = vmatpush1.msra.mxu0 0.0
    %6119 = vmatprep.subr.mxu0 0.0
    %6120 = vmatpush1.msra.mxu0 0.0
    %6121 = vmatprep.subr.mxu0 0.0
    %6122 = vmatpush1.msra.mxu0 0.0
    %6123 = vmatprep.subr.mxu0 0.0
    %6124 = vmatpush1.msra.mxu0 0.0
    %6125 = vmatprep.subr.mxu0 0.0
    %6126 = vmatpush1.msra.mxu0 0.0
    %6127 = vmatprep.subr.mxu0 0.0
    %6128 = vmatpush1.msra.mxu0 0.0
    %6129 = vmatprep.subr.mxu0 0.0
    %6130 = vmatpush1.msra.mxu0 0.0
    %6131 = vmatprep.subr.mxu0 0.0
    %6132 = vmatpush1.msra.mxu0 0.0
    %6133 = vmatprep.mubr.f32.mxu0 0.0
    %6134 = vmatmul.mubr.f32.gmra.mrb[0].mxu0 %v5996
    %v6135 = vpop.f32.mrb[0].mxu0
    %v6136 = vadd.f32 %v5991, %v6135
    %v6137 = vpop.f32.mrb[0].mxu0
    %v6138 = vadd.f32 %v5993, %v6137
    %6139 = vdwg.mxu0
    %v6140 = vadd.f32 %v6065, %v1188
    %v6141 = vadd.f32 %v6067, %v1192
    %v6142 = vadd.f32 %v6136, %v1196
    %v6143 = vadd.f32 %v6138, %v1200
    %v6144 = vtanh.pop %v6140
    %v6145 = vtanh.pop %v6141
    %v6146 = vadd.f32 %v6142, %v6143
    %v6147 = vxor.u32 %v6146, 2147483648
    %v6148 = vmul.f32 %v6147, 1.442695
    %v6149 = vpow.pop %v6148
    %v6150 = vadd.f32 %v6149, 1.0
    %v6151 = vrcp.pop %v6150
    %v6152 = vmul.f32 1.0, %v6151
    %v6153 = vsub.f32 %v6145, %v6144
    %v6154 = vmul.f32 %v6152, %v6153
    %v6155 = vadd.f32 %v6144, %v6154
    %v6157 = vsel %vm882, %v6155, 0
    %6159 = vmatprep.subr.mxu0 0.0
    %6160 = vmatpush1.msra.mxu0 %v172
    %6161 = vmatprep.subr.mxu0 0.0
    %6162 = vmatpush1.msra.mxu0 0.0
    %6163 = vmatprep.subr.mxu0 0.0
    %6164 = vmatpush1.msra.mxu0 0.0
    %6165 = vmatprep.subr.mxu0 0.0
    %6166 = vmatpush1.msra.mxu0 0.0
    %6167 = vmatprep.subr.mxu0 0.0
    %6168 = vmatpush1.msra.mxu0 0.0
    %6169 = vmatprep.subr.mxu0 0.0
    %6170 = vmatpush1.msra.mxu0 0.0
    %6171 = vmatprep.subr.mxu0 0.0
    %6172 = vmatpush1.msra.mxu0 0.0
    %6173 = vmatprep.subr.mxu0 0.0
    %6174 = vmatpush1.msra.mxu0 0.0
    %6175 = vmatprep.subr.mxu0 0.0
    %6176 = vmatpush1.msra.mxu0 0.0
    %6177 = vmatprep.subr.mxu0 0.0
    %6178 = vmatpush1.msra.mxu0 0.0
    %6179 = vmatprep.subr.mxu0 0.0
    %6180 = vmatpush1.msra.mxu0 0.0
    %6181 = vmatprep.subr.mxu0 0.0
    %6182 = vmatpush1.msra.mxu0 0.0
    %6183 = vmatprep.subr.mxu0 0.0
    %6184 = vmatpush1.msra.mxu0 0.0
    %6185 = vmatprep.subr.mxu0 0.0
    %6186 = vmatpush1.msra.mxu0 0.0
    %6187 = vmatprep.subr.mxu0 0.0
    %6188 = vmatpush1.msra.mxu0 0.0
    %6189 = vmatprep.subr.mxu0 0.0
    %6190 = vmatpush1.msra.mxu0 0.0
    %6191 = vmatprep.subr.mxu0 0.0
    %6192 = vmatpush1.msra.mxu0 0.0
    %6193 = vmatprep.subr.mxu0 0.0
    %6194 = vmatpush1.msra.mxu0 0.0
    %6195 = vmatprep.subr.mxu0 0.0
    %6196 = vmatpush1.msra.mxu0 0.0
    %6197 = vmatprep.subr.mxu0 0.0
    %6198 = vmatpush1.msra.mxu0 0.0
    %6199 = vmatprep.subr.mxu0 0.0
    %6200 = vmatpush1.msra.mxu0 0.0
    %6201 = vmatprep.subr.mxu0 0.0
    %6202 = vmatpush1.msra.mxu0 0.0
    %6203 = vmatprep.subr.mxu0 0.0
    %6204 = vmatpush1.msra.mxu0 0.0
    %6205 = vmatprep.subr.mxu0 0.0
    %6206 = vmatpush1.msra.mxu0 0.0
    %6207 = vmatprep.subr.mxu0 0.0
    %6208 = vmatpush1.msra.mxu0 0.0
    %6209 = vmatprep.subr.mxu0 0.0
    %6210 = vmatpush1.msra.mxu0 0.0
    %6211 = vmatprep.subr.mxu0 0.0
    %6212 = vmatpush1.msra.mxu0 0.0
    %6213 = vmatprep.subr.mxu0 0.0
    %6214 = vmatpush1.msra.mxu0 0.0
    %6215 = vmatprep.subr.mxu0 0.0
    %6216 = vmatpush1.msra.mxu0 0.0
    %6217 = vmatprep.subr.mxu0 0.0
    %6218 = vmatpush1.msra.mxu0 0.0
    %6219 = vmatprep.subr.mxu0 0.0
    %6220 = vmatpush1.msra.mxu0 0.0
    %6221 = vmatprep.subr.mxu0 0.0
    %6222 = vmatpush1.msra.mxu0 0.0
    %6223 = vmatprep.mubr.f32.mxu0 0.0
    %6224 = vmatmul.mubr.f32.gmra.mrb[0].mxu0 %v6157
    %v6225 = vpop.f32.mrb[0].mxu0
    %v6226 = vadd.f32 %v1225, %v6225
    %v6227 = vpop.f32.mrb[0].mxu0
    %6228 = vdwg.mxu0
    %s6229 = scalar_lea.vmem [#allocation14], 10
    %6230 = vst [vmem:[%s6229] sm:$0x3] %v6226
    %s6231 = scalar_lea.vmem %s0, 12
    %v6232 = vld [vmem:[%s6231] sm:$0x3]
    %6233 = vmatprep.subr.mxu0 %v134
    %6234 = vmatpush1.msra.mxu0 %v133
    %6235 = vmatprep.subr.mxu0 %v184
    %6236 = vmatpush1.msra.mxu0 %v181
    %6237 = vmatprep.subr.mxu0 0.0
    %6238 = vmatpush1.msra.mxu0 0.0
    %6239 = vmatprep.subr.mxu0 0.0
    %6240 = vmatpush1.msra.mxu0 0.0
    %6241 = vmatprep.subr.mxu0 0.0
    %6242 = vmatpush1.msra.mxu0 0.0
    %6243 = vmatprep.subr.mxu0 0.0
    %6244 = vmatpush1.msra.mxu0 0.0
    %6245 = vmatprep.subr.mxu0 0.0
    %6246 = vmatpush1.msra.mxu0 0.0
    %6247 = vmatprep.subr.mxu0 0.0
    %6248 = vmatpush1.msra.mxu0 0.0
    %6249 = vmatprep.subr.mxu0 0.0
    %6250 = vmatpush1.msra.mxu0 0.0
    %6251 = vmatprep.subr.mxu0 0.0
    %6252 = vmatpush1.msra.mxu0 0.0
    %6253 = vmatprep.subr.mxu0 0.0
    %6254 = vmatpush1.msra.mxu0 0.0
    %6255 = vmatprep.subr.mxu0 0.0
    %6256 = vmatpush1.msra.mxu0 0.0
    %6257 = vmatprep.subr.mxu0 0.0
    %6258 = vmatpush1.msra.mxu0 0.0
    %6259 = vmatprep.subr.mxu0 0.0
    %6260 = vmatpush1.msra.mxu0 0.0
    %6261 = vmatprep.subr.mxu0 0.0
    %6262 = vmatpush1.msra.mxu0 0.0
    %6263 = vmatprep.subr.mxu0 0.0
    %6264 = vmatpush1.msra.mxu0 0.0
    %6265 = vmatprep.subr.mxu0 0.0
    %6266 = vmatpush1.msra.mxu0 0.0
    %6267 = vmatprep.subr.mxu0 0.0
    %6268 = vmatpush1.msra.mxu0 0.0
    %6269 = vmatprep.subr.mxu0 0.0
    %6270 = vmatpush1.msra.mxu0 0.0
    %6271 = vmatprep.subr.mxu0 0.0
    %6272 = vmatpush1.msra.mxu0 0.0
    %6273 = vmatprep.subr.mxu0 0.0
    %6274 = vmatpush1.msra.mxu0 0.0
    %6275 = vmatprep.subr.mxu0 0.0
    %6276 = vmatpush1.msra.mxu0 0.0
    %6277 = vmatprep.subr.mxu0 0.0
    %6278 = vmatpush1.msra.mxu0 0.0
    %6279 = vmatprep.subr.mxu0 0.0
    %6280 = vmatpush1.msra.mxu0 0.0
    %6281 = vmatprep.subr.mxu0 0.0
    %6282 = vmatpush1.msra.mxu0 0.0
    %6283 = vmatprep.subr.mxu0 0.0
    %6284 = vmatpush1.msra.mxu0 0.0
    %6285 = vmatprep.subr.mxu0 0.0
    %6286 = vmatpush1.msra.mxu0 0.0
    %6287 = vmatprep.subr.mxu0 0.0
    %6288 = vmatpush1.msra.mxu0 0.0
    %6289 = vmatprep.subr.mxu0 0.0
    %6290 = vmatpush1.msra.mxu0 0.0
    %6291 = vmatprep.subr.mxu0 0.0
    %6292 = vmatpush1.msra.mxu0 0.0
    %6293 = vmatprep.subr.mxu0 0.0
    %6294 = vmatpush1.msra.mxu0 0.0
    %6295 = vmatprep.subr.mxu0 0.0
    %6296 = vmatpush1.msra.mxu0 0.0
    %6297 = vmatprep.mubr.f32.mxu0 0.0
    %6298 = vmatmul.mubr.f32.gmra.mrb[0].mxu0 %v5693
    %v6299 = vpop.f32.mrb[0].mxu0
    %v6300 = vadd.f32 0.0, %v6299
    %v6301 = vpop.f32.mrb[0].mxu0
    %v6302 = vadd.f32 0.0, %v6301
    %6303 = vdwg.mxu0
    %6304 = vmatprep.subr.mxu0 %v136
    %6305 = vmatpush1.msra.mxu0 %v135
    %6306 = vmatprep.subr.mxu0 %v190
    %6307 = vmatpush1.msra.mxu0 %v187
    %6308 = vmatprep.subr.mxu0 0.0
    %6309 = vmatpush1.msra.mxu0 0.0
    %6310 = vmatprep.subr.mxu0 0.0
    %6311 = vmatpush1.msra.mxu0 0.0
    %6312 = vmatprep.subr.mxu0 0.0
    %6313 = vmatpush1.msra.mxu0 0.0
    %6314 = vmatprep.subr.mxu0 0.0
    %6315 = vmatpush1.msra.mxu0 0.0
    %6316 = vmatprep.subr.mxu0 0.0
    %6317 = vmatpush1.msra.mxu0 0.0
    %6318 = vmatprep.subr.mxu0 0.0
    %6319 = vmatpush1.msra.mxu0 0.0
    %6320 = vmatprep.subr.mxu0 0.0
    %6321 = vmatpush1.msra.mxu0 0.0
    %6322 = vmatprep.subr.mxu0 0.0
    %6323 = vmatpush1.msra.mxu0 0.0
    %6324 = vmatprep.subr.mxu0 0.0
    %6325 = vmatpush1.msra.mxu0 0.0
    %6326 = vmatprep.subr.mxu0 0.0
    %6327 = vmatpush1.msra.mxu0 0.0
    %6328 = vmatprep.subr.mxu0 0.0
    %6329 = vmatpush1.msra.mxu0 0.0
    %6330 = vmatprep.subr.mxu0 0.0
    %6331 = vmatpush1.msra.mxu0 0.0
    %6332 = vmatprep.subr.mxu0 0.0
    %6333 = vmatpush1.msra.mxu0 0.0
    %6334 = vmatprep.subr.mxu0 0.0
    %6335 = vmatpush1.msra.mxu0 0.0
    %6336 = vmatprep.subr.mxu0 0.0
    %6337 = vmatpush1.msra.mxu0 0.0
    %6338 = vmatprep.subr.mxu0 0.0
    %6339 = vmatpush1.msra.mxu0 0.0
    %6340 = vmatprep.subr.mxu0 0.0
    %6341 = vmatpush1.msra.mxu0 0.0
    %6342 = vmatprep.subr.mxu0 0.0
    %6343 = vmatpush1.msra.mxu0 0.0
    %6344 = vmatprep.subr.mxu0 0.0
    %6345 = vmatpush1.msra.mxu0 0.0
    %6346 = vmatprep.subr.mxu0 0.0
    %6347 = vmatpush1.msra.mxu0 0.0
    %6348 = vmatprep.subr.mxu0 0.0
    %6349 = vmatpush1.msra.mxu0 0.0
    %6350 = vmatprep.subr.mxu0 0.0
    %6351 = vmatpush1.msra.mxu0 0.0
    %6352 = vmatprep.subr.mxu0 0.0
    %6353 = vmatpush1.msra.mxu0 0.0
    %6354 = vmatprep.subr.mxu0 0.0
    %6355 = vmatpush1.msra.mxu0 0.0
    %6356 = vmatprep.subr.mxu0 0.0
    %6357 = vmatpush1.msra.mxu0 0.0
    %6358 = vmatprep.subr.mxu0 0.0
    %6359 = vmatpush1.msra.mxu0 0.0
    %6360 = vmatprep.subr.mxu0 0.0
    %6361 = vmatpush1.msra.mxu0 0.0
    %6362 = vmatprep.subr.mxu0 0.0
    %6363 = vmatpush1.msra.mxu0 0.0
    %6364 = vmatprep.subr.mxu0 0.0
    %6365 = vmatpush1.msra.mxu0 0.0
    %6366 = vmatprep.subr.mxu0 0.0
    %6367 = vmatpush1.msra.mxu0 0.0
    %6368 = vmatprep.mubr.f32.mxu0 0.0
    %6369 = vmatmul.mubr.f32.gmra.mrb[0].mxu0 %v5693
    %v6370 = vpop.f32.mrb[0].mxu0
    %v6371 = vadd.f32 0.0, %v6370
    %v6372 = vpop.f32.mrb[0].mxu0
    %v6373 = vadd.f32 0.0, %v6372
    %6374 = vdwg.mxu0
    %v6376 = vsel %vm338, %v6232, 0
    %6378 = vmatprep.subr.mxu0 %v345
    %6379 = vmatpush1.msra.mxu0 %v343
    %6380 = vmatprep.subr.mxu0 0.0
    %6381 = vmatpush1.msra.mxu0 0.0
    %6382 = vmatprep.subr.mxu0 0.0
    %6383 = vmatpush1.msra.mxu0 0.0
    %6384 = vmatprep.subr.mxu0 0.0
    %6385 = vmatpush1.msra.mxu0 0.0
    %6386 = vmatprep.subr.mxu0 0.0
    %6387 = vmatpush1.msra.mxu0 0.0
    %6388 = vmatprep.subr.mxu0 0.0
    %6389 = vmatpush1.msra.mxu0 0.0
    %6390 = vmatprep.subr.mxu0 0.0
    %6391 = vmatpush1.msra.mxu0 0.0
    %6392 = vmatprep.subr.mxu0 0.0
    %6393 = vmatpush1.msra.mxu0 0.0
    %6394 = vmatprep.subr.mxu0 0.0
    %6395 = vmatpush1.msra.mxu0 0.0
    %6396 = vmatprep.subr.mxu0 0.0
    %6397 = vmatpush1.msra.mxu0 0.0
    %6398 = vmatprep.subr.mxu0 0.0
    %6399 = vmatpush1.msra.mxu0 0.0
    %6400 = vmatprep.subr.mxu0 0.0
    %6401 = vmatpush1.msra.mxu0 0.0
    %6402 = vmatprep.subr.mxu0 0.0
    %6403 = vmatpush1.msra.mxu0 0.0
    %6404 = vmatprep.subr.mxu0 0.0
    %6405 = vmatpush1.msra.mxu0 0.0
    %6406 = vmatprep.subr.mxu0 0.0
    %6407 = vmatpush1.msra.mxu0 0.0
    %6408 = vmatprep.subr.mxu0 0.0
    %6409 = vmatpush1.msra.mxu0 0.0
    %6410 = vmatprep.subr.mxu0 0.0
    %6411 = vmatpush1.msra.mxu0 0.0
    %6412 = vmatprep.subr.mxu0 0.0
    %6413 = vmatpush1.msra.mxu0 0.0
    %6414 = vmatprep.subr.mxu0 0.0
    %6415 = vmatpush1.msra.mxu0 0.0
    %6416 = vmatprep.subr.mxu0 0.0
    %6417 = vmatpush1.msra.mxu0 0.0
    %6418 = vmatprep.subr.mxu0 0.0
    %6419 = vmatpush1.msra.mxu0 0.0
    %6420 = vmatprep.subr.mxu0 0.0
    %6421 = vmatpush1.msra.mxu0 0.0
    %6422 = vmatprep.subr.mxu0 0.0
    %6423 = vmatpush1.msra.mxu0 0.0
    %6424 = vmatprep.subr.mxu0 0.0
    %6425 = vmatpush1.msra.mxu0 0.0
    %6426 = vmatprep.subr.mxu0 0.0
    %6427 = vmatpush1.msra.mxu0 0.0
    %6428 = vmatprep.subr.mxu0 0.0
    %6429 = vmatpush1.msra.mxu0 0.0
    %6430 = vmatprep.subr.mxu0 0.0
    %6431 = vmatpush1.msra.mxu0 0.0
    %6432 = vmatprep.subr.mxu0 0.0
    %6433 = vmatpush1.msra.mxu0 0.0
    %6434 = vmatprep.subr.mxu0 0.0
    %6435 = vmatpush1.msra.mxu0 0.0
    %6436 = vmatprep.subr.mxu0 0.0
    %6437 = vmatpush1.msra.mxu0 0.0
    %6438 = vmatprep.subr.mxu0 0.0
    %6439 = vmatpush1.msra.mxu0 0.0
    %6440 = vmatprep.subr.mxu0 0.0
    %6441 = vmatpush1.msra.mxu0 0.0
    %6442 = vmatprep.mubr.f32.mxu0 0.0
    %6443 = vmatmul.mubr.f32.gmra.mrb[0].mxu0 %v6376
    %v6444 = vpop.f32.mrb[0].mxu0
    %v6445 = vadd.f32 %v6300, %v6444
    %v6446 = vpop.f32.mrb[0].mxu0
    %v6447 = vadd.f32 %v6302, %v6446
    %6448 = vdwg.mxu0
    %6449 = vmatprep.subr.mxu0 %v349
    %6450 = vmatpush1.msra.mxu0 %v347
    %6451 = vmatprep.subr.mxu0 0.0
    %6452 = vmatpush1.msra.mxu0 0.0
    %6453 = vmatprep.subr.mxu0 0.0
    %6454 = vmatpush1.msra.mxu0 0.0
    %6455 = vmatprep.subr.mxu0 0.0
    %6456 = vmatpush1.msra.mxu0 0.0
    %6457 = vmatprep.subr.mxu0 0.0
    %6458 = vmatpush1.msra.mxu0 0.0
    %6459 = vmatprep.subr.mxu0 0.0
    %6460 = vmatpush1.msra.mxu0 0.0
    %6461 = vmatprep.subr.mxu0 0.0
    %6462 = vmatpush1.msra.mxu0 0.0
    %6463 = vmatprep.subr.mxu0 0.0
    %6464 = vmatpush1.msra.mxu0 0.0
    %6465 = vmatprep.subr.mxu0 0.0
    %6466 = vmatpush1.msra.mxu0 0.0
    %6467 = vmatprep.subr.mxu0 0.0
    %6468 = vmatpush1.msra.mxu0 0.0
    %6469 = vmatprep.subr.mxu0 0.0
    %6470 = vmatpush1.msra.mxu0 0.0
    %6471 = vmatprep.subr.mxu0 0.0
    %6472 = vmatpush1.msra.mxu0 0.0
    %6473 = vmatprep.subr.mxu0 0.0
    %6474 = vmatpush1.msra.mxu0 0.0
    %6475 = vmatprep.subr.mxu0 0.0
    %6476 = vmatpush1.msra.mxu0 0.0
    %6477 = vmatprep.subr.mxu0 0.0
    %6478 = vmatpush1.msra.mxu0 0.0
    %6479 = vmatprep.subr.mxu0 0.0
    %6480 = vmatpush1.msra.mxu0 0.0
    %6481 = vmatprep.subr.mxu0 0.0
    %6482 = vmatpush1.msra.mxu0 0.0
    %6483 = vmatprep.subr.mxu0 0.0
    %6484 = vmatpush1.msra.mxu0 0.0
    %6485 = vmatprep.subr.mxu0 0.0
    %6486 = vmatpush1.msra.mxu0 0.0
    %6487 = vmatprep.subr.mxu0 0.0
    %6488 = vmatpush1.msra.mxu0 0.0
    %6489 = vmatprep.subr.mxu0 0.0
    %6490 = vmatpush1.msra.mxu0 0.0
    %6491 = vmatprep.subr.mxu0 0.0
    %6492 = vmatpush1.msra.mxu0 0.0
    %6493 = vmatprep.subr.mxu0 0.0
    %6494 = vmatpush1.msra.mxu0 0.0
    %6495 = vmatprep.subr.mxu0 0.0
    %6496 = vmatpush1.msra.mxu0 0.0
    %6497 = vmatprep.subr.mxu0 0.0
    %6498 = vmatpush1.msra.mxu0 0.0
    %6499 = vmatprep.subr.mxu0 0.0
    %6500 = vmatpush1.msra.mxu0 0.0
    %6501 = vmatprep.subr.mxu0 0.0
    %6502 = vmatpush1.msra.mxu0 0.0
    %6503 = vmatprep.subr.mxu0 0.0
    %6504 = vmatpush1.msra.mxu0 0.0
    %6505 = vmatprep.subr.mxu0 0.0
    %6506 = vmatpush1.msra.mxu0 0.0
    %6507 = vmatprep.subr.mxu0 0.0
    %6508 = vmatpush1.msra.mxu0 0.0
    %6509 = vmatprep.subr.mxu0 0.0
    %6510 = vmatpush1.msra.mxu0 0.0
    %6511 = vmatprep.subr.mxu0 0.0
    %6512 = vmatpush1.msra.mxu0 0.0
    %6513 = vmatprep.mubr.f32.mxu0 0.0
    %6514 = vmatmul.mubr.f32.gmra.mrb[0].mxu0 %v6376
    %v6515 = vpop.f32.mrb[0].mxu0
    %v6516 = vadd.f32 %v6371, %v6515
    %v6517 = vpop.f32.mrb[0].mxu0
    %v6518 = vadd.f32 %v6373, %v6517
    %6519 = vdwg.mxu0
    %v6520 = vadd.f32 %v6445, %v497
    %v6521 = vadd.f32 %v6447, %v501
    %v6522 = vadd.f32 %v6516, %v505
    %v6523 = vadd.f32 %v6518, %v509
    %v6524 = vtanh.pop %v6520
    %v6525 = vtanh.pop %v6521
    %v6526 = vadd.f32 %v6522, %v6523
    %v6527 = vxor.u32 %v6526, 2147483648
    %v6528 = vmul.f32 %v6527, 1.442695
    %v6529 = vpow.pop %v6528
    %v6530 = vadd.f32 %v6529, 1.0
    %v6531 = vrcp.pop %v6530
    %v6532 = vmul.f32 1.0, %v6531
    %v6533 = vsub.f32 %v6525, %v6524
    %v6534 = vmul.f32 %v6532, %v6533
    %v6535 = vadd.f32 %v6524, %v6534
    %6536 = vmatprep.subr.mxu0 %v151
    %6537 = vmatpush1.msra.mxu0 %v150
    %6538 = vmatprep.subr.mxu0 %v538
    %6539 = vmatpush1.msra.mxu0 %v535
    %6540 = vmatprep.subr.mxu0 0.0
    %6541 = vmatpush1.msra.mxu0 0.0
    %6542 = vmatprep.subr.mxu0 0.0
    %6543 = vmatpush1.msra.mxu0 0.0
    %6544 = vmatprep.subr.mxu0 0.0
    %6545 = vmatpush1.msra.mxu0 0.0
    %6546 = vmatprep.subr.mxu0 0.0
    %6547 = vmatpush1.msra.mxu0 0.0
    %6548 = vmatprep.subr.mxu0 0.0
    %6549 = vmatpush1.msra.mxu0 0.0
    %6550 = vmatprep.subr.mxu0 0.0
    %6551 = vmatpush1.msra.mxu0 0.0
    %6552 = vmatprep.subr.mxu0 0.0
    %6553 = vmatpush1.msra.mxu0 0.0
    %6554 = vmatprep.subr.mxu0 0.0
    %6555 = vmatpush1.msra.mxu0 0.0
    %6556 = vmatprep.subr.mxu0 0.0
    %6557 = vmatpush1.msra.mxu0 0.0
    %6558 = vmatprep.subr.mxu0 0.0
    %6559 = vmatpush1.msra.mxu0 0.0
    %6560 = vmatprep.subr.mxu0 0.0
    %6561 = vmatpush1.msra.mxu0 0.0
    %6562 = vmatprep.subr.mxu0 0.0
    %6563 = vmatpush1.msra.mxu0 0.0
    %6564 = vmatprep.subr.mxu0 0.0
    %6565 = vmatpush1.msra.mxu0 0.0
    %6566 = vmatprep.subr.mxu0 0.0
    %6567 = vmatpush1.msra.mxu0 0.0
    %6568 = vmatprep.subr.mxu0 0.0
    %6569 = vmatpush1.msra.mxu0 0.0
    %6570 = vmatprep.subr.mxu0 0.0
    %6571 = vmatpush1.msra.mxu0 0.0
    %6572 = vmatprep.subr.mxu0 0.0
    %6573 = vmatpush1.msra.mxu0 0.0
    %6574 = vmatprep.subr.mxu0 0.0
    %6575 = vmatpush1.msra.mxu0 0.0
    %6576 = vmatprep.subr.mxu0 0.0
    %6577 = vmatpush1.msra.mxu0 0.0
    %6578 = vmatprep.subr.mxu0 0.0
    %6579 = vmatpush1.msra.mxu0 0.0
    %6580 = vmatprep.subr.mxu0 0.0
    %6581 = vmatpush1.msra.mxu0 0.0
    %6582 = vmatprep.subr.mxu0 0.0
    %6583 = vmatpush1.msra.mxu0 0.0
    %6584 = vmatprep.subr.mxu0 0.0
    %6585 = vmatpush1.msra.mxu0 0.0
    %6586 = vmatprep.subr.mxu0 0.0
    %6587 = vmatpush1.msra.mxu0 0.0
    %6588 = vmatprep.subr.mxu0 0.0
    %6589 = vmatpush1.msra.mxu0 0.0
    %6590 = vmatprep.subr.mxu0 0.0
    %6591 = vmatpush1.msra.mxu0 0.0
    %6592 = vmatprep.subr.mxu0 0.0
    %6593 = vmatpush1.msra.mxu0 0.0
    %6594 = vmatprep.subr.mxu0 0.0
    %6595 = vmatpush1.msra.mxu0 0.0
    %6596 = vmatprep.subr.mxu0 0.0
    %6597 = vmatpush1.msra.mxu0 0.0
    %6598 = vmatprep.subr.mxu0 0.0
    %6599 = vmatpush1.msra.mxu0 0.0
    %6600 = vmatprep.mubr.f32.mxu0 0.0
    %6601 = vmatmul.mubr.f32.gmra.mrb[0].mxu0 %v5996
    %v6602 = vpop.f32.mrb[0].mxu0
    %v6603 = vadd.f32 0.0, %v6602
    %v6604 = vpop.f32.mrb[0].mxu0
    %v6605 = vadd.f32 0.0, %v6604
    %6606 = vdwg.mxu0
    %6607 = vmatprep.subr.mxu0 %v153
    %6608 = vmatpush1.msra.mxu0 %v152
    %6609 = vmatprep.subr.mxu0 %v544
    %6610 = vmatpush1.msra.mxu0 %v541
    %6611 = vmatprep.subr.mxu0 0.0
    %6612 = vmatpush1.msra.mxu0 0.0
    %6613 = vmatprep.subr.mxu0 0.0
    %6614 = vmatpush1.msra.mxu0 0.0
    %6615 = vmatprep.subr.mxu0 0.0
    %6616 = vmatpush1.msra.mxu0 0.0
    %6617 = vmatprep.subr.mxu0 0.0
    %6618 = vmatpush1.msra.mxu0 0.0
    %6619 = vmatprep.subr.mxu0 0.0
    %6620 = vmatpush1.msra.mxu0 0.0
    %6621 = vmatprep.subr.mxu0 0.0
    %6622 = vmatpush1.msra.mxu0 0.0
    %6623 = vmatprep.subr.mxu0 0.0
    %6624 = vmatpush1.msra.mxu0 0.0
    %6625 = vmatprep.subr.mxu0 0.0
    %6626 = vmatpush1.msra.mxu0 0.0
    %6627 = vmatprep.subr.mxu0 0.0
    %6628 = vmatpush1.msra.mxu0 0.0
    %6629 = vmatprep.subr.mxu0 0.0
    %6630 = vmatpush1.msra.mxu0 0.0
    %6631 = vmatprep.subr.mxu0 0.0
    %6632 = vmatpush1.msra.mxu0 0.0
    %6633 = vmatprep.subr.mxu0 0.0
    %6634 = vmatpush1.msra.mxu0 0.0
    %6635 = vmatprep.subr.mxu0 0.0
    %6636 = vmatpush1.msra.mxu0 0.0
    %6637 = vmatprep.subr.mxu0 0.0
    %6638 = vmatpush1.msra.mxu0 0.0
    %6639 = vmatprep.subr.mxu0 0.0
    %6640 = vmatpush1.msra.mxu0 0.0
    %6641 = vmatprep.subr.mxu0 0.0
    %6642 = vmatpush1.msra.mxu0 0.0
    %6643 = vmatprep.subr.mxu0 0.0
    %6644 = vmatpush1.msra.mxu0 0.0
    %6645 = vmatprep.subr.mxu0 0.0
    %6646 = vmatpush1.msra.mxu0 0.0
    %6647 = vmatprep.subr.mxu0 0.0
    %6648 = vmatpush1.msra.mxu0 0.0
    %6649 = vmatprep.subr.mxu0 0.0
    %6650 = vmatpush1.msra.mxu0 0.0
    %6651 = vmatprep.subr.mxu0 0.0
    %6652 = vmatpush1.msra.mxu0 0.0
    %6653 = vmatprep.subr.mxu0 0.0
    %6654 = vmatpush1.msra.mxu0 0.0
    %6655 = vmatprep.subr.mxu0 0.0
    %6656 = vmatpush1.msra.mxu0 0.0
    %6657 = vmatprep.subr.mxu0 0.0
    %6658 = vmatpush1.msra.mxu0 0.0
    %6659 = vmatprep.subr.mxu0 0.0
    %6660 = vmatpush1.msra.mxu0 0.0
    %6661 = vmatprep.subr.mxu0 0.0
    %6662 = vmatpush1.msra.mxu0 0.0
    %6663 = vmatprep.subr.mxu0 0.0
    %6664 = vmatpush1.msra.mxu0 0.0
    %6665 = vmatprep.subr.mxu0 0.0
    %6666 = vmatpush1.msra.mxu0 0.0
    %6667 = vmatprep.subr.mxu0 0.0
    %6668 = vmatpush1.msra.mxu0 0.0
    %6669 = vmatprep.subr.mxu0 0.0
    %6670 = vmatpush1.msra.mxu0 0.0
    %6671 = vmatprep.mubr.f32.mxu0 0.0
    %6672 = vmatmul.mubr.f32.gmra.mrb[0].mxu0 %v5996
    %v6673 = vpop.f32.mrb[0].mxu0
    %v6674 = vadd.f32 0.0, %v6673
    %v6675 = vpop.f32.mrb[0].mxu0
    %v6676 = vadd.f32 0.0, %v6675
    %6677 = vdwg.mxu0
    %v6679 = vsel %vm175, %v6535, 0
    %6681 = vmatprep.subr.mxu0 %v143
    %6682 = vmatpush1.msra.mxu0 %v142
    %6683 = vmatprep.subr.mxu0 %v695
    %6684 = vmatpush1.msra.mxu0 %v692
    %6685 = vmatprep.subr.mxu0 0.0
    %6686 = vmatpush1.msra.mxu0 0.0
    %6687 = vmatprep.subr.mxu0 0.0
    %6688 = vmatpush1.msra.mxu0 0.0
    %6689 = vmatprep.subr.mxu0 0.0
    %6690 = vmatpush1.msra.mxu0 0.0
    %6691 = vmatprep.subr.mxu0 0.0
    %6692 = vmatpush1.msra.mxu0 0.0
    %6693 = vmatprep.subr.mxu0 0.0
    %6694 = vmatpush1.msra.mxu0 0.0
    %6695 = vmatprep.subr.mxu0 0.0
    %6696 = vmatpush1.msra.mxu0 0.0
    %6697 = vmatprep.subr.mxu0 0.0
    %6698 = vmatpush1.msra.mxu0 0.0
    %6699 = vmatprep.subr.mxu0 0.0
    %6700 = vmatpush1.msra.mxu0 0.0
    %6701 = vmatprep.subr.mxu0 0.0
    %6702 = vmatpush1.msra.mxu0 0.0
    %6703 = vmatprep.subr.mxu0 0.0
    %6704 = vmatpush1.msra.mxu0 0.0
    %6705 = vmatprep.subr.mxu0 0.0
    %6706 = vmatpush1.msra.mxu0 0.0
    %6707 = vmatprep.subr.mxu0 0.0
    %6708 = vmatpush1.msra.mxu0 0.0
    %6709 = vmatprep.subr.mxu0 0.0
    %6710 = vmatpush1.msra.mxu0 0.0
    %6711 = vmatprep.subr.mxu0 0.0
    %6712 = vmatpush1.msra.mxu0 0.0
    %6713 = vmatprep.subr.mxu0 0.0
    %6714 = vmatpush1.msra.mxu0 0.0
    %6715 = vmatprep.subr.mxu0 0.0
    %6716 = vmatpush1.msra.mxu0 0.0
    %6717 = vmatprep.subr.mxu0 0.0
    %6718 = vmatpush1.msra.mxu0 0.0
    %6719 = vmatprep.subr.mxu0 0.0
    %6720 = vmatpush1.msra.mxu0 0.0
    %6721 = vmatprep.subr.mxu0 0.0
    %6722 = vmatpush1.msra.mxu0 0.0
    %6723 = vmatprep.subr.mxu0 0.0
    %6724 = vmatpush1.msra.mxu0 0.0
    %6725 = vmatprep.subr.mxu0 0.0
    %6726 = vmatpush1.msra.mxu0 0.0
    %6727 = vmatprep.subr.mxu0 0.0
    %6728 = vmatpush1.msra.mxu0 0.0
    %6729 = vmatprep.subr.mxu0 0.0
    %6730 = vmatpush1.msra.mxu0 0.0
    %6731 = vmatprep.subr.mxu0 0.0
    %6732 = vmatpush1.msra.mxu0 0.0
    %6733 = vmatprep.subr.mxu0 0.0
    %6734 = vmatpush1.msra.mxu0 0.0
    %6735 = vmatprep.subr.mxu0 0.0
    %6736 = vmatpush1.msra.mxu0 0.0
    %6737 = vmatprep.subr.mxu0 0.0
    %6738 = vmatpush1.msra.mxu0 0.0
    %6739 = vmatprep.subr.mxu0 0.0
    %6740 = vmatpush1.msra.mxu0 0.0
    %6741 = vmatprep.subr.mxu0 0.0
    %6742 = vmatpush1.msra.mxu0 0.0
    %6743 = vmatprep.subr.mxu0 0.0
    %6744 = vmatpush1.msra.mxu0 0.0
    %6745 = vmatprep.mubr.f32.mxu0 0.0
    %6746 = vmatmul.mubr.f32.gmra.mrb[0].mxu0 %v6679
    %v6747 = vpop.f32.mrb[0].mxu0
    %v6748 = vadd.f32 %v6603, %v6747
    %v6749 = vpop.f32.mrb[0].mxu0
    %v6750 = vadd.f32 %v6605, %v6749
    %6751 = vdwg.mxu0
    %6752 = vmatprep.subr.mxu0 %v145
    %6753 = vmatpush1.msra.mxu0 %v144
    %6754 = vmatprep.subr.mxu0 %v701
    %6755 = vmatpush1.msra.mxu0 %v698
    %6756 = vmatprep.subr.mxu0 0.0
    %6757 = vmatpush1.msra.mxu0 0.0
    %6758 = vmatprep.subr.mxu0 0.0
    %6759 = vmatpush1.msra.mxu0 0.0
    %6760 = vmatprep.subr.mxu0 0.0
    %6761 = vmatpush1.msra.mxu0 0.0
    %6762 = vmatprep.subr.mxu0 0.0
    %6763 = vmatpush1.msra.mxu0 0.0
    %6764 = vmatprep.subr.mxu0 0.0
    %6765 = vmatpush1.msra.mxu0 0.0
    %6766 = vmatprep.subr.mxu0 0.0
    %6767 = vmatpush1.msra.mxu0 0.0
    %6768 = vmatprep.subr.mxu0 0.0
    %6769 = vmatpush1.msra.mxu0 0.0
    %6770 = vmatprep.subr.mxu0 0.0
    %6771 = vmatpush1.msra.mxu0 0.0
    %6772 = vmatprep.subr.mxu0 0.0
    %6773 = vmatpush1.msra.mxu0 0.0
    %6774 = vmatprep.subr.mxu0 0.0
    %6775 = vmatpush1.msra.mxu0 0.0
    %6776 = vmatprep.subr.mxu0 0.0
    %6777 = vmatpush1.msra.mxu0 0.0
    %6778 = vmatprep.subr.mxu0 0.0
    %6779 = vmatpush1.msra.mxu0 0.0
    %6780 = vmatprep.subr.mxu0 0.0
    %6781 = vmatpush1.msra.mxu0 0.0
    %6782 = vmatprep.subr.mxu0 0.0
    %6783 = vmatpush1.msra.mxu0 0.0
    %6784 = vmatprep.subr.mxu0 0.0
    %6785 = vmatpush1.msra.mxu0 0.0
    %6786 = vmatprep.subr.mxu0 0.0
    %6787 = vmatpush1.msra.mxu0 0.0
    %6788 = vmatprep.subr.mxu0 0.0
    %6789 = vmatpush1.msra.mxu0 0.0
    %6790 = vmatprep.subr.mxu0 0.0
    %6791 = vmatpush1.msra.mxu0 0.0
    %6792 = vmatprep.subr.mxu0 0.0
    %6793 = vmatpush1.msra.mxu0 0.0
    %6794 = vmatprep.subr.mxu0 0.0
    %6795 = vmatpush1.msra.mxu0 0.0
    %6796 = vmatprep.subr.mxu0 0.0
    %6797 = vmatpush1.msra.mxu0 0.0
    %6798 = vmatprep.subr.mxu0 0.0
    %6799 = vmatpush1.msra.mxu0 0.0
    %6800 = vmatprep.subr.mxu0 0.0
    %6801 = vmatpush1.msra.mxu0 0.0
    %6802 = vmatprep.subr.mxu0 0.0
    %6803 = vmatpush1.msra.mxu0 0.0
    %6804 = vmatprep.subr.mxu0 0.0
    %6805 = vmatpush1.msra.mxu0 0.0
    %6806 = vmatprep.subr.mxu0 0.0
    %6807 = vmatpush1.msra.mxu0 0.0
    %6808 = vmatprep.subr.mxu0 0.0
    %6809 = vmatpush1.msra.mxu0 0.0
    %6810 = vmatprep.subr.mxu0 0.0
    %6811 = vmatpush1.msra.mxu0 0.0
    %6812 = vmatprep.subr.mxu0 0.0
    %6813 = vmatpush1.msra.mxu0 0.0
    %6814 = vmatprep.subr.mxu0 0.0
    %6815 = vmatpush1.msra.mxu0 0.0
    %6816 = vmatprep.mubr.f32.mxu0 0.0
    %6817 = vmatmul.mubr.f32.gmra.mrb[0].mxu0 %v6679
    %v6818 = vpop.f32.mrb[0].mxu0
    %v6819 = vadd.f32 %v6674, %v6818
    %v6820 = vpop.f32.mrb[0].mxu0
    %v6821 = vadd.f32 %v6676, %v6820
    %6822 = vdwg.mxu0
    %v6823 = vadd.f32 %v6748, %v849
    %v6824 = vadd.f32 %v6750, %v853
    %v6825 = vadd.f32 %v6819, %v857
    %v6826 = vadd.f32 %v6821, %v861
    %v6827 = vtanh.pop %v6823
    %v6828 = vtanh.pop %v6824
    %v6829 = vadd.f32 %v6825, %v6826
    %v6830 = vxor.u32 %v6829, 2147483648
    %v6831 = vmul.f32 %v6830, 1.442695
    %v6832 = vpow.pop %v6831
    %v6833 = vadd.f32 %v6832, 1.0
    %v6834 = vrcp.pop %v6833
    %v6835 = vmul.f32 1.0, %v6834
    %v6836 = vsub.f32 %v6828, %v6827
    %v6837 = vmul.f32 %v6835, %v6836
    %v6838 = vadd.f32 %v6827, %v6837
    %6839 = vmatprep.subr.mxu0 %v168
    %6840 = vmatpush1.msra.mxu0 %v167
    %6841 = vmatprep.subr.mxu0 0.0
    %6842 = vmatpush1.msra.mxu0 0.0
    %6843 = vmatprep.subr.mxu0 0.0
    %6844 = vmatpush1.msra.mxu0 0.0
    %6845 = vmatprep.subr.mxu0 0.0
    %6846 = vmatpush1.msra.mxu0 0.0
    %6847 = vmatprep.subr.mxu0 0.0
    %6848 = vmatpush1.msra.mxu0 0.0
    %6849 = vmatprep.subr.mxu0 0.0
    %6850 = vmatpush1.msra.mxu0 0.0
    %6851 = vmatprep.subr.mxu0 0.0
    %6852 = vmatpush1.msra.mxu0 0.0
    %6853 = vmatprep.subr.mxu0 0.0
    %6854 = vmatpush1.msra.mxu0 0.0
    %6855 = vmatprep.subr.mxu0 0.0
    %6856 = vmatpush1.msra.mxu0 0.0
    %6857 = vmatprep.subr.mxu0 0.0
    %6858 = vmatpush1.msra.mxu0 0.0
    %6859 = vmatprep.subr.mxu0 0.0
    %6860 = vmatpush1.msra.mxu0 0.0
    %6861 = vmatprep.subr.mxu0 0.0
    %6862 = vmatpush1.msra.mxu0 0.0
    %6863 = vmatprep.subr.mxu0 0.0
    %6864 = vmatpush1.msra.mxu0 0.0
    %6865 = vmatprep.subr.mxu0 0.0
    %6866 = vmatpush1.msra.mxu0 0.0
    %6867 = vmatprep.subr.mxu0 0.0
    %6868 = vmatpush1.msra.mxu0 0.0
    %6869 = vmatprep.subr.mxu0 0.0
    %6870 = vmatpush1.msra.mxu0 0.0
    %6871 = vmatprep.subr.mxu0 0.0
    %6872 = vmatpush1.msra.mxu0 0.0
    %6873 = vmatprep.subr.mxu0 0.0
    %6874 = vmatpush1.msra.mxu0 0.0
    %6875 = vmatprep.subr.mxu0 0.0
    %6876 = vmatpush1.msra.mxu0 0.0
    %6877 = vmatprep.subr.mxu0 0.0
    %6878 = vmatpush1.msra.mxu0 0.0
    %6879 = vmatprep.subr.mxu0 0.0
    %6880 = vmatpush1.msra.mxu0 0.0
    %6881 = vmatprep.subr.mxu0 0.0
    %6882 = vmatpush1.msra.mxu0 0.0
    %6883 = vmatprep.subr.mxu0 0.0
    %6884 = vmatpush1.msra.mxu0 0.0
    %6885 = vmatprep.subr.mxu0 0.0
    %6886 = vmatpush1.msra.mxu0 0.0
    %6887 = vmatprep.subr.mxu0 0.0
    %6888 = vmatpush1.msra.mxu0 0.0
    %6889 = vmatprep.subr.mxu0 0.0
    %6890 = vmatpush1.msra.mxu0 0.0
    %6891 = vmatprep.subr.mxu0 0.0
    %6892 = vmatpush1.msra.mxu0 0.0
    %6893 = vmatprep.subr.mxu0 0.0
    %6894 = vmatpush1.msra.mxu0 0.0
    %6895 = vmatprep.subr.mxu0 0.0
    %6896 = vmatpush1.msra.mxu0 0.0
    %6897 = vmatprep.subr.mxu0 0.0
    %6898 = vmatpush1.msra.mxu0 0.0
    %6899 = vmatprep.subr.mxu0 0.0
    %6900 = vmatpush1.msra.mxu0 0.0
    %6901 = vmatprep.subr.mxu0 0.0
    %6902 = vmatpush1.msra.mxu0 0.0
    %6903 = vmatprep.mubr.f32.mxu0 0.0
    %6904 = vmatmul.mubr.f32.gmra.mrb[0].mxu0 %v6157
    %v6905 = vpop.f32.mrb[0].mxu0
    %v6906 = vadd.f32 0.0, %v6905
    %v6907 = vpop.f32.mrb[0].mxu0
    %v6908 = vadd.f32 0.0, %v6907
    %6909 = vdwg.mxu0
    %6910 = vmatprep.subr.mxu0 %v170
    %6911 = vmatpush1.msra.mxu0 %v169
    %6912 = vmatprep.subr.mxu0 0.0
    %6913 = vmatpush1.msra.mxu0 0.0
    %6914 = vmatprep.subr.mxu0 0.0
    %6915 = vmatpush1.msra.mxu0 0.0
    %6916 = vmatprep.subr.mxu0 0.0
    %6917 = vmatpush1.msra.mxu0 0.0
    %6918 = vmatprep.subr.mxu0 0.0
    %6919 = vmatpush1.msra.mxu0 0.0
    %6920 = vmatprep.subr.mxu0 0.0
    %6921 = vmatpush1.msra.mxu0 0.0
    %6922 = vmatprep.subr.mxu0 0.0
    %6923 = vmatpush1.msra.mxu0 0.0
    %6924 = vmatprep.subr.mxu0 0.0
    %6925 = vmatpush1.msra.mxu0 0.0
    %6926 = vmatprep.subr.mxu0 0.0
    %6927 = vmatpush1.msra.mxu0 0.0
    %6928 = vmatprep.subr.mxu0 0.0
    %6929 = vmatpush1.msra.mxu0 0.0
    %6930 = vmatprep.subr.mxu0 0.0
    %6931 = vmatpush1.msra.mxu0 0.0
    %6932 = vmatprep.subr.mxu0 0.0
    %6933 = vmatpush1.msra.mxu0 0.0
    %6934 = vmatprep.subr.mxu0 0.0
    %6935 = vmatpush1.msra.mxu0 0.0
    %6936 = vmatprep.subr.mxu0 0.0
    %6937 = vmatpush1.msra.mxu0 0.0
    %6938 = vmatprep.subr.mxu0 0.0
    %6939 = vmatpush1.msra.mxu0 0.0
    %6940 = vmatprep.subr.mxu0 0.0
    %6941 = vmatpush1.msra.mxu0 0.0
    %6942 = vmatprep.subr.mxu0 0.0
    %6943 = vmatpush1.msra.mxu0 0.0
    %6944 = vmatprep.subr.mxu0 0.0
    %6945 = vmatpush1.msra.mxu0 0.0
    %6946 = vmatprep.subr.mxu0 0.0
    %6947 = vmatpush1.msra.mxu0 0.0
    %6948 = vmatprep.subr.mxu0 0.0
    %6949 = vmatpush1.msra.mxu0 0.0
    %6950 = vmatprep.subr.mxu0 0.0
    %6951 = vmatpush1.msra.mxu0 0.0
    %6952 = vmatprep.subr.mxu0 0.0
    %6953 = vmatpush1.msra.mxu0 0.0
    %6954 = vmatprep.subr.mxu0 0.0
    %6955 = vmatpush1.msra.mxu0 0.0
    %6956 = vmatprep.subr.mxu0 0.0
    %6957 = vmatpush1.msra.mxu0 0.0
    %6958 = vmatprep.subr.mxu0 0.0
    %6959 = vmatpush1.msra.mxu0 0.0
    %6960 = vmatprep.subr.mxu0 0.0
    %6961 = vmatpush1.msra.mxu0 0.0
    %6962 = vmatprep.subr.mxu0 0.0
    %6963 = vmatpush1.msra.mxu0 0.0
    %6964 = vmatprep.subr.mxu0 0.0
    %6965 = vmatpush1.msra.mxu0 0.0
    %6966 = vmatprep.subr.mxu0 0.0
    %6967 = vmatpush1.msra.mxu0 0.0
    %6968 = vmatprep.subr.mxu0 0.0
    %6969 = vmatpush1.msra.mxu0 0.0
    %6970 = vmatprep.subr.mxu0 0.0
    %6971 = vmatpush1.msra.mxu0 0.0
    %6972 = vmatprep.subr.mxu0 0.0
    %6973 = vmatpush1.msra.mxu0 0.0
    %6974 = vmatprep.mubr.f32.mxu0 0.0
    %6975 = vmatmul.mubr.f32.gmra.mrb[0].mxu0 %v6157
    %v6976 = vpop.f32.mrb[0].mxu0
    %v6977 = vadd.f32 0.0, %v6976
    %v6978 = vpop.f32.mrb[0].mxu0
    %v6979 = vadd.f32 0.0, %v6978
    %6980 = vdwg.mxu0
    %v6982 = vsel %vm530, %v6838, 0
    %6984 = vmatprep.subr.mxu0 %v160
    %6985 = vmatpush1.msra.mxu0 %v159
    %6986 = vmatprep.subr.mxu0 %v1034
    %6987 = vmatpush1.msra.mxu0 %v1031
    %6988 = vmatprep.subr.mxu0 0.0
    %6989 = vmatpush1.msra.mxu0 0.0
    %6990 = vmatprep.subr.mxu0 0.0
    %6991 = vmatpush1.msra.mxu0 0.0
    %6992 = vmatprep.subr.mxu0 0.0
    %6993 = vmatpush1.msra.mxu0 0.0
    %6994 = vmatprep.subr.mxu0 0.0
    %6995 = vmatpush1.msra.mxu0 0.0
    %6996 = vmatprep.subr.mxu0 0.0
    %6997 = vmatpush1.msra.mxu0 0.0
    %6998 = vmatprep.subr.mxu0 0.0
    %6999 = vmatpush1.msra.mxu0 0.0
    %7000 = vmatprep.subr.mxu0 0.0
    %7001 = vmatpush1.msra.mxu0 0.0
    %7002 = vmatprep.subr.mxu0 0.0
    %7003 = vmatpush1.msra.mxu0 0.0
    %7004 = vmatprep.subr.mxu0 0.0
    %7005 = vmatpush1.msra.mxu0 0.0
    %7006 = vmatprep.subr.mxu0 0.0
    %7007 = vmatpush1.msra.mxu0 0.0
    %7008 = vmatprep.subr.mxu0 0.0
    %7009 = vmatpush1.msra.mxu0 0.0
    %7010 = vmatprep.subr.mxu0 0.0
    %7011 = vmatpush1.msra.mxu0 0.0
    %7012 = vmatprep.subr.mxu0 0.0
    %7013 = vmatpush1.msra.mxu0 0.0
    %7014 = vmatprep.subr.mxu0 0.0
    %7015 = vmatpush1.msra.mxu0 0.0
    %7016 = vmatprep.subr.mxu0 0.0
    %7017 = vmatpush1.msra.mxu0 0.0
    %7018 = vmatprep.subr.mxu0 0.0
    %7019 = vmatpush1.msra.mxu0 0.0
    %7020 = vmatprep.subr.mxu0 0.0
    %7021 = vmatpush1.msra.mxu0 0.0
    %7022 = vmatprep.subr.mxu0 0.0
    %7023 = vmatpush1.msra.mxu0 0.0
    %7024 = vmatprep.subr.mxu0 0.0
    %7025 = vmatpush1.msra.mxu0 0.0
    %7026 = vmatprep.subr.mxu0 0.0
    %7027 = vmatpush1.msra.mxu0 0.0
    %7028 = vmatprep.subr.mxu0 0.0
    %7029 = vmatpush1.msra.mxu0 0.0
    %7030 = vmatprep.subr.mxu0 0.0
    %7031 = vmatpush1.msra.mxu0 0.0
    %7032 = vmatprep.subr.mxu0 0.0
    %7033 = vmatpush1.msra.mxu0 0.0
    %7034 = vmatprep.subr.mxu0 0.0
    %7035 = vmatpush1.msra.mxu0 0.0
    %7036 = vmatprep.subr.mxu0 0.0
    %7037 = vmatpush1.msra.mxu0 0.0
    %7038 = vmatprep.subr.mxu0 0.0
    %7039 = vmatpush1.msra.mxu0 0.0
    %7040 = vmatprep.subr.mxu0 0.0
    %7041 = vmatpush1.msra.mxu0 0.0
    %7042 = vmatprep.subr.mxu0 0.0
    %7043 = vmatpush1.msra.mxu0 0.0
    %7044 = vmatprep.subr.mxu0 0.0
    %7045 = vmatpush1.msra.mxu0 0.0
    %7046 = vmatprep.subr.mxu0 0.0
    %7047 = vmatpush1.msra.mxu0 0.0
    %7048 = vmatprep.mubr.f32.mxu0 0.0
    %7049 = vmatmul.mubr.f32.gmra.mrb[0].mxu0 %v6982
    %v7050 = vpop.f32.mrb[0].mxu0
    %v7051 = vadd.f32 %v6906, %v7050
    %v7052 = vpop.f32.mrb[0].mxu0
    %v7053 = vadd.f32 %v6908, %v7052
    %7054 = vdwg.mxu0
    %7055 = vmatprep.subr.mxu0 %v162
    %7056 = vmatpush1.msra.mxu0 %v161
    %7057 = vmatprep.subr.mxu0 %v1040
    %7058 = vmatpush1.msra.mxu0 %v1037
    %7059 = vmatprep.subr.mxu0 0.0
    %7060 = vmatpush1.msra.mxu0 0.0
    %7061 = vmatprep.subr.mxu0 0.0
    %7062 = vmatpush1.msra.mxu0 0.0
    %7063 = vmatprep.subr.mxu0 0.0
    %7064 = vmatpush1.msra.mxu0 0.0
    %7065 = vmatprep.subr.mxu0 0.0
    %7066 = vmatpush1.msra.mxu0 0.0
    %7067 = vmatprep.subr.mxu0 0.0
    %7068 = vmatpush1.msra.mxu0 0.0
    %7069 = vmatprep.subr.mxu0 0.0
    %7070 = vmatpush1.msra.mxu0 0.0
    %7071 = vmatprep.subr.mxu0 0.0
    %7072 = vmatpush1.msra.mxu0 0.0
    %7073 = vmatprep.subr.mxu0 0.0
    %7074 = vmatpush1.msra.mxu0 0.0
    %7075 = vmatprep.subr.mxu0 0.0
    %7076 = vmatpush1.msra.mxu0 0.0
    %7077 = vmatprep.subr.mxu0 0.0
    %7078 = vmatpush1.msra.mxu0 0.0
    %7079 = vmatprep.subr.mxu0 0.0
    %7080 = vmatpush1.msra.mxu0 0.0
    %7081 = vmatprep.subr.mxu0 0.0
    %7082 = vmatpush1.msra.mxu0 0.0
    %7083 = vmatprep.subr.mxu0 0.0
    %7084 = vmatpush1.msra.mxu0 0.0
    %7085 = vmatprep.subr.mxu0 0.0
    %7086 = vmatpush1.msra.mxu0 0.0
    %7087 = vmatprep.subr.mxu0 0.0
    %7088 = vmatpush1.msra.mxu0 0.0
    %7089 = vmatprep.subr.mxu0 0.0
    %7090 = vmatpush1.msra.mxu0 0.0
    %7091 = vmatprep.subr.mxu0 0.0
    %7092 = vmatpush1.msra.mxu0 0.0
    %7093 = vmatprep.subr.mxu0 0.0
    %7094 = vmatpush1.msra.mxu0 0.0
    %7095 = vmatprep.subr.mxu0 0.0
    %7096 = vmatpush1.msra.mxu0 0.0
    %7097 = vmatprep.subr.mxu0 0.0
    %7098 = vmatpush1.msra.mxu0 0.0
    %7099 = vmatprep.subr.mxu0 0.0
    %7100 = vmatpush1.msra.mxu0 0.0
    %7101 = vmatprep.subr.mxu0 0.0
    %7102 = vmatpush1.msra.mxu0 0.0
    %7103 = vmatprep.subr.mxu0 0.0
    %7104 = vmatpush1.msra.mxu0 0.0
    %7105 = vmatprep.subr.mxu0 0.0
    %7106 = vmatpush1.msra.mxu0 0.0
    %7107 = vmatprep.subr.mxu0 0.0
    %7108 = vmatpush1.msra.mxu0 0.0
    %7109 = vmatprep.subr.mxu0 0.0
    %7110 = vmatpush1.msra.mxu0 0.0
    %7111 = vmatprep.subr.mxu0 0.0
    %7112 = vmatpush1.msra.mxu0 0.0
    %7113 = vmatprep.subr.mxu0 0.0
    %7114 = vmatpush1.msra.mxu0 0.0
    %7115 = vmatprep.subr.mxu0 0.0
    %7116 = vmatpush1.msra.mxu0 0.0
    %7117 = vmatprep.subr.mxu0 0.0
    %7118 = vmatpush1.msra.mxu0 0.0
    %7119 = vmatprep.mubr.f32.mxu0 0.0
    %7120 = vmatmul.mubr.f32.gmra.mrb[0].mxu0 %v6982
    %v7121 = vpop.f32.mrb[0].mxu0
    %v7122 = vadd.f32 %v6977, %v7121
    %v7123 = vpop.f32.mrb[0].mxu0
    %v7124 = vadd.f32 %v6979, %v7123
    %7125 = vdwg.mxu0
    %v7126 = vadd.f32 %v7051, %v1188
    %v7127 = vadd.f32 %v7053, %v1192
    %v7128 = vadd.f32 %v7122, %v1196
    %v7129 = vadd.f32 %v7124, %v1200
    %v7130 = vtanh.pop %v7126
    %v7131 = vtanh.pop %v7127
    %v7132 = vadd.f32 %v7128, %v7129
    %v7133 = vxor.u32 %v7132, 2147483648
    %v7134 = vmul.f32 %v7133, 1.442695
    %v7135 = vpow.pop %v7134
    %v7136 = vadd.f32 %v7135, 1.0
    %v7137 = vrcp.pop %v7136
    %v7138 = vmul.f32 1.0, %v7137
    %v7139 = vsub.f32 %v7131, %v7130
    %v7140 = vmul.f32 %v7138, %v7139
    %v7141 = vadd.f32 %v7130, %v7140
    %v7143 = vsel %vm882, %v7141, 0
    %7145 = vmatprep.subr.mxu0 0.0
    %7146 = vmatpush1.msra.mxu0 %v172
    %7147 = vmatprep.subr.mxu0 0.0
    %7148 = vmatpush1.msra.mxu0 0.0
    %7149 = vmatprep.subr.mxu0 0.0
    %7150 = vmatpush1.msra.mxu0 0.0
    %7151 = vmatprep.subr.mxu0 0.0
    %7152 = vmatpush1.msra.mxu0 0.0
    %7153 = vmatprep.subr.mxu0 0.0
    %7154 = vmatpush1.msra.mxu0 0.0
    %7155 = vmatprep.subr.mxu0 0.0
    %7156 = vmatpush1.msra.mxu0 0.0
    %7157 = vmatprep.subr.mxu0 0.0
    %7158 = vmatpush1.msra.mxu0 0.0
    %7159 = vmatprep.subr.mxu0 0.0
    %7160 = vmatpush1.msra.mxu0 0.0
    %7161 = vmatprep.subr.mxu0 0.0
    %7162 = vmatpush1.msra.mxu0 0.0
    %7163 = vmatprep.subr.mxu0 0.0
    %7164 = vmatpush1.msra.mxu0 0.0
    %7165 = vmatprep.subr.mxu0 0.0
    %7166 = vmatpush1.msra.mxu0 0.0
    %7167 = vmatprep.subr.mxu0 0.0
    %7168 = vmatpush1.msra.mxu0 0.0
    %7169 = vmatprep.subr.mxu0 0.0
    %7170 = vmatpush1.msra.mxu0 0.0
    %7171 = vmatprep.subr.mxu0 0.0
    %7172 = vmatpush1.msra.mxu0 0.0
    %7173 = vmatprep.subr.mxu0 0.0
    %7174 = vmatpush1.msra.mxu0 0.0
    %7175 = vmatprep.subr.mxu0 0.0
    %7176 = vmatpush1.msra.mxu0 0.0
    %7177 = vmatprep.subr.mxu0 0.0
    %7178 = vmatpush1.msra.mxu0 0.0
    %7179 = vmatprep.subr.mxu0 0.0
    %7180 = vmatpush1.msra.mxu0 0.0
    %7181 = vmatprep.subr.mxu0 0.0
    %7182 = vmatpush1.msra.mxu0 0.0
    %7183 = vmatprep.subr.mxu0 0.0
    %7184 = vmatpush1.msra.mxu0 0.0
    %7185 = vmatprep.subr.mxu0 0.0
    %7186 = vmatpush1.msra.mxu0 0.0
    %7187 = vmatprep.subr.mxu0 0.0
    %7188 = vmatpush1.msra.mxu0 0.0
    %7189 = vmatprep.subr.mxu0 0.0
    %7190 = vmatpush1.msra.mxu0 0.0
    %7191 = vmatprep.subr.mxu0 0.0
    %7192 = vmatpush1.msra.mxu0 0.0
    %7193 = vmatprep.subr.mxu0 0.0
    %7194 = vmatpush1.msra.mxu0 0.0
    %7195 = vmatprep.subr.mxu0 0.0
    %7196 = vmatpush1.msra.mxu0 0.0
    %7197 = vmatprep.subr.mxu0 0.0
    %7198 = vmatpush1.msra.mxu0 0.0
    %7199 = vmatprep.subr.mxu0 0.0
    %7200 = vmatpush1.msra.mxu0 0.0
    %7201 = vmatprep.subr.mxu0 0.0
    %7202 = vmatpush1.msra.mxu0 0.0
    %7203 = vmatprep.subr.mxu0 0.0
    %7204 = vmatpush1.msra.mxu0 0.0
    %7205 = vmatprep.subr.mxu0 0.0
    %7206 = vmatpush1.msra.mxu0 0.0
    %7207 = vmatprep.subr.mxu0 0.0
    %7208 = vmatpush1.msra.mxu0 0.0
    %7209 = vmatprep.mubr.f32.mxu0 0.0
    %7210 = vmatmul.mubr.f32.gmra.mrb[0].mxu0 %v7143
    %v7211 = vpop.f32.mrb[0].mxu0
    %v7212 = vadd.f32 %v1225, %v7211
    %v7213 = vpop.f32.mrb[0].mxu0
    %7214 = vdwg.mxu0
    %s7215 = scalar_lea.vmem [#allocation14], 12
    %7216 = vst [vmem:[%s7215] sm:$0x3] %v7212
    %s7217 = scalar_lea.vmem %s0, 14
    %v7218 = vld [vmem:[%s7217] sm:$0x3]
    %7219 = vmatprep.subr.mxu0 %v134
    %7220 = vmatpush1.msra.mxu0 %v133
    %7221 = vmatprep.subr.mxu0 %v184
    %7222 = vmatpush1.msra.mxu0 %v181
    %7223 = vmatprep.subr.mxu0 0.0
    %7224 = vmatpush1.msra.mxu0 0.0
    %7225 = vmatprep.subr.mxu0 0.0
    %7226 = vmatpush1.msra.mxu0 0.0
    %7227 = vmatprep.subr.mxu0 0.0
    %7228 = vmatpush1.msra.mxu0 0.0
    %7229 = vmatprep.subr.mxu0 0.0
    %7230 = vmatpush1.msra.mxu0 0.0
    %7231 = vmatprep.subr.mxu0 0.0
    %7232 = vmatpush1.msra.mxu0 0.0
    %7233 = vmatprep.subr.mxu0 0.0
    %7234 = vmatpush1.msra.mxu0 0.0
    %7235 = vmatprep.subr.mxu0 0.0
    %7236 = vmatpush1.msra.mxu0 0.0
    %7237 = vmatprep.subr.mxu0 0.0
    %7238 = vmatpush1.msra.mxu0 0.0
    %7239 = vmatprep.subr.mxu0 0.0
    %7240 = vmatpush1.msra.mxu0 0.0
    %7241 = vmatprep.subr.mxu0 0.0
    %7242 = vmatpush1.msra.mxu0 0.0
    %7243 = vmatprep.subr.mxu0 0.0
    %7244 = vmatpush1.msra.mxu0 0.0
    %7245 = vmatprep.subr.mxu0 0.0
    %7246 = vmatpush1.msra.mxu0 0.0
    %7247 = vmatprep.subr.mxu0 0.0
    %7248 = vmatpush1.msra.mxu0 0.0
    %7249 = vmatprep.subr.mxu0 0.0
    %7250 = vmatpush1.msra.mxu0 0.0
    %7251 = vmatprep.subr.mxu0 0.0
    %7252 = vmatpush1.msra.mxu0 0.0
    %7253 = vmatprep.subr.mxu0 0.0
    %7254 = vmatpush1.msra.mxu0 0.0
    %7255 = vmatprep.subr.mxu0 0.0
    %7256 = vmatpush1.msra.mxu0 0.0
    %7257 = vmatprep.subr.mxu0 0.0
    %7258 = vmatpush1.msra.mxu0 0.0
    %7259 = vmatprep.subr.mxu0 0.0
    %7260 = vmatpush1.msra.mxu0 0.0
    %7261 = vmatprep.subr.mxu0 0.0
    %7262 = vmatpush1.msra.mxu0 0.0
    %7263 = vmatprep.subr.mxu0 0.0
    %7264 = vmatpush1.msra.mxu0 0.0
    %7265 = vmatprep.subr.mxu0 0.0
    %7266 = vmatpush1.msra.mxu0 0.0
    %7267 = vmatprep.subr.mxu0 0.0
    %7268 = vmatpush1.msra.mxu0 0.0
    %7269 = vmatprep.subr.mxu0 0.0
    %7270 = vmatpush1.msra.mxu0 0.0
    %7271 = vmatprep.subr.mxu0 0.0
    %7272 = vmatpush1.msra.mxu0 0.0
    %7273 = vmatprep.subr.mxu0 0.0
    %7274 = vmatpush1.msra.mxu0 0.0
    %7275 = vmatprep.subr.mxu0 0.0
    %7276 = vmatpush1.msra.mxu0 0.0
    %7277 = vmatprep.subr.mxu0 0.0
    %7278 = vmatpush1.msra.mxu0 0.0
    %7279 = vmatprep.subr.mxu0 0.0
    %7280 = vmatpush1.msra.mxu0 0.0
    %7281 = vmatprep.subr.mxu0 0.0
    %7282 = vmatpush1.msra.mxu0 0.0
    %7283 = vmatprep.mubr.f32.mxu0 0.0
    %7284 = vmatmul.mubr.f32.gmra.mrb[0].mxu0 %v6679
    %v7285 = vpop.f32.mrb[0].mxu0
    %v7286 = vadd.f32 0.0, %v7285
    %v7287 = vpop.f32.mrb[0].mxu0
    %v7288 = vadd.f32 0.0, %v7287
    %7289 = vdwg.mxu0
    %7290 = vmatprep.subr.mxu0 %v136
    %7291 = vmatpush1.msra.mxu0 %v135
    %7292 = vmatprep.subr.mxu0 %v190
    %7293 = vmatpush1.msra.mxu0 %v187
    %7294 = vmatprep.subr.mxu0 0.0
    %7295 = vmatpush1.msra.mxu0 0.0
    %7296 = vmatprep.subr.mxu0 0.0
    %7297 = vmatpush1.msra.mxu0 0.0
    %7298 = vmatprep.subr.mxu0 0.0
    %7299 = vmatpush1.msra.mxu0 0.0
    %7300 = vmatprep.subr.mxu0 0.0
    %7301 = vmatpush1.msra.mxu0 0.0
    %7302 = vmatprep.subr.mxu0 0.0
    %7303 = vmatpush1.msra.mxu0 0.0
    %7304 = vmatprep.subr.mxu0 0.0
    %7305 = vmatpush1.msra.mxu0 0.0
    %7306 = vmatprep.subr.mxu0 0.0
    %7307 = vmatpush1.msra.mxu0 0.0
    %7308 = vmatprep.subr.mxu0 0.0
    %7309 = vmatpush1.msra.mxu0 0.0
    %7310 = vmatprep.subr.mxu0 0.0
    %7311 = vmatpush1.msra.mxu0 0.0
    %7312 = vmatprep.subr.mxu0 0.0
    %7313 = vmatpush1.msra.mxu0 0.0
    %7314 = vmatprep.subr.mxu0 0.0
    %7315 = vmatpush1.msra.mxu0 0.0
    %7316 = vmatprep.subr.mxu0 0.0
    %7317 = vmatpush1.msra.mxu0 0.0
    %7318 = vmatprep.subr.mxu0 0.0
    %7319 = vmatpush1.msra.mxu0 0.0
    %7320 = vmatprep.subr.mxu0 0.0
    %7321 = vmatpush1.msra.mxu0 0.0
    %7322 = vmatprep.subr.mxu0 0.0
    %7323 = vmatpush1.msra.mxu0 0.0
    %7324 = vmatprep.subr.mxu0 0.0
    %7325 = vmatpush1.msra.mxu0 0.0
    %7326 = vmatprep.subr.mxu0 0.0
    %7327 = vmatpush1.msra.mxu0 0.0
    %7328 = vmatprep.subr.mxu0 0.0
    %7329 = vmatpush1.msra.mxu0 0.0
    %7330 = vmatprep.subr.mxu0 0.0
    %7331 = vmatpush1.msra.mxu0 0.0
    %7332 = vmatprep.subr.mxu0 0.0
    %7333 = vmatpush1.msra.mxu0 0.0
    %7334 = vmatprep.subr.mxu0 0.0
    %7335 = vmatpush1.msra.mxu0 0.0
    %7336 = vmatprep.subr.mxu0 0.0
    %7337 = vmatpush1.msra.mxu0 0.0
    %7338 = vmatprep.subr.mxu0 0.0
    %7339 = vmatpush1.msra.mxu0 0.0
    %7340 = vmatprep.subr.mxu0 0.0
    %7341 = vmatpush1.msra.mxu0 0.0
    %7342 = vmatprep.subr.mxu0 0.0
    %7343 = vmatpush1.msra.mxu0 0.0
    %7344 = vmatprep.subr.mxu0 0.0
    %7345 = vmatpush1.msra.mxu0 0.0
    %7346 = vmatprep.subr.mxu0 0.0
    %7347 = vmatpush1.msra.mxu0 0.0
    %7348 = vmatprep.subr.mxu0 0.0
    %7349 = vmatpush1.msra.mxu0 0.0
    %7350 = vmatprep.subr.mxu0 0.0
    %7351 = vmatpush1.msra.mxu0 0.0
    %7352 = vmatprep.subr.mxu0 0.0
    %7353 = vmatpush1.msra.mxu0 0.0
    %7354 = vmatprep.mubr.f32.mxu0 0.0
    %7355 = vmatmul.mubr.f32.gmra.mrb[0].mxu0 %v6679
    %v7356 = vpop.f32.mrb[0].mxu0
    %v7357 = vadd.f32 0.0, %v7356
    %v7358 = vpop.f32.mrb[0].mxu0
    %v7359 = vadd.f32 0.0, %v7358
    %7360 = vdwg.mxu0
    %v7362 = vsel %vm338, %v7218, 0
    %7364 = vmatprep.subr.mxu0 %v345
    %7365 = vmatpush1.msra.mxu0 %v343
    %7366 = vmatprep.subr.mxu0 0.0
    %7367 = vmatpush1.msra.mxu0 0.0
    %7368 = vmatprep.subr.mxu0 0.0
    %7369 = vmatpush1.msra.mxu0 0.0
    %7370 = vmatprep.subr.mxu0 0.0
    %7371 = vmatpush1.msra.mxu0 0.0
    %7372 = vmatprep.subr.mxu0 0.0
    %7373 = vmatpush1.msra.mxu0 0.0
    %7374 = vmatprep.subr.mxu0 0.0
    %7375 = vmatpush1.msra.mxu0 0.0
    %7376 = vmatprep.subr.mxu0 0.0
    %7377 = vmatpush1.msra.mxu0 0.0
    %7378 = vmatprep.subr.mxu0 0.0
    %7379 = vmatpush1.msra.mxu0 0.0
    %7380 = vmatprep.subr.mxu0 0.0
    %7381 = vmatpush1.msra.mxu0 0.0
    %7382 = vmatprep.subr.mxu0 0.0
    %7383 = vmatpush1.msra.mxu0 0.0
    %7384 = vmatprep.subr.mxu0 0.0
    %7385 = vmatpush1.msra.mxu0 0.0
    %7386 = vmatprep.subr.mxu0 0.0
    %7387 = vmatpush1.msra.mxu0 0.0
    %7388 = vmatprep.subr.mxu0 0.0
    %7389 = vmatpush1.msra.mxu0 0.0
    %7390 = vmatprep.subr.mxu0 0.0
    %7391 = vmatpush1.msra.mxu0 0.0
    %7392 = vmatprep.subr.mxu0 0.0
    %7393 = vmatpush1.msra.mxu0 0.0
    %7394 = vmatprep.subr.mxu0 0.0
    %7395 = vmatpush1.msra.mxu0 0.0
    %7396 = vmatprep.subr.mxu0 0.0
    %7397 = vmatpush1.msra.mxu0 0.0
    %7398 = vmatprep.subr.mxu0 0.0
    %7399 = vmatpush1.msra.mxu0 0.0
    %7400 = vmatprep.subr.mxu0 0.0
    %7401 = vmatpush1.msra.mxu0 0.0
    %7402 = vmatprep.subr.mxu0 0.0
    %7403 = vmatpush1.msra.mxu0 0.0
    %7404 = vmatprep.subr.mxu0 0.0
    %7405 = vmatpush1.msra.mxu0 0.0
    %7406 = vmatprep.subr.mxu0 0.0
    %7407 = vmatpush1.msra.mxu0 0.0
    %7408 = vmatprep.subr.mxu0 0.0
    %7409 = vmatpush1.msra.mxu0 0.0
    %7410 = vmatprep.subr.mxu0 0.0
    %7411 = vmatpush1.msra.mxu0 0.0
    %7412 = vmatprep.subr.mxu0 0.0
    %7413 = vmatpush1.msra.mxu0 0.0
    %7414 = vmatprep.subr.mxu0 0.0
    %7415 = vmatpush1.msra.mxu0 0.0
    %7416 = vmatprep.subr.mxu0 0.0
    %7417 = vmatpush1.msra.mxu0 0.0
    %7418 = vmatprep.subr.mxu0 0.0
    %7419 = vmatpush1.msra.mxu0 0.0
    %7420 = vmatprep.subr.mxu0 0.0
    %7421 = vmatpush1.msra.mxu0 0.0
    %7422 = vmatprep.subr.mxu0 0.0
    %7423 = vmatpush1.msra.mxu0 0.0
    %7424 = vmatprep.subr.mxu0 0.0
    %7425 = vmatpush1.msra.mxu0 0.0
    %7426 = vmatprep.subr.mxu0 0.0
    %7427 = vmatpush1.msra.mxu0 0.0
    %7428 = vmatprep.mubr.f32.mxu0 0.0
    %7429 = vmatmul.mubr.f32.gmra.mrb[0].mxu0 %v7362
    %v7430 = vpop.f32.mrb[0].mxu0
    %v7431 = vadd.f32 %v7286, %v7430
    %v7432 = vpop.f32.mrb[0].mxu0
    %v7433 = vadd.f32 %v7288, %v7432
    %7434 = vdwg.mxu0
    %7435 = vmatprep.subr.mxu0 %v349
    %7436 = vmatpush1.msra.mxu0 %v347
    %7437 = vmatprep.subr.mxu0 0.0
    %7438 = vmatpush1.msra.mxu0 0.0
    %7439 = vmatprep.subr.mxu0 0.0
    %7440 = vmatpush1.msra.mxu0 0.0
    %7441 = vmatprep.subr.mxu0 0.0
    %7442 = vmatpush1.msra.mxu0 0.0
    %7443 = vmatprep.subr.mxu0 0.0
    %7444 = vmatpush1.msra.mxu0 0.0
    %7445 = vmatprep.subr.mxu0 0.0
    %7446 = vmatpush1.msra.mxu0 0.0
    %7447 = vmatprep.subr.mxu0 0.0
    %7448 = vmatpush1.msra.mxu0 0.0
    %7449 = vmatprep.subr.mxu0 0.0
    %7450 = vmatpush1.msra.mxu0 0.0
    %7451 = vmatprep.subr.mxu0 0.0
    %7452 = vmatpush1.msra.mxu0 0.0
    %7453 = vmatprep.subr.mxu0 0.0
    %7454 = vmatpush1.msra.mxu0 0.0
    %7455 = vmatprep.subr.mxu0 0.0
    %7456 = vmatpush1.msra.mxu0 0.0
    %7457 = vmatprep.subr.mxu0 0.0
    %7458 = vmatpush1.msra.mxu0 0.0
    %7459 = vmatprep.subr.mxu0 0.0
    %7460 = vmatpush1.msra.mxu0 0.0
    %7461 = vmatprep.subr.mxu0 0.0
    %7462 = vmatpush1.msra.mxu0 0.0
    %7463 = vmatprep.subr.mxu0 0.0
    %7464 = vmatpush1.msra.mxu0 0.0
    %7465 = vmatprep.subr.mxu0 0.0
    %7466 = vmatpush1.msra.mxu0 0.0
    %7467 = vmatprep.subr.mxu0 0.0
    %7468 = vmatpush1.msra.mxu0 0.0
    %7469 = vmatprep.subr.mxu0 0.0
    %7470 = vmatpush1.msra.mxu0 0.0
    %7471 = vmatprep.subr.mxu0 0.0
    %7472 = vmatpush1.msra.mxu0 0.0
    %7473 = vmatprep.subr.mxu0 0.0
    %7474 = vmatpush1.msra.mxu0 0.0
    %7475 = vmatprep.subr.mxu0 0.0
    %7476 = vmatpush1.msra.mxu0 0.0
    %7477 = vmatprep.subr.mxu0 0.0
    %7478 = vmatpush1.msra.mxu0 0.0
    %7479 = vmatprep.subr.mxu0 0.0
    %7480 = vmatpush1.msra.mxu0 0.0
    %7481 = vmatprep.subr.mxu0 0.0
    %7482 = vmatpush1.msra.mxu0 0.0
    %7483 = vmatprep.subr.mxu0 0.0
    %7484 = vmatpush1.msra.mxu0 0.0
    %7485 = vmatprep.subr.mxu0 0.0
    %7486 = vmatpush1.msra.mxu0 0.0
    %7487 = vmatprep.subr.mxu0 0.0
    %7488 = vmatpush1.msra.mxu0 0.0
    %7489 = vmatprep.subr.mxu0 0.0
    %7490 = vmatpush1.msra.mxu0 0.0
    %7491 = vmatprep.subr.mxu0 0.0
    %7492 = vmatpush1.msra.mxu0 0.0
    %7493 = vmatprep.subr.mxu0 0.0
    %7494 = vmatpush1.msra.mxu0 0.0
    %7495 = vmatprep.subr.mxu0 0.0
    %7496 = vmatpush1.msra.mxu0 0.0
    %7497 = vmatprep.subr.mxu0 0.0
    %7498 = vmatpush1.msra.mxu0 0.0
    %7499 = vmatprep.mubr.f32.mxu0 0.0
    %7500 = vmatmul.mubr.f32.gmra.mrb[0].mxu0 %v7362
    %v7501 = vpop.f32.mrb[0].mxu0
    %v7502 = vadd.f32 %v7357, %v7501
    %v7503 = vpop.f32.mrb[0].mxu0
    %v7504 = vadd.f32 %v7359, %v7503
    %7505 = vdwg.mxu0
    %v7506 = vadd.f32 %v7431, %v497
    %v7507 = vadd.f32 %v7433, %v501
    %v7508 = vadd.f32 %v7502, %v505
    %v7509 = vadd.f32 %v7504, %v509
    %v7510 = vtanh.pop %v7506
    %v7511 = vtanh.pop %v7507
    %v7512 = vadd.f32 %v7508, %v7509
    %v7513 = vxor.u32 %v7512, 2147483648
    %v7514 = vmul.f32 %v7513, 1.442695
    %v7515 = vpow.pop %v7514
    %v7516 = vadd.f32 %v7515, 1.0
    %v7517 = vrcp.pop %v7516
    %v7518 = vmul.f32 1.0, %v7517
    %v7519 = vsub.f32 %v7511, %v7510
    %v7520 = vmul.f32 %v7518, %v7519
    %v7521 = vadd.f32 %v7510, %v7520
    %7522 = vmatprep.subr.mxu0 %v151
    %7523 = vmatpush1.msra.mxu0 %v150
    %7524 = vmatprep.subr.mxu0 %v538
    %7525 = vmatpush1.msra.mxu0 %v535
    %7526 = vmatprep.subr.mxu0 0.0
    %7527 = vmatpush1.msra.mxu0 0.0
    %7528 = vmatprep.subr.mxu0 0.0
    %7529 = vmatpush1.msra.mxu0 0.0
    %7530 = vmatprep.subr.mxu0 0.0
    %7531 = vmatpush1.msra.mxu0 0.0
    %7532 = vmatprep.subr.mxu0 0.0
    %7533 = vmatpush1.msra.mxu0 0.0
    %7534 = vmatprep.subr.mxu0 0.0
    %7535 = vmatpush1.msra.mxu0 0.0
    %7536 = vmatprep.subr.mxu0 0.0
    %7537 = vmatpush1.msra.mxu0 0.0
    %7538 = vmatprep.subr.mxu0 0.0
    %7539 = vmatpush1.msra.mxu0 0.0
    %7540 = vmatprep.subr.mxu0 0.0
    %7541 = vmatpush1.msra.mxu0 0.0
    %7542 = vmatprep.subr.mxu0 0.0
    %7543 = vmatpush1.msra.mxu0 0.0
    %7544 = vmatprep.subr.mxu0 0.0
    %7545 = vmatpush1.msra.mxu0 0.0
    %7546 = vmatprep.subr.mxu0 0.0
    %7547 = vmatpush1.msra.mxu0 0.0
    %7548 = vmatprep.subr.mxu0 0.0
    %7549 = vmatpush1.msra.mxu0 0.0
    %7550 = vmatprep.subr.mxu0 0.0
    %7551 = vmatpush1.msra.mxu0 0.0
    %7552 = vmatprep.subr.mxu0 0.0
    %7553 = vmatpush1.msra.mxu0 0.0
    %7554 = vmatprep.subr.mxu0 0.0
    %7555 = vmatpush1.msra.mxu0 0.0
    %7556 = vmatprep.subr.mxu0 0.0
    %7557 = vmatpush1.msra.mxu0 0.0
    %7558 = vmatprep.subr.mxu0 0.0
    %7559 = vmatpush1.msra.mxu0 0.0
    %7560 = vmatprep.subr.mxu0 0.0
    %7561 = vmatpush1.msra.mxu0 0.0
    %7562 = vmatprep.subr.mxu0 0.0
    %7563 = vmatpush1.msra.mxu0 0.0
    %7564 = vmatprep.subr.mxu0 0.0
    %7565 = vmatpush1.msra.mxu0 0.0
    %7566 = vmatprep.subr.mxu0 0.0
    %7567 = vmatpush1.msra.mxu0 0.0
    %7568 = vmatprep.subr.mxu0 0.0
    %7569 = vmatpush1.msra.mxu0 0.0
    %7570 = vmatprep.subr.mxu0 0.0
    %7571 = vmatpush1.msra.mxu0 0.0
    %7572 = vmatprep.subr.mxu0 0.0
    %7573 = vmatpush1.msra.mxu0 0.0
    %7574 = vmatprep.subr.mxu0 0.0
    %7575 = vmatpush1.msra.mxu0 0.0
    %7576 = vmatprep.subr.mxu0 0.0
    %7577 = vmatpush1.msra.mxu0 0.0
    %7578 = vmatprep.subr.mxu0 0.0
    %7579 = vmatpush1.msra.mxu0 0.0
    %7580 = vmatprep.subr.mxu0 0.0
    %7581 = vmatpush1.msra.mxu0 0.0
    %7582 = vmatprep.subr.mxu0 0.0
    %7583 = vmatpush1.msra.mxu0 0.0
    %7584 = vmatprep.subr.mxu0 0.0
    %7585 = vmatpush1.msra.mxu0 0.0
    %7586 = vmatprep.mubr.f32.mxu0 0.0
    %7587 = vmatmul.mubr.f32.gmra.mrb[0].mxu0 %v6982
    %v7588 = vpop.f32.mrb[0].mxu0
    %v7589 = vadd.f32 0.0, %v7588
    %v7590 = vpop.f32.mrb[0].mxu0
    %v7591 = vadd.f32 0.0, %v7590
    %7592 = vdwg.mxu0
    %7593 = vmatprep.subr.mxu0 %v153
    %7594 = vmatpush1.msra.mxu0 %v152
    %7595 = vmatprep.subr.mxu0 %v544
    %7596 = vmatpush1.msra.mxu0 %v541
    %7597 = vmatprep.subr.mxu0 0.0
    %7598 = vmatpush1.msra.mxu0 0.0
    %7599 = vmatprep.subr.mxu0 0.0
    %7600 = vmatpush1.msra.mxu0 0.0
    %7601 = vmatprep.subr.mxu0 0.0
    %7602 = vmatpush1.msra.mxu0 0.0
    %7603 = vmatprep.subr.mxu0 0.0
    %7604 = vmatpush1.msra.mxu0 0.0
    %7605 = vmatprep.subr.mxu0 0.0
    %7606 = vmatpush1.msra.mxu0 0.0
    %7607 = vmatprep.subr.mxu0 0.0
    %7608 = vmatpush1.msra.mxu0 0.0
    %7609 = vmatprep.subr.mxu0 0.0
    %7610 = vmatpush1.msra.mxu0 0.0
    %7611 = vmatprep.subr.mxu0 0.0
    %7612 = vmatpush1.msra.mxu0 0.0
    %7613 = vmatprep.subr.mxu0 0.0
    %7614 = vmatpush1.msra.mxu0 0.0
    %7615 = vmatprep.subr.mxu0 0.0
    %7616 = vmatpush1.msra.mxu0 0.0
    %7617 = vmatprep.subr.mxu0 0.0
    %7618 = vmatpush1.msra.mxu0 0.0
    %7619 = vmatprep.subr.mxu0 0.0
    %7620 = vmatpush1.msra.mxu0 0.0
    %7621 = vmatprep.subr.mxu0 0.0
    %7622 = vmatpush1.msra.mxu0 0.0
    %7623 = vmatprep.subr.mxu0 0.0
    %7624 = vmatpush1.msra.mxu0 0.0
    %7625 = vmatprep.subr.mxu0 0.0
    %7626 = vmatpush1.msra.mxu0 0.0
    %7627 = vmatprep.subr.mxu0 0.0
    %7628 = vmatpush1.msra.mxu0 0.0
    %7629 = vmatprep.subr.mxu0 0.0
    %7630 = vmatpush1.msra.mxu0 0.0
    %7631 = vmatprep.subr.mxu0 0.0
    %7632 = vmatpush1.msra.mxu0 0.0
    %7633 = vmatprep.subr.mxu0 0.0
    %7634 = vmatpush1.msra.mxu0 0.0
    %7635 = vmatprep.subr.mxu0 0.0
    %7636 = vmatpush1.msra.mxu0 0.0
    %7637 = vmatprep.subr.mxu0 0.0
    %7638 = vmatpush1.msra.mxu0 0.0
    %7639 = vmatprep.subr.mxu0 0.0
    %7640 = vmatpush1.msra.mxu0 0.0
    %7641 = vmatprep.subr.mxu0 0.0
    %7642 = vmatpush1.msra.mxu0 0.0
    %7643 = vmatprep.subr.mxu0 0.0
    %7644 = vmatpush1.msra.mxu0 0.0
    %7645 = vmatprep.subr.mxu0 0.0
    %7646 = vmatpush1.msra.mxu0 0.0
    %7647 = vmatprep.subr.mxu0 0.0
    %7648 = vmatpush1.msra.mxu0 0.0
    %7649 = vmatprep.subr.mxu0 0.0
    %7650 = vmatpush1.msra.mxu0 0.0
    %7651 = vmatprep.subr.mxu0 0.0
    %7652 = vmatpush1.msra.mxu0 0.0
    %7653 = vmatprep.subr.mxu0 0.0
    %7654 = vmatpush1.msra.mxu0 0.0
    %7655 = vmatprep.subr.mxu0 0.0
    %7656 = vmatpush1.msra.mxu0 0.0
    %7657 = vmatprep.mubr.f32.mxu0 0.0
    %7658 = vmatmul.mubr.f32.gmra.mrb[0].mxu0 %v6982
    %v7659 = vpop.f32.mrb[0].mxu0
    %v7660 = vadd.f32 0.0, %v7659
    %v7661 = vpop.f32.mrb[0].mxu0
    %v7662 = vadd.f32 0.0, %v7661
    %7663 = vdwg.mxu0
    %v7665 = vsel %vm175, %v7521, 0
    %7667 = vmatprep.subr.mxu0 %v143
    %7668 = vmatpush1.msra.mxu0 %v142
    %7669 = vmatprep.subr.mxu0 %v695
    %7670 = vmatpush1.msra.mxu0 %v692
    %7671 = vmatprep.subr.mxu0 0.0
    %7672 = vmatpush1.msra.mxu0 0.0
    %7673 = vmatprep.subr.mxu0 0.0
    %7674 = vmatpush1.msra.mxu0 0.0
    %7675 = vmatprep.subr.mxu0 0.0
    %7676 = vmatpush1.msra.mxu0 0.0
    %7677 = vmatprep.subr.mxu0 0.0
    %7678 = vmatpush1.msra.mxu0 0.0
    %7679 = vmatprep.subr.mxu0 0.0
    %7680 = vmatpush1.msra.mxu0 0.0
    %7681 = vmatprep.subr.mxu0 0.0
    %7682 = vmatpush1.msra.mxu0 0.0
    %7683 = vmatprep.subr.mxu0 0.0
    %7684 = vmatpush1.msra.mxu0 0.0
    %7685 = vmatprep.subr.mxu0 0.0
    %7686 = vmatpush1.msra.mxu0 0.0
    %7687 = vmatprep.subr.mxu0 0.0
    %7688 = vmatpush1.msra.mxu0 0.0
    %7689 = vmatprep.subr.mxu0 0.0
    %7690 = vmatpush1.msra.mxu0 0.0
    %7691 = vmatprep.subr.mxu0 0.0
    %7692 = vmatpush1.msra.mxu0 0.0
    %7693 = vmatprep.subr.mxu0 0.0
    %7694 = vmatpush1.msra.mxu0 0.0
    %7695 = vmatprep.subr.mxu0 0.0
    %7696 = vmatpush1.msra.mxu0 0.0
    %7697 = vmatprep.subr.mxu0 0.0
    %7698 = vmatpush1.msra.mxu0 0.0
    %7699 = vmatprep.subr.mxu0 0.0
    %7700 = vmatpush1.msra.mxu0 0.0
    %7701 = vmatprep.subr.mxu0 0.0
    %7702 = vmatpush1.msra.mxu0 0.0
    %7703 = vmatprep.subr.mxu0 0.0
    %7704 = vmatpush1.msra.mxu0 0.0
    %7705 = vmatprep.subr.mxu0 0.0
    %7706 = vmatpush1.msra.mxu0 0.0
    %7707 = vmatprep.subr.mxu0 0.0
    %7708 = vmatpush1.msra.mxu0 0.0
    %7709 = vmatprep.subr.mxu0 0.0
    %7710 = vmatpush1.msra.mxu0 0.0
    %7711 = vmatprep.subr.mxu0 0.0
    %7712 = vmatpush1.msra.mxu0 0.0
    %7713 = vmatprep.subr.mxu0 0.0
    %7714 = vmatpush1.msra.mxu0 0.0
    %7715 = vmatprep.subr.mxu0 0.0
    %7716 = vmatpush1.msra.mxu0 0.0
    %7717 = vmatprep.subr.mxu0 0.0
    %7718 = vmatpush1.msra.mxu0 0.0
    %7719 = vmatprep.subr.mxu0 0.0
    %7720 = vmatpush1.msra.mxu0 0.0
    %7721 = vmatprep.subr.mxu0 0.0
    %7722 = vmatpush1.msra.mxu0 0.0
    %7723 = vmatprep.subr.mxu0 0.0
    %7724 = vmatpush1.msra.mxu0 0.0
    %7725 = vmatprep.subr.mxu0 0.0
    %7726 = vmatpush1.msra.mxu0 0.0
    %7727 = vmatprep.subr.mxu0 0.0
    %7728 = vmatpush1.msra.mxu0 0.0
    %7729 = vmatprep.subr.mxu0 0.0
    %7730 = vmatpush1.msra.mxu0 0.0
    %7731 = vmatprep.mubr.f32.mxu0 0.0
    %7732 = vmatmul.mubr.f32.gmra.mrb[0].mxu0 %v7665
    %v7733 = vpop.f32.mrb[0].mxu0
    %v7734 = vadd.f32 %v7589, %v7733
    %v7735 = vpop.f32.mrb[0].mxu0
    %v7736 = vadd.f32 %v7591, %v7735
    %7737 = vdwg.mxu0
    %7738 = vmatprep.subr.mxu0 %v145
    %7739 = vmatpush1.msra.mxu0 %v144
    %7740 = vmatprep.subr.mxu0 %v701
    %7741 = vmatpush1.msra.mxu0 %v698
    %7742 = vmatprep.subr.mxu0 0.0
    %7743 = vmatpush1.msra.mxu0 0.0
    %7744 = vmatprep.subr.mxu0 0.0
    %7745 = vmatpush1.msra.mxu0 0.0
    %7746 = vmatprep.subr.mxu0 0.0
    %7747 = vmatpush1.msra.mxu0 0.0
    %7748 = vmatprep.subr.mxu0 0.0
    %7749 = vmatpush1.msra.mxu0 0.0
    %7750 = vmatprep.subr.mxu0 0.0
    %7751 = vmatpush1.msra.mxu0 0.0
    %7752 = vmatprep.subr.mxu0 0.0
    %7753 = vmatpush1.msra.mxu0 0.0
    %7754 = vmatprep.subr.mxu0 0.0
    %7755 = vmatpush1.msra.mxu0 0.0
    %7756 = vmatprep.subr.mxu0 0.0
    %7757 = vmatpush1.msra.mxu0 0.0
    %7758 = vmatprep.subr.mxu0 0.0
    %7759 = vmatpush1.msra.mxu0 0.0
    %7760 = vmatprep.subr.mxu0 0.0
    %7761 = vmatpush1.msra.mxu0 0.0
    %7762 = vmatprep.subr.mxu0 0.0
    %7763 = vmatpush1.msra.mxu0 0.0
    %7764 = vmatprep.subr.mxu0 0.0
    %7765 = vmatpush1.msra.mxu0 0.0
    %7766 = vmatprep.subr.mxu0 0.0
    %7767 = vmatpush1.msra.mxu0 0.0
    %7768 = vmatprep.subr.mxu0 0.0
    %7769 = vmatpush1.msra.mxu0 0.0
    %7770 = vmatprep.subr.mxu0 0.0
    %7771 = vmatpush1.msra.mxu0 0.0
    %7772 = vmatprep.subr.mxu0 0.0
    %7773 = vmatpush1.msra.mxu0 0.0
    %7774 = vmatprep.subr.mxu0 0.0
    %7775 = vmatpush1.msra.mxu0 0.0
    %7776 = vmatprep.subr.mxu0 0.0
    %7777 = vmatpush1.msra.mxu0 0.0
    %7778 = vmatprep.subr.mxu0 0.0
    %7779 = vmatpush1.msra.mxu0 0.0
    %7780 = vmatprep.subr.mxu0 0.0
    %7781 = vmatpush1.msra.mxu0 0.0
    %7782 = vmatprep.subr.mxu0 0.0
    %7783 = vmatpush1.msra.mxu0 0.0
    %7784 = vmatprep.subr.mxu0 0.0
    %7785 = vmatpush1.msra.mxu0 0.0
    %7786 = vmatprep.subr.mxu0 0.0
    %7787 = vmatpush1.msra.mxu0 0.0
    %7788 = vmatprep.subr.mxu0 0.0
    %7789 = vmatpush1.msra.mxu0 0.0
    %7790 = vmatprep.subr.mxu0 0.0
    %7791 = vmatpush1.msra.mxu0 0.0
    %7792 = vmatprep.subr.mxu0 0.0
    %7793 = vmatpush1.msra.mxu0 0.0
    %7794 = vmatprep.subr.mxu0 0.0
    %7795 = vmatpush1.msra.mxu0 0.0
    %7796 = vmatprep.subr.mxu0 0.0
    %7797 = vmatpush1.msra.mxu0 0.0
    %7798 = vmatprep.subr.mxu0 0.0
    %7799 = vmatpush1.msra.mxu0 0.0
    %7800 = vmatprep.subr.mxu0 0.0
    %7801 = vmatpush1.msra.mxu0 0.0
    %7802 = vmatprep.mubr.f32.mxu0 0.0
    %7803 = vmatmul.mubr.f32.gmra.mrb[0].mxu0 %v7665
    %v7804 = vpop.f32.mrb[0].mxu0
    %v7805 = vadd.f32 %v7660, %v7804
    %v7806 = vpop.f32.mrb[0].mxu0
    %v7807 = vadd.f32 %v7662, %v7806
    %7808 = vdwg.mxu0
    %v7809 = vadd.f32 %v7734, %v849
    %v7810 = vadd.f32 %v7736, %v853
    %v7811 = vadd.f32 %v7805, %v857
    %v7812 = vadd.f32 %v7807, %v861
    %v7813 = vtanh.pop %v7809
    %v7814 = vtanh.pop %v7810
    %v7815 = vadd.f32 %v7811, %v7812
    %v7816 = vxor.u32 %v7815, 2147483648
    %v7817 = vmul.f32 %v7816, 1.442695
    %v7818 = vpow.pop %v7817
    %v7819 = vadd.f32 %v7818, 1.0
    %v7820 = vrcp.pop %v7819
    %v7821 = vmul.f32 1.0, %v7820
    %v7822 = vsub.f32 %v7814, %v7813
    %v7823 = vmul.f32 %v7821, %v7822
    %v7824 = vadd.f32 %v7813, %v7823
    %7825 = vmatprep.subr.mxu0 %v168
    %7826 = vmatpush1.msra.mxu0 %v167
    %7827 = vmatprep.subr.mxu0 0.0
    %7828 = vmatpush1.msra.mxu0 0.0
    %7829 = vmatprep.subr.mxu0 0.0
    %7830 = vmatpush1.msra.mxu0 0.0
    %7831 = vmatprep.subr.mxu0 0.0
    %7832 = vmatpush1.msra.mxu0 0.0
    %7833 = vmatprep.subr.mxu0 0.0
    %7834 = vmatpush1.msra.mxu0 0.0
    %7835 = vmatprep.subr.mxu0 0.0
    %7836 = vmatpush1.msra.mxu0 0.0
    %7837 = vmatprep.subr.mxu0 0.0
    %7838 = vmatpush1.msra.mxu0 0.0
    %7839 = vmatprep.subr.mxu0 0.0
    %7840 = vmatpush1.msra.mxu0 0.0
    %7841 = vmatprep.subr.mxu0 0.0
    %7842 = vmatpush1.msra.mxu0 0.0
    %7843 = vmatprep.subr.mxu0 0.0
    %7844 = vmatpush1.msra.mxu0 0.0
    %7845 = vmatprep.subr.mxu0 0.0
    %7846 = vmatpush1.msra.mxu0 0.0
    %7847 = vmatprep.subr.mxu0 0.0
    %7848 = vmatpush1.msra.mxu0 0.0
    %7849 = vmatprep.subr.mxu0 0.0
    %7850 = vmatpush1.msra.mxu0 0.0
    %7851 = vmatprep.subr.mxu0 0.0
    %7852 = vmatpush1.msra.mxu0 0.0
    %7853 = vmatprep.subr.mxu0 0.0
    %7854 = vmatpush1.msra.mxu0 0.0
    %7855 = vmatprep.subr.mxu0 0.0
    %7856 = vmatpush1.msra.mxu0 0.0
    %7857 = vmatprep.subr.mxu0 0.0
    %7858 = vmatpush1.msra.mxu0 0.0
    %7859 = vmatprep.subr.mxu0 0.0
    %7860 = vmatpush1.msra.mxu0 0.0
    %7861 = vmatprep.subr.mxu0 0.0
    %7862 = vmatpush1.msra.mxu0 0.0
    %7863 = vmatprep.subr.mxu0 0.0
    %7864 = vmatpush1.msra.mxu0 0.0
    %7865 = vmatprep.subr.mxu0 0.0
    %7866 = vmatpush1.msra.mxu0 0.0
    %7867 = vmatprep.subr.mxu0 0.0
    %7868 = vmatpush1.msra.mxu0 0.0
    %7869 = vmatprep.subr.mxu0 0.0
    %7870 = vmatpush1.msra.mxu0 0.0
    %7871 = vmatprep.subr.mxu0 0.0
    %7872 = vmatpush1.msra.mxu0 0.0
    %7873 = vmatprep.subr.mxu0 0.0
    %7874 = vmatpush1.msra.mxu0 0.0
    %7875 = vmatprep.subr.mxu0 0.0
    %7876 = vmatpush1.msra.mxu0 0.0
    %7877 = vmatprep.subr.mxu0 0.0
    %7878 = vmatpush1.msra.mxu0 0.0
    %7879 = vmatprep.subr.mxu0 0.0
    %7880 = vmatpush1.msra.mxu0 0.0
    %7881 = vmatprep.subr.mxu0 0.0
    %7882 = vmatpush1.msra.mxu0 0.0
    %7883 = vmatprep.subr.mxu0 0.0
    %7884 = vmatpush1.msra.mxu0 0.0
    %7885 = vmatprep.subr.mxu0 0.0
    %7886 = vmatpush1.msra.mxu0 0.0
    %7887 = vmatprep.subr.mxu0 0.0
    %7888 = vmatpush1.msra.mxu0 0.0
    %7889 = vmatprep.mubr.f32.mxu0 0.0
    %7890 = vmatmul.mubr.f32.gmra.mrb[0].mxu0 %v7143
    %v7891 = vpop.f32.mrb[0].mxu0
    %v7892 = vadd.f32 0.0, %v7891
    %v7893 = vpop.f32.mrb[0].mxu0
    %v7894 = vadd.f32 0.0, %v7893
    %7895 = vdwg.mxu0
    %7896 = vmatprep.subr.mxu0 %v170
    %7897 = vmatpush1.msra.mxu0 %v169
    %7898 = vmatprep.subr.mxu0 0.0
    %7899 = vmatpush1.msra.mxu0 0.0
    %7900 = vmatprep.subr.mxu0 0.0
    %7901 = vmatpush1.msra.mxu0 0.0
    %7902 = vmatprep.subr.mxu0 0.0
    %7903 = vmatpush1.msra.mxu0 0.0
    %7904 = vmatprep.subr.mxu0 0.0
    %7905 = vmatpush1.msra.mxu0 0.0
    %7906 = vmatprep.subr.mxu0 0.0
    %7907 = vmatpush1.msra.mxu0 0.0
    %7908 = vmatprep.subr.mxu0 0.0
    %7909 = vmatpush1.msra.mxu0 0.0
    %7910 = vmatprep.subr.mxu0 0.0
    %7911 = vmatpush1.msra.mxu0 0.0
    %7912 = vmatprep.subr.mxu0 0.0
    %7913 = vmatpush1.msra.mxu0 0.0
    %7914 = vmatprep.subr.mxu0 0.0
    %7915 = vmatpush1.msra.mxu0 0.0
    %7916 = vmatprep.subr.mxu0 0.0
    %7917 = vmatpush1.msra.mxu0 0.0
    %7918 = vmatprep.subr.mxu0 0.0
    %7919 = vmatpush1.msra.mxu0 0.0
    %7920 = vmatprep.subr.mxu0 0.0
    %7921 = vmatpush1.msra.mxu0 0.0
    %7922 = vmatprep.subr.mxu0 0.0
    %7923 = vmatpush1.msra.mxu0 0.0
    %7924 = vmatprep.subr.mxu0 0.0
    %7925 = vmatpush1.msra.mxu0 0.0
    %7926 = vmatprep.subr.mxu0 0.0
    %7927 = vmatpush1.msra.mxu0 0.0
    %7928 = vmatprep.subr.mxu0 0.0
    %7929 = vmatpush1.msra.mxu0 0.0
    %7930 = vmatprep.subr.mxu0 0.0
    %7931 = vmatpush1.msra.mxu0 0.0
    %7932 = vmatprep.subr.mxu0 0.0
    %7933 = vmatpush1.msra.mxu0 0.0
    %7934 = vmatprep.subr.mxu0 0.0
    %7935 = vmatpush1.msra.mxu0 0.0
    %7936 = vmatprep.subr.mxu0 0.0
    %7937 = vmatpush1.msra.mxu0 0.0
    %7938 = vmatprep.subr.mxu0 0.0
    %7939 = vmatpush1.msra.mxu0 0.0
    %7940 = vmatprep.subr.mxu0 0.0
    %7941 = vmatpush1.msra.mxu0 0.0
    %7942 = vmatprep.subr.mxu0 0.0
    %7943 = vmatpush1.msra.mxu0 0.0
    %7944 = vmatprep.subr.mxu0 0.0
    %7945 = vmatpush1.msra.mxu0 0.0
    %7946 = vmatprep.subr.mxu0 0.0
    %7947 = vmatpush1.msra.mxu0 0.0
    %7948 = vmatprep.subr.mxu0 0.0
    %7949 = vmatpush1.msra.mxu0 0.0
    %7950 = vmatprep.subr.mxu0 0.0
    %7951 = vmatpush1.msra.mxu0 0.0
    %7952 = vmatprep.subr.mxu0 0.0
    %7953 = vmatpush1.msra.mxu0 0.0
    %7954 = vmatprep.subr.mxu0 0.0
    %7955 = vmatpush1.msra.mxu0 0.0
    %7956 = vmatprep.subr.mxu0 0.0
    %7957 = vmatpush1.msra.mxu0 0.0
    %7958 = vmatprep.subr.mxu0 0.0
    %7959 = vmatpush1.msra.mxu0 0.0
    %7960 = vmatprep.mubr.f32.mxu0 0.0
    %7961 = vmatmul.mubr.f32.gmra.mrb[0].mxu0 %v7143
    %v7962 = vpop.f32.mrb[0].mxu0
    %v7963 = vadd.f32 0.0, %v7962
    %v7964 = vpop.f32.mrb[0].mxu0
    %v7965 = vadd.f32 0.0, %v7964
    %7966 = vdwg.mxu0
    %v7968 = vsel %vm530, %v7824, 0
    %7970 = vmatprep.subr.mxu0 %v160
    %7971 = vmatpush1.msra.mxu0 %v159
    %7972 = vmatprep.subr.mxu0 %v1034
    %7973 = vmatpush1.msra.mxu0 %v1031
    %7974 = vmatprep.subr.mxu0 0.0
    %7975 = vmatpush1.msra.mxu0 0.0
    %7976 = vmatprep.subr.mxu0 0.0
    %7977 = vmatpush1.msra.mxu0 0.0
    %7978 = vmatprep.subr.mxu0 0.0
    %7979 = vmatpush1.msra.mxu0 0.0
    %7980 = vmatprep.subr.mxu0 0.0
    %7981 = vmatpush1.msra.mxu0 0.0
    %7982 = vmatprep.subr.mxu0 0.0
    %7983 = vmatpush1.msra.mxu0 0.0
    %7984 = vmatprep.subr.mxu0 0.0
    %7985 = vmatpush1.msra.mxu0 0.0
    %7986 = vmatprep.subr.mxu0 0.0
    %7987 = vmatpush1.msra.mxu0 0.0
    %7988 = vmatprep.subr.mxu0 0.0
    %7989 = vmatpush1.msra.mxu0 0.0
    %7990 = vmatprep.subr.mxu0 0.0
    %7991 = vmatpush1.msra.mxu0 0.0
    %7992 = vmatprep.subr.mxu0 0.0
    %7993 = vmatpush1.msra.mxu0 0.0
    %7994 = vmatprep.subr.mxu0 0.0
    %7995 = vmatpush1.msra.mxu0 0.0
    %7996 = vmatprep.subr.mxu0 0.0
    %7997 = vmatpush1.msra.mxu0 0.0
    %7998 = vmatprep.subr.mxu0 0.0
    %7999 = vmatpush1.msra.mxu0 0.0
    %8000 = vmatprep.subr.mxu0 0.0
    %8001 = vmatpush1.msra.mxu0 0.0
    %8002 = vmatprep.subr.mxu0 0.0
    %8003 = vmatpush1.msra.mxu0 0.0
    %8004 = vmatprep.subr.mxu0 0.0
    %8005 = vmatpush1.msra.mxu0 0.0
    %8006 = vmatprep.subr.mxu0 0.0
    %8007 = vmatpush1.msra.mxu0 0.0
    %8008 = vmatprep.subr.mxu0 0.0
    %8009 = vmatpush1.msra.mxu0 0.0
    %8010 = vmatprep.subr.mxu0 0.0
    %8011 = vmatpush1.msra.mxu0 0.0
    %8012 = vmatprep.subr.mxu0 0.0
    %8013 = vmatpush1.msra.mxu0 0.0
    %8014 = vmatprep.subr.mxu0 0.0
    %8015 = vmatpush1.msra.mxu0 0.0
    %8016 = vmatprep.subr.mxu0 0.0
    %8017 = vmatpush1.msra.mxu0 0.0
    %8018 = vmatprep.subr.mxu0 0.0
    %8019 = vmatpush1.msra.mxu0 0.0
    %8020 = vmatprep.subr.mxu0 0.0
    %8021 = vmatpush1.msra.mxu0 0.0
    %8022 = vmatprep.subr.mxu0 0.0
    %8023 = vmatpush1.msra.mxu0 0.0
    %8024 = vmatprep.subr.mxu0 0.0
    %8025 = vmatpush1.msra.mxu0 0.0
    %8026 = vmatprep.subr.mxu0 0.0
    %8027 = vmatpush1.msra.mxu0 0.0
    %8028 = vmatprep.subr.mxu0 0.0
    %8029 = vmatpush1.msra.mxu0 0.0
    %8030 = vmatprep.subr.mxu0 0.0
    %8031 = vmatpush1.msra.mxu0 0.0
    %8032 = vmatprep.subr.mxu0 0.0
    %8033 = vmatpush1.msra.mxu0 0.0
    %8034 = vmatprep.mubr.f32.mxu0 0.0
    %8035 = vmatmul.mubr.f32.gmra.mrb[0].mxu0 %v7968
    %v8036 = vpop.f32.mrb[0].mxu0
    %v8037 = vadd.f32 %v7892, %v8036
    %v8038 = vpop.f32.mrb[0].mxu0
    %v8039 = vadd.f32 %v7894, %v8038
    %8040 = vdwg.mxu0
    %8041 = vmatprep.subr.mxu0 %v162
    %8042 = vmatpush1.msra.mxu0 %v161
    %8043 = vmatprep.subr.mxu0 %v1040
    %8044 = vmatpush1.msra.mxu0 %v1037
    %8045 = vmatprep.subr.mxu0 0.0
    %8046 = vmatpush1.msra.mxu0 0.0
    %8047 = vmatprep.subr.mxu0 0.0
    %8048 = vmatpush1.msra.mxu0 0.0
    %8049 = vmatprep.subr.mxu0 0.0
    %8050 = vmatpush1.msra.mxu0 0.0
    %8051 = vmatprep.subr.mxu0 0.0
    %8052 = vmatpush1.msra.mxu0 0.0
    %8053 = vmatprep.subr.mxu0 0.0
    %8054 = vmatpush1.msra.mxu0 0.0
    %8055 = vmatprep.subr.mxu0 0.0
    %8056 = vmatpush1.msra.mxu0 0.0
    %8057 = vmatprep.subr.mxu0 0.0
    %8058 = vmatpush1.msra.mxu0 0.0
    %8059 = vmatprep.subr.mxu0 0.0
    %8060 = vmatpush1.msra.mxu0 0.0
    %8061 = vmatprep.subr.mxu0 0.0
    %8062 = vmatpush1.msra.mxu0 0.0
    %8063 = vmatprep.subr.mxu0 0.0
    %8064 = vmatpush1.msra.mxu0 0.0
    %8065 = vmatprep.subr.mxu0 0.0
    %8066 = vmatpush1.msra.mxu0 0.0
    %8067 = vmatprep.subr.mxu0 0.0
    %8068 = vmatpush1.msra.mxu0 0.0
    %8069 = vmatprep.subr.mxu0 0.0
    %8070 = vmatpush1.msra.mxu0 0.0
    %8071 = vmatprep.subr.mxu0 0.0
    %8072 = vmatpush1.msra.mxu0 0.0
    %8073 = vmatprep.subr.mxu0 0.0
    %8074 = vmatpush1.msra.mxu0 0.0
    %8075 = vmatprep.subr.mxu0 0.0
    %8076 = vmatpush1.msra.mxu0 0.0
    %8077 = vmatprep.subr.mxu0 0.0
    %8078 = vmatpush1.msra.mxu0 0.0
    %8079 = vmatprep.subr.mxu0 0.0
    %8080 = vmatpush1.msra.mxu0 0.0
    %8081 = vmatprep.subr.mxu0 0.0
    %8082 = vmatpush1.msra.mxu0 0.0
    %8083 = vmatprep.subr.mxu0 0.0
    %8084 = vmatpush1.msra.mxu0 0.0
    %8085 = vmatprep.subr.mxu0 0.0
    %8086 = vmatpush1.msra.mxu0 0.0
    %8087 = vmatprep.subr.mxu0 0.0
    %8088 = vmatpush1.msra.mxu0 0.0
    %8089 = vmatprep.subr.mxu0 0.0
    %8090 = vmatpush1.msra.mxu0 0.0
    %8091 = vmatprep.subr.mxu0 0.0
    %8092 = vmatpush1.msra.mxu0 0.0
    %8093 = vmatprep.subr.mxu0 0.0
    %8094 = vmatpush1.msra.mxu0 0.0
    %8095 = vmatprep.subr.mxu0 0.0
    %8096 = vmatpush1.msra.mxu0 0.0
    %8097 = vmatprep.subr.mxu0 0.0
    %8098 = vmatpush1.msra.mxu0 0.0
    %8099 = vmatprep.subr.mxu0 0.0
    %8100 = vmatpush1.msra.mxu0 0.0
    %8101 = vmatprep.subr.mxu0 0.0
    %8102 = vmatpush1.msra.mxu0 0.0
    %8103 = vmatprep.subr.mxu0 0.0
    %8104 = vmatpush1.msra.mxu0 0.0
    %8105 = vmatprep.mubr.f32.mxu0 0.0
    %8106 = vmatmul.mubr.f32.gmra.mrb[0].mxu0 %v7968
    %v8107 = vpop.f32.mrb[0].mxu0
    %v8108 = vadd.f32 %v7963, %v8107
    %v8109 = vpop.f32.mrb[0].mxu0
    %v8110 = vadd.f32 %v7965, %v8109
    %8111 = vdwg.mxu0
    %v8112 = vadd.f32 %v8037, %v1188
    %v8113 = vadd.f32 %v8039, %v1192
    %v8114 = vadd.f32 %v8108, %v1196
    %v8115 = vadd.f32 %v8110, %v1200
    %v8116 = vtanh.pop %v8112
    %v8117 = vtanh.pop %v8113
    %v8118 = vadd.f32 %v8114, %v8115
    %v8119 = vxor.u32 %v8118, 2147483648
    %v8120 = vmul.f32 %v8119, 1.442695
    %v8121 = vpow.pop %v8120
    %v8122 = vadd.f32 %v8121, 1.0
    %v8123 = vrcp.pop %v8122
    %v8124 = vmul.f32 1.0, %v8123
    %v8125 = vsub.f32 %v8117, %v8116
    %v8126 = vmul.f32 %v8124, %v8125
    %v8127 = vadd.f32 %v8116, %v8126
    %v8129 = vsel %vm882, %v8127, 0
    %8131 = vmatprep.subr.mxu0 0.0
    %8132 = vmatpush1.msra.mxu0 %v172
    %8133 = vmatprep.subr.mxu0 0.0
    %8134 = vmatpush1.msra.mxu0 0.0
    %8135 = vmatprep.subr.mxu0 0.0
    %8136 = vmatpush1.msra.mxu0 0.0
    %8137 = vmatprep.subr.mxu0 0.0
    %8138 = vmatpush1.msra.mxu0 0.0
    %8139 = vmatprep.subr.mxu0 0.0
    %8140 = vmatpush1.msra.mxu0 0.0
    %8141 = vmatprep.subr.mxu0 0.0
    %8142 = vmatpush1.msra.mxu0 0.0
    %8143 = vmatprep.subr.mxu0 0.0
    %8144 = vmatpush1.msra.mxu0 0.0
    %8145 = vmatprep.subr.mxu0 0.0
    %8146 = vmatpush1.msra.mxu0 0.0
    %8147 = vmatprep.subr.mxu0 0.0
    %8148 = vmatpush1.msra.mxu0 0.0
    %8149 = vmatprep.subr.mxu0 0.0
    %8150 = vmatpush1.msra.mxu0 0.0
    %8151 = vmatprep.subr.mxu0 0.0
    %8152 = vmatpush1.msra.mxu0 0.0
    %8153 = vmatprep.subr.mxu0 0.0
    %8154 = vmatpush1.msra.mxu0 0.0
    %8155 = vmatprep.subr.mxu0 0.0
    %8156 = vmatpush1.msra.mxu0 0.0
    %8157 = vmatprep.subr.mxu0 0.0
    %8158 = vmatpush1.msra.mxu0 0.0
    %8159 = vmatprep.subr.mxu0 0.0
    %8160 = vmatpush1.msra.mxu0 0.0
    %8161 = vmatprep.subr.mxu0 0.0
    %8162 = vmatpush1.msra.mxu0 0.0
    %8163 = vmatprep.subr.mxu0 0.0
    %8164 = vmatpush1.msra.mxu0 0.0
    %8165 = vmatprep.subr.mxu0 0.0
    %8166 = vmatpush1.msra.mxu0 0.0
    %8167 = vmatprep.subr.mxu0 0.0
    %8168 = vmatpush1.msra.mxu0 0.0
    %8169 = vmatprep.subr.mxu0 0.0
    %8170 = vmatpush1.msra.mxu0 0.0
    %8171 = vmatprep.subr.mxu0 0.0
    %8172 = vmatpush1.msra.mxu0 0.0
    %8173 = vmatprep.subr.mxu0 0.0
    %8174 = vmatpush1.msra.mxu0 0.0
    %8175 = vmatprep.subr.mxu0 0.0
    %8176 = vmatpush1.msra.mxu0 0.0
    %8177 = vmatprep.subr.mxu0 0.0
    %8178 = vmatpush1.msra.mxu0 0.0
    %8179 = vmatprep.subr.mxu0 0.0
    %8180 = vmatpush1.msra.mxu0 0.0
    %8181 = vmatprep.subr.mxu0 0.0
    %8182 = vmatpush1.msra.mxu0 0.0
    %8183 = vmatprep.subr.mxu0 0.0
    %8184 = vmatpush1.msra.mxu0 0.0
    %8185 = vmatprep.subr.mxu0 0.0
    %8186 = vmatpush1.msra.mxu0 0.0
    %8187 = vmatprep.subr.mxu0 0.0
    %8188 = vmatpush1.msra.mxu0 0.0
    %8189 = vmatprep.subr.mxu0 0.0
    %8190 = vmatpush1.msra.mxu0 0.0
    %8191 = vmatprep.subr.mxu0 0.0
    %8192 = vmatpush1.msra.mxu0 0.0
    %8193 = vmatprep.subr.mxu0 0.0
    %8194 = vmatpush1.msra.mxu0 0.0
    %8195 = vmatprep.mubr.f32.mxu0 0.0
    %8196 = vmatmul.mubr.f32.gmra.mrb[0].mxu0 %v8129
    %v8197 = vpop.f32.mrb[0].mxu0
    %v8198 = vadd.f32 %v1225, %v8197
    %v8199 = vpop.f32.mrb[0].mxu0
    %8200 = vdwg.mxu0
    %s8201 = scalar_lea.vmem [#allocation14], 14
    %8202 = vst [vmem:[%s8201] sm:$0x3] %v8198
    // Predicated region
    $region78: #{tpu_custom_call.1} parent=1 // pred_check
      _
    $region79: #{tpu_custom_call.1} parent=1 // pred_check_branch
      %8204 = sbr.rel (0) target = $region81
    $region80: #{tpu_custom_call.1} parent=1 // pred_region
      %s8206 = ssub.s32 256, 256
      %8207 = vsyncadd [#allocation4], %s8206
      %s8208 = sshll.u32 [#allocation14], 4
      %s8209 = int_to_ptr.vmem [resolvable:$true] %s8208
      %8214 = dma.vmem_to_hbm [thread:$0]  %s8209, 256, %s12, [#allocation4], 32, 32, 2
    $region81: #{tpu_custom_call.1} parent=1 // pred_fallthru
      _
    // Predicated region
    $region82: #{tpu_custom_call.1} parent=1 // pred_check
      _
    $region83: #{tpu_custom_call.1} parent=1 // pred_check_branch
      %8216 = sbr.rel (0) target = $region85
    $region84: #{tpu_custom_call.1} parent=1 // pred_region
      %8217 = dma.done [#allocation4], 256
    $region85: #{tpu_custom_call.1} parent=1 // pred_fallthru
      _
    %8218 = vsyncpa [#allocation3], 1
    %8219 = vsyncpa [#allocation6], 1
    %8220 = vsyncpa [#allocation9], 1
    %8221 = vsyncpa [#allocation12], 1
    %8222 = vsyncpa [#allocation4], 1

</llo_original>
